<compile_context>
chip_gen: v5e
topology: v5e:2x2
jax: 0.10.0
libtpu: 0.0.40
codegen_flags: <defaults>
</compile_context>

<pallas_src>
import jax
import jax.numpy as jnp
from jax.experimental import pallas as pl
from jax.experimental.pallas import tpu as pltpu

# (in_features, out_features) of every Linear layer, in forward order.
LAYER_DIMS = [
    (30, 200),    # layer1_mean
    (200, 400),   # layer2_mean
    (400, 800),   # layer3_mean
    (800, 800),   # layer4_mean
    (800, 800),   # layer5_mean
    (800, 400),   # layer6_mean
    (400, 200),   # layer7_mean
    (200, 6),     # output_layer_mean
    (200, 6),     # output_layer_var
]

NEG_SLOPE = 0.01   # F.leaky_relu default negative_slope
HEAD_PAD = 128     # fused head output padded to one full vreg lane width
N_OUT = 6          # true width of each head


def _round_up(x, m):
    return ((x + m - 1) // m) * m


def _leaky_relu(v):
    return jnp.where(v > 0, v, NEG_SLOPE * v)


def encoder_kernel(x_ref,
                   w1, b1, w2, b2, w3, b3, w4, b4, w5, b5, w6, b6, w7, b7,
                   wh, bh,
                   out_ref):
    """One batch tile: 7 hidden layers (leaky_relu) + fused, lane-padded head."""
    h = x_ref[...]  # f32 (TILE_B, 30)
    for w, b in ((w1, b1), (w2, b2), (w3, b3), (w4, b4),
                 (w5, b5), (w6, b6), (w7, b7)):
        # bf16 operands into the MXU, f32 accumulation, f32 bias add.
        y = jnp.dot(h.astype(jnp.bfloat16), w[...],
                    preferred_element_type=jnp.float32) + b[...]
        h = _leaky_relu(y)

    # Fused head: (TILE_B, 200) @ (200, 128) -> (TILE_B, 128).
    out = jnp.dot(h.astype(jnp.bfloat16), wh[...],
                  preferred_element_type=jnp.float32) + bh[...]

    # Apply ReLU only to the var columns (lanes >= N_OUT); padding is zero so
    # it is unaffected.  Mean columns (lanes < N_OUT) pass through untouched.
    lane = jax.lax.broadcasted_iota(jnp.int32, out.shape, dimension=1)
    out_ref[...] = jnp.where(lane >= N_OUT, jnp.maximum(out, 0.0), out)


def prepare_params(params):
    """f32 (W (in,out), b (1,out)) list -> bf16-weight, head-fused/padded flat args."""
    flat = []
    for w, b in params[:7]:
        flat.append(w.astype(jnp.bfloat16))
        flat.append(b.astype(jnp.float32))
    # Fuse the two heads and pad the output dim to HEAD_PAD lanes with zeros.
    w_head = jnp.concatenate([params[7][0], params[8][0]], axis=1)   # (200, 12)
    b_head = jnp.concatenate([params[7][1], params[8][1]], axis=1)   # (1, 12)
    w_head = jnp.pad(w_head, ((0, 0), (0, HEAD_PAD - w_head.shape[1])))
    b_head = jnp.pad(b_head, ((0, 0), (0, HEAD_PAD - b_head.shape[1])))
    flat.append(w_head.astype(jnp.bfloat16))
    flat.append(b_head.astype(jnp.float32))
    return flat


def encoder_forward(x, flat_params, *, tile_b=128):
    """x: (B, 30) f32. flat_params: output of prepare_params. Returns (mean, var)."""
    B, F = x.shape
    # Pick an (8-multiple) batch tile, pad the batch up to a multiple of it.
    tile_b = int(min(tile_b, _round_up(max(B, 8), 8)))
    tile_b = _round_up(tile_b, 8)
    Bp = _round_up(B, tile_b)
    if Bp != B:
        x = jnp.pad(x, ((0, Bp - B), (0, 0)))
    grid = (pl.cdiv(Bp, tile_b),)

    x_spec = pl.BlockSpec((tile_b, F), lambda i: (i, 0))
    # Constant block index -> weights/biases DMA'd once, VMEM-resident across steps.
    param_specs = [pl.BlockSpec(p.shape, lambda i: (0, 0)) for p in flat_params]
    out_spec = pl.BlockSpec((tile_b, HEAD_PAD), lambda i: (i, 0))

    flops = 2 * Bp * (sum(fin * fout for fin, fout in LAYER_DIMS[:7])
                      + 200 * HEAD_PAD)
    param_bytes = sum(int(p.size) * p.dtype.itemsize for p in flat_params)
    bytes_accessed = param_bytes + int(x.size) * 4 + Bp * HEAD_PAD * 4
    cost = pl.CostEstimate(flops=flops, transcendentals=0,
                           bytes_accessed=bytes_accessed)

    out = pl.pallas_call(
        encoder_kernel,
        out_shape=jax.ShapeDtypeStruct((Bp, HEAD_PAD), jnp.float32),
        grid=grid,
        in_specs=[x_spec] + param_specs,
        out_specs=out_spec,
        compiler_params=pltpu.CompilerParams(
            dimension_semantics=("parallel",),
            vmem_limit_bytes=48 * 1024 * 1024,
        ),
        cost_estimate=cost,
    )(x, *flat_params)

    mean = out[:B, :N_OUT]
    var = out[:B, N_OUT:2 * N_OUT]
    return mean, var


def init_params(key):
    """Deterministic synthetic parameters (PyTorch-Linear-like uniform init), f32."""
    params = []
    for i, (fin, fout) in enumerate(LAYER_DIMS):
        kw, kb = jax.random.split(jax.random.fold_in(key, i))
        bound = 1.0 / jnp.sqrt(jnp.float32(fin))
        w = jax.random.uniform(kw, (fin, fout), jnp.float32, -bound, bound)
        b = jax.random.uniform(kb, (1, fout), jnp.float32, -bound, bound)
        params.append((w, b))
    return params


def encoder_reference_f32(x, params):
    """Pure-JAX f32 reference matching the PyTorch forward exactly."""
    h = x
    for w, b in params[:7]:
        h = _leaky_relu(h @ w + b)
    mean = h @ params[7][0] + params[7][1]
    var = jnp.maximum(h @ params[8][0] + params[8][1], 0.0)
    return mean, var


def encoder_reference_bf16(x, params):
    """Pure-JAX reference mimicking the kernel's bf16-weight / f32-accumulate math."""
    h = x
    for w, b in params[:7]:
        y = jnp.dot(h.astype(jnp.bfloat16), w.astype(jnp.bfloat16),
                    preferred_element_type=jnp.float32) + b
        h = _leaky_relu(y)
    wh = jnp.concatenate([params[7][0], params[8][0]], axis=1).astype(jnp.bfloat16)
    bh = jnp.concatenate([params[7][1], params[8][1]], axis=1)
    out = jnp.dot(h.astype(jnp.bfloat16), wh,
                  preferred_element_type=jnp.float32) + bh
    return out[:, :N_OUT], jnp.maximum(out[:, N_OUT:], 0.0)


if __name__ == "__main__":
    key = jax.random.PRNGKey(0)
    k_x, k_p = jax.random.split(key)

    B = 16
    x = jax.random.normal(k_x, (B, 30), jnp.float32)
    params = init_params(k_p)
    flat_params = prepare_params(params)

    # tile_b=8 -> 2 grid steps at B=16: exercises the batch pipeline while the
    # weights stay VMEM-resident (constant index_map).
    mean, var = encoder_forward(x, flat_params, tile_b=8)
    jax.block_until_ready((mean, var))

    assert mean.shape == (B, N_OUT) and var.shape == (B, N_OUT)

    # Tight check against a reference doing the same bf16-weight math.
    mean_bf, var_bf = encoder_reference_bf16(x, params)
    assert jnp.allclose(mean, mean_bf, atol=2e-2, rtol=2e-2)
    assert jnp.allclose(var, var_bf, atol=2e-2, rtol=2e-2)

    # Loose check against the exact PyTorch (f32) semantics.
    mean_f32, var_f32 = encoder_reference_f32(x, params)
    assert jnp.allclose(mean, mean_f32, atol=1e-1, rtol=1e-1)
    assert jnp.allclose(var, var_f32, atol=1e-1, rtol=1e-1)

    assert bool(jnp.all(var >= 0.0))

    print("KERNEL_OK")
</pallas_src>

<mosaic_0001>
module attributes {stable_mosaic.version = 11 : i64} {
  func.func @encoder_kernel(%arg0: i32, %arg1: memref<8x30xf32, #tpu.memory_space<vmem>>, %arg2: memref<30x200xbf16, #tpu.memory_space<vmem>>, %arg3: memref<1x200xf32, #tpu.memory_space<vmem>>, %arg4: memref<200x400xbf16, #tpu.memory_space<vmem>>, %arg5: memref<1x400xf32, #tpu.memory_space<vmem>>, %arg6: memref<400x800xbf16, #tpu.memory_space<vmem>>, %arg7: memref<1x800xf32, #tpu.memory_space<vmem>>, %arg8: memref<800x800xbf16, #tpu.memory_space<vmem>>, %arg9: memref<1x800xf32, #tpu.memory_space<vmem>>, %arg10: memref<800x800xbf16, #tpu.memory_space<vmem>>, %arg11: memref<1x800xf32, #tpu.memory_space<vmem>>, %arg12: memref<800x400xbf16, #tpu.memory_space<vmem>>, %arg13: memref<1x400xf32, #tpu.memory_space<vmem>>, %arg14: memref<400x200xbf16, #tpu.memory_space<vmem>>, %arg15: memref<1x200xf32, #tpu.memory_space<vmem>>, %arg16: memref<200x128xbf16, #tpu.memory_space<vmem>>, %arg17: memref<1x128xf32, #tpu.memory_space<vmem>>, %arg18: memref<8x128xf32, #tpu.memory_space<vmem>>) attributes {dimension_semantics = [#tpu.dimension_semantics<parallel>], iteration_bounds = array<i64: 2>, scalar_prefetch = 0 : i64, scratch_operands = 0 : i64, tpu.core_type = #tpu.core_type<tc>, window_params = [{transform_indices = @transform_0, window_bounds = array<i64: 8, 30>}, {pipeline_mode = #tpu.pipeline_mode<synchronous>, transform_indices = @transform_1, window_bounds = array<i64: 30, 200>}, {pipeline_mode = #tpu.pipeline_mode<synchronous>, transform_indices = @transform_2, window_bounds = array<i64: 1, 200>}, {pipeline_mode = #tpu.pipeline_mode<synchronous>, transform_indices = @transform_3, window_bounds = array<i64: 200, 400>}, {pipeline_mode = #tpu.pipeline_mode<synchronous>, transform_indices = @transform_4, window_bounds = array<i64: 1, 400>}, {pipeline_mode = #tpu.pipeline_mode<synchronous>, transform_indices = @transform_5, window_bounds = array<i64: 400, 800>}, {pipeline_mode = #tpu.pipeline_mode<synchronous>, transform_indices = @transform_6, window_bounds = array<i64: 1, 800>}, {pipeline_mode = #tpu.pipeline_mode<synchronous>, transform_indices = @transform_7, window_bounds = array<i64: 800, 800>}, {pipeline_mode = #tpu.pipeline_mode<synchronous>, transform_indices = @transform_8, window_bounds = array<i64: 1, 800>}, {pipeline_mode = #tpu.pipeline_mode<synchronous>, transform_indices = @transform_9, window_bounds = array<i64: 800, 800>}, {pipeline_mode = #tpu.pipeline_mode<synchronous>, transform_indices = @transform_10, window_bounds = array<i64: 1, 800>}, {pipeline_mode = #tpu.pipeline_mode<synchronous>, transform_indices = @transform_11, window_bounds = array<i64: 800, 400>}, {pipeline_mode = #tpu.pipeline_mode<synchronous>, transform_indices = @transform_12, window_bounds = array<i64: 1, 400>}, {pipeline_mode = #tpu.pipeline_mode<synchronous>, transform_indices = @transform_13, window_bounds = array<i64: 400, 200>}, {pipeline_mode = #tpu.pipeline_mode<synchronous>, transform_indices = @transform_14, window_bounds = array<i64: 1, 200>}, {pipeline_mode = #tpu.pipeline_mode<synchronous>, transform_indices = @transform_15, window_bounds = array<i64: 200, 128>}, {pipeline_mode = #tpu.pipeline_mode<synchronous>, transform_indices = @transform_16, window_bounds = array<i64: 1, 128>}, {transform_indices = @transform_17, window_bounds = array<i64: 8, 128>}]} {
    %c0 = arith.constant 0 : index
    %c0_0 = arith.constant 0 : index
    %0 = vector.load %arg1[%c0, %c0_0] : memref<8x30xf32, #tpu.memory_space<vmem>>, vector<8x30xf32>
    %1 = arith.truncf %0 : vector<8x30xf32> to vector<8x30xbf16>
    %c0_1 = arith.constant 0 : index
    %c0_2 = arith.constant 0 : index
    %2 = vector.load %arg2[%c0_1, %c0_2] : memref<30x200xbf16, #tpu.memory_space<vmem>>, vector<30x200xbf16>
    %cst = arith.constant dense<0.000000e+00> : vector<8x200xf32>
    %3 = tpu.matmul %1, %2, %cst {dimension_numbers = #tpu.dot_dimension_numbers<[1], [0], [0], [1], [0, 0, 1, 1], [], []>} : vector<8x30xbf16>, vector<30x200xbf16>, vector<8x200xf32> -> vector<8x200xf32>
    %c0_3 = arith.constant 0 : index
    %c0_4 = arith.constant 0 : index
    %4 = vector.load %arg3[%c0_3, %c0_4] : memref<1x200xf32, #tpu.memory_space<vmem>>, vector<1x200xf32>
    %5 = vector.broadcast %4 : vector<1x200xf32> to vector<8x200xf32>
    %6 = arith.addf %3, %5 : vector<8x200xf32>
    %cst_5 = arith.constant 0.000000e+00 : f32
    %7 = vector.broadcast %cst_5 : f32 to vector<8x200xf32>
    %8 = arith.cmpf ogt, %6, %7 : vector<8x200xf32>
    %cst_6 = arith.constant 0.00999999977 : f32
    %9 = vector.broadcast %cst_6 : f32 to vector<8x200xf32>
    %10 = arith.mulf %9, %6 : vector<8x200xf32>
    %11 = arith.select %8, %6, %10 : vector<8x200xi1>, vector<8x200xf32>
    %12 = arith.truncf %11 : vector<8x200xf32> to vector<8x200xbf16>
    %c0_7 = arith.constant 0 : index
    %c0_8 = arith.constant 0 : index
    %13 = vector.load %arg4[%c0_7, %c0_8] : memref<200x400xbf16, #tpu.memory_space<vmem>>, vector<200x400xbf16>
    %cst_9 = arith.constant dense<0.000000e+00> : vector<8x400xf32>
    %14 = tpu.matmul %12, %13, %cst_9 {dimension_numbers = #tpu.dot_dimension_numbers<[1], [0], [0], [1], [0, 0, 1, 1], [], []>} : vector<8x200xbf16>, vector<200x400xbf16>, vector<8x400xf32> -> vector<8x400xf32>
    %c0_10 = arith.constant 0 : index
    %c0_11 = arith.constant 0 : index
    %15 = vector.load %arg5[%c0_10, %c0_11] : memref<1x400xf32, #tpu.memory_space<vmem>>, vector<1x400xf32>
    %16 = vector.broadcast %15 : vector<1x400xf32> to vector<8x400xf32>
    %17 = arith.addf %14, %16 : vector<8x400xf32>
    %cst_12 = arith.constant 0.000000e+00 : f32
    %18 = vector.broadcast %cst_12 : f32 to vector<8x400xf32>
    %19 = arith.cmpf ogt, %17, %18 : vector<8x400xf32>
    %cst_13 = arith.constant 0.00999999977 : f32
    %20 = vector.broadcast %cst_13 : f32 to vector<8x400xf32>
    %21 = arith.mulf %20, %17 : vector<8x400xf32>
    %22 = arith.select %19, %17, %21 : vector<8x400xi1>, vector<8x400xf32>
    %23 = arith.truncf %22 : vector<8x400xf32> to vector<8x400xbf16>
    %c0_14 = arith.constant 0 : index
    %c0_15 = arith.constant 0 : index
    %24 = vector.load %arg6[%c0_14, %c0_15] : memref<400x800xbf16, #tpu.memory_space<vmem>>, vector<400x800xbf16>
    %cst_16 = arith.constant dense<0.000000e+00> : vector<8x800xf32>
    %25 = tpu.matmul %23, %24, %cst_16 {dimension_numbers = #tpu.dot_dimension_numbers<[1], [0], [0], [1], [0, 0, 1, 1], [], []>} : vector<8x400xbf16>, vector<400x800xbf16>, vector<8x800xf32> -> vector<8x800xf32>
    %c0_17 = arith.constant 0 : index
    %c0_18 = arith.constant 0 : index
    %26 = vector.load %arg7[%c0_17, %c0_18] : memref<1x800xf32, #tpu.memory_space<vmem>>, vector<1x800xf32>
    %27 = vector.broadcast %26 : vector<1x800xf32> to vector<8x800xf32>
    %28 = arith.addf %25, %27 : vector<8x800xf32>
    %cst_19 = arith.constant 0.000000e+00 : f32
    %29 = vector.broadcast %cst_19 : f32 to vector<8x800xf32>
    %30 = arith.cmpf ogt, %28, %29 : vector<8x800xf32>
    %cst_20 = arith.constant 0.00999999977 : f32
    %31 = vector.broadcast %cst_20 : f32 to vector<8x800xf32>
    %32 = arith.mulf %31, %28 : vector<8x800xf32>
    %33 = arith.select %30, %28, %32 : vector<8x800xi1>, vector<8x800xf32>
    %34 = arith.truncf %33 : vector<8x800xf32> to vector<8x800xbf16>
    %c0_21 = arith.constant 0 : index
    %c0_22 = arith.constant 0 : index
    %35 = vector.load %arg8[%c0_21, %c0_22] : memref<800x800xbf16, #tpu.memory_space<vmem>>, vector<800x800xbf16>
    %cst_23 = arith.constant dense<0.000000e+00> : vector<8x800xf32>
    %36 = tpu.matmul %34, %35, %cst_23 {dimension_numbers = #tpu.dot_dimension_numbers<[1], [0], [0], [1], [0, 0, 1, 1], [], []>} : vector<8x800xbf16>, vector<800x800xbf16>, vector<8x800xf32> -> vector<8x800xf32>
    %c0_24 = arith.constant 0 : index
    %c0_25 = arith.constant 0 : index
    %37 = vector.load %arg9[%c0_24, %c0_25] : memref<1x800xf32, #tpu.memory_space<vmem>>, vector<1x800xf32>
    %38 = vector.broadcast %37 : vector<1x800xf32> to vector<8x800xf32>
    %39 = arith.addf %36, %38 : vector<8x800xf32>
    %cst_26 = arith.constant 0.000000e+00 : f32
    %40 = vector.broadcast %cst_26 : f32 to vector<8x800xf32>
    %41 = arith.cmpf ogt, %39, %40 : vector<8x800xf32>
    %cst_27 = arith.constant 0.00999999977 : f32
    %42 = vector.broadcast %cst_27 : f32 to vector<8x800xf32>
    %43 = arith.mulf %42, %39 : vector<8x800xf32>
    %44 = arith.select %41, %39, %43 : vector<8x800xi1>, vector<8x800xf32>
    %45 = arith.truncf %44 : vector<8x800xf32> to vector<8x800xbf16>
    %c0_28 = arith.constant 0 : index
    %c0_29 = arith.constant 0 : index
    %46 = vector.load %arg10[%c0_28, %c0_29] : memref<800x800xbf16, #tpu.memory_space<vmem>>, vector<800x800xbf16>
    %cst_30 = arith.constant dense<0.000000e+00> : vector<8x800xf32>
    %47 = tpu.matmul %45, %46, %cst_30 {dimension_numbers = #tpu.dot_dimension_numbers<[1], [0], [0], [1], [0, 0, 1, 1], [], []>} : vector<8x800xbf16>, vector<800x800xbf16>, vector<8x800xf32> -> vector<8x800xf32>
    %c0_31 = arith.constant 0 : index
    %c0_32 = arith.constant 0 : index
    %48 = vector.load %arg11[%c0_31, %c0_32] : memref<1x800xf32, #tpu.memory_space<vmem>>, vector<1x800xf32>
    %49 = vector.broadcast %48 : vector<1x800xf32> to vector<8x800xf32>
    %50 = arith.addf %47, %49 : vector<8x800xf32>
    %cst_33 = arith.constant 0.000000e+00 : f32
    %51 = vector.broadcast %cst_33 : f32 to vector<8x800xf32>
    %52 = arith.cmpf ogt, %50, %51 : vector<8x800xf32>
    %cst_34 = arith.constant 0.00999999977 : f32
    %53 = vector.broadcast %cst_34 : f32 to vector<8x800xf32>
    %54 = arith.mulf %53, %50 : vector<8x800xf32>
    %55 = arith.select %52, %50, %54 : vector<8x800xi1>, vector<8x800xf32>
    %56 = arith.truncf %55 : vector<8x800xf32> to vector<8x800xbf16>
    %c0_35 = arith.constant 0 : index
    %c0_36 = arith.constant 0 : index
    %57 = vector.load %arg12[%c0_35, %c0_36] : memref<800x400xbf16, #tpu.memory_space<vmem>>, vector<800x400xbf16>
    %cst_37 = arith.constant dense<0.000000e+00> : vector<8x400xf32>
    %58 = tpu.matmul %56, %57, %cst_37 {dimension_numbers = #tpu.dot_dimension_numbers<[1], [0], [0], [1], [0, 0, 1, 1], [], []>} : vector<8x800xbf16>, vector<800x400xbf16>, vector<8x400xf32> -> vector<8x400xf32>
    %c0_38 = arith.constant 0 : index
    %c0_39 = arith.constant 0 : index
    %59 = vector.load %arg13[%c0_38, %c0_39] : memref<1x400xf32, #tpu.memory_space<vmem>>, vector<1x400xf32>
    %60 = vector.broadcast %59 : vector<1x400xf32> to vector<8x400xf32>
    %61 = arith.addf %58, %60 : vector<8x400xf32>
    %cst_40 = arith.constant 0.000000e+00 : f32
    %62 = vector.broadcast %cst_40 : f32 to vector<8x400xf32>
    %63 = arith.cmpf ogt, %61, %62 : vector<8x400xf32>
    %cst_41 = arith.constant 0.00999999977 : f32
    %64 = vector.broadcast %cst_41 : f32 to vector<8x400xf32>
    %65 = arith.mulf %64, %61 : vector<8x400xf32>
    %66 = arith.select %63, %61, %65 : vector<8x400xi1>, vector<8x400xf32>
    %67 = arith.truncf %66 : vector<8x400xf32> to vector<8x400xbf16>
    %c0_42 = arith.constant 0 : index
    %c0_43 = arith.constant 0 : index
    %68 = vector.load %arg14[%c0_42, %c0_43] : memref<400x200xbf16, #tpu.memory_space<vmem>>, vector<400x200xbf16>
    %cst_44 = arith.constant dense<0.000000e+00> : vector<8x200xf32>
    %69 = tpu.matmul %67, %68, %cst_44 {dimension_numbers = #tpu.dot_dimension_numbers<[1], [0], [0], [1], [0, 0, 1, 1], [], []>} : vector<8x400xbf16>, vector<400x200xbf16>, vector<8x200xf32> -> vector<8x200xf32>
    %c0_45 = arith.constant 0 : index
    %c0_46 = arith.constant 0 : index
    %70 = vector.load %arg15[%c0_45, %c0_46] : memref<1x200xf32, #tpu.memory_space<vmem>>, vector<1x200xf32>
    %71 = vector.broadcast %70 : vector<1x200xf32> to vector<8x200xf32>
    %72 = arith.addf %69, %71 : vector<8x200xf32>
    %cst_47 = arith.constant 0.000000e+00 : f32
    %73 = vector.broadcast %cst_47 : f32 to vector<8x200xf32>
    %74 = arith.cmpf ogt, %72, %73 : vector<8x200xf32>
    %cst_48 = arith.constant 0.00999999977 : f32
    %75 = vector.broadcast %cst_48 : f32 to vector<8x200xf32>
    %76 = arith.mulf %75, %72 : vector<8x200xf32>
    %77 = arith.select %74, %72, %76 : vector<8x200xi1>, vector<8x200xf32>
    %78 = arith.truncf %77 : vector<8x200xf32> to vector<8x200xbf16>
    %c0_49 = arith.constant 0 : index
    %c0_50 = arith.constant 0 : index
    %79 = vector.load %arg16[%c0_49, %c0_50] : memref<200x128xbf16, #tpu.memory_space<vmem>>, vector<200x128xbf16>
    %cst_51 = arith.constant dense<0.000000e+00> : vector<8x128xf32>
    %80 = tpu.matmul %78, %79, %cst_51 {dimension_numbers = #tpu.dot_dimension_numbers<[1], [0], [0], [1], [0, 0, 1, 1], [], []>} : vector<8x200xbf16>, vector<200x128xbf16>, vector<8x128xf32> -> vector<8x128xf32>
    %c0_52 = arith.constant 0 : index
    %c0_53 = arith.constant 0 : index
    %81 = vector.load %arg17[%c0_52, %c0_53] : memref<1x128xf32, #tpu.memory_space<vmem>>, vector<1x128xf32>
    %82 = vector.broadcast %81 : vector<1x128xf32> to vector<8x128xf32>
    %83 = arith.addf %80, %82 : vector<8x128xf32>
    %84 = tpu.iota {dimensions = array<i32: 1>} : vector<8x128xi32>
    %c6_i32 = arith.constant 6 : i32
    %85 = vector.broadcast %c6_i32 : i32 to vector<8x128xi32>
    %86 = arith.cmpi sge, %84, %85 : vector<8x128xi32>
    %cst_54 = arith.constant 0.000000e+00 : f32
    %87 = vector.broadcast %cst_54 : f32 to vector<8x128xf32>
    %88 = arith.maximumf %83, %87 : vector<8x128xf32>
    %89 = arith.select %86, %88, %83 : vector<8x128xi1>, vector<8x128xf32>
    %c0_55 = arith.constant 0 : index
    %c0_56 = arith.constant 0 : index
    %90 = vector.load %arg18[%c0_55, %c0_56] : memref<8x128xf32, #tpu.memory_space<vmem>>, vector<8x128xf32>
    tpu.vector_store %arg18[%c0_55, %c0_56], %89 {strides = array<i32>} : memref<8x128xf32, #tpu.memory_space<vmem>>, vector<8x128xf32>,
    return
  }
  func.func @transform_0(%arg0: i32) -> (i32, i32) {
    %c0_i32 = arith.constant 0 : i32
    %c0_i32_0 = arith.constant 0 : i32
    return %arg0, %c0_i32 : i32, i32
  }
  func.func @transform_1(%arg0: i32) -> (i32, i32) {
    %c0_i32 = arith.constant 0 : i32
    %c0_i32_0 = arith.constant 0 : i32
    %c0_i32_1 = arith.constant 0 : i32
    return %c0_i32, %c0_i32_0 : i32, i32
  }
  func.func @transform_2(%arg0: i32) -> (i32, i32) {
    %c0_i32 = arith.constant 0 : i32
    %c0_i32_0 = arith.constant 0 : i32
    %c0_i32_1 = arith.constant 0 : i32
    return %c0_i32, %c0_i32_0 : i32, i32
  }
  func.func @transform_3(%arg0: i32) -> (i32, i32) {
    %c0_i32 = arith.constant 0 : i32
    %c0_i32_0 = arith.constant 0 : i32
    %c0_i32_1 = arith.constant 0 : i32
    return %c0_i32, %c0_i32_0 : i32, i32
  }
  func.func @transform_4(%arg0: i32) -> (i32, i32) {
    %c0_i32 = arith.constant 0 : i32
    %c0_i32_0 = arith.constant 0 : i32
    %c0_i32_1 = arith.constant 0 : i32
    return %c0_i32, %c0_i32_0 : i32, i32
  }
  func.func @transform_5(%arg0: i32) -> (i32, i32) {
    %c0_i32 = arith.constant 0 : i32
    %c0_i32_0 = arith.constant 0 : i32
    %c0_i32_1 = arith.constant 0 : i32
    return %c0_i32, %c0_i32_0 : i32, i32
  }
  func.func @transform_6(%arg0: i32) -> (i32, i32) {
    %c0_i32 = arith.constant 0 : i32
    %c0_i32_0 = arith.constant 0 : i32
    %c0_i32_1 = arith.constant 0 : i32
    return %c0_i32, %c0_i32_0 : i32, i32
  }
  func.func @transform_7(%arg0: i32) -> (i32, i32) {
    %c0_i32 = arith.constant 0 : i32
    %c0_i32_0 = arith.constant 0 : i32
    %c0_i32_1 = arith.constant 0 : i32
    return %c0_i32, %c0_i32_0 : i32, i32
  }
  func.func @transform_8(%arg0: i32) -> (i32, i32) {
    %c0_i32 = arith.constant 0 : i32
    %c0_i32_0 = arith.constant 0 : i32
    %c0_i32_1 = arith.constant 0 : i32
    return %c0_i32, %c0_i32_0 : i32, i32
  }
  func.func @transform_9(%arg0: i32) -> (i32, i32) {
    %c0_i32 = arith.constant 0 : i32
    %c0_i32_0 = arith.constant 0 : i32
    %c0_i32_1 = arith.constant 0 : i32
    return %c0_i32, %c0_i32_0 : i32, i32
  }
  func.func @transform_10(%arg0: i32) -> (i32, i32) {
    %c0_i32 = arith.constant 0 : i32
    %c0_i32_0 = arith.constant 0 : i32
    %c0_i32_1 = arith.constant 0 : i32
    return %c0_i32, %c0_i32_0 : i32, i32
  }
  func.func @transform_11(%arg0: i32) -> (i32, i32) {
    %c0_i32 = arith.constant 0 : i32
    %c0_i32_0 = arith.constant 0 : i32
    %c0_i32_1 = arith.constant 0 : i32
    return %c0_i32, %c0_i32_0 : i32, i32
  }
  func.func @transform_12(%arg0: i32) -> (i32, i32) {
    %c0_i32 = arith.constant 0 : i32
    %c0_i32_0 = arith.constant 0 : i32
    %c0_i32_1 = arith.constant 0 : i32
    return %c0_i32, %c0_i32_0 : i32, i32
  }
  func.func @transform_13(%arg0: i32) -> (i32, i32) {
    %c0_i32 = arith.constant 0 : i32
    %c0_i32_0 = arith.constant 0 : i32
    %c0_i32_1 = arith.constant 0 : i32
    return %c0_i32, %c0_i32_0 : i32, i32
  }
  func.func @transform_14(%arg0: i32) -> (i32, i32) {
    %c0_i32 = arith.constant 0 : i32
    %c0_i32_0 = arith.constant 0 : i32
    %c0_i32_1 = arith.constant 0 : i32
    return %c0_i32, %c0_i32_0 : i32, i32
  }
  func.func @transform_15(%arg0: i32) -> (i32, i32) {
    %c0_i32 = arith.constant 0 : i32
    %c0_i32_0 = arith.constant 0 : i32
    %c0_i32_1 = arith.constant 0 : i32
    return %c0_i32, %c0_i32_0 : i32, i32
  }
  func.func @transform_16(%arg0: i32) -> (i32, i32) {
    %c0_i32 = arith.constant 0 : i32
    %c0_i32_0 = arith.constant 0 : i32
    %c0_i32_1 = arith.constant 0 : i32
    return %c0_i32, %c0_i32_0 : i32, i32
  }
  func.func @transform_17(%arg0: i32) -> (i32, i32) {
    %c0_i32 = arith.constant 0 : i32
    %c0_i32_0 = arith.constant 0 : i32
    return %arg0, %c0_i32 : i32, i32
  }
}

</mosaic_0001>

<llo_original>
// kernel: tpu_custom_call.1
$region0: #{tpu_custom_call.1}
  #allocation0 [shape = 'u32[]', space=smem, size = 0x4, offset = 0x4, fixed_abs, tag = 'smem constant byte address 0x4 - core index']
  #allocation1 [shape = 'u32[72,128]{1,0:T(1,128)}', space=vmem, size = 0x9000, scoped, tag = 'internal scratch']
  %s0 = inlined_call_operand.vmem [shape: f32[16,30], index: 0, kind: input, shape index: {}]
  %s1 = inlined_call_operand.vmem [shape: bf16[30,200], index: 1, kind: input, shape index: {}]
  %s2 = inlined_call_operand.vmem [shape: f32[1,200], index: 2, kind: input, shape index: {}]
  %s3 = inlined_call_operand.hbm [shape: bf16[200,400], index: 3, kind: input, shape index: {}]
  %s4 = inlined_call_operand.vmem [shape: f32[1,400], index: 4, kind: input, shape index: {}]
  %s5 = inlined_call_operand.hbm [shape: bf16[400,800], index: 5, kind: input, shape index: {}]
  %s6 = inlined_call_operand.vmem [shape: f32[1,800], index: 6, kind: input, shape index: {}]
  %s7 = inlined_call_operand.vmem [shape: bf16[800,800], index: 7, kind: input, shape index: {}]
  %s8 = inlined_call_operand.vmem [shape: f32[1,800], index: 8, kind: input, shape index: {}]
  %s9 = inlined_call_operand.hbm [shape: bf16[800,800], index: 9, kind: input, shape index: {}]
  %s10 = inlined_call_operand.vmem [shape: f32[1,800], index: 10, kind: input, shape index: {}]
  %s11 = inlined_call_operand.vmem [shape: bf16[800,400], index: 11, kind: input, shape index: {}]
  %s12 = inlined_call_operand.vmem [shape: f32[1,400], index: 12, kind: input, shape index: {}]
  %s13 = inlined_call_operand.hbm [shape: bf16[400,200], index: 13, kind: input, shape index: {}]
  %s14 = inlined_call_operand.vmem [shape: f32[1,200], index: 14, kind: input, shape index: {}]
  %s15 = inlined_call_operand.vmem [shape: bf16[200,128], index: 15, kind: input, shape index: {}]
  %s16 = inlined_call_operand.vmem [shape: f32[1,128], index: 16, kind: input, shape index: {}]
  %s17 = inlined_call_operand.hbm [shape: f32[16,128], index: 17, kind: output, shape index: {}]
  %s18 = sld [smem:[#allocation0]]
  $region117: #{tpu_custom_call.1} parent=0
    _
  %s20 = ssub.s32 1, %s18
  %s21 = scalar_select 0, %s20, %s18
  $region1: #{tpu_custom_call.1} parent=0
    #allocation2 [shape = 'u8[204800]{0}', space=vmem, size = 0x32000, scoped, tag = 'input window, operand 3, single buffered']
    #allocation3 [shape = 's32[2]{0}', space=sflag, size = 0x8, scoped, tag = 'scoped memory for tpu_custom_call.1']
    #allocation4 [shape = 's32[2]{0}', space=sflag, size = 0x8, scoped, tag = 'scoped memory for tpu_custom_call.1']
    #allocation5 [shape = 'u8[716800]{0}', space=vmem, size = 0xaf000, scoped, tag = 'input window, operand 5, single buffered']
    #allocation6 [shape = 's32[1]{0}', space=sflag, size = 0x4, scoped, tag = 'scoped memory for tpu_custom_call.1']
    #allocation7 [shape = 'u8[1433600]{0}', space=vmem, size = 0x15e000, scoped, tag = 'input window, operand 9, single buffered']
    #allocation8 [shape = 'u8[204800]{0}', space=vmem, size = 0x32000, scoped, tag = 'input window, operand 13, single buffered']
    #allocation9 [shape = 's32[1]{0}', space=sflag, size = 0x4, scoped, tag = 'scoped memory for tpu_custom_call.1']
    #allocation10 [shape = 'u8[8192]{0}', space=vmem, size = 0x2000, scoped, tag = 'output window, operand 0']
    %22 = vsyncpa [#allocation3], 0
    %23 = vsyncpa [#allocation6], 0
    %24 = vsyncpa [#allocation9], 0
    %25 = vsyncpa [#allocation4], 0
    %s26 = scalar_lea.sflag [#allocation4], 1
    %27 = vsyncpa %s26, 0
    loop: start=0, step=1, limit=4
    $region2: #{tpu_custom_call.1} parent=1 // loop_pre_header
      _
    $region3: #{tpu_custom_call.1} parent=1 // loop_header
      %s29 = sphi 0, %s33
      %p30 = scmp.ge.s32.totalorder %s29, 4
      %s39 = sphi 0, %s41
      %s42 = sphi 0, %s39
      %s43 = sphi 0, %s42
      %s59 = sphi 0, %s43
      %s63 = sphi 0, %s63
      %s65 = sphi 0, %s63
      %s66 = sphi 0, %s65
      %s80 = sphi 0, %s66
      %s84 = sphi 0, %s84
      %s86 = sphi 0, %s84
      %s87 = sphi 0, %s86
      %s101 = sphi 0, %s87
      %s105 = sphi 0, %s105
      %s107 = sphi 0, %s105
      %s108 = sphi 0, %s107
      %s122 = sphi 0, %s108
      %s126 = sphi 0, %s126
      %s128 = sphi 0, %s126
      %s129 = sphi 0, %s128
      %s143 = sphi 0, %s129
      %s147 = sphi 0, %s147
      %s149 = sphi 0, %s147
      %s150 = sphi 0, %s149
      %s164 = sphi 0, %s150
      %s168 = sphi 0, %s168
      %s170 = sphi 0, %s168
      %s171 = sphi 0, %s170
      %s185 = sphi 0, %s171
      %s189 = sphi 0, %s189
      %s191 = sphi 0, %s189
      %s192 = sphi 0, %s191
      %s206 = sphi 0, %s192
      %s210 = sphi 0, %s210
      %s212 = sphi 0, %s210
      %s213 = sphi 0, %s212
      %s227 = sphi 0, %s213
      %s231 = sphi 0, %s231
      %s233 = sphi 0, %s231
      %s234 = sphi 0, %s233
      %s248 = sphi 0, %s234
      %s252 = sphi 0, %s252
      %s254 = sphi 0, %s252
      %s255 = sphi 0, %s254
      %s269 = sphi 0, %s255
      %s273 = sphi 0, %s273
      %s275 = sphi 0, %s273
      %s276 = sphi 0, %s275
      %s290 = sphi 0, %s276
      %s294 = sphi 0, %s294
      %s296 = sphi 0, %s294
      %s297 = sphi 0, %s296
      %s311 = sphi 0, %s297
      %s315 = sphi 0, %s315
      %s317 = sphi 0, %s315
      %s318 = sphi 0, %s317
      %s332 = sphi 0, %s318
      %s336 = sphi 0, %s336
      %s338 = sphi 0, %s336
      %s339 = sphi 0, %s338
      %s353 = sphi 0, %s339
      %s357 = sphi 0, %s357
      %s359 = sphi 0, %s357
      %s360 = sphi 0, %s359
      %s374 = sphi 0, %s360
      %s378 = sphi 0, %s378
      %s380 = sphi 0, %s378
      %s381 = sphi 0, %s380
      %s395 = sphi 0, %s381
      %s401 = sphi 0, %s403
      %s404 = sphi 0, %s401
      %s405 = sphi 0, %s404
      %s421 = sphi 0, %s405
    $region4: #{tpu_custom_call.1} parent=1 // loop_header_branch
      %32 = sbr.rel (%p30) target = $region8
    $region5: #{tpu_custom_call.1} parent=1 // loop_body
      %s34 = ssub.s32 %s29, 1
      %s35 = ssub.s32 %s29, 2
      %s36 = sadd.s32 %s29, 1
      %s37 = ssub.s32 %s29, %s36
      %p38 = scmp.eq.s32.totalorder %s37, 0
      %s40 = sadd.s32 %s39, 1
      %s41 = scalar_select %p38, %s39, %s40
      %p44 = pneg %p38
      %p45 = scmp.eq.s32.totalorder %s29, 1
      %p46 = por %p44, %p45
      %p47 = scmp.ne.s32.totalorder %s39, %s42
      %p48 = scmp.eq.s32.totalorder %s29, 0
      %p49 = por %p47, %p48
      %p50 = scmp.ne.s32.totalorder %s39, %s42
      %p51 = scmp.eq.s32.totalorder %s34, 1
      %p52 = por %p50, %p51
      %p53 = scmp.ne.s32.totalorder %s42, %s43
      %p54 = scmp.eq.s32.totalorder %s34, 0
      %p55 = por %p53, %p54
      %p56 = scmp.ne.s32.totalorder %s42, %s43
      %p57 = scmp.eq.s32.totalorder %s35, 1
      %p58 = por %p56, %p57
      %p60 = scmp.ne.s32.totalorder %s43, %s59
      %p61 = scmp.eq.s32.totalorder %s35, 0
      %p62 = por %p60, %p61
      %s64 = sadd.s32 %s63, 1
      %p67 = scmp.eq.s32.totalorder %s29, 1
      %p68 = scmp.ne.s32.totalorder %s63, %s65
      %p69 = scmp.eq.s32.totalorder %s29, 0
      %p70 = por %p68, %p69
      %p71 = scmp.ne.s32.totalorder %s63, %s65
      %p72 = scmp.eq.s32.totalorder %s34, 1
      %p73 = por %p71, %p72
      %p74 = scmp.ne.s32.totalorder %s65, %s66
      %p75 = scmp.eq.s32.totalorder %s34, 0
      %p76 = por %p74, %p75
      %p77 = scmp.ne.s32.totalorder %s65, %s66
      %p78 = scmp.eq.s32.totalorder %s35, 1
      %p79 = por %p77, %p78
      %p81 = scmp.ne.s32.totalorder %s66, %s80
      %p82 = scmp.eq.s32.totalorder %s35, 0
      %p83 = por %p81, %p82
      %s85 = sadd.s32 %s84, 1
      %p88 = scmp.eq.s32.totalorder %s29, 1
      %p89 = scmp.ne.s32.totalorder %s84, %s86
      %p90 = scmp.eq.s32.totalorder %s29, 0
      %p91 = por %p89, %p90
      %p92 = scmp.ne.s32.totalorder %s84, %s86
      %p93 = scmp.eq.s32.totalorder %s34, 1
      %p94 = por %p92, %p93
      %p95 = scmp.ne.s32.totalorder %s86, %s87
      %p96 = scmp.eq.s32.totalorder %s34, 0
      %p97 = por %p95, %p96
      %p98 = scmp.ne.s32.totalorder %s86, %s87
      %p99 = scmp.eq.s32.totalorder %s35, 1
      %p100 = por %p98, %p99
      %p102 = scmp.ne.s32.totalorder %s87, %s101
      %p103 = scmp.eq.s32.totalorder %s35, 0
      %p104 = por %p102, %p103
      %s106 = sadd.s32 %s105, 1
      %p109 = scmp.eq.s32.totalorder %s29, 1
      %p110 = scmp.ne.s32.totalorder %s105, %s107
      %p111 = scmp.eq.s32.totalorder %s29, 0
      %p112 = por %p110, %p111
      %p113 = scmp.ne.s32.totalorder %s105, %s107
      %p114 = scmp.eq.s32.totalorder %s34, 1
      %p115 = por %p113, %p114
      %p116 = scmp.ne.s32.totalorder %s107, %s108
      %p117 = scmp.eq.s32.totalorder %s34, 0
      %p118 = por %p116, %p117
      %p119 = scmp.ne.s32.totalorder %s107, %s108
      %p120 = scmp.eq.s32.totalorder %s35, 1
      %p121 = por %p119, %p120
      %p123 = scmp.ne.s32.totalorder %s108, %s122
      %p124 = scmp.eq.s32.totalorder %s35, 0
      %p125 = por %p123, %p124
      %s127 = sadd.s32 %s126, 1
      %p130 = scmp.eq.s32.totalorder %s29, 1
      %p131 = scmp.ne.s32.totalorder %s126, %s128
      %p132 = scmp.eq.s32.totalorder %s29, 0
      %p133 = por %p131, %p132
      %p134 = scmp.ne.s32.totalorder %s126, %s128
      %p135 = scmp.eq.s32.totalorder %s34, 1
      %p136 = por %p134, %p135
      %p137 = scmp.ne.s32.totalorder %s128, %s129
      %p138 = scmp.eq.s32.totalorder %s34, 0
      %p139 = por %p137, %p138
      %p140 = scmp.ne.s32.totalorder %s128, %s129
      %p141 = scmp.eq.s32.totalorder %s35, 1
      %p142 = por %p140, %p141
      %p144 = scmp.ne.s32.totalorder %s129, %s143
      %p145 = scmp.eq.s32.totalorder %s35, 0
      %p146 = por %p144, %p145
      %s148 = sadd.s32 %s147, 1
      %p151 = scmp.eq.s32.totalorder %s29, 1
      %p152 = scmp.ne.s32.totalorder %s147, %s149
      %p153 = scmp.eq.s32.totalorder %s29, 0
      %p154 = por %p152, %p153
      %p155 = scmp.ne.s32.totalorder %s147, %s149
      %p156 = scmp.eq.s32.totalorder %s34, 1
      %p157 = por %p155, %p156
      %p158 = scmp.ne.s32.totalorder %s149, %s150
      %p159 = scmp.eq.s32.totalorder %s34, 0
      %p160 = por %p158, %p159
      %p161 = scmp.ne.s32.totalorder %s149, %s150
      %p162 = scmp.eq.s32.totalorder %s35, 1
      %p163 = por %p161, %p162
      %p165 = scmp.ne.s32.totalorder %s150, %s164
      %p166 = scmp.eq.s32.totalorder %s35, 0
      %p167 = por %p165, %p166
      %s169 = sadd.s32 %s168, 1
      %p172 = scmp.eq.s32.totalorder %s29, 1
      %p173 = scmp.ne.s32.totalorder %s168, %s170
      %p174 = scmp.eq.s32.totalorder %s29, 0
      %p175 = por %p173, %p174
      %p176 = scmp.ne.s32.totalorder %s168, %s170
      %p177 = scmp.eq.s32.totalorder %s34, 1
      %p178 = por %p176, %p177
      %p179 = scmp.ne.s32.totalorder %s170, %s171
      %p180 = scmp.eq.s32.totalorder %s34, 0
      %p181 = por %p179, %p180
      %p182 = scmp.ne.s32.totalorder %s170, %s171
      %p183 = scmp.eq.s32.totalorder %s35, 1
      %p184 = por %p182, %p183
      %p186 = scmp.ne.s32.totalorder %s171, %s185
      %p187 = scmp.eq.s32.totalorder %s35, 0
      %p188 = por %p186, %p187
      %s190 = sadd.s32 %s189, 1
      %p193 = scmp.eq.s32.totalorder %s29, 1
      %p194 = scmp.ne.s32.totalorder %s189, %s191
      %p195 = scmp.eq.s32.totalorder %s29, 0
      %p196 = por %p194, %p195
      %p197 = scmp.ne.s32.totalorder %s189, %s191
      %p198 = scmp.eq.s32.totalorder %s34, 1
      %p199 = por %p197, %p198
      %p200 = scmp.ne.s32.totalorder %s191, %s192
      %p201 = scmp.eq.s32.totalorder %s34, 0
      %p202 = por %p200, %p201
      %p203 = scmp.ne.s32.totalorder %s191, %s192
      %p204 = scmp.eq.s32.totalorder %s35, 1
      %p205 = por %p203, %p204
      %p207 = scmp.ne.s32.totalorder %s192, %s206
      %p208 = scmp.eq.s32.totalorder %s35, 0
      %p209 = por %p207, %p208
      %s211 = sadd.s32 %s210, 1
      %p214 = scmp.eq.s32.totalorder %s29, 1
      %p215 = scmp.ne.s32.totalorder %s210, %s212
      %p216 = scmp.eq.s32.totalorder %s29, 0
      %p217 = por %p215, %p216
      %p218 = scmp.ne.s32.totalorder %s210, %s212
      %p219 = scmp.eq.s32.totalorder %s34, 1
      %p220 = por %p218, %p219
      %p221 = scmp.ne.s32.totalorder %s212, %s213
      %p222 = scmp.eq.s32.totalorder %s34, 0
      %p223 = por %p221, %p222
      %p224 = scmp.ne.s32.totalorder %s212, %s213
      %p225 = scmp.eq.s32.totalorder %s35, 1
      %p226 = por %p224, %p225
      %p228 = scmp.ne.s32.totalorder %s213, %s227
      %p229 = scmp.eq.s32.totalorder %s35, 0
      %p230 = por %p228, %p229
      %s232 = sadd.s32 %s231, 1
      %p235 = scmp.eq.s32.totalorder %s29, 1
      %p236 = scmp.ne.s32.totalorder %s231, %s233
      %p237 = scmp.eq.s32.totalorder %s29, 0
      %p238 = por %p236, %p237
      %p239 = scmp.ne.s32.totalorder %s231, %s233
      %p240 = scmp.eq.s32.totalorder %s34, 1
      %p241 = por %p239, %p240
      %p242 = scmp.ne.s32.totalorder %s233, %s234
      %p243 = scmp.eq.s32.totalorder %s34, 0
      %p244 = por %p242, %p243
      %p245 = scmp.ne.s32.totalorder %s233, %s234
      %p246 = scmp.eq.s32.totalorder %s35, 1
      %p247 = por %p245, %p246
      %p249 = scmp.ne.s32.totalorder %s234, %s248
      %p250 = scmp.eq.s32.totalorder %s35, 0
      %p251 = por %p249, %p250
      %s253 = sadd.s32 %s252, 1
      %p256 = scmp.eq.s32.totalorder %s29, 1
      %p257 = scmp.ne.s32.totalorder %s252, %s254
      %p258 = scmp.eq.s32.totalorder %s29, 0
      %p259 = por %p257, %p258
      %p260 = scmp.ne.s32.totalorder %s252, %s254
      %p261 = scmp.eq.s32.totalorder %s34, 1
      %p262 = por %p260, %p261
      %p263 = scmp.ne.s32.totalorder %s254, %s255
      %p264 = scmp.eq.s32.totalorder %s34, 0
      %p265 = por %p263, %p264
      %p266 = scmp.ne.s32.totalorder %s254, %s255
      %p267 = scmp.eq.s32.totalorder %s35, 1
      %p268 = por %p266, %p267
      %p270 = scmp.ne.s32.totalorder %s255, %s269
      %p271 = scmp.eq.s32.totalorder %s35, 0
      %p272 = por %p270, %p271
      %s274 = sadd.s32 %s273, 1
      %p277 = scmp.eq.s32.totalorder %s29, 1
      %p278 = scmp.ne.s32.totalorder %s273, %s275
      %p279 = scmp.eq.s32.totalorder %s29, 0
      %p280 = por %p278, %p279
      %p281 = scmp.ne.s32.totalorder %s273, %s275
      %p282 = scmp.eq.s32.totalorder %s34, 1
      %p283 = por %p281, %p282
      %p284 = scmp.ne.s32.totalorder %s275, %s276
      %p285 = scmp.eq.s32.totalorder %s34, 0
      %p286 = por %p284, %p285
      %p287 = scmp.ne.s32.totalorder %s275, %s276
      %p288 = scmp.eq.s32.totalorder %s35, 1
      %p289 = por %p287, %p288
      %p291 = scmp.ne.s32.totalorder %s276, %s290
      %p292 = scmp.eq.s32.totalorder %s35, 0
      %p293 = por %p291, %p292
      %s295 = sadd.s32 %s294, 1
      %p298 = scmp.eq.s32.totalorder %s29, 1
      %p299 = scmp.ne.s32.totalorder %s294, %s296
      %p300 = scmp.eq.s32.totalorder %s29, 0
      %p301 = por %p299, %p300
      %p302 = scmp.ne.s32.totalorder %s294, %s296
      %p303 = scmp.eq.s32.totalorder %s34, 1
      %p304 = por %p302, %p303
      %p305 = scmp.ne.s32.totalorder %s296, %s297
      %p306 = scmp.eq.s32.totalorder %s34, 0
      %p307 = por %p305, %p306
      %p308 = scmp.ne.s32.totalorder %s296, %s297
      %p309 = scmp.eq.s32.totalorder %s35, 1
      %p310 = por %p308, %p309
      %p312 = scmp.ne.s32.totalorder %s297, %s311
      %p313 = scmp.eq.s32.totalorder %s35, 0
      %p314 = por %p312, %p313
      %s316 = sadd.s32 %s315, 1
      %p319 = scmp.eq.s32.totalorder %s29, 1
      %p320 = scmp.ne.s32.totalorder %s315, %s317
      %p321 = scmp.eq.s32.totalorder %s29, 0
      %p322 = por %p320, %p321
      %p323 = scmp.ne.s32.totalorder %s315, %s317
      %p324 = scmp.eq.s32.totalorder %s34, 1
      %p325 = por %p323, %p324
      %p326 = scmp.ne.s32.totalorder %s317, %s318
      %p327 = scmp.eq.s32.totalorder %s34, 0
      %p328 = por %p326, %p327
      %p329 = scmp.ne.s32.totalorder %s317, %s318
      %p330 = scmp.eq.s32.totalorder %s35, 1
      %p331 = por %p329, %p330
      %p333 = scmp.ne.s32.totalorder %s318, %s332
      %p334 = scmp.eq.s32.totalorder %s35, 0
      %p335 = por %p333, %p334
      %s337 = sadd.s32 %s336, 1
      %p340 = scmp.eq.s32.totalorder %s29, 1
      %p341 = scmp.ne.s32.totalorder %s336, %s338
      %p342 = scmp.eq.s32.totalorder %s29, 0
      %p343 = por %p341, %p342
      %p344 = scmp.ne.s32.totalorder %s336, %s338
      %p345 = scmp.eq.s32.totalorder %s34, 1
      %p346 = por %p344, %p345
      %p347 = scmp.ne.s32.totalorder %s338, %s339
      %p348 = scmp.eq.s32.totalorder %s34, 0
      %p349 = por %p347, %p348
      %p350 = scmp.ne.s32.totalorder %s338, %s339
      %p351 = scmp.eq.s32.totalorder %s35, 1
      %p352 = por %p350, %p351
      %p354 = scmp.ne.s32.totalorder %s339, %s353
      %p355 = scmp.eq.s32.totalorder %s35, 0
      %p356 = por %p354, %p355
      %s358 = sadd.s32 %s357, 1
      %p361 = scmp.eq.s32.totalorder %s29, 1
      %p362 = scmp.ne.s32.totalorder %s357, %s359
      %p363 = scmp.eq.s32.totalorder %s29, 0
      %p364 = por %p362, %p363
      %p365 = scmp.ne.s32.totalorder %s357, %s359
      %p366 = scmp.eq.s32.totalorder %s34, 1
      %p367 = por %p365, %p366
      %p368 = scmp.ne.s32.totalorder %s359, %s360
      %p369 = scmp.eq.s32.totalorder %s34, 0
      %p370 = por %p368, %p369
      %p371 = scmp.ne.s32.totalorder %s359, %s360
      %p372 = scmp.eq.s32.totalorder %s35, 1
      %p373 = por %p371, %p372
      %p375 = scmp.ne.s32.totalorder %s360, %s374
      %p376 = scmp.eq.s32.totalorder %s35, 0
      %p377 = por %p375, %p376
      %s379 = sadd.s32 %s378, 1
      %p382 = scmp.eq.s32.totalorder %s29, 1
      %p383 = scmp.ne.s32.totalorder %s378, %s380
      %p384 = scmp.eq.s32.totalorder %s29, 0
      %p385 = por %p383, %p384
      %p386 = scmp.ne.s32.totalorder %s378, %s380
      %p387 = scmp.eq.s32.totalorder %s34, 1
      %p388 = por %p386, %p387
      %p389 = scmp.ne.s32.totalorder %s380, %s381
      %p390 = scmp.eq.s32.totalorder %s34, 0
      %p391 = por %p389, %p390
      %p392 = scmp.ne.s32.totalorder %s380, %s381
      %p393 = scmp.eq.s32.totalorder %s35, 1
      %p394 = por %p392, %p393
      %p396 = scmp.ne.s32.totalorder %s381, %s395
      %p397 = scmp.eq.s32.totalorder %s35, 0
      %p398 = por %p396, %p397
      %s399 = ssub.s32 %s29, %s36
      %p400 = scmp.eq.s32.totalorder %s399, 0
      %s402 = sadd.s32 %s401, 1
      %s403 = scalar_select %p400, %s401, %s402
      %p406 = pneg %p400
      %p407 = scmp.eq.s32.totalorder %s29, 1
      %p408 = por %p406, %p407
      %p409 = scmp.ne.s32.totalorder %s401, %s404
      %p410 = scmp.eq.s32.totalorder %s29, 0
      %p411 = por %p409, %p410
      %p412 = scmp.ne.s32.totalorder %s401, %s404
      %p413 = scmp.eq.s32.totalorder %s34, 1
      %p414 = por %p412, %p413
      %p415 = scmp.ne.s32.totalorder %s404, %s405
      %p416 = scmp.eq.s32.totalorder %s34, 0
      %p417 = por %p415, %p416
      %p418 = scmp.ne.s32.totalorder %s404, %s405
      %p419 = scmp.eq.s32.totalorder %s35, 1
      %p420 = por %p418, %p419
      %p422 = scmp.ne.s32.totalorder %s405, %s421
      %p423 = scmp.eq.s32.totalorder %s35, 0
      %p424 = por %p422, %p423
      %p425 = scmp.le.s32.totalorder 1, %s29
      %p426 = scmp.lt.s32.totalorder %s29, 3
      %p427 = pnand %p425, %p426
      %p428 = pneg %p427
      // Predicated region
      $region9: #{tpu_custom_call.1} parent=5 // pred_check
        _
      $region10: #{tpu_custom_call.1} parent=5 // pred_check_branch
        %430 = sbr.rel (%p427) target = $region12
      $region11: #{tpu_custom_call.1} parent=5 // pred_region
        %s431 = ssub.s32 %s29, 1
        // Predicated region
        $region13: #{tpu_custom_call.1} parent=11 // pred_check
          %p432 = pneg %p76
        $region14: #{tpu_custom_call.1} parent=11 // pred_check_branch
          %434 = sbr.rel (%p432) target = $region16
        $region15: #{tpu_custom_call.1} parent=11 // pred_region
          _
        $region16: #{tpu_custom_call.1} parent=11 // pred_fallthru
          _
        // Predicated region
        $region17: #{tpu_custom_call.1} parent=11 // pred_check
          %p435 = pneg %p97
        $region18: #{tpu_custom_call.1} parent=11 // pred_check_branch
          %437 = sbr.rel (%p435) target = $region20
        $region19: #{tpu_custom_call.1} parent=11 // pred_region
          _
        $region20: #{tpu_custom_call.1} parent=11 // pred_fallthru
          _
        // Predicated region
        $region21: #{tpu_custom_call.1} parent=11 // pred_check
          %p438 = pneg %p118
        $region22: #{tpu_custom_call.1} parent=11 // pred_check_branch
          %440 = sbr.rel (%p438) target = $region24
        $region23: #{tpu_custom_call.1} parent=11 // pred_region
          %442 = vsyncadd [#allocation3], 0
          %s443 = sshll.u32 %s3, 4
          %s444 = int_to_ptr.hbm [resolvable:$true] %s443
          %s445 = sshll.u32 [#allocation2], 4
          %s446 = int_to_ptr.vmem [resolvable:$true] %s445
          %451 = dma.hbm_to_vmem [thread:$0]  %s444, 6400, %s446, [#allocation3], 256, 256, 16
        $region24: #{tpu_custom_call.1} parent=11 // pred_fallthru
          _
        // Predicated region
        $region25: #{tpu_custom_call.1} parent=11 // pred_check
          %p452 = pneg %p139
        $region26: #{tpu_custom_call.1} parent=11 // pred_check_branch
          %454 = sbr.rel (%p452) target = $region28
        $region27: #{tpu_custom_call.1} parent=11 // pred_region
          _
        $region28: #{tpu_custom_call.1} parent=11 // pred_fallthru
          _
        // Predicated region
        $region29: #{tpu_custom_call.1} parent=11 // pred_check
          %p455 = pneg %p160
        $region30: #{tpu_custom_call.1} parent=11 // pred_check_branch
          %457 = sbr.rel (%p455) target = $region32
        $region31: #{tpu_custom_call.1} parent=11 // pred_region
          %459 = vsyncadd [#allocation6], 0
          %s460 = sshll.u32 %s5, 4
          %s461 = int_to_ptr.hbm [resolvable:$true] %s460
          %s462 = sshll.u32 [#allocation5], 4
          %s463 = int_to_ptr.vmem [resolvable:$true] %s462
          %468 = dma.hbm_to_vmem [thread:$0]  %s461, 22400, %s463, [#allocation6], 448, 448, 28
        $region32: #{tpu_custom_call.1} parent=11 // pred_fallthru
          _
        // Predicated region
        $region33: #{tpu_custom_call.1} parent=11 // pred_check
          %p469 = pneg %p181
        $region34: #{tpu_custom_call.1} parent=11 // pred_check_branch
          %471 = sbr.rel (%p469) target = $region36
        $region35: #{tpu_custom_call.1} parent=11 // pred_region
          _
        $region36: #{tpu_custom_call.1} parent=11 // pred_fallthru
          _
        // Predicated region
        $region37: #{tpu_custom_call.1} parent=11 // pred_check
          %p472 = pneg %p202
        $region38: #{tpu_custom_call.1} parent=11 // pred_check_branch
          %474 = sbr.rel (%p472) target = $region40
        $region39: #{tpu_custom_call.1} parent=11 // pred_region
          _
        $region40: #{tpu_custom_call.1} parent=11 // pred_fallthru
          _
        // Predicated region
        $region41: #{tpu_custom_call.1} parent=11 // pred_check
          %p475 = pneg %p223
        $region42: #{tpu_custom_call.1} parent=11 // pred_check_branch
          %477 = sbr.rel (%p475) target = $region44
        $region43: #{tpu_custom_call.1} parent=11 // pred_region
          _
        $region44: #{tpu_custom_call.1} parent=11 // pred_fallthru
          _
        // Predicated region
        $region45: #{tpu_custom_call.1} parent=11 // pred_check
          %p478 = pneg %p244
        $region46: #{tpu_custom_call.1} parent=11 // pred_check_branch
          %480 = sbr.rel (%p478) target = $region48
        $region47: #{tpu_custom_call.1} parent=11 // pred_region
          %482 = vsyncadd [#allocation6], 0
          %s483 = sshll.u32 %s9, 4
          %s484 = int_to_ptr.hbm [resolvable:$true] %s483
          %s485 = sshll.u32 [#allocation7], 4
          %s486 = int_to_ptr.vmem [resolvable:$true] %s485
          %491 = dma.hbm_to_vmem [thread:$0]  %s484, 44800, %s486, [#allocation6], 448, 448, 28
        $region48: #{tpu_custom_call.1} parent=11 // pred_fallthru
          _
        // Predicated region
        $region49: #{tpu_custom_call.1} parent=11 // pred_check
          %p492 = pneg %p265
        $region50: #{tpu_custom_call.1} parent=11 // pred_check_branch
          %494 = sbr.rel (%p492) target = $region52
        $region51: #{tpu_custom_call.1} parent=11 // pred_region
          _
        $region52: #{tpu_custom_call.1} parent=11 // pred_fallthru
          _
        // Predicated region
        $region53: #{tpu_custom_call.1} parent=11 // pred_check
          %p495 = pneg %p286
        $region54: #{tpu_custom_call.1} parent=11 // pred_check_branch
          %497 = sbr.rel (%p495) target = $region56
        $region55: #{tpu_custom_call.1} parent=11 // pred_region
          _
        $region56: #{tpu_custom_call.1} parent=11 // pred_fallthru
          _
        // Predicated region
        $region57: #{tpu_custom_call.1} parent=11 // pred_check
          %p498 = pneg %p307
        $region58: #{tpu_custom_call.1} parent=11 // pred_check_branch
          %500 = sbr.rel (%p498) target = $region60
        $region59: #{tpu_custom_call.1} parent=11 // pred_region
          _
        $region60: #{tpu_custom_call.1} parent=11 // pred_fallthru
          _
        // Predicated region
        $region61: #{tpu_custom_call.1} parent=11 // pred_check
          %p501 = pneg %p328
        $region62: #{tpu_custom_call.1} parent=11 // pred_check_branch
          %503 = sbr.rel (%p501) target = $region64
        $region63: #{tpu_custom_call.1} parent=11 // pred_region
          %505 = vsyncadd [#allocation9], 0
          %s506 = sshll.u32 %s13, 4
          %s507 = int_to_ptr.hbm [resolvable:$true] %s506
          %s508 = sshll.u32 [#allocation8], 4
          %s509 = int_to_ptr.vmem [resolvable:$true] %s508
          %514 = dma.hbm_to_vmem [thread:$0]  %s507, 6400, %s509, [#allocation9], 128, 128, 8
        $region64: #{tpu_custom_call.1} parent=11 // pred_fallthru
          _
        // Predicated region
        $region65: #{tpu_custom_call.1} parent=11 // pred_check
          %p515 = pneg %p349
        $region66: #{tpu_custom_call.1} parent=11 // pred_check_branch
          %517 = sbr.rel (%p515) target = $region68
        $region67: #{tpu_custom_call.1} parent=11 // pred_region
          _
        $region68: #{tpu_custom_call.1} parent=11 // pred_fallthru
          _
        // Predicated region
        $region69: #{tpu_custom_call.1} parent=11 // pred_check
          %p518 = pneg %p370
        $region70: #{tpu_custom_call.1} parent=11 // pred_check_branch
          %520 = sbr.rel (%p518) target = $region72
        $region71: #{tpu_custom_call.1} parent=11 // pred_region
          _
        $region72: #{tpu_custom_call.1} parent=11 // pred_fallthru
          _
        // Predicated region
        $region73: #{tpu_custom_call.1} parent=11 // pred_check
          %p521 = pneg %p391
        $region74: #{tpu_custom_call.1} parent=11 // pred_check_branch
          %523 = sbr.rel (%p521) target = $region76
        $region75: #{tpu_custom_call.1} parent=11 // pred_region
          _
        $region76: #{tpu_custom_call.1} parent=11 // pred_fallthru
          _
      $region12: #{tpu_custom_call.1} parent=5 // pred_fallthru
        _
      %p524 = scmp.lt.s32.totalorder %s29, 2
      // Predicated region
      $region77: #{tpu_custom_call.1} parent=5 // pred_check
        %p525 = pneg %p524
      $region78: #{tpu_custom_call.1} parent=5 // pred_check_branch
        %527 = sbr.rel (%p525) target = $region80
      $region79: #{tpu_custom_call.1} parent=5 // pred_region
        // Predicated region
        $region81: #{tpu_custom_call.1} parent=79 // pred_check
          %p528 = pneg %p49
        $region82: #{tpu_custom_call.1} parent=79 // pred_check_branch
          %530 = sbr.rel (%p528) target = $region84
        $region83: #{tpu_custom_call.1} parent=79 // pred_region
          %p531 = scmp.lt.s32.totalorder %s29, 1
          %s532 = scalar_select %p531, %s29, 1
          %s533 = smul.addr %s532, 8
          %s534 = scalar_lea.vmem %s0, %s533
        $region84: #{tpu_custom_call.1} parent=79 // pred_fallthru
          _
      $region80: #{tpu_custom_call.1} parent=5 // pred_fallthru
        _
      %p535 = scmp.le.s32.totalorder 1, %s29
      %p536 = scmp.lt.s32.totalorder %s29, 3
      %p537 = pnand %p535, %p536
      %p538 = pneg %p537
      // Predicated region
      $region85: #{tpu_custom_call.1} parent=5 // pred_check
        _
      $region86: #{tpu_custom_call.1} parent=5 // pred_check_branch
        %540 = sbr.rel (%p537) target = $region88
      $region87: #{tpu_custom_call.1} parent=5 // pred_region
        %s541 = ssub.s32 %s29, 1
        // Predicated region
        $region89: #{tpu_custom_call.1} parent=87 // pred_check
          %p542 = pneg %p118
        $region90: #{tpu_custom_call.1} parent=87 // pred_check_branch
          %544 = sbr.rel (%p542) target = $region92
        $region91: #{tpu_custom_call.1} parent=87 // pred_region
          %546 = dma.done [#allocation3], 6400
        $region92: #{tpu_custom_call.1} parent=87 // pred_fallthru
          _
        // Predicated region
        $region93: #{tpu_custom_call.1} parent=87 // pred_check
          %p547 = pneg %p160
        $region94: #{tpu_custom_call.1} parent=87 // pred_check_branch
          %549 = sbr.rel (%p547) target = $region96
        $region95: #{tpu_custom_call.1} parent=87 // pred_region
          %551 = dma.done [#allocation6], 22400
        $region96: #{tpu_custom_call.1} parent=87 // pred_fallthru
          _
        // Predicated region
        $region97: #{tpu_custom_call.1} parent=87 // pred_check
          %p552 = pneg %p244
        $region98: #{tpu_custom_call.1} parent=87 // pred_check_branch
          %554 = sbr.rel (%p552) target = $region100
        $region99: #{tpu_custom_call.1} parent=87 // pred_region
          %556 = dma.done [#allocation6], 44800
        $region100: #{tpu_custom_call.1} parent=87 // pred_fallthru
          _
        // Predicated region
        $region101: #{tpu_custom_call.1} parent=87 // pred_check
          %p557 = pneg %p328
        $region102: #{tpu_custom_call.1} parent=87 // pred_check_branch
          %559 = sbr.rel (%p557) target = $region104
        $region103: #{tpu_custom_call.1} parent=87 // pred_region
          %561 = dma.done [#allocation9], 6400
        $region104: #{tpu_custom_call.1} parent=87 // pred_fallthru
          _
        %p562 = scmp.lt.s32.totalorder %s34, 1
        %s563 = scalar_select %p562, %s34, 1
        %s564 = smul.addr %s563, 8
        %s565 = scalar_lea.vmem %s0, %s564
        %p566 = pneg %p55
        %p567 = pneg %p52
        %p568 = pneg %p76
        %p569 = pneg %p73
        %p570 = pneg %p97
        %p571 = pneg %p94
        %p572 = pneg %p118
        %p573 = pneg %p115
        %p574 = pneg %p139
        %p575 = pneg %p136
        %p576 = pneg %p160
        %p577 = pneg %p157
        %p578 = pneg %p181
        %p579 = pneg %p178
        %p580 = pneg %p202
        %p581 = pneg %p199
        %p582 = pneg %p223
        %p583 = pneg %p220
        %p584 = pneg %p244
        %p585 = pneg %p241
        %p586 = pneg %p265
        %p587 = pneg %p262
        %p588 = pneg %p286
        %p589 = pneg %p283
        %p590 = pneg %p307
        %p591 = pneg %p304
        %p592 = pneg %p328
        %p593 = pneg %p325
        %p594 = pneg %p349
        %p595 = pneg %p346
        %p596 = pneg %p370
        %p597 = pneg %p367
        %p598 = pneg %p391
        %p599 = pneg %p388
        %p600 = pneg %p417
        %p601 = pneg %p414
        %s602 = sand.u32 %s404, 1
        %s603 = scalar_lea.sflag [#allocation4], %s602
        %s604 = sand.u32 %s404, 1
        %s605 = smul.addr %s604, 8
        %s606 = scalar_lea.vmem [#allocation10], %s605
        %p607 = scmp.lt.s32.totalorder %s34, 1
        %s608 = scalar_select %p607, %s34, 1
        %s609 = smul.addr %s608, 8
        %s610 = scalar_lea.vmem %s0, %s609
        %v612 = vld [vmem:[%s610] sm:$0xff]
        %v613 = vpack.c.bf16 %v612, %v612
        %v614 = vld [vmem:[%s1] sm:$0xff]
        %v615 = vld [vmem:[%s1 + $0x8] sm:$0xff]
        %v616 = vld [vmem:[%s1 + $0x10] sm:$0xff]
        %v617 = vld [vmem:[%s1 + $0x18] sm:$0x77]
        %v618 = vld [vmem:[%s2] sm:$0x3]
        %v620 = vperm.slane %v618, 0
        %v621 = vperm.slane %v618, 1
        %v628 = vunpack.c.l.b16 %v614
        %v629 = vunpack.c.h.b16 %v614
        %v630 = vunpack.c.l.b16 %v615
        %v631 = vunpack.c.h.b16 %v615
        %v632 = vunpack.c.l.b16 %v616
        %v633 = vunpack.c.h.b16 %v616
        %v634 = vunpack.c.l.b16 %v617
        %v635 = vunpack.c.h.b16 %v617
        %v636 = vpack.c.b16 %v630, %v628
        %v637 = vpack.c.b16 %v631, %v629
        %v638 = vpack.c.b16 %v634, %v632
        %v639 = vpack.c.b16 %v635, %v633
        %vm642 = vcmask 244736
        %v644 = vsel %vm642, %v613, 0
        %vm646 = vcmask 1046528
        %v648 = vsel %vm646, %v638, 0
        %v651 = vsel %vm646, %v639, 0
        %653 = vmatpush.bf16.msra.mxu0 0
        %654 = vmatpush.bf16.msra.mxu0 0
        %655 = vmatpush.bf16.msra.mxu0 0
        %656 = vmatpush.bf16.msra.mxu0 0
        %657 = vmatpush.bf16.msra.mxu0 0
        %658 = vmatpush.bf16.msra.mxu0 0
        %659 = vmatpush.bf16.msra.mxu0 %v648
        %660 = vmatpush.bf16.msra.mxu0 %v636
        %661 = vmatmul.bf16.gmra.mxu0 %v644
        %v662 = vpop.f32.mrf.mxu0
        %v663 = vadd.f32 %v620, %v662
        %v664 = vpop.f32.mrf.mxu0
        %665 = vdwg.mxu0
        %666 = vmatpush.bf16.msra.mxu0 0
        %667 = vmatpush.bf16.msra.mxu0 0
        %668 = vmatpush.bf16.msra.mxu0 0
        %669 = vmatpush.bf16.msra.mxu0 0
        %670 = vmatpush.bf16.msra.mxu0 0
        %671 = vmatpush.bf16.msra.mxu0 0
        %672 = vmatpush.bf16.msra.mxu0 %v651
        %673 = vmatpush.bf16.msra.mxu0 %v637
        %674 = vmatmul.bf16.gmra.mxu0 %v644
        %v675 = vpop.f32.mrf.mxu0
        %v676 = vadd.f32 %v621, %v675
        %v677 = vpop.f32.mrf.mxu0
        %678 = vdwg.mxu0
        %vm679 = vcmp.gt.f32.partialorder %v663, 0.0
        %vm680 = vcmp.gt.f32.partialorder %v676, 0.0
        %v681 = vmul.f32 %v663, 0.01
        %v682 = vmul.f32 %v676, 0.01
        %v683 = vsel %vm679, %v663, %v681
        %v684 = vsel %vm680, %v676, %v682
        %v685 = vpack.c.bf16 %v683, %v683
        %v686 = vpack.c.bf16 %v684, %v684
        %v687 = vld [vmem:[#allocation2] sm:$0xff]
        %v688 = vld [vmem:[#allocation2 + $0x8] sm:$0xff]
        %v689 = vld [vmem:[#allocation2 + $0x10] sm:$0xff]
        %v690 = vld [vmem:[#allocation2 + $0x18] sm:$0xff]
        %v691 = vld [vmem:[#allocation2 + $0x20] sm:$0xff]
        %v692 = vld [vmem:[#allocation2 + $0x28] sm:$0xff]
        %v693 = vld [vmem:[#allocation2 + $0x30] sm:$0xff]
        %v694 = vld [vmem:[#allocation2 + $0x38] sm:$0xff]
        %v695 = vld [vmem:[#allocation2 + $0x40] sm:$0xff]
        %v696 = vld [vmem:[#allocation2 + $0x48] sm:$0xff]
        %v697 = vld [vmem:[#allocation2 + $0x50] sm:$0xff]
        %v698 = vld [vmem:[#allocation2 + $0x58] sm:$0xff]
        %v699 = vld [vmem:[#allocation2 + $0x60] sm:$0xff]
        %v700 = vld [vmem:[#allocation2 + $0x68] sm:$0xff]
        %v701 = vld [vmem:[#allocation2 + $0x70] sm:$0xff]
        %v702 = vld [vmem:[#allocation2 + $0x78] sm:$0xff]
        %v703 = vld [vmem:[#allocation2 + $0x80] sm:$0xff]
        %v704 = vld [vmem:[#allocation2 + $0x88] sm:$0xff]
        %v705 = vld [vmem:[#allocation2 + $0x90] sm:$0xff]
        %v706 = vld [vmem:[#allocation2 + $0x98] sm:$0xff]
        %v707 = vld [vmem:[#allocation2 + $0xa0] sm:$0xff]
        %v708 = vld [vmem:[#allocation2 + $0xa8] sm:$0xff]
        %v709 = vld [vmem:[#allocation2 + $0xb0] sm:$0xff]
        %v710 = vld [vmem:[#allocation2 + $0xb8] sm:$0xff]
        %v711 = vld [vmem:[#allocation2 + $0xc0] sm:$0xff]
        %v712 = vld [vmem:[#allocation2 + $0xc8] sm:$0xff]
        %v713 = vld [vmem:[#allocation2 + $0xd0] sm:$0xff]
        %v714 = vld [vmem:[#allocation2 + $0xd8] sm:$0xff]
        %v715 = vld [vmem:[#allocation2 + $0xe0] sm:$0xff]
        %v716 = vld [vmem:[#allocation2 + $0xe8] sm:$0xff]
        %v717 = vld [vmem:[#allocation2 + $0xf0] sm:$0xff]
        %v718 = vld [vmem:[#allocation2 + $0xf8] sm:$0xff]
        %v719 = vld [vmem:[#allocation2 + $0x100] sm:$0xff]
        %v720 = vld [vmem:[#allocation2 + $0x108] sm:$0xff]
        %v721 = vld [vmem:[#allocation2 + $0x110] sm:$0xff]
        %v722 = vld [vmem:[#allocation2 + $0x118] sm:$0xff]
        %v723 = vld [vmem:[#allocation2 + $0x120] sm:$0xff]
        %v724 = vld [vmem:[#allocation2 + $0x128] sm:$0xff]
        %v725 = vld [vmem:[#allocation2 + $0x130] sm:$0xff]
        %v726 = vld [vmem:[#allocation2 + $0x138] sm:$0xff]
        %v727 = vld [vmem:[#allocation2 + $0x140] sm:$0xff]
        %v728 = vld [vmem:[#allocation2 + $0x148] sm:$0xff]
        %v729 = vld [vmem:[#allocation2 + $0x150] sm:$0xff]
        %v730 = vld [vmem:[#allocation2 + $0x158] sm:$0xff]
        %v731 = vld [vmem:[#allocation2 + $0x160] sm:$0xff]
        %v732 = vld [vmem:[#allocation2 + $0x168] sm:$0xff]
        %v733 = vld [vmem:[#allocation2 + $0x170] sm:$0xff]
        %v734 = vld [vmem:[#allocation2 + $0x178] sm:$0xff]
        %v735 = vld [vmem:[#allocation2 + $0x180] sm:$0xff]
        %v736 = vld [vmem:[#allocation2 + $0x188] sm:$0xff]
        %v737 = vld [vmem:[%s4] sm:$0xf]
        %v739 = vperm.slane %v737, 0
        %v740 = vperm.slane %v737, 1
        %v741 = vperm.slane %v737, 2
        %v742 = vperm.slane %v737, 3
        %v797 = vunpack.c.l.b16 %v687
        %v798 = vunpack.c.h.b16 %v687
        %v799 = vunpack.c.l.b16 %v688
        %v800 = vunpack.c.h.b16 %v688
        %v801 = vunpack.c.l.b16 %v689
        %v802 = vunpack.c.h.b16 %v689
        %v803 = vunpack.c.l.b16 %v690
        %v804 = vunpack.c.h.b16 %v690
        %v805 = vunpack.c.l.b16 %v691
        %v806 = vunpack.c.h.b16 %v691
        %v807 = vunpack.c.l.b16 %v692
        %v808 = vunpack.c.h.b16 %v692
        %v809 = vunpack.c.l.b16 %v693
        %v810 = vunpack.c.h.b16 %v693
        %v811 = vunpack.c.l.b16 %v694
        %v812 = vunpack.c.h.b16 %v694
        %v813 = vunpack.c.l.b16 %v695
        %v814 = vunpack.c.h.b16 %v695
        %v815 = vunpack.c.l.b16 %v696
        %v816 = vunpack.c.h.b16 %v696
        %v817 = vunpack.c.l.b16 %v697
        %v818 = vunpack.c.h.b16 %v697
        %v819 = vunpack.c.l.b16 %v698
        %v820 = vunpack.c.h.b16 %v698
        %v821 = vunpack.c.l.b16 %v699
        %v822 = vunpack.c.h.b16 %v699
        %v823 = vunpack.c.l.b16 %v700
        %v824 = vunpack.c.h.b16 %v700
        %v825 = vunpack.c.l.b16 %v701
        %v826 = vunpack.c.h.b16 %v701
        %v827 = vunpack.c.l.b16 %v702
        %v828 = vunpack.c.h.b16 %v702
        %v829 = vunpack.c.l.b16 %v703
        %v830 = vunpack.c.h.b16 %v703
        %v831 = vunpack.c.l.b16 %v704
        %v832 = vunpack.c.h.b16 %v704
        %v833 = vunpack.c.l.b16 %v705
        %v834 = vunpack.c.h.b16 %v705
        %v835 = vunpack.c.l.b16 %v706
        %v836 = vunpack.c.h.b16 %v706
        %v837 = vunpack.c.l.b16 %v707
        %v838 = vunpack.c.h.b16 %v707
        %v839 = vunpack.c.l.b16 %v708
        %v840 = vunpack.c.h.b16 %v708
        %v841 = vunpack.c.l.b16 %v709
        %v842 = vunpack.c.h.b16 %v709
        %v843 = vunpack.c.l.b16 %v710
        %v844 = vunpack.c.h.b16 %v710
        %v845 = vunpack.c.l.b16 %v711
        %v846 = vunpack.c.h.b16 %v711
        %v847 = vunpack.c.l.b16 %v712
        %v848 = vunpack.c.h.b16 %v712
        %v849 = vunpack.c.l.b16 %v713
        %v850 = vunpack.c.h.b16 %v713
        %v851 = vunpack.c.l.b16 %v714
        %v852 = vunpack.c.h.b16 %v714
        %v853 = vunpack.c.l.b16 %v715
        %v854 = vunpack.c.h.b16 %v715
        %v855 = vunpack.c.l.b16 %v716
        %v856 = vunpack.c.h.b16 %v716
        %v857 = vunpack.c.l.b16 %v717
        %v858 = vunpack.c.h.b16 %v717
        %v859 = vunpack.c.l.b16 %v718
        %v860 = vunpack.c.h.b16 %v718
        %v861 = vunpack.c.l.b16 %v719
        %v862 = vunpack.c.h.b16 %v719
        %v863 = vunpack.c.l.b16 %v720
        %v864 = vunpack.c.h.b16 %v720
        %v865 = vunpack.c.l.b16 %v721
        %v866 = vunpack.c.h.b16 %v721
        %v867 = vunpack.c.l.b16 %v722
        %v868 = vunpack.c.h.b16 %v722
        %v869 = vunpack.c.l.b16 %v723
        %v870 = vunpack.c.h.b16 %v723
        %v871 = vunpack.c.l.b16 %v724
        %v872 = vunpack.c.h.b16 %v724
        %v873 = vunpack.c.l.b16 %v725
        %v874 = vunpack.c.h.b16 %v725
        %v875 = vunpack.c.l.b16 %v726
        %v876 = vunpack.c.h.b16 %v726
        %v877 = vunpack.c.l.b16 %v727
        %v878 = vunpack.c.h.b16 %v727
        %v879 = vunpack.c.l.b16 %v728
        %v880 = vunpack.c.h.b16 %v728
        %v881 = vunpack.c.l.b16 %v729
        %v882 = vunpack.c.h.b16 %v729
        %v883 = vunpack.c.l.b16 %v730
        %v884 = vunpack.c.h.b16 %v730
        %v885 = vunpack.c.l.b16 %v731
        %v886 = vunpack.c.h.b16 %v731
        %v887 = vunpack.c.l.b16 %v732
        %v888 = vunpack.c.h.b16 %v732
        %v889 = vunpack.c.l.b16 %v733
        %v890 = vunpack.c.h.b16 %v733
        %v891 = vunpack.c.l.b16 %v734
        %v892 = vunpack.c.h.b16 %v734
        %v893 = vunpack.c.l.b16 %v735
        %v894 = vunpack.c.h.b16 %v735
        %v895 = vunpack.c.l.b16 %v736
        %v896 = vunpack.c.h.b16 %v736
        %v897 = vpack.c.b16 %v801, %v797
        %v898 = vpack.c.b16 %v802, %v798
        %v899 = vpack.c.b16 %v803, %v799
        %v900 = vpack.c.b16 %v804, %v800
        %v901 = vpack.c.b16 %v809, %v805
        %v902 = vpack.c.b16 %v810, %v806
        %v903 = vpack.c.b16 %v811, %v807
        %v904 = vpack.c.b16 %v812, %v808
        %v905 = vpack.c.b16 %v817, %v813
        %v906 = vpack.c.b16 %v818, %v814
        %v907 = vpack.c.b16 %v819, %v815
        %v908 = vpack.c.b16 %v820, %v816
        %v909 = vpack.c.b16 %v825, %v821
        %v910 = vpack.c.b16 %v826, %v822
        %v911 = vpack.c.b16 %v827, %v823
        %v912 = vpack.c.b16 %v828, %v824
        %v913 = vpack.c.b16 %v833, %v829
        %v914 = vpack.c.b16 %v834, %v830
        %v915 = vpack.c.b16 %v835, %v831
        %v916 = vpack.c.b16 %v836, %v832
        %v917 = vpack.c.b16 %v841, %v837
        %v918 = vpack.c.b16 %v842, %v838
        %v919 = vpack.c.b16 %v843, %v839
        %v920 = vpack.c.b16 %v844, %v840
        %v921 = vpack.c.b16 %v849, %v845
        %v922 = vpack.c.b16 %v850, %v846
        %v923 = vpack.c.b16 %v851, %v847
        %v924 = vpack.c.b16 %v852, %v848
        %v925 = vpack.c.b16 %v857, %v853
        %v926 = vpack.c.b16 %v858, %v854
        %v927 = vpack.c.b16 %v859, %v855
        %v928 = vpack.c.b16 %v860, %v856
        %v929 = vpack.c.b16 %v865, %v861
        %v930 = vpack.c.b16 %v866, %v862
        %v931 = vpack.c.b16 %v867, %v863
        %v932 = vpack.c.b16 %v868, %v864
        %v933 = vpack.c.b16 %v873, %v869
        %v934 = vpack.c.b16 %v874, %v870
        %v935 = vpack.c.b16 %v875, %v871
        %v936 = vpack.c.b16 %v876, %v872
        %v937 = vpack.c.b16 %v881, %v877
        %v938 = vpack.c.b16 %v882, %v878
        %v939 = vpack.c.b16 %v883, %v879
        %v940 = vpack.c.b16 %v884, %v880
        %v941 = vpack.c.b16 %v889, %v885
        %v942 = vpack.c.b16 %v890, %v886
        %v943 = vpack.c.b16 %v891, %v887
        %v944 = vpack.c.b16 %v892, %v888
        %v945 = vpack.c.b16 %v893, %v893
        %v946 = vpack.c.b16 %v894, %v894
        %v947 = vpack.c.b16 %v895, %v895
        %v948 = vpack.c.b16 %v896, %v896
        %vm997 = vcmask 588800
        %v999 = vsel %vm997, %v686, 0
        %vm1001 = vcmask 1043456
        %v1003 = vsel %vm1001, %v945, 0
        %v1006 = vsel %vm1001, %v946, 0
        %v1009 = vsel %vm1001, %v947, 0
        %v1012 = vsel %vm1001, %v948, 0
        %1014 = vmatpush.bf16.msra.mxu0 %v925
        %1015 = vmatpush.bf16.msra.mxu0 %v921
        %1016 = vmatpush.bf16.msra.mxu0 %v917
        %1017 = vmatpush.bf16.msra.mxu0 %v913
        %1018 = vmatpush.bf16.msra.mxu0 %v909
        %1019 = vmatpush.bf16.msra.mxu0 %v905
        %1020 = vmatpush.bf16.msra.mxu0 %v901
        %1021 = vmatpush.bf16.msra.mxu0 %v897
        %1022 = vmatmul.bf16.gmra.mxu0 %v685
        %v1023 = vpop.f32.mrf.mxu0
        %v1024 = vadd.f32 %v739, %v1023
        %v1025 = vpop.f32.mrf.mxu0
        %1026 = vdwg.mxu0
        %1027 = vmatpush.bf16.msra.mxu0 0
        %1028 = vmatpush.bf16.msra.mxu0 0
        %1029 = vmatpush.bf16.msra.mxu0 0
        %1030 = vmatpush.bf16.msra.mxu0 %v1003
        %1031 = vmatpush.bf16.msra.mxu0 %v941
        %1032 = vmatpush.bf16.msra.mxu0 %v937
        %1033 = vmatpush.bf16.msra.mxu0 %v933
        %1034 = vmatpush.bf16.msra.mxu0 %v929
        %1035 = vmatmul.bf16.gmra.mxu0 %v999
        %v1036 = vpop.f32.mrf.mxu0
        %v1037 = vadd.f32 %v1024, %v1036
        %v1038 = vpop.f32.mrf.mxu0
        %1039 = vdwg.mxu0
        %1040 = vmatpush.bf16.msra.mxu0 %v926
        %1041 = vmatpush.bf16.msra.mxu0 %v922
        %1042 = vmatpush.bf16.msra.mxu0 %v918
        %1043 = vmatpush.bf16.msra.mxu0 %v914
        %1044 = vmatpush.bf16.msra.mxu0 %v910
        %1045 = vmatpush.bf16.msra.mxu0 %v906
        %1046 = vmatpush.bf16.msra.mxu0 %v902
        %1047 = vmatpush.bf16.msra.mxu0 %v898
        %1048 = vmatmul.bf16.gmra.mxu0 %v685
        %v1049 = vpop.f32.mrf.mxu0
        %v1050 = vadd.f32 %v740, %v1049
        %v1051 = vpop.f32.mrf.mxu0
        %1052 = vdwg.mxu0
        %1053 = vmatpush.bf16.msra.mxu0 0
        %1054 = vmatpush.bf16.msra.mxu0 0
        %1055 = vmatpush.bf16.msra.mxu0 0
        %1056 = vmatpush.bf16.msra.mxu0 %v1006
        %1057 = vmatpush.bf16.msra.mxu0 %v942
        %1058 = vmatpush.bf16.msra.mxu0 %v938
        %1059 = vmatpush.bf16.msra.mxu0 %v934
        %1060 = vmatpush.bf16.msra.mxu0 %v930
        %1061 = vmatmul.bf16.gmra.mxu0 %v999
        %v1062 = vpop.f32.mrf.mxu0
        %v1063 = vadd.f32 %v1050, %v1062
        %v1064 = vpop.f32.mrf.mxu0
        %1065 = vdwg.mxu0
        %1066 = vmatpush.bf16.msra.mxu0 %v927
        %1067 = vmatpush.bf16.msra.mxu0 %v923
        %1068 = vmatpush.bf16.msra.mxu0 %v919
        %1069 = vmatpush.bf16.msra.mxu0 %v915
        %1070 = vmatpush.bf16.msra.mxu0 %v911
        %1071 = vmatpush.bf16.msra.mxu0 %v907
        %1072 = vmatpush.bf16.msra.mxu0 %v903
        %1073 = vmatpush.bf16.msra.mxu0 %v899
        %1074 = vmatmul.bf16.gmra.mxu0 %v685
        %v1075 = vpop.f32.mrf.mxu0
        %v1076 = vadd.f32 %v741, %v1075
        %v1077 = vpop.f32.mrf.mxu0
        %1078 = vdwg.mxu0
        %1079 = vmatpush.bf16.msra.mxu0 0
        %1080 = vmatpush.bf16.msra.mxu0 0
        %1081 = vmatpush.bf16.msra.mxu0 0
        %1082 = vmatpush.bf16.msra.mxu0 %v1009
        %1083 = vmatpush.bf16.msra.mxu0 %v943
        %1084 = vmatpush.bf16.msra.mxu0 %v939
        %1085 = vmatpush.bf16.msra.mxu0 %v935
        %1086 = vmatpush.bf16.msra.mxu0 %v931
        %1087 = vmatmul.bf16.gmra.mxu0 %v999
        %v1088 = vpop.f32.mrf.mxu0
        %v1089 = vadd.f32 %v1076, %v1088
        %v1090 = vpop.f32.mrf.mxu0
        %1091 = vdwg.mxu0
        %1092 = vmatpush.bf16.msra.mxu0 %v928
        %1093 = vmatpush.bf16.msra.mxu0 %v924
        %1094 = vmatpush.bf16.msra.mxu0 %v920
        %1095 = vmatpush.bf16.msra.mxu0 %v916
        %1096 = vmatpush.bf16.msra.mxu0 %v912
        %1097 = vmatpush.bf16.msra.mxu0 %v908
        %1098 = vmatpush.bf16.msra.mxu0 %v904
        %1099 = vmatpush.bf16.msra.mxu0 %v900
        %1100 = vmatmul.bf16.gmra.mxu0 %v685
        %v1101 = vpop.f32.mrf.mxu0
        %v1102 = vadd.f32 %v742, %v1101
        %v1103 = vpop.f32.mrf.mxu0
        %1104 = vdwg.mxu0
        %1105 = vmatpush.bf16.msra.mxu0 0
        %1106 = vmatpush.bf16.msra.mxu0 0
        %1107 = vmatpush.bf16.msra.mxu0 0
        %1108 = vmatpush.bf16.msra.mxu0 %v1012
        %1109 = vmatpush.bf16.msra.mxu0 %v944
        %1110 = vmatpush.bf16.msra.mxu0 %v940
        %1111 = vmatpush.bf16.msra.mxu0 %v936
        %1112 = vmatpush.bf16.msra.mxu0 %v932
        %1113 = vmatmul.bf16.gmra.mxu0 %v999
        %v1114 = vpop.f32.mrf.mxu0
        %v1115 = vadd.f32 %v1102, %v1114
        %v1116 = vpop.f32.mrf.mxu0
        %1117 = vdwg.mxu0
        %vm1118 = vcmp.gt.f32.partialorder %v1037, 0.0
        %vm1119 = vcmp.gt.f32.partialorder %v1063, 0.0
        %vm1120 = vcmp.gt.f32.partialorder %v1089, 0.0
        %vm1121 = vcmp.gt.f32.partialorder %v1115, 0.0
        %v1122 = vmul.f32 %v1037, 0.01
        %v1123 = vmul.f32 %v1063, 0.01
        %v1124 = vmul.f32 %v1089, 0.01
        %v1125 = vmul.f32 %v1115, 0.01
        %v1126 = vsel %vm1118, %v1037, %v1122
        %v1127 = vsel %vm1119, %v1063, %v1123
        %v1128 = vsel %vm1120, %v1089, %v1124
        %v1129 = vsel %vm1121, %v1115, %v1125
        %v1130 = vpack.c.bf16 %v1126, %v1126
        %v1131 = vpack.c.bf16 %v1127, %v1127
        %v1132 = vpack.c.bf16 %v1128, %v1128
        %v1133 = vpack.c.bf16 %v1129, %v1129
        %v1134 = vld [vmem:[#allocation5] sm:$0xff]
        %v1135 = vld [vmem:[#allocation5 + $0x8] sm:$0xff]
        %v1136 = vld [vmem:[#allocation5 + $0x10] sm:$0xff]
        %v1137 = vld [vmem:[#allocation5 + $0x18] sm:$0xf]
        %v1138 = vld [vmem:[#allocation5 + $0x1c] sm:$0xff]
        %v1139 = vld [vmem:[#allocation5 + $0x24] sm:$0xff]
        %v1140 = vld [vmem:[#allocation5 + $0x2c] sm:$0xff]
        %v1141 = vld [vmem:[#allocation5 + $0x34] sm:$0xf]
        %v1142 = vld [vmem:[#allocation5 + $0x38] sm:$0xff]
        %v1143 = vld [vmem:[#allocation5 + $0x40] sm:$0xff]
        %v1144 = vld [vmem:[#allocation5 + $0x48] sm:$0xff]
        %v1145 = vld [vmem:[#allocation5 + $0x50] sm:$0xf]
        %v1146 = vld [vmem:[#allocation5 + $0x54] sm:$0xff]
        %v1147 = vld [vmem:[#allocation5 + $0x5c] sm:$0xff]
        %v1148 = vld [vmem:[#allocation5 + $0x64] sm:$0xff]
        %v1149 = vld [vmem:[#allocation5 + $0x6c] sm:$0xf]
        %v1150 = vld [vmem:[#allocation5 + $0x70] sm:$0xff]
        %v1151 = vld [vmem:[#allocation5 + $0x78] sm:$0xff]
        %v1152 = vld [vmem:[#allocation5 + $0x80] sm:$0xff]
        %v1153 = vld [vmem:[#allocation5 + $0x88] sm:$0xf]
        %v1154 = vld [vmem:[#allocation5 + $0x8c] sm:$0xff]
        %v1155 = vld [vmem:[#allocation5 + $0x94] sm:$0xff]
        %v1156 = vld [vmem:[#allocation5 + $0x9c] sm:$0xff]
        %v1157 = vld [vmem:[#allocation5 + $0xa4] sm:$0xf]
        %v1158 = vld [vmem:[#allocation5 + $0xa8] sm:$0xff]
        %v1159 = vld [vmem:[#allocation5 + $0xb0] sm:$0xff]
        %v1160 = vld [vmem:[#allocation5 + $0xb8] sm:$0xff]
        %v1161 = vld [vmem:[#allocation5 + $0xc0] sm:$0xf]
        %v1162 = vld [vmem:[#allocation5 + $0xc4] sm:$0xff]
        %v1163 = vld [vmem:[#allocation5 + $0xcc] sm:$0xff]
        %v1164 = vld [vmem:[#allocation5 + $0xd4] sm:$0xff]
        %v1165 = vld [vmem:[#allocation5 + $0xdc] sm:$0xf]
        %v1166 = vld [vmem:[#allocation5 + $0xe0] sm:$0xff]
        %v1167 = vld [vmem:[#allocation5 + $0xe8] sm:$0xff]
        %v1168 = vld [vmem:[#allocation5 + $0xf0] sm:$0xff]
        %v1169 = vld [vmem:[#allocation5 + $0xf8] sm:$0xf]
        %v1170 = vld [vmem:[#allocation5 + $0xfc] sm:$0xff]
        %v1171 = vld [vmem:[#allocation5 + $0x104] sm:$0xff]
        %v1172 = vld [vmem:[#allocation5 + $0x10c] sm:$0xff]
        %v1173 = vld [vmem:[#allocation5 + $0x114] sm:$0xf]
        %v1174 = vld [vmem:[#allocation5 + $0x118] sm:$0xff]
        %v1175 = vld [vmem:[#allocation5 + $0x120] sm:$0xff]
        %v1176 = vld [vmem:[#allocation5 + $0x128] sm:$0xff]
        %v1177 = vld [vmem:[#allocation5 + $0x130] sm:$0xf]
        %v1178 = vld [vmem:[#allocation5 + $0x134] sm:$0xff]
        %v1179 = vld [vmem:[#allocation5 + $0x13c] sm:$0xff]
        %v1180 = vld [vmem:[#allocation5 + $0x144] sm:$0xff]
        %v1181 = vld [vmem:[#allocation5 + $0x14c] sm:$0xf]
        %v1182 = vld [vmem:[#allocation5 + $0x150] sm:$0xff]
        %v1183 = vld [vmem:[#allocation5 + $0x158] sm:$0xff]
        %v1184 = vld [vmem:[#allocation5 + $0x160] sm:$0xff]
        %v1185 = vld [vmem:[#allocation5 + $0x168] sm:$0xf]
        %v1186 = vld [vmem:[#allocation5 + $0x16c] sm:$0xff]
        %v1187 = vld [vmem:[#allocation5 + $0x174] sm:$0xff]
        %v1188 = vld [vmem:[#allocation5 + $0x17c] sm:$0xff]
        %v1189 = vld [vmem:[#allocation5 + $0x184] sm:$0xf]
        %v1190 = vld [vmem:[#allocation5 + $0x188] sm:$0xff]
        %v1191 = vld [vmem:[#allocation5 + $0x190] sm:$0xff]
        %v1192 = vld [vmem:[#allocation5 + $0x198] sm:$0xff]
        %v1193 = vld [vmem:[#allocation5 + $0x1a0] sm:$0xf]
        %v1194 = vld [vmem:[#allocation5 + $0x1a4] sm:$0xff]
        %v1195 = vld [vmem:[#allocation5 + $0x1ac] sm:$0xff]
        %v1196 = vld [vmem:[#allocation5 + $0x1b4] sm:$0xff]
        %v1197 = vld [vmem:[#allocation5 + $0x1bc] sm:$0xf]
        %v1198 = vld [vmem:[#allocation5 + $0x1c0] sm:$0xff]
        %v1199 = vld [vmem:[#allocation5 + $0x1c8] sm:$0xff]
        %v1200 = vld [vmem:[#allocation5 + $0x1d0] sm:$0xff]
        %v1201 = vld [vmem:[#allocation5 + $0x1d8] sm:$0xf]
        %v1202 = vld [vmem:[#allocation5 + $0x1dc] sm:$0xff]
        %v1203 = vld [vmem:[#allocation5 + $0x1e4] sm:$0xff]
        %v1204 = vld [vmem:[#allocation5 + $0x1ec] sm:$0xff]
        %v1205 = vld [vmem:[#allocation5 + $0x1f4] sm:$0xf]
        %v1206 = vld [vmem:[#allocation5 + $0x1f8] sm:$0xff]
        %v1207 = vld [vmem:[#allocation5 + $0x200] sm:$0xff]
        %v1208 = vld [vmem:[#allocation5 + $0x208] sm:$0xff]
        %v1209 = vld [vmem:[#allocation5 + $0x210] sm:$0xf]
        %v1210 = vld [vmem:[#allocation5 + $0x214] sm:$0xff]
        %v1211 = vld [vmem:[#allocation5 + $0x21c] sm:$0xff]
        %v1212 = vld [vmem:[#allocation5 + $0x224] sm:$0xff]
        %v1213 = vld [vmem:[#allocation5 + $0x22c] sm:$0xf]
        %v1214 = vld [vmem:[#allocation5 + $0x230] sm:$0xff]
        %v1215 = vld [vmem:[#allocation5 + $0x238] sm:$0xff]
        %v1216 = vld [vmem:[#allocation5 + $0x240] sm:$0xff]
        %v1217 = vld [vmem:[#allocation5 + $0x248] sm:$0xf]
        %v1218 = vld [vmem:[#allocation5 + $0x24c] sm:$0xff]
        %v1219 = vld [vmem:[#allocation5 + $0x254] sm:$0xff]
        %v1220 = vld [vmem:[#allocation5 + $0x25c] sm:$0xff]
        %v1221 = vld [vmem:[#allocation5 + $0x264] sm:$0xf]
        %v1222 = vld [vmem:[#allocation5 + $0x268] sm:$0xff]
        %v1223 = vld [vmem:[#allocation5 + $0x270] sm:$0xff]
        %v1224 = vld [vmem:[#allocation5 + $0x278] sm:$0xff]
        %v1225 = vld [vmem:[#allocation5 + $0x280] sm:$0xf]
        %v1226 = vld [vmem:[#allocation5 + $0x284] sm:$0xff]
        %v1227 = vld [vmem:[#allocation5 + $0x28c] sm:$0xff]
        %v1228 = vld [vmem:[#allocation5 + $0x294] sm:$0xff]
        %v1229 = vld [vmem:[#allocation5 + $0x29c] sm:$0xf]
        %v1230 = vld [vmem:[#allocation5 + $0x2a0] sm:$0xff]
        %v1231 = vld [vmem:[#allocation5 + $0x2a8] sm:$0xff]
        %v1232 = vld [vmem:[#allocation5 + $0x2b0] sm:$0xff]
        %v1233 = vld [vmem:[#allocation5 + $0x2b8] sm:$0xf]
        %v1234 = vld [vmem:[#allocation5 + $0x2bc] sm:$0xff]
        %v1235 = vld [vmem:[#allocation5 + $0x2c4] sm:$0xff]
        %v1236 = vld [vmem:[#allocation5 + $0x2cc] sm:$0xff]
        %v1237 = vld [vmem:[#allocation5 + $0x2d4] sm:$0xf]
        %v1238 = vld [vmem:[#allocation5 + $0x2d8] sm:$0xff]
        %v1239 = vld [vmem:[#allocation5 + $0x2e0] sm:$0xff]
        %v1240 = vld [vmem:[#allocation5 + $0x2e8] sm:$0xff]
        %v1241 = vld [vmem:[#allocation5 + $0x2f0] sm:$0xf]
        %v1242 = vld [vmem:[#allocation5 + $0x2f4] sm:$0xff]
        %v1243 = vld [vmem:[#allocation5 + $0x2fc] sm:$0xff]
        %v1244 = vld [vmem:[#allocation5 + $0x304] sm:$0xff]
        %v1245 = vld [vmem:[#allocation5 + $0x30c] sm:$0xf]
        %v1246 = vld [vmem:[#allocation5 + $0x310] sm:$0xff]
        %v1247 = vld [vmem:[#allocation5 + $0x318] sm:$0xff]
        %v1248 = vld [vmem:[#allocation5 + $0x320] sm:$0xff]
        %v1249 = vld [vmem:[#allocation5 + $0x328] sm:$0xf]
        %v1250 = vld [vmem:[#allocation5 + $0x32c] sm:$0xff]
        %v1251 = vld [vmem:[#allocation5 + $0x334] sm:$0xff]
        %v1252 = vld [vmem:[#allocation5 + $0x33c] sm:$0xff]
        %v1253 = vld [vmem:[#allocation5 + $0x344] sm:$0xf]
        %v1254 = vld [vmem:[#allocation5 + $0x348] sm:$0xff]
        %v1255 = vld [vmem:[#allocation5 + $0x350] sm:$0xff]
        %v1256 = vld [vmem:[#allocation5 + $0x358] sm:$0xff]
        %v1257 = vld [vmem:[#allocation5 + $0x360] sm:$0xf]
        %v1258 = vld [vmem:[#allocation5 + $0x364] sm:$0xff]
        %v1259 = vld [vmem:[#allocation5 + $0x36c] sm:$0xff]
        %v1260 = vld [vmem:[#allocation5 + $0x374] sm:$0xff]
        %v1261 = vld [vmem:[#allocation5 + $0x37c] sm:$0xf]
        %v1262 = vld [vmem:[#allocation5 + $0x380] sm:$0xff]
        %v1263 = vld [vmem:[#allocation5 + $0x388] sm:$0xff]
        %v1264 = vld [vmem:[#allocation5 + $0x390] sm:$0xff]
        %v1265 = vld [vmem:[#allocation5 + $0x398] sm:$0xf]
        %v1266 = vld [vmem:[#allocation5 + $0x39c] sm:$0xff]
        %v1267 = vld [vmem:[#allocation5 + $0x3a4] sm:$0xff]
        %v1268 = vld [vmem:[#allocation5 + $0x3ac] sm:$0xff]
        %v1269 = vld [vmem:[#allocation5 + $0x3b4] sm:$0xf]
        %v1270 = vld [vmem:[#allocation5 + $0x3b8] sm:$0xff]
        %v1271 = vld [vmem:[#allocation5 + $0x3c0] sm:$0xff]
        %v1272 = vld [vmem:[#allocation5 + $0x3c8] sm:$0xff]
        %v1273 = vld [vmem:[#allocation5 + $0x3d0] sm:$0xf]
        %v1274 = vld [vmem:[#allocation5 + $0x3d4] sm:$0xff]
        %v1275 = vld [vmem:[#allocation5 + $0x3dc] sm:$0xff]
        %v1276 = vld [vmem:[#allocation5 + $0x3e4] sm:$0xff]
        %v1277 = vld [vmem:[#allocation5 + $0x3ec] sm:$0xf]
        %v1278 = vld [vmem:[#allocation5 + $0x3f0] sm:$0xff]
        %v1279 = vld [vmem:[#allocation5 + $0x3f8] sm:$0xff]
        %v1280 = vld [vmem:[#allocation5 + $0x400] sm:$0xff]
        %v1281 = vld [vmem:[#allocation5 + $0x408] sm:$0xf]
        %v1282 = vld [vmem:[#allocation5 + $0x40c] sm:$0xff]
        %v1283 = vld [vmem:[#allocation5 + $0x414] sm:$0xff]
        %v1284 = vld [vmem:[#allocation5 + $0x41c] sm:$0xff]
        %v1285 = vld [vmem:[#allocation5 + $0x424] sm:$0xf]
        %v1286 = vld [vmem:[#allocation5 + $0x428] sm:$0xff]
        %v1287 = vld [vmem:[#allocation5 + $0x430] sm:$0xff]
        %v1288 = vld [vmem:[#allocation5 + $0x438] sm:$0xff]
        %v1289 = vld [vmem:[#allocation5 + $0x440] sm:$0xf]
        %v1290 = vld [vmem:[#allocation5 + $0x444] sm:$0xff]
        %v1291 = vld [vmem:[#allocation5 + $0x44c] sm:$0xff]
        %v1292 = vld [vmem:[#allocation5 + $0x454] sm:$0xff]
        %v1293 = vld [vmem:[#allocation5 + $0x45c] sm:$0xf]
        %v1294 = vld [vmem:[#allocation5 + $0x460] sm:$0xff]
        %v1295 = vld [vmem:[#allocation5 + $0x468] sm:$0xff]
        %v1296 = vld [vmem:[#allocation5 + $0x470] sm:$0xff]
        %v1297 = vld [vmem:[#allocation5 + $0x478] sm:$0xf]
        %v1298 = vld [vmem:[#allocation5 + $0x47c] sm:$0xff]
        %v1299 = vld [vmem:[#allocation5 + $0x484] sm:$0xff]
        %v1300 = vld [vmem:[#allocation5 + $0x48c] sm:$0xff]
        %v1301 = vld [vmem:[#allocation5 + $0x494] sm:$0xf]
        %v1302 = vld [vmem:[#allocation5 + $0x498] sm:$0xff]
        %v1303 = vld [vmem:[#allocation5 + $0x4a0] sm:$0xff]
        %v1304 = vld [vmem:[#allocation5 + $0x4a8] sm:$0xff]
        %v1305 = vld [vmem:[#allocation5 + $0x4b0] sm:$0xf]
        %v1306 = vld [vmem:[#allocation5 + $0x4b4] sm:$0xff]
        %v1307 = vld [vmem:[#allocation5 + $0x4bc] sm:$0xff]
        %v1308 = vld [vmem:[#allocation5 + $0x4c4] sm:$0xff]
        %v1309 = vld [vmem:[#allocation5 + $0x4cc] sm:$0xf]
        %v1310 = vld [vmem:[#allocation5 + $0x4d0] sm:$0xff]
        %v1311 = vld [vmem:[#allocation5 + $0x4d8] sm:$0xff]
        %v1312 = vld [vmem:[#allocation5 + $0x4e0] sm:$0xff]
        %v1313 = vld [vmem:[#allocation5 + $0x4e8] sm:$0xf]
        %v1314 = vld [vmem:[#allocation5 + $0x4ec] sm:$0xff]
        %v1315 = vld [vmem:[#allocation5 + $0x4f4] sm:$0xff]
        %v1316 = vld [vmem:[#allocation5 + $0x4fc] sm:$0xff]
        %v1317 = vld [vmem:[#allocation5 + $0x504] sm:$0xf]
        %v1318 = vld [vmem:[#allocation5 + $0x508] sm:$0xff]
        %v1319 = vld [vmem:[#allocation5 + $0x510] sm:$0xff]
        %v1320 = vld [vmem:[#allocation5 + $0x518] sm:$0xff]
        %v1321 = vld [vmem:[#allocation5 + $0x520] sm:$0xf]
        %v1322 = vld [vmem:[#allocation5 + $0x524] sm:$0xff]
        %v1323 = vld [vmem:[#allocation5 + $0x52c] sm:$0xff]
        %v1324 = vld [vmem:[#allocation5 + $0x534] sm:$0xff]
        %v1325 = vld [vmem:[#allocation5 + $0x53c] sm:$0xf]
        %v1326 = vld [vmem:[#allocation5 + $0x540] sm:$0xff]
        %v1327 = vld [vmem:[#allocation5 + $0x548] sm:$0xff]
        %v1328 = vld [vmem:[#allocation5 + $0x550] sm:$0xff]
        %v1329 = vld [vmem:[#allocation5 + $0x558] sm:$0xf]
        %v1330 = vld [vmem:[#allocation5 + $0x55c] sm:$0xff]
        %v1331 = vld [vmem:[#allocation5 + $0x564] sm:$0xff]
        %v1332 = vld [vmem:[#allocation5 + $0x56c] sm:$0xff]
        %v1333 = vld [vmem:[#allocation5 + $0x574] sm:$0xf]
        %v1334 = vld [vmem:[%s6] sm:$0x7f]
        %v1336 = vperm.slane %v1334, 0
        %v1337 = vperm.slane %v1334, 1
        %v1338 = vperm.slane %v1334, 2
        %v1339 = vperm.slane %v1334, 3
        %v1340 = vperm.slane %v1334, 4
        %v1341 = vperm.slane %v1334, 5
        %v1342 = vperm.slane %v1334, 6
        %v1550 = vunpack.c.l.b16 %v1134
        %v1551 = vunpack.c.h.b16 %v1134
        %v1552 = vunpack.c.l.b16 %v1135
        %v1553 = vunpack.c.h.b16 %v1135
        %v1554 = vunpack.c.l.b16 %v1136
        %v1555 = vunpack.c.h.b16 %v1136
        %v1556 = vunpack.c.l.b16 %v1137
        %v1557 = vunpack.c.l.b16 %v1138
        %v1558 = vunpack.c.h.b16 %v1138
        %v1559 = vunpack.c.l.b16 %v1139
        %v1560 = vunpack.c.h.b16 %v1139
        %v1561 = vunpack.c.l.b16 %v1140
        %v1562 = vunpack.c.h.b16 %v1140
        %v1563 = vunpack.c.l.b16 %v1141
        %v1564 = vunpack.c.l.b16 %v1142
        %v1565 = vunpack.c.h.b16 %v1142
        %v1566 = vunpack.c.l.b16 %v1143
        %v1567 = vunpack.c.h.b16 %v1143
        %v1568 = vunpack.c.l.b16 %v1144
        %v1569 = vunpack.c.h.b16 %v1144
        %v1570 = vunpack.c.l.b16 %v1145
        %v1571 = vunpack.c.l.b16 %v1146
        %v1572 = vunpack.c.h.b16 %v1146
        %v1573 = vunpack.c.l.b16 %v1147
        %v1574 = vunpack.c.h.b16 %v1147
        %v1575 = vunpack.c.l.b16 %v1148
        %v1576 = vunpack.c.h.b16 %v1148
        %v1577 = vunpack.c.l.b16 %v1149
        %v1578 = vunpack.c.l.b16 %v1150
        %v1579 = vunpack.c.h.b16 %v1150
        %v1580 = vunpack.c.l.b16 %v1151
        %v1581 = vunpack.c.h.b16 %v1151
        %v1582 = vunpack.c.l.b16 %v1152
        %v1583 = vunpack.c.h.b16 %v1152
        %v1584 = vunpack.c.l.b16 %v1153
        %v1585 = vunpack.c.l.b16 %v1154
        %v1586 = vunpack.c.h.b16 %v1154
        %v1587 = vunpack.c.l.b16 %v1155
        %v1588 = vunpack.c.h.b16 %v1155
        %v1589 = vunpack.c.l.b16 %v1156
        %v1590 = vunpack.c.h.b16 %v1156
        %v1591 = vunpack.c.l.b16 %v1157
        %v1592 = vunpack.c.l.b16 %v1158
        %v1593 = vunpack.c.h.b16 %v1158
        %v1594 = vunpack.c.l.b16 %v1159
        %v1595 = vunpack.c.h.b16 %v1159
        %v1596 = vunpack.c.l.b16 %v1160
        %v1597 = vunpack.c.h.b16 %v1160
        %v1598 = vunpack.c.l.b16 %v1161
        %v1599 = vunpack.c.l.b16 %v1162
        %v1600 = vunpack.c.h.b16 %v1162
        %v1601 = vunpack.c.l.b16 %v1163
        %v1602 = vunpack.c.h.b16 %v1163
        %v1603 = vunpack.c.l.b16 %v1164
        %v1604 = vunpack.c.h.b16 %v1164
        %v1605 = vunpack.c.l.b16 %v1165
        %v1606 = vunpack.c.l.b16 %v1166
        %v1607 = vunpack.c.h.b16 %v1166
        %v1608 = vunpack.c.l.b16 %v1167
        %v1609 = vunpack.c.h.b16 %v1167
        %v1610 = vunpack.c.l.b16 %v1168
        %v1611 = vunpack.c.h.b16 %v1168
        %v1612 = vunpack.c.l.b16 %v1169
        %v1613 = vunpack.c.l.b16 %v1170
        %v1614 = vunpack.c.h.b16 %v1170
        %v1615 = vunpack.c.l.b16 %v1171
        %v1616 = vunpack.c.h.b16 %v1171
        %v1617 = vunpack.c.l.b16 %v1172
        %v1618 = vunpack.c.h.b16 %v1172
        %v1619 = vunpack.c.l.b16 %v1173
        %v1620 = vunpack.c.l.b16 %v1174
        %v1621 = vunpack.c.h.b16 %v1174
        %v1622 = vunpack.c.l.b16 %v1175
        %v1623 = vunpack.c.h.b16 %v1175
        %v1624 = vunpack.c.l.b16 %v1176
        %v1625 = vunpack.c.h.b16 %v1176
        %v1626 = vunpack.c.l.b16 %v1177
        %v1627 = vunpack.c.l.b16 %v1178
        %v1628 = vunpack.c.h.b16 %v1178
        %v1629 = vunpack.c.l.b16 %v1179
        %v1630 = vunpack.c.h.b16 %v1179
        %v1631 = vunpack.c.l.b16 %v1180
        %v1632 = vunpack.c.h.b16 %v1180
        %v1633 = vunpack.c.l.b16 %v1181
        %v1634 = vunpack.c.l.b16 %v1182
        %v1635 = vunpack.c.h.b16 %v1182
        %v1636 = vunpack.c.l.b16 %v1183
        %v1637 = vunpack.c.h.b16 %v1183
        %v1638 = vunpack.c.l.b16 %v1184
        %v1639 = vunpack.c.h.b16 %v1184
        %v1640 = vunpack.c.l.b16 %v1185
        %v1641 = vunpack.c.l.b16 %v1186
        %v1642 = vunpack.c.h.b16 %v1186
        %v1643 = vunpack.c.l.b16 %v1187
        %v1644 = vunpack.c.h.b16 %v1187
        %v1645 = vunpack.c.l.b16 %v1188
        %v1646 = vunpack.c.h.b16 %v1188
        %v1647 = vunpack.c.l.b16 %v1189
        %v1648 = vunpack.c.l.b16 %v1190
        %v1649 = vunpack.c.h.b16 %v1190
        %v1650 = vunpack.c.l.b16 %v1191
        %v1651 = vunpack.c.h.b16 %v1191
        %v1652 = vunpack.c.l.b16 %v1192
        %v1653 = vunpack.c.h.b16 %v1192
        %v1654 = vunpack.c.l.b16 %v1193
        %v1655 = vunpack.c.l.b16 %v1194
        %v1656 = vunpack.c.h.b16 %v1194
        %v1657 = vunpack.c.l.b16 %v1195
        %v1658 = vunpack.c.h.b16 %v1195
        %v1659 = vunpack.c.l.b16 %v1196
        %v1660 = vunpack.c.h.b16 %v1196
        %v1661 = vunpack.c.l.b16 %v1197
        %v1662 = vunpack.c.l.b16 %v1198
        %v1663 = vunpack.c.h.b16 %v1198
        %v1664 = vunpack.c.l.b16 %v1199
        %v1665 = vunpack.c.h.b16 %v1199
        %v1666 = vunpack.c.l.b16 %v1200
        %v1667 = vunpack.c.h.b16 %v1200
        %v1668 = vunpack.c.l.b16 %v1201
        %v1669 = vunpack.c.l.b16 %v1202
        %v1670 = vunpack.c.h.b16 %v1202
        %v1671 = vunpack.c.l.b16 %v1203
        %v1672 = vunpack.c.h.b16 %v1203
        %v1673 = vunpack.c.l.b16 %v1204
        %v1674 = vunpack.c.h.b16 %v1204
        %v1675 = vunpack.c.l.b16 %v1205
        %v1676 = vunpack.c.l.b16 %v1206
        %v1677 = vunpack.c.h.b16 %v1206
        %v1678 = vunpack.c.l.b16 %v1207
        %v1679 = vunpack.c.h.b16 %v1207
        %v1680 = vunpack.c.l.b16 %v1208
        %v1681 = vunpack.c.h.b16 %v1208
        %v1682 = vunpack.c.l.b16 %v1209
        %v1683 = vunpack.c.l.b16 %v1210
        %v1684 = vunpack.c.h.b16 %v1210
        %v1685 = vunpack.c.l.b16 %v1211
        %v1686 = vunpack.c.h.b16 %v1211
        %v1687 = vunpack.c.l.b16 %v1212
        %v1688 = vunpack.c.h.b16 %v1212
        %v1689 = vunpack.c.l.b16 %v1213
        %v1690 = vunpack.c.l.b16 %v1214
        %v1691 = vunpack.c.h.b16 %v1214
        %v1692 = vunpack.c.l.b16 %v1215
        %v1693 = vunpack.c.h.b16 %v1215
        %v1694 = vunpack.c.l.b16 %v1216
        %v1695 = vunpack.c.h.b16 %v1216
        %v1696 = vunpack.c.l.b16 %v1217
        %v1697 = vunpack.c.l.b16 %v1218
        %v1698 = vunpack.c.h.b16 %v1218
        %v1699 = vunpack.c.l.b16 %v1219
        %v1700 = vunpack.c.h.b16 %v1219
        %v1701 = vunpack.c.l.b16 %v1220
        %v1702 = vunpack.c.h.b16 %v1220
        %v1703 = vunpack.c.l.b16 %v1221
        %v1704 = vunpack.c.l.b16 %v1222
        %v1705 = vunpack.c.h.b16 %v1222
        %v1706 = vunpack.c.l.b16 %v1223
        %v1707 = vunpack.c.h.b16 %v1223
        %v1708 = vunpack.c.l.b16 %v1224
        %v1709 = vunpack.c.h.b16 %v1224
        %v1710 = vunpack.c.l.b16 %v1225
        %v1711 = vunpack.c.l.b16 %v1226
        %v1712 = vunpack.c.h.b16 %v1226
        %v1713 = vunpack.c.l.b16 %v1227
        %v1714 = vunpack.c.h.b16 %v1227
        %v1715 = vunpack.c.l.b16 %v1228
        %v1716 = vunpack.c.h.b16 %v1228
        %v1717 = vunpack.c.l.b16 %v1229
        %v1718 = vunpack.c.l.b16 %v1230
        %v1719 = vunpack.c.h.b16 %v1230
        %v1720 = vunpack.c.l.b16 %v1231
        %v1721 = vunpack.c.h.b16 %v1231
        %v1722 = vunpack.c.l.b16 %v1232
        %v1723 = vunpack.c.h.b16 %v1232
        %v1724 = vunpack.c.l.b16 %v1233
        %v1725 = vunpack.c.l.b16 %v1234
        %v1726 = vunpack.c.h.b16 %v1234
        %v1727 = vunpack.c.l.b16 %v1235
        %v1728 = vunpack.c.h.b16 %v1235
        %v1729 = vunpack.c.l.b16 %v1236
        %v1730 = vunpack.c.h.b16 %v1236
        %v1731 = vunpack.c.l.b16 %v1237
        %v1732 = vunpack.c.l.b16 %v1238
        %v1733 = vunpack.c.h.b16 %v1238
        %v1734 = vunpack.c.l.b16 %v1239
        %v1735 = vunpack.c.h.b16 %v1239
        %v1736 = vunpack.c.l.b16 %v1240
        %v1737 = vunpack.c.h.b16 %v1240
        %v1738 = vunpack.c.l.b16 %v1241
        %v1739 = vunpack.c.l.b16 %v1242
        %v1740 = vunpack.c.h.b16 %v1242
        %v1741 = vunpack.c.l.b16 %v1243
        %v1742 = vunpack.c.h.b16 %v1243
        %v1743 = vunpack.c.l.b16 %v1244
        %v1744 = vunpack.c.h.b16 %v1244
        %v1745 = vunpack.c.l.b16 %v1245
        %v1746 = vunpack.c.l.b16 %v1246
        %v1747 = vunpack.c.h.b16 %v1246
        %v1748 = vunpack.c.l.b16 %v1247
        %v1749 = vunpack.c.h.b16 %v1247
        %v1750 = vunpack.c.l.b16 %v1248
        %v1751 = vunpack.c.h.b16 %v1248
        %v1752 = vunpack.c.l.b16 %v1249
        %v1753 = vunpack.c.l.b16 %v1250
        %v1754 = vunpack.c.h.b16 %v1250
        %v1755 = vunpack.c.l.b16 %v1251
        %v1756 = vunpack.c.h.b16 %v1251
        %v1757 = vunpack.c.l.b16 %v1252
        %v1758 = vunpack.c.h.b16 %v1252
        %v1759 = vunpack.c.l.b16 %v1253
        %v1760 = vunpack.c.l.b16 %v1254
        %v1761 = vunpack.c.h.b16 %v1254
        %v1762 = vunpack.c.l.b16 %v1255
        %v1763 = vunpack.c.h.b16 %v1255
        %v1764 = vunpack.c.l.b16 %v1256
        %v1765 = vunpack.c.h.b16 %v1256
        %v1766 = vunpack.c.l.b16 %v1257
        %v1767 = vunpack.c.l.b16 %v1258
        %v1768 = vunpack.c.h.b16 %v1258
        %v1769 = vunpack.c.l.b16 %v1259
        %v1770 = vunpack.c.h.b16 %v1259
        %v1771 = vunpack.c.l.b16 %v1260
        %v1772 = vunpack.c.h.b16 %v1260
        %v1773 = vunpack.c.l.b16 %v1261
        %v1774 = vunpack.c.l.b16 %v1262
        %v1775 = vunpack.c.h.b16 %v1262
        %v1776 = vunpack.c.l.b16 %v1263
        %v1777 = vunpack.c.h.b16 %v1263
        %v1778 = vunpack.c.l.b16 %v1264
        %v1779 = vunpack.c.h.b16 %v1264
        %v1780 = vunpack.c.l.b16 %v1265
        %v1781 = vunpack.c.l.b16 %v1266
        %v1782 = vunpack.c.h.b16 %v1266
        %v1783 = vunpack.c.l.b16 %v1267
        %v1784 = vunpack.c.h.b16 %v1267
        %v1785 = vunpack.c.l.b16 %v1268
        %v1786 = vunpack.c.h.b16 %v1268
        %v1787 = vunpack.c.l.b16 %v1269
        %v1788 = vunpack.c.l.b16 %v1270
        %v1789 = vunpack.c.h.b16 %v1270
        %v1790 = vunpack.c.l.b16 %v1271
        %v1791 = vunpack.c.h.b16 %v1271
        %v1792 = vunpack.c.l.b16 %v1272
        %v1793 = vunpack.c.h.b16 %v1272
        %v1794 = vunpack.c.l.b16 %v1273
        %v1795 = vunpack.c.l.b16 %v1274
        %v1796 = vunpack.c.h.b16 %v1274
        %v1797 = vunpack.c.l.b16 %v1275
        %v1798 = vunpack.c.h.b16 %v1275
        %v1799 = vunpack.c.l.b16 %v1276
        %v1800 = vunpack.c.h.b16 %v1276
        %v1801 = vunpack.c.l.b16 %v1277
        %v1802 = vunpack.c.l.b16 %v1278
        %v1803 = vunpack.c.h.b16 %v1278
        %v1804 = vunpack.c.l.b16 %v1279
        %v1805 = vunpack.c.h.b16 %v1279
        %v1806 = vunpack.c.l.b16 %v1280
        %v1807 = vunpack.c.h.b16 %v1280
        %v1808 = vunpack.c.l.b16 %v1281
        %v1809 = vunpack.c.l.b16 %v1282
        %v1810 = vunpack.c.h.b16 %v1282
        %v1811 = vunpack.c.l.b16 %v1283
        %v1812 = vunpack.c.h.b16 %v1283
        %v1813 = vunpack.c.l.b16 %v1284
        %v1814 = vunpack.c.h.b16 %v1284
        %v1815 = vunpack.c.l.b16 %v1285
        %v1816 = vunpack.c.l.b16 %v1286
        %v1817 = vunpack.c.h.b16 %v1286
        %v1818 = vunpack.c.l.b16 %v1287
        %v1819 = vunpack.c.h.b16 %v1287
        %v1820 = vunpack.c.l.b16 %v1288
        %v1821 = vunpack.c.h.b16 %v1288
        %v1822 = vunpack.c.l.b16 %v1289
        %v1823 = vunpack.c.l.b16 %v1290
        %v1824 = vunpack.c.h.b16 %v1290
        %v1825 = vunpack.c.l.b16 %v1291
        %v1826 = vunpack.c.h.b16 %v1291
        %v1827 = vunpack.c.l.b16 %v1292
        %v1828 = vunpack.c.h.b16 %v1292
        %v1829 = vunpack.c.l.b16 %v1293
        %v1830 = vunpack.c.l.b16 %v1294
        %v1831 = vunpack.c.h.b16 %v1294
        %v1832 = vunpack.c.l.b16 %v1295
        %v1833 = vunpack.c.h.b16 %v1295
        %v1834 = vunpack.c.l.b16 %v1296
        %v1835 = vunpack.c.h.b16 %v1296
        %v1836 = vunpack.c.l.b16 %v1297
        %v1837 = vunpack.c.l.b16 %v1298
        %v1838 = vunpack.c.h.b16 %v1298
        %v1839 = vunpack.c.l.b16 %v1299
        %v1840 = vunpack.c.h.b16 %v1299
        %v1841 = vunpack.c.l.b16 %v1300
        %v1842 = vunpack.c.h.b16 %v1300
        %v1843 = vunpack.c.l.b16 %v1301
        %v1844 = vunpack.c.l.b16 %v1302
        %v1845 = vunpack.c.h.b16 %v1302
        %v1846 = vunpack.c.l.b16 %v1303
        %v1847 = vunpack.c.h.b16 %v1303
        %v1848 = vunpack.c.l.b16 %v1304
        %v1849 = vunpack.c.h.b16 %v1304
        %v1850 = vunpack.c.l.b16 %v1305
        %v1851 = vunpack.c.l.b16 %v1306
        %v1852 = vunpack.c.h.b16 %v1306
        %v1853 = vunpack.c.l.b16 %v1307
        %v1854 = vunpack.c.h.b16 %v1307
        %v1855 = vunpack.c.l.b16 %v1308
        %v1856 = vunpack.c.h.b16 %v1308
        %v1857 = vunpack.c.l.b16 %v1309
        %v1858 = vunpack.c.l.b16 %v1310
        %v1859 = vunpack.c.h.b16 %v1310
        %v1860 = vunpack.c.l.b16 %v1311
        %v1861 = vunpack.c.h.b16 %v1311
        %v1862 = vunpack.c.l.b16 %v1312
        %v1863 = vunpack.c.h.b16 %v1312
        %v1864 = vunpack.c.l.b16 %v1313
        %v1865 = vunpack.c.l.b16 %v1314
        %v1866 = vunpack.c.h.b16 %v1314
        %v1867 = vunpack.c.l.b16 %v1315
        %v1868 = vunpack.c.h.b16 %v1315
        %v1869 = vunpack.c.l.b16 %v1316
        %v1870 = vunpack.c.h.b16 %v1316
        %v1871 = vunpack.c.l.b16 %v1317
        %v1872 = vunpack.c.l.b16 %v1318
        %v1873 = vunpack.c.h.b16 %v1318
        %v1874 = vunpack.c.l.b16 %v1319
        %v1875 = vunpack.c.h.b16 %v1319
        %v1876 = vunpack.c.l.b16 %v1320
        %v1877 = vunpack.c.h.b16 %v1320
        %v1878 = vunpack.c.l.b16 %v1321
        %v1879 = vunpack.c.l.b16 %v1322
        %v1880 = vunpack.c.h.b16 %v1322
        %v1881 = vunpack.c.l.b16 %v1323
        %v1882 = vunpack.c.h.b16 %v1323
        %v1883 = vunpack.c.l.b16 %v1324
        %v1884 = vunpack.c.h.b16 %v1324
        %v1885 = vunpack.c.l.b16 %v1325
        %v1886 = vunpack.c.l.b16 %v1326
        %v1887 = vunpack.c.h.b16 %v1326
        %v1888 = vunpack.c.l.b16 %v1327
        %v1889 = vunpack.c.h.b16 %v1327
        %v1890 = vunpack.c.l.b16 %v1328
        %v1891 = vunpack.c.h.b16 %v1328
        %v1892 = vunpack.c.l.b16 %v1329
        %v1893 = vunpack.c.l.b16 %v1330
        %v1894 = vunpack.c.h.b16 %v1330
        %v1895 = vunpack.c.l.b16 %v1331
        %v1896 = vunpack.c.h.b16 %v1331
        %v1897 = vunpack.c.l.b16 %v1332
        %v1898 = vunpack.c.h.b16 %v1332
        %v1899 = vunpack.c.l.b16 %v1333
        %v1900 = vpack.c.b16 %v1557, %v1550
        %v1901 = vpack.c.b16 %v1558, %v1551
        %v1902 = vpack.c.b16 %v1559, %v1552
        %v1903 = vpack.c.b16 %v1560, %v1553
        %v1904 = vpack.c.b16 %v1561, %v1554
        %v1905 = vpack.c.b16 %v1562, %v1555
        %v1906 = vpack.c.b16 %v1563, %v1556
        %v1907 = vpack.c.b16 %v1571, %v1564
        %v1908 = vpack.c.b16 %v1572, %v1565
        %v1909 = vpack.c.b16 %v1573, %v1566
        %v1910 = vpack.c.b16 %v1574, %v1567
        %v1911 = vpack.c.b16 %v1575, %v1568
        %v1912 = vpack.c.b16 %v1576, %v1569
        %v1913 = vpack.c.b16 %v1577, %v1570
        %v1914 = vpack.c.b16 %v1585, %v1578
        %v1915 = vpack.c.b16 %v1586, %v1579
        %v1916 = vpack.c.b16 %v1587, %v1580
        %v1917 = vpack.c.b16 %v1588, %v1581
        %v1918 = vpack.c.b16 %v1589, %v1582
        %v1919 = vpack.c.b16 %v1590, %v1583
        %v1920 = vpack.c.b16 %v1591, %v1584
        %v1921 = vpack.c.b16 %v1599, %v1592
        %v1922 = vpack.c.b16 %v1600, %v1593
        %v1923 = vpack.c.b16 %v1601, %v1594
        %v1924 = vpack.c.b16 %v1602, %v1595
        %v1925 = vpack.c.b16 %v1603, %v1596
        %v1926 = vpack.c.b16 %v1604, %v1597
        %v1927 = vpack.c.b16 %v1605, %v1598
        %v1928 = vpack.c.b16 %v1613, %v1606
        %v1929 = vpack.c.b16 %v1614, %v1607
        %v1930 = vpack.c.b16 %v1615, %v1608
        %v1931 = vpack.c.b16 %v1616, %v1609
        %v1932 = vpack.c.b16 %v1617, %v1610
        %v1933 = vpack.c.b16 %v1618, %v1611
        %v1934 = vpack.c.b16 %v1619, %v1612
        %v1935 = vpack.c.b16 %v1627, %v1620
        %v1936 = vpack.c.b16 %v1628, %v1621
        %v1937 = vpack.c.b16 %v1629, %v1622
        %v1938 = vpack.c.b16 %v1630, %v1623
        %v1939 = vpack.c.b16 %v1631, %v1624
        %v1940 = vpack.c.b16 %v1632, %v1625
        %v1941 = vpack.c.b16 %v1633, %v1626
        %v1942 = vpack.c.b16 %v1641, %v1634
        %v1943 = vpack.c.b16 %v1642, %v1635
        %v1944 = vpack.c.b16 %v1643, %v1636
        %v1945 = vpack.c.b16 %v1644, %v1637
        %v1946 = vpack.c.b16 %v1645, %v1638
        %v1947 = vpack.c.b16 %v1646, %v1639
        %v1948 = vpack.c.b16 %v1647, %v1640
        %v1949 = vpack.c.b16 %v1655, %v1648
        %v1950 = vpack.c.b16 %v1656, %v1649
        %v1951 = vpack.c.b16 %v1657, %v1650
        %v1952 = vpack.c.b16 %v1658, %v1651
        %v1953 = vpack.c.b16 %v1659, %v1652
        %v1954 = vpack.c.b16 %v1660, %v1653
        %v1955 = vpack.c.b16 %v1661, %v1654
        %v1956 = vpack.c.b16 %v1669, %v1662
        %v1957 = vpack.c.b16 %v1670, %v1663
        %v1958 = vpack.c.b16 %v1671, %v1664
        %v1959 = vpack.c.b16 %v1672, %v1665
        %v1960 = vpack.c.b16 %v1673, %v1666
        %v1961 = vpack.c.b16 %v1674, %v1667
        %v1962 = vpack.c.b16 %v1675, %v1668
        %v1963 = vpack.c.b16 %v1683, %v1676
        %v1964 = vpack.c.b16 %v1684, %v1677
        %v1965 = vpack.c.b16 %v1685, %v1678
        %v1966 = vpack.c.b16 %v1686, %v1679
        %v1967 = vpack.c.b16 %v1687, %v1680
        %v1968 = vpack.c.b16 %v1688, %v1681
        %v1969 = vpack.c.b16 %v1689, %v1682
        %v1970 = vpack.c.b16 %v1697, %v1690
        %v1971 = vpack.c.b16 %v1698, %v1691
        %v1972 = vpack.c.b16 %v1699, %v1692
        %v1973 = vpack.c.b16 %v1700, %v1693
        %v1974 = vpack.c.b16 %v1701, %v1694
        %v1975 = vpack.c.b16 %v1702, %v1695
        %v1976 = vpack.c.b16 %v1703, %v1696
        %v1977 = vpack.c.b16 %v1711, %v1704
        %v1978 = vpack.c.b16 %v1712, %v1705
        %v1979 = vpack.c.b16 %v1713, %v1706
        %v1980 = vpack.c.b16 %v1714, %v1707
        %v1981 = vpack.c.b16 %v1715, %v1708
        %v1982 = vpack.c.b16 %v1716, %v1709
        %v1983 = vpack.c.b16 %v1717, %v1710
        %v1984 = vpack.c.b16 %v1725, %v1718
        %v1985 = vpack.c.b16 %v1726, %v1719
        %v1986 = vpack.c.b16 %v1727, %v1720
        %v1987 = vpack.c.b16 %v1728, %v1721
        %v1988 = vpack.c.b16 %v1729, %v1722
        %v1989 = vpack.c.b16 %v1730, %v1723
        %v1990 = vpack.c.b16 %v1731, %v1724
        %v1991 = vpack.c.b16 %v1739, %v1732
        %v1992 = vpack.c.b16 %v1740, %v1733
        %v1993 = vpack.c.b16 %v1741, %v1734
        %v1994 = vpack.c.b16 %v1742, %v1735
        %v1995 = vpack.c.b16 %v1743, %v1736
        %v1996 = vpack.c.b16 %v1744, %v1737
        %v1997 = vpack.c.b16 %v1745, %v1738
        %v1998 = vpack.c.b16 %v1753, %v1746
        %v1999 = vpack.c.b16 %v1754, %v1747
        %v2000 = vpack.c.b16 %v1755, %v1748
        %v2001 = vpack.c.b16 %v1756, %v1749
        %v2002 = vpack.c.b16 %v1757, %v1750
        %v2003 = vpack.c.b16 %v1758, %v1751
        %v2004 = vpack.c.b16 %v1759, %v1752
        %v2005 = vpack.c.b16 %v1767, %v1760
        %v2006 = vpack.c.b16 %v1768, %v1761
        %v2007 = vpack.c.b16 %v1769, %v1762
        %v2008 = vpack.c.b16 %v1770, %v1763
        %v2009 = vpack.c.b16 %v1771, %v1764
        %v2010 = vpack.c.b16 %v1772, %v1765
        %v2011 = vpack.c.b16 %v1773, %v1766
        %v2012 = vpack.c.b16 %v1781, %v1774
        %v2013 = vpack.c.b16 %v1782, %v1775
        %v2014 = vpack.c.b16 %v1783, %v1776
        %v2015 = vpack.c.b16 %v1784, %v1777
        %v2016 = vpack.c.b16 %v1785, %v1778
        %v2017 = vpack.c.b16 %v1786, %v1779
        %v2018 = vpack.c.b16 %v1787, %v1780
        %v2019 = vpack.c.b16 %v1795, %v1788
        %v2020 = vpack.c.b16 %v1796, %v1789
        %v2021 = vpack.c.b16 %v1797, %v1790
        %v2022 = vpack.c.b16 %v1798, %v1791
        %v2023 = vpack.c.b16 %v1799, %v1792
        %v2024 = vpack.c.b16 %v1800, %v1793
        %v2025 = vpack.c.b16 %v1801, %v1794
        %v2026 = vpack.c.b16 %v1809, %v1802
        %v2027 = vpack.c.b16 %v1810, %v1803
        %v2028 = vpack.c.b16 %v1811, %v1804
        %v2029 = vpack.c.b16 %v1812, %v1805
        %v2030 = vpack.c.b16 %v1813, %v1806
        %v2031 = vpack.c.b16 %v1814, %v1807
        %v2032 = vpack.c.b16 %v1815, %v1808
        %v2033 = vpack.c.b16 %v1823, %v1816
        %v2034 = vpack.c.b16 %v1824, %v1817
        %v2035 = vpack.c.b16 %v1825, %v1818
        %v2036 = vpack.c.b16 %v1826, %v1819
        %v2037 = vpack.c.b16 %v1827, %v1820
        %v2038 = vpack.c.b16 %v1828, %v1821
        %v2039 = vpack.c.b16 %v1829, %v1822
        %v2040 = vpack.c.b16 %v1837, %v1830
        %v2041 = vpack.c.b16 %v1838, %v1831
        %v2042 = vpack.c.b16 %v1839, %v1832
        %v2043 = vpack.c.b16 %v1840, %v1833
        %v2044 = vpack.c.b16 %v1841, %v1834
        %v2045 = vpack.c.b16 %v1842, %v1835
        %v2046 = vpack.c.b16 %v1843, %v1836
        %v2047 = vpack.c.b16 %v1851, %v1844
        %v2048 = vpack.c.b16 %v1852, %v1845
        %v2049 = vpack.c.b16 %v1853, %v1846
        %v2050 = vpack.c.b16 %v1854, %v1847
        %v2051 = vpack.c.b16 %v1855, %v1848
        %v2052 = vpack.c.b16 %v1856, %v1849
        %v2053 = vpack.c.b16 %v1857, %v1850
        %v2054 = vpack.c.b16 %v1865, %v1858
        %v2055 = vpack.c.b16 %v1866, %v1859
        %v2056 = vpack.c.b16 %v1867, %v1860
        %v2057 = vpack.c.b16 %v1868, %v1861
        %v2058 = vpack.c.b16 %v1869, %v1862
        %v2059 = vpack.c.b16 %v1870, %v1863
        %v2060 = vpack.c.b16 %v1871, %v1864
        %v2061 = vpack.c.b16 %v1879, %v1872
        %v2062 = vpack.c.b16 %v1880, %v1873
        %v2063 = vpack.c.b16 %v1881, %v1874
        %v2064 = vpack.c.b16 %v1882, %v1875
        %v2065 = vpack.c.b16 %v1883, %v1876
        %v2066 = vpack.c.b16 %v1884, %v1877
        %v2067 = vpack.c.b16 %v1885, %v1878
        %v2068 = vpack.c.b16 %v1893, %v1886
        %v2069 = vpack.c.b16 %v1894, %v1887
        %v2070 = vpack.c.b16 %v1895, %v1888
        %v2071 = vpack.c.b16 %v1896, %v1889
        %v2072 = vpack.c.b16 %v1897, %v1890
        %v2073 = vpack.c.b16 %v1898, %v1891
        %v2074 = vpack.c.b16 %v1899, %v1892
        %vm2250 = vcmask 130048
        %v2252 = vsel %vm2250, %v1133, 0
        %2254 = vmatpush.bf16.msra.mxu0 %v1949
        %2255 = vmatpush.bf16.msra.mxu0 %v1942
        %2256 = vmatpush.bf16.msra.mxu0 %v1935
        %2257 = vmatpush.bf16.msra.mxu0 %v1928
        %2258 = vmatpush.bf16.msra.mxu0 %v1921
        %2259 = vmatpush.bf16.msra.mxu0 %v1914
        %2260 = vmatpush.bf16.msra.mxu0 %v1907
        %2261 = vmatpush.bf16.msra.mxu0 %v1900
        %2262 = vmatmul.bf16.gmra.mxu0 %v1130
        %v2263 = vpop.f32.mrf.mxu0
        %v2264 = vadd.f32 %v1336, %v2263
        %v2265 = vpop.f32.mrf.mxu0
        %2266 = vdwg.mxu0
        %2267 = vmatpush.bf16.msra.mxu0 %v2005
        %2268 = vmatpush.bf16.msra.mxu0 %v1998
        %2269 = vmatpush.bf16.msra.mxu0 %v1991
        %2270 = vmatpush.bf16.msra.mxu0 %v1984
        %2271 = vmatpush.bf16.msra.mxu0 %v1977
        %2272 = vmatpush.bf16.msra.mxu0 %v1970
        %2273 = vmatpush.bf16.msra.mxu0 %v1963
        %2274 = vmatpush.bf16.msra.mxu0 %v1956
        %2275 = vmatmul.bf16.gmra.mxu0 %v1131
        %v2276 = vpop.f32.mrf.mxu0
        %v2277 = vadd.f32 %v2264, %v2276
        %v2278 = vpop.f32.mrf.mxu0
        %2279 = vdwg.mxu0
        %2280 = vmatpush.bf16.msra.mxu0 %v2061
        %2281 = vmatpush.bf16.msra.mxu0 %v2054
        %2282 = vmatpush.bf16.msra.mxu0 %v2047
        %2283 = vmatpush.bf16.msra.mxu0 %v2040
        %2284 = vmatpush.bf16.msra.mxu0 %v2033
        %2285 = vmatpush.bf16.msra.mxu0 %v2026
        %2286 = vmatpush.bf16.msra.mxu0 %v2019
        %2287 = vmatpush.bf16.msra.mxu0 %v2012
        %2288 = vmatmul.bf16.gmra.mxu0 %v1132
        %v2289 = vpop.f32.mrf.mxu0
        %v2290 = vadd.f32 %v2277, %v2289
        %v2291 = vpop.f32.mrf.mxu0
        %2292 = vdwg.mxu0
        %2293 = vmatpush.bf16.msra.mxu0 0
        %2294 = vmatpush.bf16.msra.mxu0 0
        %2295 = vmatpush.bf16.msra.mxu0 0
        %2296 = vmatpush.bf16.msra.mxu0 0
        %2297 = vmatpush.bf16.msra.mxu0 0
        %2298 = vmatpush.bf16.msra.mxu0 0
        %2299 = vmatpush.bf16.msra.mxu0 0
        %2300 = vmatpush.bf16.msra.mxu0 %v2068
        %2301 = vmatmul.bf16.gmra.mxu0 %v2252
        %v2302 = vpop.f32.mrf.mxu0
        %v2303 = vadd.f32 %v2290, %v2302
        %v2304 = vpop.f32.mrf.mxu0
        %2305 = vdwg.mxu0
        %2306 = vmatpush.bf16.msra.mxu0 %v1950
        %2307 = vmatpush.bf16.msra.mxu0 %v1943
        %2308 = vmatpush.bf16.msra.mxu0 %v1936
        %2309 = vmatpush.bf16.msra.mxu0 %v1929
        %2310 = vmatpush.bf16.msra.mxu0 %v1922
        %2311 = vmatpush.bf16.msra.mxu0 %v1915
        %2312 = vmatpush.bf16.msra.mxu0 %v1908
        %2313 = vmatpush.bf16.msra.mxu0 %v1901
        %2314 = vmatmul.bf16.gmra.mxu0 %v1130
        %v2315 = vpop.f32.mrf.mxu0
        %v2316 = vadd.f32 %v1337, %v2315
        %v2317 = vpop.f32.mrf.mxu0
        %2318 = vdwg.mxu0
        %2319 = vmatpush.bf16.msra.mxu0 %v2006
        %2320 = vmatpush.bf16.msra.mxu0 %v1999
        %2321 = vmatpush.bf16.msra.mxu0 %v1992
        %2322 = vmatpush.bf16.msra.mxu0 %v1985
        %2323 = vmatpush.bf16.msra.mxu0 %v1978
        %2324 = vmatpush.bf16.msra.mxu0 %v1971
        %2325 = vmatpush.bf16.msra.mxu0 %v1964
        %2326 = vmatpush.bf16.msra.mxu0 %v1957
        %2327 = vmatmul.bf16.gmra.mxu0 %v1131
        %v2328 = vpop.f32.mrf.mxu0
        %v2329 = vadd.f32 %v2316, %v2328
        %v2330 = vpop.f32.mrf.mxu0
        %2331 = vdwg.mxu0
        %2332 = vmatpush.bf16.msra.mxu0 %v2062
        %2333 = vmatpush.bf16.msra.mxu0 %v2055
        %2334 = vmatpush.bf16.msra.mxu0 %v2048
        %2335 = vmatpush.bf16.msra.mxu0 %v2041
        %2336 = vmatpush.bf16.msra.mxu0 %v2034
        %2337 = vmatpush.bf16.msra.mxu0 %v2027
        %2338 = vmatpush.bf16.msra.mxu0 %v2020
        %2339 = vmatpush.bf16.msra.mxu0 %v2013
        %2340 = vmatmul.bf16.gmra.mxu0 %v1132
        %v2341 = vpop.f32.mrf.mxu0
        %v2342 = vadd.f32 %v2329, %v2341
        %v2343 = vpop.f32.mrf.mxu0
        %2344 = vdwg.mxu0
        %2345 = vmatpush.bf16.msra.mxu0 0
        %2346 = vmatpush.bf16.msra.mxu0 0
        %2347 = vmatpush.bf16.msra.mxu0 0
        %2348 = vmatpush.bf16.msra.mxu0 0
        %2349 = vmatpush.bf16.msra.mxu0 0
        %2350 = vmatpush.bf16.msra.mxu0 0
        %2351 = vmatpush.bf16.msra.mxu0 0
        %2352 = vmatpush.bf16.msra.mxu0 %v2069
        %2353 = vmatmul.bf16.gmra.mxu0 %v2252
        %v2354 = vpop.f32.mrf.mxu0
        %v2355 = vadd.f32 %v2342, %v2354
        %v2356 = vpop.f32.mrf.mxu0
        %2357 = vdwg.mxu0
        %2358 = vmatpush.bf16.msra.mxu0 %v1951
        %2359 = vmatpush.bf16.msra.mxu0 %v1944
        %2360 = vmatpush.bf16.msra.mxu0 %v1937
        %2361 = vmatpush.bf16.msra.mxu0 %v1930
        %2362 = vmatpush.bf16.msra.mxu0 %v1923
        %2363 = vmatpush.bf16.msra.mxu0 %v1916
        %2364 = vmatpush.bf16.msra.mxu0 %v1909
        %2365 = vmatpush.bf16.msra.mxu0 %v1902
        %2366 = vmatmul.bf16.gmra.mxu0 %v1130
        %v2367 = vpop.f32.mrf.mxu0
        %v2368 = vadd.f32 %v1338, %v2367
        %v2369 = vpop.f32.mrf.mxu0
        %2370 = vdwg.mxu0
        %2371 = vmatpush.bf16.msra.mxu0 %v2007
        %2372 = vmatpush.bf16.msra.mxu0 %v2000
        %2373 = vmatpush.bf16.msra.mxu0 %v1993
        %2374 = vmatpush.bf16.msra.mxu0 %v1986
        %2375 = vmatpush.bf16.msra.mxu0 %v1979
        %2376 = vmatpush.bf16.msra.mxu0 %v1972
        %2377 = vmatpush.bf16.msra.mxu0 %v1965
        %2378 = vmatpush.bf16.msra.mxu0 %v1958
        %2379 = vmatmul.bf16.gmra.mxu0 %v1131
        %v2380 = vpop.f32.mrf.mxu0
        %v2381 = vadd.f32 %v2368, %v2380
        %v2382 = vpop.f32.mrf.mxu0
        %2383 = vdwg.mxu0
        %2384 = vmatpush.bf16.msra.mxu0 %v2063
        %2385 = vmatpush.bf16.msra.mxu0 %v2056
        %2386 = vmatpush.bf16.msra.mxu0 %v2049
        %2387 = vmatpush.bf16.msra.mxu0 %v2042
        %2388 = vmatpush.bf16.msra.mxu0 %v2035
        %2389 = vmatpush.bf16.msra.mxu0 %v2028
        %2390 = vmatpush.bf16.msra.mxu0 %v2021
        %2391 = vmatpush.bf16.msra.mxu0 %v2014
        %2392 = vmatmul.bf16.gmra.mxu0 %v1132
        %v2393 = vpop.f32.mrf.mxu0
        %v2394 = vadd.f32 %v2381, %v2393
        %v2395 = vpop.f32.mrf.mxu0
        %2396 = vdwg.mxu0
        %2397 = vmatpush.bf16.msra.mxu0 0
        %2398 = vmatpush.bf16.msra.mxu0 0
        %2399 = vmatpush.bf16.msra.mxu0 0
        %2400 = vmatpush.bf16.msra.mxu0 0
        %2401 = vmatpush.bf16.msra.mxu0 0
        %2402 = vmatpush.bf16.msra.mxu0 0
        %2403 = vmatpush.bf16.msra.mxu0 0
        %2404 = vmatpush.bf16.msra.mxu0 %v2070
        %2405 = vmatmul.bf16.gmra.mxu0 %v2252
        %v2406 = vpop.f32.mrf.mxu0
        %v2407 = vadd.f32 %v2394, %v2406
        %v2408 = vpop.f32.mrf.mxu0
        %2409 = vdwg.mxu0
        %2410 = vmatpush.bf16.msra.mxu0 %v1952
        %2411 = vmatpush.bf16.msra.mxu0 %v1945
        %2412 = vmatpush.bf16.msra.mxu0 %v1938
        %2413 = vmatpush.bf16.msra.mxu0 %v1931
        %2414 = vmatpush.bf16.msra.mxu0 %v1924
        %2415 = vmatpush.bf16.msra.mxu0 %v1917
        %2416 = vmatpush.bf16.msra.mxu0 %v1910
        %2417 = vmatpush.bf16.msra.mxu0 %v1903
        %2418 = vmatmul.bf16.gmra.mxu0 %v1130
        %v2419 = vpop.f32.mrf.mxu0
        %v2420 = vadd.f32 %v1339, %v2419
        %v2421 = vpop.f32.mrf.mxu0
        %2422 = vdwg.mxu0
        %2423 = vmatpush.bf16.msra.mxu0 %v2008
        %2424 = vmatpush.bf16.msra.mxu0 %v2001
        %2425 = vmatpush.bf16.msra.mxu0 %v1994
        %2426 = vmatpush.bf16.msra.mxu0 %v1987
        %2427 = vmatpush.bf16.msra.mxu0 %v1980
        %2428 = vmatpush.bf16.msra.mxu0 %v1973
        %2429 = vmatpush.bf16.msra.mxu0 %v1966
        %2430 = vmatpush.bf16.msra.mxu0 %v1959
        %2431 = vmatmul.bf16.gmra.mxu0 %v1131
        %v2432 = vpop.f32.mrf.mxu0
        %v2433 = vadd.f32 %v2420, %v2432
        %v2434 = vpop.f32.mrf.mxu0
        %2435 = vdwg.mxu0
        %2436 = vmatpush.bf16.msra.mxu0 %v2064
        %2437 = vmatpush.bf16.msra.mxu0 %v2057
        %2438 = vmatpush.bf16.msra.mxu0 %v2050
        %2439 = vmatpush.bf16.msra.mxu0 %v2043
        %2440 = vmatpush.bf16.msra.mxu0 %v2036
        %2441 = vmatpush.bf16.msra.mxu0 %v2029
        %2442 = vmatpush.bf16.msra.mxu0 %v2022
        %2443 = vmatpush.bf16.msra.mxu0 %v2015
        %2444 = vmatmul.bf16.gmra.mxu0 %v1132
        %v2445 = vpop.f32.mrf.mxu0
        %v2446 = vadd.f32 %v2433, %v2445
        %v2447 = vpop.f32.mrf.mxu0
        %2448 = vdwg.mxu0
        %2449 = vmatpush.bf16.msra.mxu0 0
        %2450 = vmatpush.bf16.msra.mxu0 0
        %2451 = vmatpush.bf16.msra.mxu0 0
        %2452 = vmatpush.bf16.msra.mxu0 0
        %2453 = vmatpush.bf16.msra.mxu0 0
        %2454 = vmatpush.bf16.msra.mxu0 0
        %2455 = vmatpush.bf16.msra.mxu0 0
        %2456 = vmatpush.bf16.msra.mxu0 %v2071
        %2457 = vmatmul.bf16.gmra.mxu0 %v2252
        %v2458 = vpop.f32.mrf.mxu0
        %v2459 = vadd.f32 %v2446, %v2458
        %v2460 = vpop.f32.mrf.mxu0
        %2461 = vdwg.mxu0
        %2462 = vmatpush.bf16.msra.mxu0 %v1953
        %2463 = vmatpush.bf16.msra.mxu0 %v1946
        %2464 = vmatpush.bf16.msra.mxu0 %v1939
        %2465 = vmatpush.bf16.msra.mxu0 %v1932
        %2466 = vmatpush.bf16.msra.mxu0 %v1925
        %2467 = vmatpush.bf16.msra.mxu0 %v1918
        %2468 = vmatpush.bf16.msra.mxu0 %v1911
        %2469 = vmatpush.bf16.msra.mxu0 %v1904
        %2470 = vmatmul.bf16.gmra.mxu0 %v1130
        %v2471 = vpop.f32.mrf.mxu0
        %v2472 = vadd.f32 %v1340, %v2471
        %v2473 = vpop.f32.mrf.mxu0
        %2474 = vdwg.mxu0
        %2475 = vmatpush.bf16.msra.mxu0 %v2009
        %2476 = vmatpush.bf16.msra.mxu0 %v2002
        %2477 = vmatpush.bf16.msra.mxu0 %v1995
        %2478 = vmatpush.bf16.msra.mxu0 %v1988
        %2479 = vmatpush.bf16.msra.mxu0 %v1981
        %2480 = vmatpush.bf16.msra.mxu0 %v1974
        %2481 = vmatpush.bf16.msra.mxu0 %v1967
        %2482 = vmatpush.bf16.msra.mxu0 %v1960
        %2483 = vmatmul.bf16.gmra.mxu0 %v1131
        %v2484 = vpop.f32.mrf.mxu0
        %v2485 = vadd.f32 %v2472, %v2484
        %v2486 = vpop.f32.mrf.mxu0
        %2487 = vdwg.mxu0
        %2488 = vmatpush.bf16.msra.mxu0 %v2065
        %2489 = vmatpush.bf16.msra.mxu0 %v2058
        %2490 = vmatpush.bf16.msra.mxu0 %v2051
        %2491 = vmatpush.bf16.msra.mxu0 %v2044
        %2492 = vmatpush.bf16.msra.mxu0 %v2037
        %2493 = vmatpush.bf16.msra.mxu0 %v2030
        %2494 = vmatpush.bf16.msra.mxu0 %v2023
        %2495 = vmatpush.bf16.msra.mxu0 %v2016
        %2496 = vmatmul.bf16.gmra.mxu0 %v1132
        %v2497 = vpop.f32.mrf.mxu0
        %v2498 = vadd.f32 %v2485, %v2497
        %v2499 = vpop.f32.mrf.mxu0
        %2500 = vdwg.mxu0
        %2501 = vmatpush.bf16.msra.mxu0 0
        %2502 = vmatpush.bf16.msra.mxu0 0
        %2503 = vmatpush.bf16.msra.mxu0 0
        %2504 = vmatpush.bf16.msra.mxu0 0
        %2505 = vmatpush.bf16.msra.mxu0 0
        %2506 = vmatpush.bf16.msra.mxu0 0
        %2507 = vmatpush.bf16.msra.mxu0 0
        %2508 = vmatpush.bf16.msra.mxu0 %v2072
        %2509 = vmatmul.bf16.gmra.mxu0 %v2252
        %v2510 = vpop.f32.mrf.mxu0
        %v2511 = vadd.f32 %v2498, %v2510
        %v2512 = vpop.f32.mrf.mxu0
        %2513 = vdwg.mxu0
        %2514 = vmatpush.bf16.msra.mxu0 %v1954
        %2515 = vmatpush.bf16.msra.mxu0 %v1947
        %2516 = vmatpush.bf16.msra.mxu0 %v1940
        %2517 = vmatpush.bf16.msra.mxu0 %v1933
        %2518 = vmatpush.bf16.msra.mxu0 %v1926
        %2519 = vmatpush.bf16.msra.mxu0 %v1919
        %2520 = vmatpush.bf16.msra.mxu0 %v1912
        %2521 = vmatpush.bf16.msra.mxu0 %v1905
        %2522 = vmatmul.bf16.gmra.mxu0 %v1130
        %v2523 = vpop.f32.mrf.mxu0
        %v2524 = vadd.f32 %v1341, %v2523
        %v2525 = vpop.f32.mrf.mxu0
        %2526 = vdwg.mxu0
        %2527 = vmatpush.bf16.msra.mxu0 %v2010
        %2528 = vmatpush.bf16.msra.mxu0 %v2003
        %2529 = vmatpush.bf16.msra.mxu0 %v1996
        %2530 = vmatpush.bf16.msra.mxu0 %v1989
        %2531 = vmatpush.bf16.msra.mxu0 %v1982
        %2532 = vmatpush.bf16.msra.mxu0 %v1975
        %2533 = vmatpush.bf16.msra.mxu0 %v1968
        %2534 = vmatpush.bf16.msra.mxu0 %v1961
        %2535 = vmatmul.bf16.gmra.mxu0 %v1131
        %v2536 = vpop.f32.mrf.mxu0
        %v2537 = vadd.f32 %v2524, %v2536
        %v2538 = vpop.f32.mrf.mxu0
        %2539 = vdwg.mxu0
        %2540 = vmatpush.bf16.msra.mxu0 %v2066
        %2541 = vmatpush.bf16.msra.mxu0 %v2059
        %2542 = vmatpush.bf16.msra.mxu0 %v2052
        %2543 = vmatpush.bf16.msra.mxu0 %v2045
        %2544 = vmatpush.bf16.msra.mxu0 %v2038
        %2545 = vmatpush.bf16.msra.mxu0 %v2031
        %2546 = vmatpush.bf16.msra.mxu0 %v2024
        %2547 = vmatpush.bf16.msra.mxu0 %v2017
        %2548 = vmatmul.bf16.gmra.mxu0 %v1132
        %v2549 = vpop.f32.mrf.mxu0
        %v2550 = vadd.f32 %v2537, %v2549
        %v2551 = vpop.f32.mrf.mxu0
        %2552 = vdwg.mxu0
        %2553 = vmatpush.bf16.msra.mxu0 0
        %2554 = vmatpush.bf16.msra.mxu0 0
        %2555 = vmatpush.bf16.msra.mxu0 0
        %2556 = vmatpush.bf16.msra.mxu0 0
        %2557 = vmatpush.bf16.msra.mxu0 0
        %2558 = vmatpush.bf16.msra.mxu0 0
        %2559 = vmatpush.bf16.msra.mxu0 0
        %2560 = vmatpush.bf16.msra.mxu0 %v2073
        %2561 = vmatmul.bf16.gmra.mxu0 %v2252
        %v2562 = vpop.f32.mrf.mxu0
        %v2563 = vadd.f32 %v2550, %v2562
        %v2564 = vpop.f32.mrf.mxu0
        %2565 = vdwg.mxu0
        %2566 = vmatpush.bf16.msra.mxu0 %v1955
        %2567 = vmatpush.bf16.msra.mxu0 %v1948
        %2568 = vmatpush.bf16.msra.mxu0 %v1941
        %2569 = vmatpush.bf16.msra.mxu0 %v1934
        %2570 = vmatpush.bf16.msra.mxu0 %v1927
        %2571 = vmatpush.bf16.msra.mxu0 %v1920
        %2572 = vmatpush.bf16.msra.mxu0 %v1913
        %2573 = vmatpush.bf16.msra.mxu0 %v1906
        %2574 = vmatmul.bf16.gmra.mxu0 %v1130
        %v2575 = vpop.f32.mrf.mxu0
        %v2576 = vadd.f32 %v1342, %v2575
        %v2577 = vpop.f32.mrf.mxu0
        %2578 = vdwg.mxu0
        %2579 = vmatpush.bf16.msra.mxu0 %v2011
        %2580 = vmatpush.bf16.msra.mxu0 %v2004
        %2581 = vmatpush.bf16.msra.mxu0 %v1997
        %2582 = vmatpush.bf16.msra.mxu0 %v1990
        %2583 = vmatpush.bf16.msra.mxu0 %v1983
        %2584 = vmatpush.bf16.msra.mxu0 %v1976
        %2585 = vmatpush.bf16.msra.mxu0 %v1969
        %2586 = vmatpush.bf16.msra.mxu0 %v1962
        %2587 = vmatmul.bf16.gmra.mxu0 %v1131
        %v2588 = vpop.f32.mrf.mxu0
        %v2589 = vadd.f32 %v2576, %v2588
        %v2590 = vpop.f32.mrf.mxu0
        %2591 = vdwg.mxu0
        %2592 = vmatpush.bf16.msra.mxu0 %v2067
        %2593 = vmatpush.bf16.msra.mxu0 %v2060
        %2594 = vmatpush.bf16.msra.mxu0 %v2053
        %2595 = vmatpush.bf16.msra.mxu0 %v2046
        %2596 = vmatpush.bf16.msra.mxu0 %v2039
        %2597 = vmatpush.bf16.msra.mxu0 %v2032
        %2598 = vmatpush.bf16.msra.mxu0 %v2025
        %2599 = vmatpush.bf16.msra.mxu0 %v2018
        %2600 = vmatmul.bf16.gmra.mxu0 %v1132
        %v2601 = vpop.f32.mrf.mxu0
        %v2602 = vadd.f32 %v2589, %v2601
        %v2603 = vpop.f32.mrf.mxu0
        %2604 = vdwg.mxu0
        %2605 = vmatpush.bf16.msra.mxu0 0
        %2606 = vmatpush.bf16.msra.mxu0 0
        %2607 = vmatpush.bf16.msra.mxu0 0
        %2608 = vmatpush.bf16.msra.mxu0 0
        %2609 = vmatpush.bf16.msra.mxu0 0
        %2610 = vmatpush.bf16.msra.mxu0 0
        %2611 = vmatpush.bf16.msra.mxu0 0
        %2612 = vmatpush.bf16.msra.mxu0 %v2074
        %2613 = vmatmul.bf16.gmra.mxu0 %v2252
        %v2614 = vpop.f32.mrf.mxu0
        %v2615 = vadd.f32 %v2602, %v2614
        %v2616 = vpop.f32.mrf.mxu0
        %2617 = vdwg.mxu0
        %vm2618 = vcmp.gt.f32.partialorder %v2303, 0.0
        %vm2619 = vcmp.gt.f32.partialorder %v2355, 0.0
        %vm2620 = vcmp.gt.f32.partialorder %v2407, 0.0
        %vm2621 = vcmp.gt.f32.partialorder %v2459, 0.0
        %vm2622 = vcmp.gt.f32.partialorder %v2511, 0.0
        %vm2623 = vcmp.gt.f32.partialorder %v2563, 0.0
        %vm2624 = vcmp.gt.f32.partialorder %v2615, 0.0
        %v2625 = vmul.f32 %v2303, 0.01
        %v2626 = vmul.f32 %v2355, 0.01
        %v2627 = vmul.f32 %v2407, 0.01
        %v2628 = vmul.f32 %v2459, 0.01
        %v2629 = vmul.f32 %v2511, 0.01
        %v2630 = vmul.f32 %v2563, 0.01
        %v2631 = vmul.f32 %v2615, 0.01
        %v2632 = vsel %vm2618, %v2303, %v2625
        %v2633 = vsel %vm2619, %v2355, %v2626
        %v2634 = vsel %vm2620, %v2407, %v2627
        %v2635 = vsel %vm2621, %v2459, %v2628
        %v2636 = vsel %vm2622, %v2511, %v2629
        %v2637 = vsel %vm2623, %v2563, %v2630
        %v2638 = vsel %vm2624, %v2615, %v2631
        %v2639 = vpack.c.bf16 %v2632, %v2632
        %v2640 = vpack.c.bf16 %v2633, %v2633
        %v2641 = vpack.c.bf16 %v2634, %v2634
        %v2642 = vpack.c.bf16 %v2635, %v2635
        %v2643 = vpack.c.bf16 %v2636, %v2636
        %v2644 = vpack.c.bf16 %v2637, %v2637
        %v2645 = vpack.c.bf16 %v2638, %v2638
        %v2646 = vld [vmem:[%s7] sm:$0xff]
        %v2647 = vld [vmem:[%s7 + $0x8] sm:$0xff]
        %v2648 = vld [vmem:[%s7 + $0x10] sm:$0xff]
        %v2649 = vld [vmem:[%s7 + $0x18] sm:$0xf]
        %v2650 = vld [vmem:[%s7 + $0x1c] sm:$0xff]
        %v2651 = vld [vmem:[%s7 + $0x24] sm:$0xff]
        %v2652 = vld [vmem:[%s7 + $0x2c] sm:$0xff]
        %v2653 = vld [vmem:[%s7 + $0x34] sm:$0xf]
        %v2654 = vld [vmem:[%s7 + $0x38] sm:$0xff]
        %v2655 = vld [vmem:[%s7 + $0x40] sm:$0xff]
        %v2656 = vld [vmem:[%s7 + $0x48] sm:$0xff]
        %v2657 = vld [vmem:[%s7 + $0x50] sm:$0xf]
        %v2658 = vld [vmem:[%s7 + $0x54] sm:$0xff]
        %v2659 = vld [vmem:[%s7 + $0x5c] sm:$0xff]
        %v2660 = vld [vmem:[%s7 + $0x64] sm:$0xff]
        %v2661 = vld [vmem:[%s7 + $0x6c] sm:$0xf]
        %v2662 = vld [vmem:[%s7 + $0x70] sm:$0xff]
        %v2663 = vld [vmem:[%s7 + $0x78] sm:$0xff]
        %v2664 = vld [vmem:[%s7 + $0x80] sm:$0xff]
        %v2665 = vld [vmem:[%s7 + $0x88] sm:$0xf]
        %v2666 = vld [vmem:[%s7 + $0x8c] sm:$0xff]
        %v2667 = vld [vmem:[%s7 + $0x94] sm:$0xff]
        %v2668 = vld [vmem:[%s7 + $0x9c] sm:$0xff]
        %v2669 = vld [vmem:[%s7 + $0xa4] sm:$0xf]
        %v2670 = vld [vmem:[%s7 + $0xa8] sm:$0xff]
        %v2671 = vld [vmem:[%s7 + $0xb0] sm:$0xff]
        %v2672 = vld [vmem:[%s7 + $0xb8] sm:$0xff]
        %v2673 = vld [vmem:[%s7 + $0xc0] sm:$0xf]
        %v2674 = vld [vmem:[%s7 + $0xc4] sm:$0xff]
        %v2675 = vld [vmem:[%s7 + $0xcc] sm:$0xff]
        %v2676 = vld [vmem:[%s7 + $0xd4] sm:$0xff]
        %v2677 = vld [vmem:[%s7 + $0xdc] sm:$0xf]
        %v2678 = vld [vmem:[%s7 + $0xe0] sm:$0xff]
        %v2679 = vld [vmem:[%s7 + $0xe8] sm:$0xff]
        %v2680 = vld [vmem:[%s7 + $0xf0] sm:$0xff]
        %v2681 = vld [vmem:[%s7 + $0xf8] sm:$0xf]
        %v2682 = vld [vmem:[%s7 + $0xfc] sm:$0xff]
        %v2683 = vld [vmem:[%s7 + $0x104] sm:$0xff]
        %v2684 = vld [vmem:[%s7 + $0x10c] sm:$0xff]
        %v2685 = vld [vmem:[%s7 + $0x114] sm:$0xf]
        %v2686 = vld [vmem:[%s7 + $0x118] sm:$0xff]
        %v2687 = vld [vmem:[%s7 + $0x120] sm:$0xff]
        %v2688 = vld [vmem:[%s7 + $0x128] sm:$0xff]
        %v2689 = vld [vmem:[%s7 + $0x130] sm:$0xf]
        %v2690 = vld [vmem:[%s7 + $0x134] sm:$0xff]
        %v2691 = vld [vmem:[%s7 + $0x13c] sm:$0xff]
        %v2692 = vld [vmem:[%s7 + $0x144] sm:$0xff]
        %v2693 = vld [vmem:[%s7 + $0x14c] sm:$0xf]
        %v2694 = vld [vmem:[%s7 + $0x150] sm:$0xff]
        %v2695 = vld [vmem:[%s7 + $0x158] sm:$0xff]
        %v2696 = vld [vmem:[%s7 + $0x160] sm:$0xff]
        %v2697 = vld [vmem:[%s7 + $0x168] sm:$0xf]
        %v2698 = vld [vmem:[%s7 + $0x16c] sm:$0xff]
        %v2699 = vld [vmem:[%s7 + $0x174] sm:$0xff]
        %v2700 = vld [vmem:[%s7 + $0x17c] sm:$0xff]
        %v2701 = vld [vmem:[%s7 + $0x184] sm:$0xf]
        %v2702 = vld [vmem:[%s7 + $0x188] sm:$0xff]
        %v2703 = vld [vmem:[%s7 + $0x190] sm:$0xff]
        %v2704 = vld [vmem:[%s7 + $0x198] sm:$0xff]
        %v2705 = vld [vmem:[%s7 + $0x1a0] sm:$0xf]
        %v2706 = vld [vmem:[%s7 + $0x1a4] sm:$0xff]
        %v2707 = vld [vmem:[%s7 + $0x1ac] sm:$0xff]
        %v2708 = vld [vmem:[%s7 + $0x1b4] sm:$0xff]
        %v2709 = vld [vmem:[%s7 + $0x1bc] sm:$0xf]
        %v2710 = vld [vmem:[%s7 + $0x1c0] sm:$0xff]
        %v2711 = vld [vmem:[%s7 + $0x1c8] sm:$0xff]
        %v2712 = vld [vmem:[%s7 + $0x1d0] sm:$0xff]
        %v2713 = vld [vmem:[%s7 + $0x1d8] sm:$0xf]
        %v2714 = vld [vmem:[%s7 + $0x1dc] sm:$0xff]
        %v2715 = vld [vmem:[%s7 + $0x1e4] sm:$0xff]
        %v2716 = vld [vmem:[%s7 + $0x1ec] sm:$0xff]
        %v2717 = vld [vmem:[%s7 + $0x1f4] sm:$0xf]
        %v2718 = vld [vmem:[%s7 + $0x1f8] sm:$0xff]
        %v2719 = vld [vmem:[%s7 + $0x200] sm:$0xff]
        %v2720 = vld [vmem:[%s7 + $0x208] sm:$0xff]
        %v2721 = vld [vmem:[%s7 + $0x210] sm:$0xf]
        %v2722 = vld [vmem:[%s7 + $0x214] sm:$0xff]
        %v2723 = vld [vmem:[%s7 + $0x21c] sm:$0xff]
        %v2724 = vld [vmem:[%s7 + $0x224] sm:$0xff]
        %v2725 = vld [vmem:[%s7 + $0x22c] sm:$0xf]
        %v2726 = vld [vmem:[%s7 + $0x230] sm:$0xff]
        %v2727 = vld [vmem:[%s7 + $0x238] sm:$0xff]
        %v2728 = vld [vmem:[%s7 + $0x240] sm:$0xff]
        %v2729 = vld [vmem:[%s7 + $0x248] sm:$0xf]
        %v2730 = vld [vmem:[%s7 + $0x24c] sm:$0xff]
        %v2731 = vld [vmem:[%s7 + $0x254] sm:$0xff]
        %v2732 = vld [vmem:[%s7 + $0x25c] sm:$0xff]
        %v2733 = vld [vmem:[%s7 + $0x264] sm:$0xf]
        %v2734 = vld [vmem:[%s7 + $0x268] sm:$0xff]
        %v2735 = vld [vmem:[%s7 + $0x270] sm:$0xff]
        %v2736 = vld [vmem:[%s7 + $0x278] sm:$0xff]
        %v2737 = vld [vmem:[%s7 + $0x280] sm:$0xf]
        %v2738 = vld [vmem:[%s7 + $0x284] sm:$0xff]
        %v2739 = vld [vmem:[%s7 + $0x28c] sm:$0xff]
        %v2740 = vld [vmem:[%s7 + $0x294] sm:$0xff]
        %v2741 = vld [vmem:[%s7 + $0x29c] sm:$0xf]
        %v2742 = vld [vmem:[%s7 + $0x2a0] sm:$0xff]
        %v2743 = vld [vmem:[%s7 + $0x2a8] sm:$0xff]
        %v2744 = vld [vmem:[%s7 + $0x2b0] sm:$0xff]
        %v2745 = vld [vmem:[%s7 + $0x2b8] sm:$0xf]
        %v2746 = vld [vmem:[%s7 + $0x2bc] sm:$0xff]
        %v2747 = vld [vmem:[%s7 + $0x2c4] sm:$0xff]
        %v2748 = vld [vmem:[%s7 + $0x2cc] sm:$0xff]
        %v2749 = vld [vmem:[%s7 + $0x2d4] sm:$0xf]
        %v2750 = vld [vmem:[%s7 + $0x2d8] sm:$0xff]
        %v2751 = vld [vmem:[%s7 + $0x2e0] sm:$0xff]
        %v2752 = vld [vmem:[%s7 + $0x2e8] sm:$0xff]
        %v2753 = vld [vmem:[%s7 + $0x2f0] sm:$0xf]
        %v2754 = vld [vmem:[%s7 + $0x2f4] sm:$0xff]
        %v2755 = vld [vmem:[%s7 + $0x2fc] sm:$0xff]
        %v2756 = vld [vmem:[%s7 + $0x304] sm:$0xff]
        %v2757 = vld [vmem:[%s7 + $0x30c] sm:$0xf]
        %v2758 = vld [vmem:[%s7 + $0x310] sm:$0xff]
        %v2759 = vld [vmem:[%s7 + $0x318] sm:$0xff]
        %v2760 = vld [vmem:[%s7 + $0x320] sm:$0xff]
        %v2761 = vld [vmem:[%s7 + $0x328] sm:$0xf]
        %v2762 = vld [vmem:[%s7 + $0x32c] sm:$0xff]
        %v2763 = vld [vmem:[%s7 + $0x334] sm:$0xff]
        %v2764 = vld [vmem:[%s7 + $0x33c] sm:$0xff]
        %v2765 = vld [vmem:[%s7 + $0x344] sm:$0xf]
        %v2766 = vld [vmem:[%s7 + $0x348] sm:$0xff]
        %v2767 = vld [vmem:[%s7 + $0x350] sm:$0xff]
        %v2768 = vld [vmem:[%s7 + $0x358] sm:$0xff]
        %v2769 = vld [vmem:[%s7 + $0x360] sm:$0xf]
        %v2770 = vld [vmem:[%s7 + $0x364] sm:$0xff]
        %v2771 = vld [vmem:[%s7 + $0x36c] sm:$0xff]
        %v2772 = vld [vmem:[%s7 + $0x374] sm:$0xff]
        %v2773 = vld [vmem:[%s7 + $0x37c] sm:$0xf]
        %v2774 = vld [vmem:[%s7 + $0x380] sm:$0xff]
        %v2775 = vld [vmem:[%s7 + $0x388] sm:$0xff]
        %v2776 = vld [vmem:[%s7 + $0x390] sm:$0xff]
        %v2777 = vld [vmem:[%s7 + $0x398] sm:$0xf]
        %v2778 = vld [vmem:[%s7 + $0x39c] sm:$0xff]
        %v2779 = vld [vmem:[%s7 + $0x3a4] sm:$0xff]
        %v2780 = vld [vmem:[%s7 + $0x3ac] sm:$0xff]
        %v2781 = vld [vmem:[%s7 + $0x3b4] sm:$0xf]
        %v2782 = vld [vmem:[%s7 + $0x3b8] sm:$0xff]
        %v2783 = vld [vmem:[%s7 + $0x3c0] sm:$0xff]
        %v2784 = vld [vmem:[%s7 + $0x3c8] sm:$0xff]
        %v2785 = vld [vmem:[%s7 + $0x3d0] sm:$0xf]
        %v2786 = vld [vmem:[%s7 + $0x3d4] sm:$0xff]
        %v2787 = vld [vmem:[%s7 + $0x3dc] sm:$0xff]
        %v2788 = vld [vmem:[%s7 + $0x3e4] sm:$0xff]
        %v2789 = vld [vmem:[%s7 + $0x3ec] sm:$0xf]
        %v2790 = vld [vmem:[%s7 + $0x3f0] sm:$0xff]
        %v2791 = vld [vmem:[%s7 + $0x3f8] sm:$0xff]
        %v2792 = vld [vmem:[%s7 + $0x400] sm:$0xff]
        %v2793 = vld [vmem:[%s7 + $0x408] sm:$0xf]
        %v2794 = vld [vmem:[%s7 + $0x40c] sm:$0xff]
        %v2795 = vld [vmem:[%s7 + $0x414] sm:$0xff]
        %v2796 = vld [vmem:[%s7 + $0x41c] sm:$0xff]
        %v2797 = vld [vmem:[%s7 + $0x424] sm:$0xf]
        %v2798 = vld [vmem:[%s7 + $0x428] sm:$0xff]
        %v2799 = vld [vmem:[%s7 + $0x430] sm:$0xff]
        %v2800 = vld [vmem:[%s7 + $0x438] sm:$0xff]
        %v2801 = vld [vmem:[%s7 + $0x440] sm:$0xf]
        %v2802 = vld [vmem:[%s7 + $0x444] sm:$0xff]
        %v2803 = vld [vmem:[%s7 + $0x44c] sm:$0xff]
        %v2804 = vld [vmem:[%s7 + $0x454] sm:$0xff]
        %v2805 = vld [vmem:[%s7 + $0x45c] sm:$0xf]
        %v2806 = vld [vmem:[%s7 + $0x460] sm:$0xff]
        %v2807 = vld [vmem:[%s7 + $0x468] sm:$0xff]
        %v2808 = vld [vmem:[%s7 + $0x470] sm:$0xff]
        %v2809 = vld [vmem:[%s7 + $0x478] sm:$0xf]
        %v2810 = vld [vmem:[%s7 + $0x47c] sm:$0xff]
        %v2811 = vld [vmem:[%s7 + $0x484] sm:$0xff]
        %v2812 = vld [vmem:[%s7 + $0x48c] sm:$0xff]
        %v2813 = vld [vmem:[%s7 + $0x494] sm:$0xf]
        %v2814 = vld [vmem:[%s7 + $0x498] sm:$0xff]
        %v2815 = vld [vmem:[%s7 + $0x4a0] sm:$0xff]
        %v2816 = vld [vmem:[%s7 + $0x4a8] sm:$0xff]
        %v2817 = vld [vmem:[%s7 + $0x4b0] sm:$0xf]
        %v2818 = vld [vmem:[%s7 + $0x4b4] sm:$0xff]
        %v2819 = vld [vmem:[%s7 + $0x4bc] sm:$0xff]
        %v2820 = vld [vmem:[%s7 + $0x4c4] sm:$0xff]
        %v2821 = vld [vmem:[%s7 + $0x4cc] sm:$0xf]
        %v2822 = vld [vmem:[%s7 + $0x4d0] sm:$0xff]
        %v2823 = vld [vmem:[%s7 + $0x4d8] sm:$0xff]
        %v2824 = vld [vmem:[%s7 + $0x4e0] sm:$0xff]
        %v2825 = vld [vmem:[%s7 + $0x4e8] sm:$0xf]
        %v2826 = vld [vmem:[%s7 + $0x4ec] sm:$0xff]
        %v2827 = vld [vmem:[%s7 + $0x4f4] sm:$0xff]
        %v2828 = vld [vmem:[%s7 + $0x4fc] sm:$0xff]
        %v2829 = vld [vmem:[%s7 + $0x504] sm:$0xf]
        %v2830 = vld [vmem:[%s7 + $0x508] sm:$0xff]
        %v2831 = vld [vmem:[%s7 + $0x510] sm:$0xff]
        %v2832 = vld [vmem:[%s7 + $0x518] sm:$0xff]
        %v2833 = vld [vmem:[%s7 + $0x520] sm:$0xf]
        %v2834 = vld [vmem:[%s7 + $0x524] sm:$0xff]
        %v2835 = vld [vmem:[%s7 + $0x52c] sm:$0xff]
        %v2836 = vld [vmem:[%s7 + $0x534] sm:$0xff]
        %v2837 = vld [vmem:[%s7 + $0x53c] sm:$0xf]
        %v2838 = vld [vmem:[%s7 + $0x540] sm:$0xff]
        %v2839 = vld [vmem:[%s7 + $0x548] sm:$0xff]
        %v2840 = vld [vmem:[%s7 + $0x550] sm:$0xff]
        %v2841 = vld [vmem:[%s7 + $0x558] sm:$0xf]
        %v2842 = vld [vmem:[%s7 + $0x55c] sm:$0xff]
        %v2843 = vld [vmem:[%s7 + $0x564] sm:$0xff]
        %v2844 = vld [vmem:[%s7 + $0x56c] sm:$0xff]
        %v2845 = vld [vmem:[%s7 + $0x574] sm:$0xf]
        %v2846 = vld [vmem:[%s7 + $0x578] sm:$0xff]
        %v2847 = vld [vmem:[%s7 + $0x580] sm:$0xff]
        %v2848 = vld [vmem:[%s7 + $0x588] sm:$0xff]
        %v2849 = vld [vmem:[%s7 + $0x590] sm:$0xf]
        %v2850 = vld [vmem:[%s7 + $0x594] sm:$0xff]
        %v2851 = vld [vmem:[%s7 + $0x59c] sm:$0xff]
        %v2852 = vld [vmem:[%s7 + $0x5a4] sm:$0xff]
        %v2853 = vld [vmem:[%s7 + $0x5ac] sm:$0xf]
        %v2854 = vld [vmem:[%s7 + $0x5b0] sm:$0xff]
        %v2855 = vld [vmem:[%s7 + $0x5b8] sm:$0xff]
        %v2856 = vld [vmem:[%s7 + $0x5c0] sm:$0xff]
        %v2857 = vld [vmem:[%s7 + $0x5c8] sm:$0xf]
        %v2858 = vld [vmem:[%s7 + $0x5cc] sm:$0xff]
        %v2859 = vld [vmem:[%s7 + $0x5d4] sm:$0xff]
        %v2860 = vld [vmem:[%s7 + $0x5dc] sm:$0xff]
        %v2861 = vld [vmem:[%s7 + $0x5e4] sm:$0xf]
        %v2862 = vld [vmem:[%s7 + $0x5e8] sm:$0xff]
        %v2863 = vld [vmem:[%s7 + $0x5f0] sm:$0xff]
        %v2864 = vld [vmem:[%s7 + $0x5f8] sm:$0xff]
        %v2865 = vld [vmem:[%s7 + $0x600] sm:$0xf]
        %v2866 = vld [vmem:[%s7 + $0x604] sm:$0xff]
        %v2867 = vld [vmem:[%s7 + $0x60c] sm:$0xff]
        %v2868 = vld [vmem:[%s7 + $0x614] sm:$0xff]
        %v2869 = vld [vmem:[%s7 + $0x61c] sm:$0xf]
        %v2870 = vld [vmem:[%s7 + $0x620] sm:$0xff]
        %v2871 = vld [vmem:[%s7 + $0x628] sm:$0xff]
        %v2872 = vld [vmem:[%s7 + $0x630] sm:$0xff]
        %v2873 = vld [vmem:[%s7 + $0x638] sm:$0xf]
        %v2874 = vld [vmem:[%s7 + $0x63c] sm:$0xff]
        %v2875 = vld [vmem:[%s7 + $0x644] sm:$0xff]
        %v2876 = vld [vmem:[%s7 + $0x64c] sm:$0xff]
        %v2877 = vld [vmem:[%s7 + $0x654] sm:$0xf]
        %v2878 = vld [vmem:[%s7 + $0x658] sm:$0xff]
        %v2879 = vld [vmem:[%s7 + $0x660] sm:$0xff]
        %v2880 = vld [vmem:[%s7 + $0x668] sm:$0xff]
        %v2881 = vld [vmem:[%s7 + $0x670] sm:$0xf]
        %v2882 = vld [vmem:[%s7 + $0x674] sm:$0xff]
        %v2883 = vld [vmem:[%s7 + $0x67c] sm:$0xff]
        %v2884 = vld [vmem:[%s7 + $0x684] sm:$0xff]
        %v2885 = vld [vmem:[%s7 + $0x68c] sm:$0xf]
        %v2886 = vld [vmem:[%s7 + $0x690] sm:$0xff]
        %v2887 = vld [vmem:[%s7 + $0x698] sm:$0xff]
        %v2888 = vld [vmem:[%s7 + $0x6a0] sm:$0xff]
        %v2889 = vld [vmem:[%s7 + $0x6a8] sm:$0xf]
        %v2890 = vld [vmem:[%s7 + $0x6ac] sm:$0xff]
        %v2891 = vld [vmem:[%s7 + $0x6b4] sm:$0xff]
        %v2892 = vld [vmem:[%s7 + $0x6bc] sm:$0xff]
        %v2893 = vld [vmem:[%s7 + $0x6c4] sm:$0xf]
        %v2894 = vld [vmem:[%s7 + $0x6c8] sm:$0xff]
        %v2895 = vld [vmem:[%s7 + $0x6d0] sm:$0xff]
        %v2896 = vld [vmem:[%s7 + $0x6d8] sm:$0xff]
        %v2897 = vld [vmem:[%s7 + $0x6e0] sm:$0xf]
        %v2898 = vld [vmem:[%s7 + $0x6e4] sm:$0xff]
        %v2899 = vld [vmem:[%s7 + $0x6ec] sm:$0xff]
        %v2900 = vld [vmem:[%s7 + $0x6f4] sm:$0xff]
        %v2901 = vld [vmem:[%s7 + $0x6fc] sm:$0xf]
        %v2902 = vld [vmem:[%s7 + $0x700] sm:$0xff]
        %v2903 = vld [vmem:[%s7 + $0x708] sm:$0xff]
        %v2904 = vld [vmem:[%s7 + $0x710] sm:$0xff]
        %v2905 = vld [vmem:[%s7 + $0x718] sm:$0xf]
        %v2906 = vld [vmem:[%s7 + $0x71c] sm:$0xff]
        %v2907 = vld [vmem:[%s7 + $0x724] sm:$0xff]
        %v2908 = vld [vmem:[%s7 + $0x72c] sm:$0xff]
        %v2909 = vld [vmem:[%s7 + $0x734] sm:$0xf]
        %v2910 = vld [vmem:[%s7 + $0x738] sm:$0xff]
        %v2911 = vld [vmem:[%s7 + $0x740] sm:$0xff]
        %v2912 = vld [vmem:[%s7 + $0x748] sm:$0xff]
        %v2913 = vld [vmem:[%s7 + $0x750] sm:$0xf]
        %v2914 = vld [vmem:[%s7 + $0x754] sm:$0xff]
        %v2915 = vld [vmem:[%s7 + $0x75c] sm:$0xff]
        %v2916 = vld [vmem:[%s7 + $0x764] sm:$0xff]
        %v2917 = vld [vmem:[%s7 + $0x76c] sm:$0xf]
        %v2918 = vld [vmem:[%s7 + $0x770] sm:$0xff]
        %v2919 = vld [vmem:[%s7 + $0x778] sm:$0xff]
        %v2920 = vld [vmem:[%s7 + $0x780] sm:$0xff]
        %v2921 = vld [vmem:[%s7 + $0x788] sm:$0xf]
        %v2922 = vld [vmem:[%s7 + $0x78c] sm:$0xff]
        %v2923 = vld [vmem:[%s7 + $0x794] sm:$0xff]
        %v2924 = vld [vmem:[%s7 + $0x79c] sm:$0xff]
        %v2925 = vld [vmem:[%s7 + $0x7a4] sm:$0xf]
        %v2926 = vld [vmem:[%s7 + $0x7a8] sm:$0xff]
        %v2927 = vld [vmem:[%s7 + $0x7b0] sm:$0xff]
        %v2928 = vld [vmem:[%s7 + $0x7b8] sm:$0xff]
        %v2929 = vld [vmem:[%s7 + $0x7c0] sm:$0xf]
        %v2930 = vld [vmem:[%s7 + $0x7c4] sm:$0xff]
        %v2931 = vld [vmem:[%s7 + $0x7cc] sm:$0xff]
        %v2932 = vld [vmem:[%s7 + $0x7d4] sm:$0xff]
        %v2933 = vld [vmem:[%s7 + $0x7dc] sm:$0xf]
        %v2934 = vld [vmem:[%s7 + $0x7e0] sm:$0xff]
        %v2935 = vld [vmem:[%s7 + $0x7e8] sm:$0xff]
        %v2936 = vld [vmem:[%s7 + $0x7f0] sm:$0xff]
        %v2937 = vld [vmem:[%s7 + $0x7f8] sm:$0xf]
        %v2938 = vld [vmem:[%s7 + $0x7fc] sm:$0xff]
        %v2939 = vld [vmem:[%s7 + $0x804] sm:$0xff]
        %v2940 = vld [vmem:[%s7 + $0x80c] sm:$0xff]
        %v2941 = vld [vmem:[%s7 + $0x814] sm:$0xf]
        %v2942 = vld [vmem:[%s7 + $0x818] sm:$0xff]
        %v2943 = vld [vmem:[%s7 + $0x820] sm:$0xff]
        %v2944 = vld [vmem:[%s7 + $0x828] sm:$0xff]
        %v2945 = vld [vmem:[%s7 + $0x830] sm:$0xf]
        %v2946 = vld [vmem:[%s7 + $0x834] sm:$0xff]
        %v2947 = vld [vmem:[%s7 + $0x83c] sm:$0xff]
        %v2948 = vld [vmem:[%s7 + $0x844] sm:$0xff]
        %v2949 = vld [vmem:[%s7 + $0x84c] sm:$0xf]
        %v2950 = vld [vmem:[%s7 + $0x850] sm:$0xff]
        %v2951 = vld [vmem:[%s7 + $0x858] sm:$0xff]
        %v2952 = vld [vmem:[%s7 + $0x860] sm:$0xff]
        %v2953 = vld [vmem:[%s7 + $0x868] sm:$0xf]
        %v2954 = vld [vmem:[%s7 + $0x86c] sm:$0xff]
        %v2955 = vld [vmem:[%s7 + $0x874] sm:$0xff]
        %v2956 = vld [vmem:[%s7 + $0x87c] sm:$0xff]
        %v2957 = vld [vmem:[%s7 + $0x884] sm:$0xf]
        %v2958 = vld [vmem:[%s7 + $0x888] sm:$0xff]
        %v2959 = vld [vmem:[%s7 + $0x890] sm:$0xff]
        %v2960 = vld [vmem:[%s7 + $0x898] sm:$0xff]
        %v2961 = vld [vmem:[%s7 + $0x8a0] sm:$0xf]
        %v2962 = vld [vmem:[%s7 + $0x8a4] sm:$0xff]
        %v2963 = vld [vmem:[%s7 + $0x8ac] sm:$0xff]
        %v2964 = vld [vmem:[%s7 + $0x8b4] sm:$0xff]
        %v2965 = vld [vmem:[%s7 + $0x8bc] sm:$0xf]
        %v2966 = vld [vmem:[%s7 + $0x8c0] sm:$0xff]
        %v2967 = vld [vmem:[%s7 + $0x8c8] sm:$0xff]
        %v2968 = vld [vmem:[%s7 + $0x8d0] sm:$0xff]
        %v2969 = vld [vmem:[%s7 + $0x8d8] sm:$0xf]
        %v2970 = vld [vmem:[%s7 + $0x8dc] sm:$0xff]
        %v2971 = vld [vmem:[%s7 + $0x8e4] sm:$0xff]
        %v2972 = vld [vmem:[%s7 + $0x8ec] sm:$0xff]
        %v2973 = vld [vmem:[%s7 + $0x8f4] sm:$0xf]
        %v2974 = vld [vmem:[%s7 + $0x8f8] sm:$0xff]
        %v2975 = vld [vmem:[%s7 + $0x900] sm:$0xff]
        %v2976 = vld [vmem:[%s7 + $0x908] sm:$0xff]
        %v2977 = vld [vmem:[%s7 + $0x910] sm:$0xf]
        %v2978 = vld [vmem:[%s7 + $0x914] sm:$0xff]
        %v2979 = vld [vmem:[%s7 + $0x91c] sm:$0xff]
        %v2980 = vld [vmem:[%s7 + $0x924] sm:$0xff]
        %v2981 = vld [vmem:[%s7 + $0x92c] sm:$0xf]
        %v2982 = vld [vmem:[%s7 + $0x930] sm:$0xff]
        %v2983 = vld [vmem:[%s7 + $0x938] sm:$0xff]
        %v2984 = vld [vmem:[%s7 + $0x940] sm:$0xff]
        %v2985 = vld [vmem:[%s7 + $0x948] sm:$0xf]
        %v2986 = vld [vmem:[%s7 + $0x94c] sm:$0xff]
        %v2987 = vld [vmem:[%s7 + $0x954] sm:$0xff]
        %v2988 = vld [vmem:[%s7 + $0x95c] sm:$0xff]
        %v2989 = vld [vmem:[%s7 + $0x964] sm:$0xf]
        %v2990 = vld [vmem:[%s7 + $0x968] sm:$0xff]
        %v2991 = vld [vmem:[%s7 + $0x970] sm:$0xff]
        %v2992 = vld [vmem:[%s7 + $0x978] sm:$0xff]
        %v2993 = vld [vmem:[%s7 + $0x980] sm:$0xf]
        %v2994 = vld [vmem:[%s7 + $0x984] sm:$0xff]
        %v2995 = vld [vmem:[%s7 + $0x98c] sm:$0xff]
        %v2996 = vld [vmem:[%s7 + $0x994] sm:$0xff]
        %v2997 = vld [vmem:[%s7 + $0x99c] sm:$0xf]
        %v2998 = vld [vmem:[%s7 + $0x9a0] sm:$0xff]
        %v2999 = vld [vmem:[%s7 + $0x9a8] sm:$0xff]
        %v3000 = vld [vmem:[%s7 + $0x9b0] sm:$0xff]
        %v3001 = vld [vmem:[%s7 + $0x9b8] sm:$0xf]
        %v3002 = vld [vmem:[%s7 + $0x9bc] sm:$0xff]
        %v3003 = vld [vmem:[%s7 + $0x9c4] sm:$0xff]
        %v3004 = vld [vmem:[%s7 + $0x9cc] sm:$0xff]
        %v3005 = vld [vmem:[%s7 + $0x9d4] sm:$0xf]
        %v3006 = vld [vmem:[%s7 + $0x9d8] sm:$0xff]
        %v3007 = vld [vmem:[%s7 + $0x9e0] sm:$0xff]
        %v3008 = vld [vmem:[%s7 + $0x9e8] sm:$0xff]
        %v3009 = vld [vmem:[%s7 + $0x9f0] sm:$0xf]
        %v3010 = vld [vmem:[%s7 + $0x9f4] sm:$0xff]
        %v3011 = vld [vmem:[%s7 + $0x9fc] sm:$0xff]
        %v3012 = vld [vmem:[%s7 + $0xa04] sm:$0xff]
        %v3013 = vld [vmem:[%s7 + $0xa0c] sm:$0xf]
        %v3014 = vld [vmem:[%s7 + $0xa10] sm:$0xff]
        %v3015 = vld [vmem:[%s7 + $0xa18] sm:$0xff]
        %v3016 = vld [vmem:[%s7 + $0xa20] sm:$0xff]
        %v3017 = vld [vmem:[%s7 + $0xa28] sm:$0xf]
        %v3018 = vld [vmem:[%s7 + $0xa2c] sm:$0xff]
        %v3019 = vld [vmem:[%s7 + $0xa34] sm:$0xff]
        %v3020 = vld [vmem:[%s7 + $0xa3c] sm:$0xff]
        %v3021 = vld [vmem:[%s7 + $0xa44] sm:$0xf]
        %v3022 = vld [vmem:[%s7 + $0xa48] sm:$0xff]
        %v3023 = vld [vmem:[%s7 + $0xa50] sm:$0xff]
        %v3024 = vld [vmem:[%s7 + $0xa58] sm:$0xff]
        %v3025 = vld [vmem:[%s7 + $0xa60] sm:$0xf]
        %v3026 = vld [vmem:[%s7 + $0xa64] sm:$0xff]
        %v3027 = vld [vmem:[%s7 + $0xa6c] sm:$0xff]
        %v3028 = vld [vmem:[%s7 + $0xa74] sm:$0xff]
        %v3029 = vld [vmem:[%s7 + $0xa7c] sm:$0xf]
        %v3030 = vld [vmem:[%s7 + $0xa80] sm:$0xff]
        %v3031 = vld [vmem:[%s7 + $0xa88] sm:$0xff]
        %v3032 = vld [vmem:[%s7 + $0xa90] sm:$0xff]
        %v3033 = vld [vmem:[%s7 + $0xa98] sm:$0xf]
        %v3034 = vld [vmem:[%s7 + $0xa9c] sm:$0xff]
        %v3035 = vld [vmem:[%s7 + $0xaa4] sm:$0xff]
        %v3036 = vld [vmem:[%s7 + $0xaac] sm:$0xff]
        %v3037 = vld [vmem:[%s7 + $0xab4] sm:$0xf]
        %v3038 = vld [vmem:[%s7 + $0xab8] sm:$0xff]
        %v3039 = vld [vmem:[%s7 + $0xac0] sm:$0xff]
        %v3040 = vld [vmem:[%s7 + $0xac8] sm:$0xff]
        %v3041 = vld [vmem:[%s7 + $0xad0] sm:$0xf]
        %v3042 = vld [vmem:[%s7 + $0xad4] sm:$0xff]
        %v3043 = vld [vmem:[%s7 + $0xadc] sm:$0xff]
        %v3044 = vld [vmem:[%s7 + $0xae4] sm:$0xff]
        %v3045 = vld [vmem:[%s7 + $0xaec] sm:$0xf]
        %v3046 = vld [vmem:[%s8] sm:$0x7f]
        %v3048 = vperm.slane %v3046, 0
        %v3049 = vperm.slane %v3046, 1
        %v3050 = vperm.slane %v3046, 2
        %v3051 = vperm.slane %v3046, 3
        %v3052 = vperm.slane %v3046, 4
        %v3053 = vperm.slane %v3046, 5
        %v3054 = vperm.slane %v3046, 6
        %v3462 = vunpack.c.l.b16 %v2646
        %v3463 = vunpack.c.h.b16 %v2646
        %v3464 = vunpack.c.l.b16 %v2647
        %v3465 = vunpack.c.h.b16 %v2647
        %v3466 = vunpack.c.l.b16 %v2648
        %v3467 = vunpack.c.h.b16 %v2648
        %v3468 = vunpack.c.l.b16 %v2649
        %v3469 = vunpack.c.l.b16 %v2650
        %v3470 = vunpack.c.h.b16 %v2650
        %v3471 = vunpack.c.l.b16 %v2651
        %v3472 = vunpack.c.h.b16 %v2651
        %v3473 = vunpack.c.l.b16 %v2652
        %v3474 = vunpack.c.h.b16 %v2652
        %v3475 = vunpack.c.l.b16 %v2653
        %v3476 = vunpack.c.l.b16 %v2654
        %v3477 = vunpack.c.h.b16 %v2654
        %v3478 = vunpack.c.l.b16 %v2655
        %v3479 = vunpack.c.h.b16 %v2655
        %v3480 = vunpack.c.l.b16 %v2656
        %v3481 = vunpack.c.h.b16 %v2656
        %v3482 = vunpack.c.l.b16 %v2657
        %v3483 = vunpack.c.l.b16 %v2658
        %v3484 = vunpack.c.h.b16 %v2658
        %v3485 = vunpack.c.l.b16 %v2659
        %v3486 = vunpack.c.h.b16 %v2659
        %v3487 = vunpack.c.l.b16 %v2660
        %v3488 = vunpack.c.h.b16 %v2660
        %v3489 = vunpack.c.l.b16 %v2661
        %v3490 = vunpack.c.l.b16 %v2662
        %v3491 = vunpack.c.h.b16 %v2662
        %v3492 = vunpack.c.l.b16 %v2663
        %v3493 = vunpack.c.h.b16 %v2663
        %v3494 = vunpack.c.l.b16 %v2664
        %v3495 = vunpack.c.h.b16 %v2664
        %v3496 = vunpack.c.l.b16 %v2665
        %v3497 = vunpack.c.l.b16 %v2666
        %v3498 = vunpack.c.h.b16 %v2666
        %v3499 = vunpack.c.l.b16 %v2667
        %v3500 = vunpack.c.h.b16 %v2667
        %v3501 = vunpack.c.l.b16 %v2668
        %v3502 = vunpack.c.h.b16 %v2668
        %v3503 = vunpack.c.l.b16 %v2669
        %v3504 = vunpack.c.l.b16 %v2670
        %v3505 = vunpack.c.h.b16 %v2670
        %v3506 = vunpack.c.l.b16 %v2671
        %v3507 = vunpack.c.h.b16 %v2671
        %v3508 = vunpack.c.l.b16 %v2672
        %v3509 = vunpack.c.h.b16 %v2672
        %v3510 = vunpack.c.l.b16 %v2673
        %v3511 = vunpack.c.l.b16 %v2674
        %v3512 = vunpack.c.h.b16 %v2674
        %v3513 = vunpack.c.l.b16 %v2675
        %v3514 = vunpack.c.h.b16 %v2675
        %v3515 = vunpack.c.l.b16 %v2676
        %v3516 = vunpack.c.h.b16 %v2676
        %v3517 = vunpack.c.l.b16 %v2677
        %v3518 = vunpack.c.l.b16 %v2678
        %v3519 = vunpack.c.h.b16 %v2678
        %v3520 = vunpack.c.l.b16 %v2679
        %v3521 = vunpack.c.h.b16 %v2679
        %v3522 = vunpack.c.l.b16 %v2680
        %v3523 = vunpack.c.h.b16 %v2680
        %v3524 = vunpack.c.l.b16 %v2681
        %v3525 = vunpack.c.l.b16 %v2682
        %v3526 = vunpack.c.h.b16 %v2682
        %v3527 = vunpack.c.l.b16 %v2683
        %v3528 = vunpack.c.h.b16 %v2683
        %v3529 = vunpack.c.l.b16 %v2684
        %v3530 = vunpack.c.h.b16 %v2684
        %v3531 = vunpack.c.l.b16 %v2685
        %v3532 = vunpack.c.l.b16 %v2686
        %v3533 = vunpack.c.h.b16 %v2686
        %v3534 = vunpack.c.l.b16 %v2687
        %v3535 = vunpack.c.h.b16 %v2687
        %v3536 = vunpack.c.l.b16 %v2688
        %v3537 = vunpack.c.h.b16 %v2688
        %v3538 = vunpack.c.l.b16 %v2689
        %v3539 = vunpack.c.l.b16 %v2690
        %v3540 = vunpack.c.h.b16 %v2690
        %v3541 = vunpack.c.l.b16 %v2691
        %v3542 = vunpack.c.h.b16 %v2691
        %v3543 = vunpack.c.l.b16 %v2692
        %v3544 = vunpack.c.h.b16 %v2692
        %v3545 = vunpack.c.l.b16 %v2693
        %v3546 = vunpack.c.l.b16 %v2694
        %v3547 = vunpack.c.h.b16 %v2694
        %v3548 = vunpack.c.l.b16 %v2695
        %v3549 = vunpack.c.h.b16 %v2695
        %v3550 = vunpack.c.l.b16 %v2696
        %v3551 = vunpack.c.h.b16 %v2696
        %v3552 = vunpack.c.l.b16 %v2697
        %v3553 = vunpack.c.l.b16 %v2698
        %v3554 = vunpack.c.h.b16 %v2698
        %v3555 = vunpack.c.l.b16 %v2699
        %v3556 = vunpack.c.h.b16 %v2699
        %v3557 = vunpack.c.l.b16 %v2700
        %v3558 = vunpack.c.h.b16 %v2700
        %v3559 = vunpack.c.l.b16 %v2701
        %v3560 = vunpack.c.l.b16 %v2702
        %v3561 = vunpack.c.h.b16 %v2702
        %v3562 = vunpack.c.l.b16 %v2703
        %v3563 = vunpack.c.h.b16 %v2703
        %v3564 = vunpack.c.l.b16 %v2704
        %v3565 = vunpack.c.h.b16 %v2704
        %v3566 = vunpack.c.l.b16 %v2705
        %v3567 = vunpack.c.l.b16 %v2706
        %v3568 = vunpack.c.h.b16 %v2706
        %v3569 = vunpack.c.l.b16 %v2707
        %v3570 = vunpack.c.h.b16 %v2707
        %v3571 = vunpack.c.l.b16 %v2708
        %v3572 = vunpack.c.h.b16 %v2708
        %v3573 = vunpack.c.l.b16 %v2709
        %v3574 = vunpack.c.l.b16 %v2710
        %v3575 = vunpack.c.h.b16 %v2710
        %v3576 = vunpack.c.l.b16 %v2711
        %v3577 = vunpack.c.h.b16 %v2711
        %v3578 = vunpack.c.l.b16 %v2712
        %v3579 = vunpack.c.h.b16 %v2712
        %v3580 = vunpack.c.l.b16 %v2713
        %v3581 = vunpack.c.l.b16 %v2714
        %v3582 = vunpack.c.h.b16 %v2714
        %v3583 = vunpack.c.l.b16 %v2715
        %v3584 = vunpack.c.h.b16 %v2715
        %v3585 = vunpack.c.l.b16 %v2716
        %v3586 = vunpack.c.h.b16 %v2716
        %v3587 = vunpack.c.l.b16 %v2717
        %v3588 = vunpack.c.l.b16 %v2718
        %v3589 = vunpack.c.h.b16 %v2718
        %v3590 = vunpack.c.l.b16 %v2719
        %v3591 = vunpack.c.h.b16 %v2719
        %v3592 = vunpack.c.l.b16 %v2720
        %v3593 = vunpack.c.h.b16 %v2720
        %v3594 = vunpack.c.l.b16 %v2721
        %v3595 = vunpack.c.l.b16 %v2722
        %v3596 = vunpack.c.h.b16 %v2722
        %v3597 = vunpack.c.l.b16 %v2723
        %v3598 = vunpack.c.h.b16 %v2723
        %v3599 = vunpack.c.l.b16 %v2724
        %v3600 = vunpack.c.h.b16 %v2724
        %v3601 = vunpack.c.l.b16 %v2725
        %v3602 = vunpack.c.l.b16 %v2726
        %v3603 = vunpack.c.h.b16 %v2726
        %v3604 = vunpack.c.l.b16 %v2727
        %v3605 = vunpack.c.h.b16 %v2727
        %v3606 = vunpack.c.l.b16 %v2728
        %v3607 = vunpack.c.h.b16 %v2728
        %v3608 = vunpack.c.l.b16 %v2729
        %v3609 = vunpack.c.l.b16 %v2730
        %v3610 = vunpack.c.h.b16 %v2730
        %v3611 = vunpack.c.l.b16 %v2731
        %v3612 = vunpack.c.h.b16 %v2731
        %v3613 = vunpack.c.l.b16 %v2732
        %v3614 = vunpack.c.h.b16 %v2732
        %v3615 = vunpack.c.l.b16 %v2733
        %v3616 = vunpack.c.l.b16 %v2734
        %v3617 = vunpack.c.h.b16 %v2734
        %v3618 = vunpack.c.l.b16 %v2735
        %v3619 = vunpack.c.h.b16 %v2735
        %v3620 = vunpack.c.l.b16 %v2736
        %v3621 = vunpack.c.h.b16 %v2736
        %v3622 = vunpack.c.l.b16 %v2737
        %v3623 = vunpack.c.l.b16 %v2738
        %v3624 = vunpack.c.h.b16 %v2738
        %v3625 = vunpack.c.l.b16 %v2739
        %v3626 = vunpack.c.h.b16 %v2739
        %v3627 = vunpack.c.l.b16 %v2740
        %v3628 = vunpack.c.h.b16 %v2740
        %v3629 = vunpack.c.l.b16 %v2741
        %v3630 = vunpack.c.l.b16 %v2742
        %v3631 = vunpack.c.h.b16 %v2742
        %v3632 = vunpack.c.l.b16 %v2743
        %v3633 = vunpack.c.h.b16 %v2743
        %v3634 = vunpack.c.l.b16 %v2744
        %v3635 = vunpack.c.h.b16 %v2744
        %v3636 = vunpack.c.l.b16 %v2745
        %v3637 = vunpack.c.l.b16 %v2746
        %v3638 = vunpack.c.h.b16 %v2746
        %v3639 = vunpack.c.l.b16 %v2747
        %v3640 = vunpack.c.h.b16 %v2747
        %v3641 = vunpack.c.l.b16 %v2748
        %v3642 = vunpack.c.h.b16 %v2748
        %v3643 = vunpack.c.l.b16 %v2749
        %v3644 = vunpack.c.l.b16 %v2750
        %v3645 = vunpack.c.h.b16 %v2750
        %v3646 = vunpack.c.l.b16 %v2751
        %v3647 = vunpack.c.h.b16 %v2751
        %v3648 = vunpack.c.l.b16 %v2752
        %v3649 = vunpack.c.h.b16 %v2752
        %v3650 = vunpack.c.l.b16 %v2753
        %v3651 = vunpack.c.l.b16 %v2754
        %v3652 = vunpack.c.h.b16 %v2754
        %v3653 = vunpack.c.l.b16 %v2755
        %v3654 = vunpack.c.h.b16 %v2755
        %v3655 = vunpack.c.l.b16 %v2756
        %v3656 = vunpack.c.h.b16 %v2756
        %v3657 = vunpack.c.l.b16 %v2757
        %v3658 = vunpack.c.l.b16 %v2758
        %v3659 = vunpack.c.h.b16 %v2758
        %v3660 = vunpack.c.l.b16 %v2759
        %v3661 = vunpack.c.h.b16 %v2759
        %v3662 = vunpack.c.l.b16 %v2760
        %v3663 = vunpack.c.h.b16 %v2760
        %v3664 = vunpack.c.l.b16 %v2761
        %v3665 = vunpack.c.l.b16 %v2762
        %v3666 = vunpack.c.h.b16 %v2762
        %v3667 = vunpack.c.l.b16 %v2763
        %v3668 = vunpack.c.h.b16 %v2763
        %v3669 = vunpack.c.l.b16 %v2764
        %v3670 = vunpack.c.h.b16 %v2764
        %v3671 = vunpack.c.l.b16 %v2765
        %v3672 = vunpack.c.l.b16 %v2766
        %v3673 = vunpack.c.h.b16 %v2766
        %v3674 = vunpack.c.l.b16 %v2767
        %v3675 = vunpack.c.h.b16 %v2767
        %v3676 = vunpack.c.l.b16 %v2768
        %v3677 = vunpack.c.h.b16 %v2768
        %v3678 = vunpack.c.l.b16 %v2769
        %v3679 = vunpack.c.l.b16 %v2770
        %v3680 = vunpack.c.h.b16 %v2770
        %v3681 = vunpack.c.l.b16 %v2771
        %v3682 = vunpack.c.h.b16 %v2771
        %v3683 = vunpack.c.l.b16 %v2772
        %v3684 = vunpack.c.h.b16 %v2772
        %v3685 = vunpack.c.l.b16 %v2773
        %v3686 = vunpack.c.l.b16 %v2774
        %v3687 = vunpack.c.h.b16 %v2774
        %v3688 = vunpack.c.l.b16 %v2775
        %v3689 = vunpack.c.h.b16 %v2775
        %v3690 = vunpack.c.l.b16 %v2776
        %v3691 = vunpack.c.h.b16 %v2776
        %v3692 = vunpack.c.l.b16 %v2777
        %v3693 = vunpack.c.l.b16 %v2778
        %v3694 = vunpack.c.h.b16 %v2778
        %v3695 = vunpack.c.l.b16 %v2779
        %v3696 = vunpack.c.h.b16 %v2779
        %v3697 = vunpack.c.l.b16 %v2780
        %v3698 = vunpack.c.h.b16 %v2780
        %v3699 = vunpack.c.l.b16 %v2781
        %v3700 = vunpack.c.l.b16 %v2782
        %v3701 = vunpack.c.h.b16 %v2782
        %v3702 = vunpack.c.l.b16 %v2783
        %v3703 = vunpack.c.h.b16 %v2783
        %v3704 = vunpack.c.l.b16 %v2784
        %v3705 = vunpack.c.h.b16 %v2784
        %v3706 = vunpack.c.l.b16 %v2785
        %v3707 = vunpack.c.l.b16 %v2786
        %v3708 = vunpack.c.h.b16 %v2786
        %v3709 = vunpack.c.l.b16 %v2787
        %v3710 = vunpack.c.h.b16 %v2787
        %v3711 = vunpack.c.l.b16 %v2788
        %v3712 = vunpack.c.h.b16 %v2788
        %v3713 = vunpack.c.l.b16 %v2789
        %v3714 = vunpack.c.l.b16 %v2790
        %v3715 = vunpack.c.h.b16 %v2790
        %v3716 = vunpack.c.l.b16 %v2791
        %v3717 = vunpack.c.h.b16 %v2791
        %v3718 = vunpack.c.l.b16 %v2792
        %v3719 = vunpack.c.h.b16 %v2792
        %v3720 = vunpack.c.l.b16 %v2793
        %v3721 = vunpack.c.l.b16 %v2794
        %v3722 = vunpack.c.h.b16 %v2794
        %v3723 = vunpack.c.l.b16 %v2795
        %v3724 = vunpack.c.h.b16 %v2795
        %v3725 = vunpack.c.l.b16 %v2796
        %v3726 = vunpack.c.h.b16 %v2796
        %v3727 = vunpack.c.l.b16 %v2797
        %v3728 = vunpack.c.l.b16 %v2798
        %v3729 = vunpack.c.h.b16 %v2798
        %v3730 = vunpack.c.l.b16 %v2799
        %v3731 = vunpack.c.h.b16 %v2799
        %v3732 = vunpack.c.l.b16 %v2800
        %v3733 = vunpack.c.h.b16 %v2800
        %v3734 = vunpack.c.l.b16 %v2801
        %v3735 = vunpack.c.l.b16 %v2802
        %v3736 = vunpack.c.h.b16 %v2802
        %v3737 = vunpack.c.l.b16 %v2803
        %v3738 = vunpack.c.h.b16 %v2803
        %v3739 = vunpack.c.l.b16 %v2804
        %v3740 = vunpack.c.h.b16 %v2804
        %v3741 = vunpack.c.l.b16 %v2805
        %v3742 = vunpack.c.l.b16 %v2806
        %v3743 = vunpack.c.h.b16 %v2806
        %v3744 = vunpack.c.l.b16 %v2807
        %v3745 = vunpack.c.h.b16 %v2807
        %v3746 = vunpack.c.l.b16 %v2808
        %v3747 = vunpack.c.h.b16 %v2808
        %v3748 = vunpack.c.l.b16 %v2809
        %v3749 = vunpack.c.l.b16 %v2810
        %v3750 = vunpack.c.h.b16 %v2810
        %v3751 = vunpack.c.l.b16 %v2811
        %v3752 = vunpack.c.h.b16 %v2811
        %v3753 = vunpack.c.l.b16 %v2812
        %v3754 = vunpack.c.h.b16 %v2812
        %v3755 = vunpack.c.l.b16 %v2813
        %v3756 = vunpack.c.l.b16 %v2814
        %v3757 = vunpack.c.h.b16 %v2814
        %v3758 = vunpack.c.l.b16 %v2815
        %v3759 = vunpack.c.h.b16 %v2815
        %v3760 = vunpack.c.l.b16 %v2816
        %v3761 = vunpack.c.h.b16 %v2816
        %v3762 = vunpack.c.l.b16 %v2817
        %v3763 = vunpack.c.l.b16 %v2818
        %v3764 = vunpack.c.h.b16 %v2818
        %v3765 = vunpack.c.l.b16 %v2819
        %v3766 = vunpack.c.h.b16 %v2819
        %v3767 = vunpack.c.l.b16 %v2820
        %v3768 = vunpack.c.h.b16 %v2820
        %v3769 = vunpack.c.l.b16 %v2821
        %v3770 = vunpack.c.l.b16 %v2822
        %v3771 = vunpack.c.h.b16 %v2822
        %v3772 = vunpack.c.l.b16 %v2823
        %v3773 = vunpack.c.h.b16 %v2823
        %v3774 = vunpack.c.l.b16 %v2824
        %v3775 = vunpack.c.h.b16 %v2824
        %v3776 = vunpack.c.l.b16 %v2825
        %v3777 = vunpack.c.l.b16 %v2826
        %v3778 = vunpack.c.h.b16 %v2826
        %v3779 = vunpack.c.l.b16 %v2827
        %v3780 = vunpack.c.h.b16 %v2827
        %v3781 = vunpack.c.l.b16 %v2828
        %v3782 = vunpack.c.h.b16 %v2828
        %v3783 = vunpack.c.l.b16 %v2829
        %v3784 = vunpack.c.l.b16 %v2830
        %v3785 = vunpack.c.h.b16 %v2830
        %v3786 = vunpack.c.l.b16 %v2831
        %v3787 = vunpack.c.h.b16 %v2831
        %v3788 = vunpack.c.l.b16 %v2832
        %v3789 = vunpack.c.h.b16 %v2832
        %v3790 = vunpack.c.l.b16 %v2833
        %v3791 = vunpack.c.l.b16 %v2834
        %v3792 = vunpack.c.h.b16 %v2834
        %v3793 = vunpack.c.l.b16 %v2835
        %v3794 = vunpack.c.h.b16 %v2835
        %v3795 = vunpack.c.l.b16 %v2836
        %v3796 = vunpack.c.h.b16 %v2836
        %v3797 = vunpack.c.l.b16 %v2837
        %v3798 = vunpack.c.l.b16 %v2838
        %v3799 = vunpack.c.h.b16 %v2838
        %v3800 = vunpack.c.l.b16 %v2839
        %v3801 = vunpack.c.h.b16 %v2839
        %v3802 = vunpack.c.l.b16 %v2840
        %v3803 = vunpack.c.h.b16 %v2840
        %v3804 = vunpack.c.l.b16 %v2841
        %v3805 = vunpack.c.l.b16 %v2842
        %v3806 = vunpack.c.h.b16 %v2842
        %v3807 = vunpack.c.l.b16 %v2843
        %v3808 = vunpack.c.h.b16 %v2843
        %v3809 = vunpack.c.l.b16 %v2844
        %v3810 = vunpack.c.h.b16 %v2844
        %v3811 = vunpack.c.l.b16 %v2845
        %v3812 = vunpack.c.l.b16 %v2846
        %v3813 = vunpack.c.h.b16 %v2846
        %v3814 = vunpack.c.l.b16 %v2847
        %v3815 = vunpack.c.h.b16 %v2847
        %v3816 = vunpack.c.l.b16 %v2848
        %v3817 = vunpack.c.h.b16 %v2848
        %v3818 = vunpack.c.l.b16 %v2849
        %v3819 = vunpack.c.l.b16 %v2850
        %v3820 = vunpack.c.h.b16 %v2850
        %v3821 = vunpack.c.l.b16 %v2851
        %v3822 = vunpack.c.h.b16 %v2851
        %v3823 = vunpack.c.l.b16 %v2852
        %v3824 = vunpack.c.h.b16 %v2852
        %v3825 = vunpack.c.l.b16 %v2853
        %v3826 = vunpack.c.l.b16 %v2854
        %v3827 = vunpack.c.h.b16 %v2854
        %v3828 = vunpack.c.l.b16 %v2855
        %v3829 = vunpack.c.h.b16 %v2855
        %v3830 = vunpack.c.l.b16 %v2856
        %v3831 = vunpack.c.h.b16 %v2856
        %v3832 = vunpack.c.l.b16 %v2857
        %v3833 = vunpack.c.l.b16 %v2858
        %v3834 = vunpack.c.h.b16 %v2858
        %v3835 = vunpack.c.l.b16 %v2859
        %v3836 = vunpack.c.h.b16 %v2859
        %v3837 = vunpack.c.l.b16 %v2860
        %v3838 = vunpack.c.h.b16 %v2860
        %v3839 = vunpack.c.l.b16 %v2861
        %v3840 = vunpack.c.l.b16 %v2862
        %v3841 = vunpack.c.h.b16 %v2862
        %v3842 = vunpack.c.l.b16 %v2863
        %v3843 = vunpack.c.h.b16 %v2863
        %v3844 = vunpack.c.l.b16 %v2864
        %v3845 = vunpack.c.h.b16 %v2864
        %v3846 = vunpack.c.l.b16 %v2865
        %v3847 = vunpack.c.l.b16 %v2866
        %v3848 = vunpack.c.h.b16 %v2866
        %v3849 = vunpack.c.l.b16 %v2867
        %v3850 = vunpack.c.h.b16 %v2867
        %v3851 = vunpack.c.l.b16 %v2868
        %v3852 = vunpack.c.h.b16 %v2868
        %v3853 = vunpack.c.l.b16 %v2869
        %v3854 = vunpack.c.l.b16 %v2870
        %v3855 = vunpack.c.h.b16 %v2870
        %v3856 = vunpack.c.l.b16 %v2871
        %v3857 = vunpack.c.h.b16 %v2871
        %v3858 = vunpack.c.l.b16 %v2872
        %v3859 = vunpack.c.h.b16 %v2872
        %v3860 = vunpack.c.l.b16 %v2873
        %v3861 = vunpack.c.l.b16 %v2874
        %v3862 = vunpack.c.h.b16 %v2874
        %v3863 = vunpack.c.l.b16 %v2875
        %v3864 = vunpack.c.h.b16 %v2875
        %v3865 = vunpack.c.l.b16 %v2876
        %v3866 = vunpack.c.h.b16 %v2876
        %v3867 = vunpack.c.l.b16 %v2877
        %v3868 = vunpack.c.l.b16 %v2878
        %v3869 = vunpack.c.h.b16 %v2878
        %v3870 = vunpack.c.l.b16 %v2879
        %v3871 = vunpack.c.h.b16 %v2879
        %v3872 = vunpack.c.l.b16 %v2880
        %v3873 = vunpack.c.h.b16 %v2880
        %v3874 = vunpack.c.l.b16 %v2881
        %v3875 = vunpack.c.l.b16 %v2882
        %v3876 = vunpack.c.h.b16 %v2882
        %v3877 = vunpack.c.l.b16 %v2883
        %v3878 = vunpack.c.h.b16 %v2883
        %v3879 = vunpack.c.l.b16 %v2884
        %v3880 = vunpack.c.h.b16 %v2884
        %v3881 = vunpack.c.l.b16 %v2885
        %v3882 = vunpack.c.l.b16 %v2886
        %v3883 = vunpack.c.h.b16 %v2886
        %v3884 = vunpack.c.l.b16 %v2887
        %v3885 = vunpack.c.h.b16 %v2887
        %v3886 = vunpack.c.l.b16 %v2888
        %v3887 = vunpack.c.h.b16 %v2888
        %v3888 = vunpack.c.l.b16 %v2889
        %v3889 = vunpack.c.l.b16 %v2890
        %v3890 = vunpack.c.h.b16 %v2890
        %v3891 = vunpack.c.l.b16 %v2891
        %v3892 = vunpack.c.h.b16 %v2891
        %v3893 = vunpack.c.l.b16 %v2892
        %v3894 = vunpack.c.h.b16 %v2892
        %v3895 = vunpack.c.l.b16 %v2893
        %v3896 = vunpack.c.l.b16 %v2894
        %v3897 = vunpack.c.h.b16 %v2894
        %v3898 = vunpack.c.l.b16 %v2895
        %v3899 = vunpack.c.h.b16 %v2895
        %v3900 = vunpack.c.l.b16 %v2896
        %v3901 = vunpack.c.h.b16 %v2896
        %v3902 = vunpack.c.l.b16 %v2897
        %v3903 = vunpack.c.l.b16 %v2898
        %v3904 = vunpack.c.h.b16 %v2898
        %v3905 = vunpack.c.l.b16 %v2899
        %v3906 = vunpack.c.h.b16 %v2899
        %v3907 = vunpack.c.l.b16 %v2900
        %v3908 = vunpack.c.h.b16 %v2900
        %v3909 = vunpack.c.l.b16 %v2901
        %v3910 = vunpack.c.l.b16 %v2902
        %v3911 = vunpack.c.h.b16 %v2902
        %v3912 = vunpack.c.l.b16 %v2903
        %v3913 = vunpack.c.h.b16 %v2903
        %v3914 = vunpack.c.l.b16 %v2904
        %v3915 = vunpack.c.h.b16 %v2904
        %v3916 = vunpack.c.l.b16 %v2905
        %v3917 = vunpack.c.l.b16 %v2906
        %v3918 = vunpack.c.h.b16 %v2906
        %v3919 = vunpack.c.l.b16 %v2907
        %v3920 = vunpack.c.h.b16 %v2907
        %v3921 = vunpack.c.l.b16 %v2908
        %v3922 = vunpack.c.h.b16 %v2908
        %v3923 = vunpack.c.l.b16 %v2909
        %v3924 = vunpack.c.l.b16 %v2910
        %v3925 = vunpack.c.h.b16 %v2910
        %v3926 = vunpack.c.l.b16 %v2911
        %v3927 = vunpack.c.h.b16 %v2911
        %v3928 = vunpack.c.l.b16 %v2912
        %v3929 = vunpack.c.h.b16 %v2912
        %v3930 = vunpack.c.l.b16 %v2913
        %v3931 = vunpack.c.l.b16 %v2914
        %v3932 = vunpack.c.h.b16 %v2914
        %v3933 = vunpack.c.l.b16 %v2915
        %v3934 = vunpack.c.h.b16 %v2915
        %v3935 = vunpack.c.l.b16 %v2916
        %v3936 = vunpack.c.h.b16 %v2916
        %v3937 = vunpack.c.l.b16 %v2917
        %v3938 = vunpack.c.l.b16 %v2918
        %v3939 = vunpack.c.h.b16 %v2918
        %v3940 = vunpack.c.l.b16 %v2919
        %v3941 = vunpack.c.h.b16 %v2919
        %v3942 = vunpack.c.l.b16 %v2920
        %v3943 = vunpack.c.h.b16 %v2920
        %v3944 = vunpack.c.l.b16 %v2921
        %v3945 = vunpack.c.l.b16 %v2922
        %v3946 = vunpack.c.h.b16 %v2922
        %v3947 = vunpack.c.l.b16 %v2923
        %v3948 = vunpack.c.h.b16 %v2923
        %v3949 = vunpack.c.l.b16 %v2924
        %v3950 = vunpack.c.h.b16 %v2924
        %v3951 = vunpack.c.l.b16 %v2925
        %v3952 = vunpack.c.l.b16 %v2926
        %v3953 = vunpack.c.h.b16 %v2926
        %v3954 = vunpack.c.l.b16 %v2927
        %v3955 = vunpack.c.h.b16 %v2927
        %v3956 = vunpack.c.l.b16 %v2928
        %v3957 = vunpack.c.h.b16 %v2928
        %v3958 = vunpack.c.l.b16 %v2929
        %v3959 = vunpack.c.l.b16 %v2930
        %v3960 = vunpack.c.h.b16 %v2930
        %v3961 = vunpack.c.l.b16 %v2931
        %v3962 = vunpack.c.h.b16 %v2931
        %v3963 = vunpack.c.l.b16 %v2932
        %v3964 = vunpack.c.h.b16 %v2932
        %v3965 = vunpack.c.l.b16 %v2933
        %v3966 = vunpack.c.l.b16 %v2934
        %v3967 = vunpack.c.h.b16 %v2934
        %v3968 = vunpack.c.l.b16 %v2935
        %v3969 = vunpack.c.h.b16 %v2935
        %v3970 = vunpack.c.l.b16 %v2936
        %v3971 = vunpack.c.h.b16 %v2936
        %v3972 = vunpack.c.l.b16 %v2937
        %v3973 = vunpack.c.l.b16 %v2938
        %v3974 = vunpack.c.h.b16 %v2938
        %v3975 = vunpack.c.l.b16 %v2939
        %v3976 = vunpack.c.h.b16 %v2939
        %v3977 = vunpack.c.l.b16 %v2940
        %v3978 = vunpack.c.h.b16 %v2940
        %v3979 = vunpack.c.l.b16 %v2941
        %v3980 = vunpack.c.l.b16 %v2942
        %v3981 = vunpack.c.h.b16 %v2942
        %v3982 = vunpack.c.l.b16 %v2943
        %v3983 = vunpack.c.h.b16 %v2943
        %v3984 = vunpack.c.l.b16 %v2944
        %v3985 = vunpack.c.h.b16 %v2944
        %v3986 = vunpack.c.l.b16 %v2945
        %v3987 = vunpack.c.l.b16 %v2946
        %v3988 = vunpack.c.h.b16 %v2946
        %v3989 = vunpack.c.l.b16 %v2947
        %v3990 = vunpack.c.h.b16 %v2947
        %v3991 = vunpack.c.l.b16 %v2948
        %v3992 = vunpack.c.h.b16 %v2948
        %v3993 = vunpack.c.l.b16 %v2949
        %v3994 = vunpack.c.l.b16 %v2950
        %v3995 = vunpack.c.h.b16 %v2950
        %v3996 = vunpack.c.l.b16 %v2951
        %v3997 = vunpack.c.h.b16 %v2951
        %v3998 = vunpack.c.l.b16 %v2952
        %v3999 = vunpack.c.h.b16 %v2952
        %v4000 = vunpack.c.l.b16 %v2953
        %v4001 = vunpack.c.l.b16 %v2954
        %v4002 = vunpack.c.h.b16 %v2954
        %v4003 = vunpack.c.l.b16 %v2955
        %v4004 = vunpack.c.h.b16 %v2955
        %v4005 = vunpack.c.l.b16 %v2956
        %v4006 = vunpack.c.h.b16 %v2956
        %v4007 = vunpack.c.l.b16 %v2957
        %v4008 = vunpack.c.l.b16 %v2958
        %v4009 = vunpack.c.h.b16 %v2958
        %v4010 = vunpack.c.l.b16 %v2959
        %v4011 = vunpack.c.h.b16 %v2959
        %v4012 = vunpack.c.l.b16 %v2960
        %v4013 = vunpack.c.h.b16 %v2960
        %v4014 = vunpack.c.l.b16 %v2961
        %v4015 = vunpack.c.l.b16 %v2962
        %v4016 = vunpack.c.h.b16 %v2962
        %v4017 = vunpack.c.l.b16 %v2963
        %v4018 = vunpack.c.h.b16 %v2963
        %v4019 = vunpack.c.l.b16 %v2964
        %v4020 = vunpack.c.h.b16 %v2964
        %v4021 = vunpack.c.l.b16 %v2965
        %v4022 = vunpack.c.l.b16 %v2966
        %v4023 = vunpack.c.h.b16 %v2966
        %v4024 = vunpack.c.l.b16 %v2967
        %v4025 = vunpack.c.h.b16 %v2967
        %v4026 = vunpack.c.l.b16 %v2968
        %v4027 = vunpack.c.h.b16 %v2968
        %v4028 = vunpack.c.l.b16 %v2969
        %v4029 = vunpack.c.l.b16 %v2970
        %v4030 = vunpack.c.h.b16 %v2970
        %v4031 = vunpack.c.l.b16 %v2971
        %v4032 = vunpack.c.h.b16 %v2971
        %v4033 = vunpack.c.l.b16 %v2972
        %v4034 = vunpack.c.h.b16 %v2972
        %v4035 = vunpack.c.l.b16 %v2973
        %v4036 = vunpack.c.l.b16 %v2974
        %v4037 = vunpack.c.h.b16 %v2974
        %v4038 = vunpack.c.l.b16 %v2975
        %v4039 = vunpack.c.h.b16 %v2975
        %v4040 = vunpack.c.l.b16 %v2976
        %v4041 = vunpack.c.h.b16 %v2976
        %v4042 = vunpack.c.l.b16 %v2977
        %v4043 = vunpack.c.l.b16 %v2978
        %v4044 = vunpack.c.h.b16 %v2978
        %v4045 = vunpack.c.l.b16 %v2979
        %v4046 = vunpack.c.h.b16 %v2979
        %v4047 = vunpack.c.l.b16 %v2980
        %v4048 = vunpack.c.h.b16 %v2980
        %v4049 = vunpack.c.l.b16 %v2981
        %v4050 = vunpack.c.l.b16 %v2982
        %v4051 = vunpack.c.h.b16 %v2982
        %v4052 = vunpack.c.l.b16 %v2983
        %v4053 = vunpack.c.h.b16 %v2983
        %v4054 = vunpack.c.l.b16 %v2984
        %v4055 = vunpack.c.h.b16 %v2984
        %v4056 = vunpack.c.l.b16 %v2985
        %v4057 = vunpack.c.l.b16 %v2986
        %v4058 = vunpack.c.h.b16 %v2986
        %v4059 = vunpack.c.l.b16 %v2987
        %v4060 = vunpack.c.h.b16 %v2987
        %v4061 = vunpack.c.l.b16 %v2988
        %v4062 = vunpack.c.h.b16 %v2988
        %v4063 = vunpack.c.l.b16 %v2989
        %v4064 = vunpack.c.l.b16 %v2990
        %v4065 = vunpack.c.h.b16 %v2990
        %v4066 = vunpack.c.l.b16 %v2991
        %v4067 = vunpack.c.h.b16 %v2991
        %v4068 = vunpack.c.l.b16 %v2992
        %v4069 = vunpack.c.h.b16 %v2992
        %v4070 = vunpack.c.l.b16 %v2993
        %v4071 = vunpack.c.l.b16 %v2994
        %v4072 = vunpack.c.h.b16 %v2994
        %v4073 = vunpack.c.l.b16 %v2995
        %v4074 = vunpack.c.h.b16 %v2995
        %v4075 = vunpack.c.l.b16 %v2996
        %v4076 = vunpack.c.h.b16 %v2996
        %v4077 = vunpack.c.l.b16 %v2997
        %v4078 = vunpack.c.l.b16 %v2998
        %v4079 = vunpack.c.h.b16 %v2998
        %v4080 = vunpack.c.l.b16 %v2999
        %v4081 = vunpack.c.h.b16 %v2999
        %v4082 = vunpack.c.l.b16 %v3000
        %v4083 = vunpack.c.h.b16 %v3000
        %v4084 = vunpack.c.l.b16 %v3001
        %v4085 = vunpack.c.l.b16 %v3002
        %v4086 = vunpack.c.h.b16 %v3002
        %v4087 = vunpack.c.l.b16 %v3003
        %v4088 = vunpack.c.h.b16 %v3003
        %v4089 = vunpack.c.l.b16 %v3004
        %v4090 = vunpack.c.h.b16 %v3004
        %v4091 = vunpack.c.l.b16 %v3005
        %v4092 = vunpack.c.l.b16 %v3006
        %v4093 = vunpack.c.h.b16 %v3006
        %v4094 = vunpack.c.l.b16 %v3007
        %v4095 = vunpack.c.h.b16 %v3007
        %v4096 = vunpack.c.l.b16 %v3008
        %v4097 = vunpack.c.h.b16 %v3008
        %v4098 = vunpack.c.l.b16 %v3009
        %v4099 = vunpack.c.l.b16 %v3010
        %v4100 = vunpack.c.h.b16 %v3010
        %v4101 = vunpack.c.l.b16 %v3011
        %v4102 = vunpack.c.h.b16 %v3011
        %v4103 = vunpack.c.l.b16 %v3012
        %v4104 = vunpack.c.h.b16 %v3012
        %v4105 = vunpack.c.l.b16 %v3013
        %v4106 = vunpack.c.l.b16 %v3014
        %v4107 = vunpack.c.h.b16 %v3014
        %v4108 = vunpack.c.l.b16 %v3015
        %v4109 = vunpack.c.h.b16 %v3015
        %v4110 = vunpack.c.l.b16 %v3016
        %v4111 = vunpack.c.h.b16 %v3016
        %v4112 = vunpack.c.l.b16 %v3017
        %v4113 = vunpack.c.l.b16 %v3018
        %v4114 = vunpack.c.h.b16 %v3018
        %v4115 = vunpack.c.l.b16 %v3019
        %v4116 = vunpack.c.h.b16 %v3019
        %v4117 = vunpack.c.l.b16 %v3020
        %v4118 = vunpack.c.h.b16 %v3020
        %v4119 = vunpack.c.l.b16 %v3021
        %v4120 = vunpack.c.l.b16 %v3022
        %v4121 = vunpack.c.h.b16 %v3022
        %v4122 = vunpack.c.l.b16 %v3023
        %v4123 = vunpack.c.h.b16 %v3023
        %v4124 = vunpack.c.l.b16 %v3024
        %v4125 = vunpack.c.h.b16 %v3024
        %v4126 = vunpack.c.l.b16 %v3025
        %v4127 = vunpack.c.l.b16 %v3026
        %v4128 = vunpack.c.h.b16 %v3026
        %v4129 = vunpack.c.l.b16 %v3027
        %v4130 = vunpack.c.h.b16 %v3027
        %v4131 = vunpack.c.l.b16 %v3028
        %v4132 = vunpack.c.h.b16 %v3028
        %v4133 = vunpack.c.l.b16 %v3029
        %v4134 = vunpack.c.l.b16 %v3030
        %v4135 = vunpack.c.h.b16 %v3030
        %v4136 = vunpack.c.l.b16 %v3031
        %v4137 = vunpack.c.h.b16 %v3031
        %v4138 = vunpack.c.l.b16 %v3032
        %v4139 = vunpack.c.h.b16 %v3032
        %v4140 = vunpack.c.l.b16 %v3033
        %v4141 = vunpack.c.l.b16 %v3034
        %v4142 = vunpack.c.h.b16 %v3034
        %v4143 = vunpack.c.l.b16 %v3035
        %v4144 = vunpack.c.h.b16 %v3035
        %v4145 = vunpack.c.l.b16 %v3036
        %v4146 = vunpack.c.h.b16 %v3036
        %v4147 = vunpack.c.l.b16 %v3037
        %v4148 = vunpack.c.l.b16 %v3038
        %v4149 = vunpack.c.h.b16 %v3038
        %v4150 = vunpack.c.l.b16 %v3039
        %v4151 = vunpack.c.h.b16 %v3039
        %v4152 = vunpack.c.l.b16 %v3040
        %v4153 = vunpack.c.h.b16 %v3040
        %v4154 = vunpack.c.l.b16 %v3041
        %v4155 = vunpack.c.l.b16 %v3042
        %v4156 = vunpack.c.h.b16 %v3042
        %v4157 = vunpack.c.l.b16 %v3043
        %v4158 = vunpack.c.h.b16 %v3043
        %v4159 = vunpack.c.l.b16 %v3044
        %v4160 = vunpack.c.h.b16 %v3044
        %v4161 = vunpack.c.l.b16 %v3045
        %v4162 = vpack.c.b16 %v3469, %v3462
        %v4163 = vpack.c.b16 %v3470, %v3463
        %v4164 = vpack.c.b16 %v3471, %v3464
        %v4165 = vpack.c.b16 %v3472, %v3465
        %v4166 = vpack.c.b16 %v3473, %v3466
        %v4167 = vpack.c.b16 %v3474, %v3467
        %v4168 = vpack.c.b16 %v3475, %v3468
        %v4169 = vpack.c.b16 %v3483, %v3476
        %v4170 = vpack.c.b16 %v3484, %v3477
        %v4171 = vpack.c.b16 %v3485, %v3478
        %v4172 = vpack.c.b16 %v3486, %v3479
        %v4173 = vpack.c.b16 %v3487, %v3480
        %v4174 = vpack.c.b16 %v3488, %v3481
        %v4175 = vpack.c.b16 %v3489, %v3482
        %v4176 = vpack.c.b16 %v3497, %v3490
        %v4177 = vpack.c.b16 %v3498, %v3491
        %v4178 = vpack.c.b16 %v3499, %v3492
        %v4179 = vpack.c.b16 %v3500, %v3493
        %v4180 = vpack.c.b16 %v3501, %v3494
        %v4181 = vpack.c.b16 %v3502, %v3495
        %v4182 = vpack.c.b16 %v3503, %v3496
        %v4183 = vpack.c.b16 %v3511, %v3504
        %v4184 = vpack.c.b16 %v3512, %v3505
        %v4185 = vpack.c.b16 %v3513, %v3506
        %v4186 = vpack.c.b16 %v3514, %v3507
        %v4187 = vpack.c.b16 %v3515, %v3508
        %v4188 = vpack.c.b16 %v3516, %v3509
        %v4189 = vpack.c.b16 %v3517, %v3510
        %v4190 = vpack.c.b16 %v3525, %v3518
        %v4191 = vpack.c.b16 %v3526, %v3519
        %v4192 = vpack.c.b16 %v3527, %v3520
        %v4193 = vpack.c.b16 %v3528, %v3521
        %v4194 = vpack.c.b16 %v3529, %v3522
        %v4195 = vpack.c.b16 %v3530, %v3523
        %v4196 = vpack.c.b16 %v3531, %v3524
        %v4197 = vpack.c.b16 %v3539, %v3532
        %v4198 = vpack.c.b16 %v3540, %v3533
        %v4199 = vpack.c.b16 %v3541, %v3534
        %v4200 = vpack.c.b16 %v3542, %v3535
        %v4201 = vpack.c.b16 %v3543, %v3536
        %v4202 = vpack.c.b16 %v3544, %v3537
        %v4203 = vpack.c.b16 %v3545, %v3538
        %v4204 = vpack.c.b16 %v3553, %v3546
        %v4205 = vpack.c.b16 %v3554, %v3547
        %v4206 = vpack.c.b16 %v3555, %v3548
        %v4207 = vpack.c.b16 %v3556, %v3549
        %v4208 = vpack.c.b16 %v3557, %v3550
        %v4209 = vpack.c.b16 %v3558, %v3551
        %v4210 = vpack.c.b16 %v3559, %v3552
        %v4211 = vpack.c.b16 %v3567, %v3560
        %v4212 = vpack.c.b16 %v3568, %v3561
        %v4213 = vpack.c.b16 %v3569, %v3562
        %v4214 = vpack.c.b16 %v3570, %v3563
        %v4215 = vpack.c.b16 %v3571, %v3564
        %v4216 = vpack.c.b16 %v3572, %v3565
        %v4217 = vpack.c.b16 %v3573, %v3566
        %v4218 = vpack.c.b16 %v3581, %v3574
        %v4219 = vpack.c.b16 %v3582, %v3575
        %v4220 = vpack.c.b16 %v3583, %v3576
        %v4221 = vpack.c.b16 %v3584, %v3577
        %v4222 = vpack.c.b16 %v3585, %v3578
        %v4223 = vpack.c.b16 %v3586, %v3579
        %v4224 = vpack.c.b16 %v3587, %v3580
        %v4225 = vpack.c.b16 %v3595, %v3588
        %v4226 = vpack.c.b16 %v3596, %v3589
        %v4227 = vpack.c.b16 %v3597, %v3590
        %v4228 = vpack.c.b16 %v3598, %v3591
        %v4229 = vpack.c.b16 %v3599, %v3592
        %v4230 = vpack.c.b16 %v3600, %v3593
        %v4231 = vpack.c.b16 %v3601, %v3594
        %v4232 = vpack.c.b16 %v3609, %v3602
        %v4233 = vpack.c.b16 %v3610, %v3603
        %v4234 = vpack.c.b16 %v3611, %v3604
        %v4235 = vpack.c.b16 %v3612, %v3605
        %v4236 = vpack.c.b16 %v3613, %v3606
        %v4237 = vpack.c.b16 %v3614, %v3607
        %v4238 = vpack.c.b16 %v3615, %v3608
        %v4239 = vpack.c.b16 %v3623, %v3616
        %v4240 = vpack.c.b16 %v3624, %v3617
        %v4241 = vpack.c.b16 %v3625, %v3618
        %v4242 = vpack.c.b16 %v3626, %v3619
        %v4243 = vpack.c.b16 %v3627, %v3620
        %v4244 = vpack.c.b16 %v3628, %v3621
        %v4245 = vpack.c.b16 %v3629, %v3622
        %v4246 = vpack.c.b16 %v3637, %v3630
        %v4247 = vpack.c.b16 %v3638, %v3631
        %v4248 = vpack.c.b16 %v3639, %v3632
        %v4249 = vpack.c.b16 %v3640, %v3633
        %v4250 = vpack.c.b16 %v3641, %v3634
        %v4251 = vpack.c.b16 %v3642, %v3635
        %v4252 = vpack.c.b16 %v3643, %v3636
        %v4253 = vpack.c.b16 %v3651, %v3644
        %v4254 = vpack.c.b16 %v3652, %v3645
        %v4255 = vpack.c.b16 %v3653, %v3646
        %v4256 = vpack.c.b16 %v3654, %v3647
        %v4257 = vpack.c.b16 %v3655, %v3648
        %v4258 = vpack.c.b16 %v3656, %v3649
        %v4259 = vpack.c.b16 %v3657, %v3650
        %v4260 = vpack.c.b16 %v3665, %v3658
        %v4261 = vpack.c.b16 %v3666, %v3659
        %v4262 = vpack.c.b16 %v3667, %v3660
        %v4263 = vpack.c.b16 %v3668, %v3661
        %v4264 = vpack.c.b16 %v3669, %v3662
        %v4265 = vpack.c.b16 %v3670, %v3663
        %v4266 = vpack.c.b16 %v3671, %v3664
        %v4267 = vpack.c.b16 %v3679, %v3672
        %v4268 = vpack.c.b16 %v3680, %v3673
        %v4269 = vpack.c.b16 %v3681, %v3674
        %v4270 = vpack.c.b16 %v3682, %v3675
        %v4271 = vpack.c.b16 %v3683, %v3676
        %v4272 = vpack.c.b16 %v3684, %v3677
        %v4273 = vpack.c.b16 %v3685, %v3678
        %v4274 = vpack.c.b16 %v3693, %v3686
        %v4275 = vpack.c.b16 %v3694, %v3687
        %v4276 = vpack.c.b16 %v3695, %v3688
        %v4277 = vpack.c.b16 %v3696, %v3689
        %v4278 = vpack.c.b16 %v3697, %v3690
        %v4279 = vpack.c.b16 %v3698, %v3691
        %v4280 = vpack.c.b16 %v3699, %v3692
        %v4281 = vpack.c.b16 %v3707, %v3700
        %v4282 = vpack.c.b16 %v3708, %v3701
        %v4283 = vpack.c.b16 %v3709, %v3702
        %v4284 = vpack.c.b16 %v3710, %v3703
        %v4285 = vpack.c.b16 %v3711, %v3704
        %v4286 = vpack.c.b16 %v3712, %v3705
        %v4287 = vpack.c.b16 %v3713, %v3706
        %v4288 = vpack.c.b16 %v3721, %v3714
        %v4289 = vpack.c.b16 %v3722, %v3715
        %v4290 = vpack.c.b16 %v3723, %v3716
        %v4291 = vpack.c.b16 %v3724, %v3717
        %v4292 = vpack.c.b16 %v3725, %v3718
        %v4293 = vpack.c.b16 %v3726, %v3719
        %v4294 = vpack.c.b16 %v3727, %v3720
        %v4295 = vpack.c.b16 %v3735, %v3728
        %v4296 = vpack.c.b16 %v3736, %v3729
        %v4297 = vpack.c.b16 %v3737, %v3730
        %v4298 = vpack.c.b16 %v3738, %v3731
        %v4299 = vpack.c.b16 %v3739, %v3732
        %v4300 = vpack.c.b16 %v3740, %v3733
        %v4301 = vpack.c.b16 %v3741, %v3734
        %v4302 = vpack.c.b16 %v3749, %v3742
        %v4303 = vpack.c.b16 %v3750, %v3743
        %v4304 = vpack.c.b16 %v3751, %v3744
        %v4305 = vpack.c.b16 %v3752, %v3745
        %v4306 = vpack.c.b16 %v3753, %v3746
        %v4307 = vpack.c.b16 %v3754, %v3747
        %v4308 = vpack.c.b16 %v3755, %v3748
        %v4309 = vpack.c.b16 %v3763, %v3756
        %v4310 = vpack.c.b16 %v3764, %v3757
        %v4311 = vpack.c.b16 %v3765, %v3758
        %v4312 = vpack.c.b16 %v3766, %v3759
        %v4313 = vpack.c.b16 %v3767, %v3760
        %v4314 = vpack.c.b16 %v3768, %v3761
        %v4315 = vpack.c.b16 %v3769, %v3762
        %v4316 = vpack.c.b16 %v3777, %v3770
        %v4317 = vpack.c.b16 %v3778, %v3771
        %v4318 = vpack.c.b16 %v3779, %v3772
        %v4319 = vpack.c.b16 %v3780, %v3773
        %v4320 = vpack.c.b16 %v3781, %v3774
        %v4321 = vpack.c.b16 %v3782, %v3775
        %v4322 = vpack.c.b16 %v3783, %v3776
        %v4323 = vpack.c.b16 %v3791, %v3784
        %v4324 = vpack.c.b16 %v3792, %v3785
        %v4325 = vpack.c.b16 %v3793, %v3786
        %v4326 = vpack.c.b16 %v3794, %v3787
        %v4327 = vpack.c.b16 %v3795, %v3788
        %v4328 = vpack.c.b16 %v3796, %v3789
        %v4329 = vpack.c.b16 %v3797, %v3790
        %v4330 = vpack.c.b16 %v3805, %v3798
        %v4331 = vpack.c.b16 %v3806, %v3799
        %v4332 = vpack.c.b16 %v3807, %v3800
        %v4333 = vpack.c.b16 %v3808, %v3801
        %v4334 = vpack.c.b16 %v3809, %v3802
        %v4335 = vpack.c.b16 %v3810, %v3803
        %v4336 = vpack.c.b16 %v3811, %v3804
        %v4337 = vpack.c.b16 %v3819, %v3812
        %v4338 = vpack.c.b16 %v3820, %v3813
        %v4339 = vpack.c.b16 %v3821, %v3814
        %v4340 = vpack.c.b16 %v3822, %v3815
        %v4341 = vpack.c.b16 %v3823, %v3816
        %v4342 = vpack.c.b16 %v3824, %v3817
        %v4343 = vpack.c.b16 %v3825, %v3818
        %v4344 = vpack.c.b16 %v3833, %v3826
        %v4345 = vpack.c.b16 %v3834, %v3827
        %v4346 = vpack.c.b16 %v3835, %v3828
        %v4347 = vpack.c.b16 %v3836, %v3829
        %v4348 = vpack.c.b16 %v3837, %v3830
        %v4349 = vpack.c.b16 %v3838, %v3831
        %v4350 = vpack.c.b16 %v3839, %v3832
        %v4351 = vpack.c.b16 %v3847, %v3840
        %v4352 = vpack.c.b16 %v3848, %v3841
        %v4353 = vpack.c.b16 %v3849, %v3842
        %v4354 = vpack.c.b16 %v3850, %v3843
        %v4355 = vpack.c.b16 %v3851, %v3844
        %v4356 = vpack.c.b16 %v3852, %v3845
        %v4357 = vpack.c.b16 %v3853, %v3846
        %v4358 = vpack.c.b16 %v3861, %v3854
        %v4359 = vpack.c.b16 %v3862, %v3855
        %v4360 = vpack.c.b16 %v3863, %v3856
        %v4361 = vpack.c.b16 %v3864, %v3857
        %v4362 = vpack.c.b16 %v3865, %v3858
        %v4363 = vpack.c.b16 %v3866, %v3859
        %v4364 = vpack.c.b16 %v3867, %v3860
        %v4365 = vpack.c.b16 %v3875, %v3868
        %v4366 = vpack.c.b16 %v3876, %v3869
        %v4367 = vpack.c.b16 %v3877, %v3870
        %v4368 = vpack.c.b16 %v3878, %v3871
        %v4369 = vpack.c.b16 %v3879, %v3872
        %v4370 = vpack.c.b16 %v3880, %v3873
        %v4371 = vpack.c.b16 %v3881, %v3874
        %v4372 = vpack.c.b16 %v3889, %v3882
        %v4373 = vpack.c.b16 %v3890, %v3883
        %v4374 = vpack.c.b16 %v3891, %v3884
        %v4375 = vpack.c.b16 %v3892, %v3885
        %v4376 = vpack.c.b16 %v3893, %v3886
        %v4377 = vpack.c.b16 %v3894, %v3887
        %v4378 = vpack.c.b16 %v3895, %v3888
        %v4379 = vpack.c.b16 %v3903, %v3896
        %v4380 = vpack.c.b16 %v3904, %v3897
        %v4381 = vpack.c.b16 %v3905, %v3898
        %v4382 = vpack.c.b16 %v3906, %v3899
        %v4383 = vpack.c.b16 %v3907, %v3900
        %v4384 = vpack.c.b16 %v3908, %v3901
        %v4385 = vpack.c.b16 %v3909, %v3902
        %v4386 = vpack.c.b16 %v3917, %v3910
        %v4387 = vpack.c.b16 %v3918, %v3911
        %v4388 = vpack.c.b16 %v3919, %v3912
        %v4389 = vpack.c.b16 %v3920, %v3913
        %v4390 = vpack.c.b16 %v3921, %v3914
        %v4391 = vpack.c.b16 %v3922, %v3915
        %v4392 = vpack.c.b16 %v3923, %v3916
        %v4393 = vpack.c.b16 %v3931, %v3924
        %v4394 = vpack.c.b16 %v3932, %v3925
        %v4395 = vpack.c.b16 %v3933, %v3926
        %v4396 = vpack.c.b16 %v3934, %v3927
        %v4397 = vpack.c.b16 %v3935, %v3928
        %v4398 = vpack.c.b16 %v3936, %v3929
        %v4399 = vpack.c.b16 %v3937, %v3930
        %v4400 = vpack.c.b16 %v3945, %v3938
        %v4401 = vpack.c.b16 %v3946, %v3939
        %v4402 = vpack.c.b16 %v3947, %v3940
        %v4403 = vpack.c.b16 %v3948, %v3941
        %v4404 = vpack.c.b16 %v3949, %v3942
        %v4405 = vpack.c.b16 %v3950, %v3943
        %v4406 = vpack.c.b16 %v3951, %v3944
        %v4407 = vpack.c.b16 %v3959, %v3952
        %v4408 = vpack.c.b16 %v3960, %v3953
        %v4409 = vpack.c.b16 %v3961, %v3954
        %v4410 = vpack.c.b16 %v3962, %v3955
        %v4411 = vpack.c.b16 %v3963, %v3956
        %v4412 = vpack.c.b16 %v3964, %v3957
        %v4413 = vpack.c.b16 %v3965, %v3958
        %v4414 = vpack.c.b16 %v3973, %v3966
        %v4415 = vpack.c.b16 %v3974, %v3967
        %v4416 = vpack.c.b16 %v3975, %v3968
        %v4417 = vpack.c.b16 %v3976, %v3969
        %v4418 = vpack.c.b16 %v3977, %v3970
        %v4419 = vpack.c.b16 %v3978, %v3971
        %v4420 = vpack.c.b16 %v3979, %v3972
        %v4421 = vpack.c.b16 %v3987, %v3980
        %v4422 = vpack.c.b16 %v3988, %v3981
        %v4423 = vpack.c.b16 %v3989, %v3982
        %v4424 = vpack.c.b16 %v3990, %v3983
        %v4425 = vpack.c.b16 %v3991, %v3984
        %v4426 = vpack.c.b16 %v3992, %v3985
        %v4427 = vpack.c.b16 %v3993, %v3986
        %v4428 = vpack.c.b16 %v4001, %v3994
        %v4429 = vpack.c.b16 %v4002, %v3995
        %v4430 = vpack.c.b16 %v4003, %v3996
        %v4431 = vpack.c.b16 %v4004, %v3997
        %v4432 = vpack.c.b16 %v4005, %v3998
        %v4433 = vpack.c.b16 %v4006, %v3999
        %v4434 = vpack.c.b16 %v4007, %v4000
        %v4435 = vpack.c.b16 %v4015, %v4008
        %v4436 = vpack.c.b16 %v4016, %v4009
        %v4437 = vpack.c.b16 %v4017, %v4010
        %v4438 = vpack.c.b16 %v4018, %v4011
        %v4439 = vpack.c.b16 %v4019, %v4012
        %v4440 = vpack.c.b16 %v4020, %v4013
        %v4441 = vpack.c.b16 %v4021, %v4014
        %v4442 = vpack.c.b16 %v4029, %v4022
        %v4443 = vpack.c.b16 %v4030, %v4023
        %v4444 = vpack.c.b16 %v4031, %v4024
        %v4445 = vpack.c.b16 %v4032, %v4025
        %v4446 = vpack.c.b16 %v4033, %v4026
        %v4447 = vpack.c.b16 %v4034, %v4027
        %v4448 = vpack.c.b16 %v4035, %v4028
        %v4449 = vpack.c.b16 %v4043, %v4036
        %v4450 = vpack.c.b16 %v4044, %v4037
        %v4451 = vpack.c.b16 %v4045, %v4038
        %v4452 = vpack.c.b16 %v4046, %v4039
        %v4453 = vpack.c.b16 %v4047, %v4040
        %v4454 = vpack.c.b16 %v4048, %v4041
        %v4455 = vpack.c.b16 %v4049, %v4042
        %v4456 = vpack.c.b16 %v4057, %v4050
        %v4457 = vpack.c.b16 %v4058, %v4051
        %v4458 = vpack.c.b16 %v4059, %v4052
        %v4459 = vpack.c.b16 %v4060, %v4053
        %v4460 = vpack.c.b16 %v4061, %v4054
        %v4461 = vpack.c.b16 %v4062, %v4055
        %v4462 = vpack.c.b16 %v4063, %v4056
        %v4463 = vpack.c.b16 %v4071, %v4064
        %v4464 = vpack.c.b16 %v4072, %v4065
        %v4465 = vpack.c.b16 %v4073, %v4066
        %v4466 = vpack.c.b16 %v4074, %v4067
        %v4467 = vpack.c.b16 %v4075, %v4068
        %v4468 = vpack.c.b16 %v4076, %v4069
        %v4469 = vpack.c.b16 %v4077, %v4070
        %v4470 = vpack.c.b16 %v4085, %v4078
        %v4471 = vpack.c.b16 %v4086, %v4079
        %v4472 = vpack.c.b16 %v4087, %v4080
        %v4473 = vpack.c.b16 %v4088, %v4081
        %v4474 = vpack.c.b16 %v4089, %v4082
        %v4475 = vpack.c.b16 %v4090, %v4083
        %v4476 = vpack.c.b16 %v4091, %v4084
        %v4477 = vpack.c.b16 %v4099, %v4092
        %v4478 = vpack.c.b16 %v4100, %v4093
        %v4479 = vpack.c.b16 %v4101, %v4094
        %v4480 = vpack.c.b16 %v4102, %v4095
        %v4481 = vpack.c.b16 %v4103, %v4096
        %v4482 = vpack.c.b16 %v4104, %v4097
        %v4483 = vpack.c.b16 %v4105, %v4098
        %v4484 = vpack.c.b16 %v4113, %v4106
        %v4485 = vpack.c.b16 %v4114, %v4107
        %v4486 = vpack.c.b16 %v4115, %v4108
        %v4487 = vpack.c.b16 %v4116, %v4109
        %v4488 = vpack.c.b16 %v4117, %v4110
        %v4489 = vpack.c.b16 %v4118, %v4111
        %v4490 = vpack.c.b16 %v4119, %v4112
        %v4491 = vpack.c.b16 %v4127, %v4120
        %v4492 = vpack.c.b16 %v4128, %v4121
        %v4493 = vpack.c.b16 %v4129, %v4122
        %v4494 = vpack.c.b16 %v4130, %v4123
        %v4495 = vpack.c.b16 %v4131, %v4124
        %v4496 = vpack.c.b16 %v4132, %v4125
        %v4497 = vpack.c.b16 %v4133, %v4126
        %v4498 = vpack.c.b16 %v4141, %v4134
        %v4499 = vpack.c.b16 %v4142, %v4135
        %v4500 = vpack.c.b16 %v4143, %v4136
        %v4501 = vpack.c.b16 %v4144, %v4137
        %v4502 = vpack.c.b16 %v4145, %v4138
        %v4503 = vpack.c.b16 %v4146, %v4139
        %v4504 = vpack.c.b16 %v4147, %v4140
        %v4505 = vpack.c.b16 %v4155, %v4148
        %v4506 = vpack.c.b16 %v4156, %v4149
        %v4507 = vpack.c.b16 %v4157, %v4150
        %v4508 = vpack.c.b16 %v4158, %v4151
        %v4509 = vpack.c.b16 %v4159, %v4152
        %v4510 = vpack.c.b16 %v4160, %v4153
        %v4511 = vpack.c.b16 %v4161, %v4154
        %vm4862 = vcmask 261120
        %v4864 = vsel %vm4862, %v2645, 0
        %4866 = vmatpush.bf16.msra.mxu0 %v4211
        %4867 = vmatpush.bf16.msra.mxu0 %v4204
        %4868 = vmatpush.bf16.msra.mxu0 %v4197
        %4869 = vmatpush.bf16.msra.mxu0 %v4190
        %4870 = vmatpush.bf16.msra.mxu0 %v4183
        %4871 = vmatpush.bf16.msra.mxu0 %v4176
        %4872 = vmatpush.bf16.msra.mxu0 %v4169
        %4873 = vmatpush.bf16.msra.mxu0 %v4162
        %4874 = vmatmul.bf16.gmra.mxu0 %v2639
        %v4875 = vpop.f32.mrf.mxu0
        %v4876 = vadd.f32 %v3048, %v4875
        %v4877 = vpop.f32.mrf.mxu0
        %4878 = vdwg.mxu0
        %4879 = vmatpush.bf16.msra.mxu0 %v4267
        %4880 = vmatpush.bf16.msra.mxu0 %v4260
        %4881 = vmatpush.bf16.msra.mxu0 %v4253
        %4882 = vmatpush.bf16.msra.mxu0 %v4246
        %4883 = vmatpush.bf16.msra.mxu0 %v4239
        %4884 = vmatpush.bf16.msra.mxu0 %v4232
        %4885 = vmatpush.bf16.msra.mxu0 %v4225
        %4886 = vmatpush.bf16.msra.mxu0 %v4218
        %4887 = vmatmul.bf16.gmra.mxu0 %v2640
        %v4888 = vpop.f32.mrf.mxu0
        %v4889 = vadd.f32 %v4876, %v4888
        %v4890 = vpop.f32.mrf.mxu0
        %4891 = vdwg.mxu0
        %4892 = vmatpush.bf16.msra.mxu0 %v4323
        %4893 = vmatpush.bf16.msra.mxu0 %v4316
        %4894 = vmatpush.bf16.msra.mxu0 %v4309
        %4895 = vmatpush.bf16.msra.mxu0 %v4302
        %4896 = vmatpush.bf16.msra.mxu0 %v4295
        %4897 = vmatpush.bf16.msra.mxu0 %v4288
        %4898 = vmatpush.bf16.msra.mxu0 %v4281
        %4899 = vmatpush.bf16.msra.mxu0 %v4274
        %4900 = vmatmul.bf16.gmra.mxu0 %v2641
        %v4901 = vpop.f32.mrf.mxu0
        %v4902 = vadd.f32 %v4889, %v4901
        %v4903 = vpop.f32.mrf.mxu0
        %4904 = vdwg.mxu0
        %4905 = vmatpush.bf16.msra.mxu0 %v4379
        %4906 = vmatpush.bf16.msra.mxu0 %v4372
        %4907 = vmatpush.bf16.msra.mxu0 %v4365
        %4908 = vmatpush.bf16.msra.mxu0 %v4358
        %4909 = vmatpush.bf16.msra.mxu0 %v4351
        %4910 = vmatpush.bf16.msra.mxu0 %v4344
        %4911 = vmatpush.bf16.msra.mxu0 %v4337
        %4912 = vmatpush.bf16.msra.mxu0 %v4330
        %4913 = vmatmul.bf16.gmra.mxu0 %v2642
        %v4914 = vpop.f32.mrf.mxu0
        %v4915 = vadd.f32 %v4902, %v4914
        %v4916 = vpop.f32.mrf.mxu0
        %4917 = vdwg.mxu0
        %4918 = vmatpush.bf16.msra.mxu0 %v4435
        %4919 = vmatpush.bf16.msra.mxu0 %v4428
        %4920 = vmatpush.bf16.msra.mxu0 %v4421
        %4921 = vmatpush.bf16.msra.mxu0 %v4414
        %4922 = vmatpush.bf16.msra.mxu0 %v4407
        %4923 = vmatpush.bf16.msra.mxu0 %v4400
        %4924 = vmatpush.bf16.msra.mxu0 %v4393
        %4925 = vmatpush.bf16.msra.mxu0 %v4386
        %4926 = vmatmul.bf16.gmra.mxu0 %v2643
        %v4927 = vpop.f32.mrf.mxu0
        %v4928 = vadd.f32 %v4915, %v4927
        %v4929 = vpop.f32.mrf.mxu0
        %4930 = vdwg.mxu0
        %4931 = vmatpush.bf16.msra.mxu0 %v4491
        %4932 = vmatpush.bf16.msra.mxu0 %v4484
        %4933 = vmatpush.bf16.msra.mxu0 %v4477
        %4934 = vmatpush.bf16.msra.mxu0 %v4470
        %4935 = vmatpush.bf16.msra.mxu0 %v4463
        %4936 = vmatpush.bf16.msra.mxu0 %v4456
        %4937 = vmatpush.bf16.msra.mxu0 %v4449
        %4938 = vmatpush.bf16.msra.mxu0 %v4442
        %4939 = vmatmul.bf16.gmra.mxu0 %v2644
        %v4940 = vpop.f32.mrf.mxu0
        %v4941 = vadd.f32 %v4928, %v4940
        %v4942 = vpop.f32.mrf.mxu0
        %4943 = vdwg.mxu0
        %4944 = vmatpush.bf16.msra.mxu0 0
        %4945 = vmatpush.bf16.msra.mxu0 0
        %4946 = vmatpush.bf16.msra.mxu0 0
        %4947 = vmatpush.bf16.msra.mxu0 0
        %4948 = vmatpush.bf16.msra.mxu0 0
        %4949 = vmatpush.bf16.msra.mxu0 0
        %4950 = vmatpush.bf16.msra.mxu0 %v4505
        %4951 = vmatpush.bf16.msra.mxu0 %v4498
        %4952 = vmatmul.bf16.gmra.mxu0 %v4864
        %v4953 = vpop.f32.mrf.mxu0
        %v4954 = vadd.f32 %v4941, %v4953
        %v4955 = vpop.f32.mrf.mxu0
        %4956 = vdwg.mxu0
        %4957 = vmatpush.bf16.msra.mxu0 %v4212
        %4958 = vmatpush.bf16.msra.mxu0 %v4205
        %4959 = vmatpush.bf16.msra.mxu0 %v4198
        %4960 = vmatpush.bf16.msra.mxu0 %v4191
        %4961 = vmatpush.bf16.msra.mxu0 %v4184
        %4962 = vmatpush.bf16.msra.mxu0 %v4177
        %4963 = vmatpush.bf16.msra.mxu0 %v4170
        %4964 = vmatpush.bf16.msra.mxu0 %v4163
        %4965 = vmatmul.bf16.gmra.mxu0 %v2639
        %v4966 = vpop.f32.mrf.mxu0
        %v4967 = vadd.f32 %v3049, %v4966
        %v4968 = vpop.f32.mrf.mxu0
        %4969 = vdwg.mxu0
        %4970 = vmatpush.bf16.msra.mxu0 %v4268
        %4971 = vmatpush.bf16.msra.mxu0 %v4261
        %4972 = vmatpush.bf16.msra.mxu0 %v4254
        %4973 = vmatpush.bf16.msra.mxu0 %v4247
        %4974 = vmatpush.bf16.msra.mxu0 %v4240
        %4975 = vmatpush.bf16.msra.mxu0 %v4233
        %4976 = vmatpush.bf16.msra.mxu0 %v4226
        %4977 = vmatpush.bf16.msra.mxu0 %v4219
        %4978 = vmatmul.bf16.gmra.mxu0 %v2640
        %v4979 = vpop.f32.mrf.mxu0
        %v4980 = vadd.f32 %v4967, %v4979
        %v4981 = vpop.f32.mrf.mxu0
        %4982 = vdwg.mxu0
        %4983 = vmatpush.bf16.msra.mxu0 %v4324
        %4984 = vmatpush.bf16.msra.mxu0 %v4317
        %4985 = vmatpush.bf16.msra.mxu0 %v4310
        %4986 = vmatpush.bf16.msra.mxu0 %v4303
        %4987 = vmatpush.bf16.msra.mxu0 %v4296
        %4988 = vmatpush.bf16.msra.mxu0 %v4289
        %4989 = vmatpush.bf16.msra.mxu0 %v4282
        %4990 = vmatpush.bf16.msra.mxu0 %v4275
        %4991 = vmatmul.bf16.gmra.mxu0 %v2641
        %v4992 = vpop.f32.mrf.mxu0
        %v4993 = vadd.f32 %v4980, %v4992
        %v4994 = vpop.f32.mrf.mxu0
        %4995 = vdwg.mxu0
        %4996 = vmatpush.bf16.msra.mxu0 %v4380
        %4997 = vmatpush.bf16.msra.mxu0 %v4373
        %4998 = vmatpush.bf16.msra.mxu0 %v4366
        %4999 = vmatpush.bf16.msra.mxu0 %v4359
        %5000 = vmatpush.bf16.msra.mxu0 %v4352
        %5001 = vmatpush.bf16.msra.mxu0 %v4345
        %5002 = vmatpush.bf16.msra.mxu0 %v4338
        %5003 = vmatpush.bf16.msra.mxu0 %v4331
        %5004 = vmatmul.bf16.gmra.mxu0 %v2642
        %v5005 = vpop.f32.mrf.mxu0
        %v5006 = vadd.f32 %v4993, %v5005
        %v5007 = vpop.f32.mrf.mxu0
        %5008 = vdwg.mxu0
        %5009 = vmatpush.bf16.msra.mxu0 %v4436
        %5010 = vmatpush.bf16.msra.mxu0 %v4429
        %5011 = vmatpush.bf16.msra.mxu0 %v4422
        %5012 = vmatpush.bf16.msra.mxu0 %v4415
        %5013 = vmatpush.bf16.msra.mxu0 %v4408
        %5014 = vmatpush.bf16.msra.mxu0 %v4401
        %5015 = vmatpush.bf16.msra.mxu0 %v4394
        %5016 = vmatpush.bf16.msra.mxu0 %v4387
        %5017 = vmatmul.bf16.gmra.mxu0 %v2643
        %v5018 = vpop.f32.mrf.mxu0
        %v5019 = vadd.f32 %v5006, %v5018
        %v5020 = vpop.f32.mrf.mxu0
        %5021 = vdwg.mxu0
        %5022 = vmatpush.bf16.msra.mxu0 %v4492
        %5023 = vmatpush.bf16.msra.mxu0 %v4485
        %5024 = vmatpush.bf16.msra.mxu0 %v4478
        %5025 = vmatpush.bf16.msra.mxu0 %v4471
        %5026 = vmatpush.bf16.msra.mxu0 %v4464
        %5027 = vmatpush.bf16.msra.mxu0 %v4457
        %5028 = vmatpush.bf16.msra.mxu0 %v4450
        %5029 = vmatpush.bf16.msra.mxu0 %v4443
        %5030 = vmatmul.bf16.gmra.mxu0 %v2644
        %v5031 = vpop.f32.mrf.mxu0
        %v5032 = vadd.f32 %v5019, %v5031
        %v5033 = vpop.f32.mrf.mxu0
        %5034 = vdwg.mxu0
        %5035 = vmatpush.bf16.msra.mxu0 0
        %5036 = vmatpush.bf16.msra.mxu0 0
        %5037 = vmatpush.bf16.msra.mxu0 0
        %5038 = vmatpush.bf16.msra.mxu0 0
        %5039 = vmatpush.bf16.msra.mxu0 0
        %5040 = vmatpush.bf16.msra.mxu0 0
        %5041 = vmatpush.bf16.msra.mxu0 %v4506
        %5042 = vmatpush.bf16.msra.mxu0 %v4499
        %5043 = vmatmul.bf16.gmra.mxu0 %v4864
        %v5044 = vpop.f32.mrf.mxu0
        %v5045 = vadd.f32 %v5032, %v5044
        %v5046 = vpop.f32.mrf.mxu0
        %5047 = vdwg.mxu0
        %5048 = vmatpush.bf16.msra.mxu0 %v4213
        %5049 = vmatpush.bf16.msra.mxu0 %v4206
        %5050 = vmatpush.bf16.msra.mxu0 %v4199
        %5051 = vmatpush.bf16.msra.mxu0 %v4192
        %5052 = vmatpush.bf16.msra.mxu0 %v4185
        %5053 = vmatpush.bf16.msra.mxu0 %v4178
        %5054 = vmatpush.bf16.msra.mxu0 %v4171
        %5055 = vmatpush.bf16.msra.mxu0 %v4164
        %5056 = vmatmul.bf16.gmra.mxu0 %v2639
        %v5057 = vpop.f32.mrf.mxu0
        %v5058 = vadd.f32 %v3050, %v5057
        %v5059 = vpop.f32.mrf.mxu0
        %5060 = vdwg.mxu0
        %5061 = vmatpush.bf16.msra.mxu0 %v4269
        %5062 = vmatpush.bf16.msra.mxu0 %v4262
        %5063 = vmatpush.bf16.msra.mxu0 %v4255
        %5064 = vmatpush.bf16.msra.mxu0 %v4248
        %5065 = vmatpush.bf16.msra.mxu0 %v4241
        %5066 = vmatpush.bf16.msra.mxu0 %v4234
        %5067 = vmatpush.bf16.msra.mxu0 %v4227
        %5068 = vmatpush.bf16.msra.mxu0 %v4220
        %5069 = vmatmul.bf16.gmra.mxu0 %v2640
        %v5070 = vpop.f32.mrf.mxu0
        %v5071 = vadd.f32 %v5058, %v5070
        %v5072 = vpop.f32.mrf.mxu0
        %5073 = vdwg.mxu0
        %5074 = vmatpush.bf16.msra.mxu0 %v4325
        %5075 = vmatpush.bf16.msra.mxu0 %v4318
        %5076 = vmatpush.bf16.msra.mxu0 %v4311
        %5077 = vmatpush.bf16.msra.mxu0 %v4304
        %5078 = vmatpush.bf16.msra.mxu0 %v4297
        %5079 = vmatpush.bf16.msra.mxu0 %v4290
        %5080 = vmatpush.bf16.msra.mxu0 %v4283
        %5081 = vmatpush.bf16.msra.mxu0 %v4276
        %5082 = vmatmul.bf16.gmra.mxu0 %v2641
        %v5083 = vpop.f32.mrf.mxu0
        %v5084 = vadd.f32 %v5071, %v5083
        %v5085 = vpop.f32.mrf.mxu0
        %5086 = vdwg.mxu0
        %5087 = vmatpush.bf16.msra.mxu0 %v4381
        %5088 = vmatpush.bf16.msra.mxu0 %v4374
        %5089 = vmatpush.bf16.msra.mxu0 %v4367
        %5090 = vmatpush.bf16.msra.mxu0 %v4360
        %5091 = vmatpush.bf16.msra.mxu0 %v4353
        %5092 = vmatpush.bf16.msra.mxu0 %v4346
        %5093 = vmatpush.bf16.msra.mxu0 %v4339
        %5094 = vmatpush.bf16.msra.mxu0 %v4332
        %5095 = vmatmul.bf16.gmra.mxu0 %v2642
        %v5096 = vpop.f32.mrf.mxu0
        %v5097 = vadd.f32 %v5084, %v5096
        %v5098 = vpop.f32.mrf.mxu0
        %5099 = vdwg.mxu0
        %5100 = vmatpush.bf16.msra.mxu0 %v4437
        %5101 = vmatpush.bf16.msra.mxu0 %v4430
        %5102 = vmatpush.bf16.msra.mxu0 %v4423
        %5103 = vmatpush.bf16.msra.mxu0 %v4416
        %5104 = vmatpush.bf16.msra.mxu0 %v4409
        %5105 = vmatpush.bf16.msra.mxu0 %v4402
        %5106 = vmatpush.bf16.msra.mxu0 %v4395
        %5107 = vmatpush.bf16.msra.mxu0 %v4388
        %5108 = vmatmul.bf16.gmra.mxu0 %v2643
        %v5109 = vpop.f32.mrf.mxu0
        %v5110 = vadd.f32 %v5097, %v5109
        %v5111 = vpop.f32.mrf.mxu0
        %5112 = vdwg.mxu0
        %5113 = vmatpush.bf16.msra.mxu0 %v4493
        %5114 = vmatpush.bf16.msra.mxu0 %v4486
        %5115 = vmatpush.bf16.msra.mxu0 %v4479
        %5116 = vmatpush.bf16.msra.mxu0 %v4472
        %5117 = vmatpush.bf16.msra.mxu0 %v4465
        %5118 = vmatpush.bf16.msra.mxu0 %v4458
        %5119 = vmatpush.bf16.msra.mxu0 %v4451
        %5120 = vmatpush.bf16.msra.mxu0 %v4444
        %5121 = vmatmul.bf16.gmra.mxu0 %v2644
        %v5122 = vpop.f32.mrf.mxu0
        %v5123 = vadd.f32 %v5110, %v5122
        %v5124 = vpop.f32.mrf.mxu0
        %5125 = vdwg.mxu0
        %5126 = vmatpush.bf16.msra.mxu0 0
        %5127 = vmatpush.bf16.msra.mxu0 0
        %5128 = vmatpush.bf16.msra.mxu0 0
        %5129 = vmatpush.bf16.msra.mxu0 0
        %5130 = vmatpush.bf16.msra.mxu0 0
        %5131 = vmatpush.bf16.msra.mxu0 0
        %5132 = vmatpush.bf16.msra.mxu0 %v4507
        %5133 = vmatpush.bf16.msra.mxu0 %v4500
        %5134 = vmatmul.bf16.gmra.mxu0 %v4864
        %v5135 = vpop.f32.mrf.mxu0
        %v5136 = vadd.f32 %v5123, %v5135
        %v5137 = vpop.f32.mrf.mxu0
        %5138 = vdwg.mxu0
        %5139 = vmatpush.bf16.msra.mxu0 %v4214
        %5140 = vmatpush.bf16.msra.mxu0 %v4207
        %5141 = vmatpush.bf16.msra.mxu0 %v4200
        %5142 = vmatpush.bf16.msra.mxu0 %v4193
        %5143 = vmatpush.bf16.msra.mxu0 %v4186
        %5144 = vmatpush.bf16.msra.mxu0 %v4179
        %5145 = vmatpush.bf16.msra.mxu0 %v4172
        %5146 = vmatpush.bf16.msra.mxu0 %v4165
        %5147 = vmatmul.bf16.gmra.mxu0 %v2639
        %v5148 = vpop.f32.mrf.mxu0
        %v5149 = vadd.f32 %v3051, %v5148
        %v5150 = vpop.f32.mrf.mxu0
        %5151 = vdwg.mxu0
        %5152 = vmatpush.bf16.msra.mxu0 %v4270
        %5153 = vmatpush.bf16.msra.mxu0 %v4263
        %5154 = vmatpush.bf16.msra.mxu0 %v4256
        %5155 = vmatpush.bf16.msra.mxu0 %v4249
        %5156 = vmatpush.bf16.msra.mxu0 %v4242
        %5157 = vmatpush.bf16.msra.mxu0 %v4235
        %5158 = vmatpush.bf16.msra.mxu0 %v4228
        %5159 = vmatpush.bf16.msra.mxu0 %v4221
        %5160 = vmatmul.bf16.gmra.mxu0 %v2640
        %v5161 = vpop.f32.mrf.mxu0
        %v5162 = vadd.f32 %v5149, %v5161
        %v5163 = vpop.f32.mrf.mxu0
        %5164 = vdwg.mxu0
        %5165 = vmatpush.bf16.msra.mxu0 %v4326
        %5166 = vmatpush.bf16.msra.mxu0 %v4319
        %5167 = vmatpush.bf16.msra.mxu0 %v4312
        %5168 = vmatpush.bf16.msra.mxu0 %v4305
        %5169 = vmatpush.bf16.msra.mxu0 %v4298
        %5170 = vmatpush.bf16.msra.mxu0 %v4291
        %5171 = vmatpush.bf16.msra.mxu0 %v4284
        %5172 = vmatpush.bf16.msra.mxu0 %v4277
        %5173 = vmatmul.bf16.gmra.mxu0 %v2641
        %v5174 = vpop.f32.mrf.mxu0
        %v5175 = vadd.f32 %v5162, %v5174
        %v5176 = vpop.f32.mrf.mxu0
        %5177 = vdwg.mxu0
        %5178 = vmatpush.bf16.msra.mxu0 %v4382
        %5179 = vmatpush.bf16.msra.mxu0 %v4375
        %5180 = vmatpush.bf16.msra.mxu0 %v4368
        %5181 = vmatpush.bf16.msra.mxu0 %v4361
        %5182 = vmatpush.bf16.msra.mxu0 %v4354
        %5183 = vmatpush.bf16.msra.mxu0 %v4347
        %5184 = vmatpush.bf16.msra.mxu0 %v4340
        %5185 = vmatpush.bf16.msra.mxu0 %v4333
        %5186 = vmatmul.bf16.gmra.mxu0 %v2642
        %v5187 = vpop.f32.mrf.mxu0
        %v5188 = vadd.f32 %v5175, %v5187
        %v5189 = vpop.f32.mrf.mxu0
        %5190 = vdwg.mxu0
        %5191 = vmatpush.bf16.msra.mxu0 %v4438
        %5192 = vmatpush.bf16.msra.mxu0 %v4431
        %5193 = vmatpush.bf16.msra.mxu0 %v4424
        %5194 = vmatpush.bf16.msra.mxu0 %v4417
        %5195 = vmatpush.bf16.msra.mxu0 %v4410
        %5196 = vmatpush.bf16.msra.mxu0 %v4403
        %5197 = vmatpush.bf16.msra.mxu0 %v4396
        %5198 = vmatpush.bf16.msra.mxu0 %v4389
        %5199 = vmatmul.bf16.gmra.mxu0 %v2643
        %v5200 = vpop.f32.mrf.mxu0
        %v5201 = vadd.f32 %v5188, %v5200
        %v5202 = vpop.f32.mrf.mxu0
        %5203 = vdwg.mxu0
        %5204 = vmatpush.bf16.msra.mxu0 %v4494
        %5205 = vmatpush.bf16.msra.mxu0 %v4487
        %5206 = vmatpush.bf16.msra.mxu0 %v4480
        %5207 = vmatpush.bf16.msra.mxu0 %v4473
        %5208 = vmatpush.bf16.msra.mxu0 %v4466
        %5209 = vmatpush.bf16.msra.mxu0 %v4459
        %5210 = vmatpush.bf16.msra.mxu0 %v4452
        %5211 = vmatpush.bf16.msra.mxu0 %v4445
        %5212 = vmatmul.bf16.gmra.mxu0 %v2644
        %v5213 = vpop.f32.mrf.mxu0
        %v5214 = vadd.f32 %v5201, %v5213
        %v5215 = vpop.f32.mrf.mxu0
        %5216 = vdwg.mxu0
        %5217 = vmatpush.bf16.msra.mxu0 0
        %5218 = vmatpush.bf16.msra.mxu0 0
        %5219 = vmatpush.bf16.msra.mxu0 0
        %5220 = vmatpush.bf16.msra.mxu0 0
        %5221 = vmatpush.bf16.msra.mxu0 0
        %5222 = vmatpush.bf16.msra.mxu0 0
        %5223 = vmatpush.bf16.msra.mxu0 %v4508
        %5224 = vmatpush.bf16.msra.mxu0 %v4501
        %5225 = vmatmul.bf16.gmra.mxu0 %v4864
        %v5226 = vpop.f32.mrf.mxu0
        %v5227 = vadd.f32 %v5214, %v5226
        %v5228 = vpop.f32.mrf.mxu0
        %5229 = vdwg.mxu0
        %5230 = vmatpush.bf16.msra.mxu0 %v4215
        %5231 = vmatpush.bf16.msra.mxu0 %v4208
        %5232 = vmatpush.bf16.msra.mxu0 %v4201
        %5233 = vmatpush.bf16.msra.mxu0 %v4194
        %5234 = vmatpush.bf16.msra.mxu0 %v4187
        %5235 = vmatpush.bf16.msra.mxu0 %v4180
        %5236 = vmatpush.bf16.msra.mxu0 %v4173
        %5237 = vmatpush.bf16.msra.mxu0 %v4166
        %5238 = vmatmul.bf16.gmra.mxu0 %v2639
        %v5239 = vpop.f32.mrf.mxu0
        %v5240 = vadd.f32 %v3052, %v5239
        %v5241 = vpop.f32.mrf.mxu0
        %5242 = vdwg.mxu0
        %5243 = vmatpush.bf16.msra.mxu0 %v4271
        %5244 = vmatpush.bf16.msra.mxu0 %v4264
        %5245 = vmatpush.bf16.msra.mxu0 %v4257
        %5246 = vmatpush.bf16.msra.mxu0 %v4250
        %5247 = vmatpush.bf16.msra.mxu0 %v4243
        %5248 = vmatpush.bf16.msra.mxu0 %v4236
        %5249 = vmatpush.bf16.msra.mxu0 %v4229
        %5250 = vmatpush.bf16.msra.mxu0 %v4222
        %5251 = vmatmul.bf16.gmra.mxu0 %v2640
        %v5252 = vpop.f32.mrf.mxu0
        %v5253 = vadd.f32 %v5240, %v5252
        %v5254 = vpop.f32.mrf.mxu0
        %5255 = vdwg.mxu0
        %5256 = vmatpush.bf16.msra.mxu0 %v4327
        %5257 = vmatpush.bf16.msra.mxu0 %v4320
        %5258 = vmatpush.bf16.msra.mxu0 %v4313
        %5259 = vmatpush.bf16.msra.mxu0 %v4306
        %5260 = vmatpush.bf16.msra.mxu0 %v4299
        %5261 = vmatpush.bf16.msra.mxu0 %v4292
        %5262 = vmatpush.bf16.msra.mxu0 %v4285
        %5263 = vmatpush.bf16.msra.mxu0 %v4278
        %5264 = vmatmul.bf16.gmra.mxu0 %v2641
        %v5265 = vpop.f32.mrf.mxu0
        %v5266 = vadd.f32 %v5253, %v5265
        %v5267 = vpop.f32.mrf.mxu0
        %5268 = vdwg.mxu0
        %5269 = vmatpush.bf16.msra.mxu0 %v4383
        %5270 = vmatpush.bf16.msra.mxu0 %v4376
        %5271 = vmatpush.bf16.msra.mxu0 %v4369
        %5272 = vmatpush.bf16.msra.mxu0 %v4362
        %5273 = vmatpush.bf16.msra.mxu0 %v4355
        %5274 = vmatpush.bf16.msra.mxu0 %v4348
        %5275 = vmatpush.bf16.msra.mxu0 %v4341
        %5276 = vmatpush.bf16.msra.mxu0 %v4334
        %5277 = vmatmul.bf16.gmra.mxu0 %v2642
        %v5278 = vpop.f32.mrf.mxu0
        %v5279 = vadd.f32 %v5266, %v5278
        %v5280 = vpop.f32.mrf.mxu0
        %5281 = vdwg.mxu0
        %5282 = vmatpush.bf16.msra.mxu0 %v4439
        %5283 = vmatpush.bf16.msra.mxu0 %v4432
        %5284 = vmatpush.bf16.msra.mxu0 %v4425
        %5285 = vmatpush.bf16.msra.mxu0 %v4418
        %5286 = vmatpush.bf16.msra.mxu0 %v4411
        %5287 = vmatpush.bf16.msra.mxu0 %v4404
        %5288 = vmatpush.bf16.msra.mxu0 %v4397
        %5289 = vmatpush.bf16.msra.mxu0 %v4390
        %5290 = vmatmul.bf16.gmra.mxu0 %v2643
        %v5291 = vpop.f32.mrf.mxu0
        %v5292 = vadd.f32 %v5279, %v5291
        %v5293 = vpop.f32.mrf.mxu0
        %5294 = vdwg.mxu0
        %5295 = vmatpush.bf16.msra.mxu0 %v4495
        %5296 = vmatpush.bf16.msra.mxu0 %v4488
        %5297 = vmatpush.bf16.msra.mxu0 %v4481
        %5298 = vmatpush.bf16.msra.mxu0 %v4474
        %5299 = vmatpush.bf16.msra.mxu0 %v4467
        %5300 = vmatpush.bf16.msra.mxu0 %v4460
        %5301 = vmatpush.bf16.msra.mxu0 %v4453
        %5302 = vmatpush.bf16.msra.mxu0 %v4446
        %5303 = vmatmul.bf16.gmra.mxu0 %v2644
        %v5304 = vpop.f32.mrf.mxu0
        %v5305 = vadd.f32 %v5292, %v5304
        %v5306 = vpop.f32.mrf.mxu0
        %5307 = vdwg.mxu0
        %5308 = vmatpush.bf16.msra.mxu0 0
        %5309 = vmatpush.bf16.msra.mxu0 0
        %5310 = vmatpush.bf16.msra.mxu0 0
        %5311 = vmatpush.bf16.msra.mxu0 0
        %5312 = vmatpush.bf16.msra.mxu0 0
        %5313 = vmatpush.bf16.msra.mxu0 0
        %5314 = vmatpush.bf16.msra.mxu0 %v4509
        %5315 = vmatpush.bf16.msra.mxu0 %v4502
        %5316 = vmatmul.bf16.gmra.mxu0 %v4864
        %v5317 = vpop.f32.mrf.mxu0
        %v5318 = vadd.f32 %v5305, %v5317
        %v5319 = vpop.f32.mrf.mxu0
        %5320 = vdwg.mxu0
        %5321 = vmatpush.bf16.msra.mxu0 %v4216
        %5322 = vmatpush.bf16.msra.mxu0 %v4209
        %5323 = vmatpush.bf16.msra.mxu0 %v4202
        %5324 = vmatpush.bf16.msra.mxu0 %v4195
        %5325 = vmatpush.bf16.msra.mxu0 %v4188
        %5326 = vmatpush.bf16.msra.mxu0 %v4181
        %5327 = vmatpush.bf16.msra.mxu0 %v4174
        %5328 = vmatpush.bf16.msra.mxu0 %v4167
        %5329 = vmatmul.bf16.gmra.mxu0 %v2639
        %v5330 = vpop.f32.mrf.mxu0
        %v5331 = vadd.f32 %v3053, %v5330
        %v5332 = vpop.f32.mrf.mxu0
        %5333 = vdwg.mxu0
        %5334 = vmatpush.bf16.msra.mxu0 %v4272
        %5335 = vmatpush.bf16.msra.mxu0 %v4265
        %5336 = vmatpush.bf16.msra.mxu0 %v4258
        %5337 = vmatpush.bf16.msra.mxu0 %v4251
        %5338 = vmatpush.bf16.msra.mxu0 %v4244
        %5339 = vmatpush.bf16.msra.mxu0 %v4237
        %5340 = vmatpush.bf16.msra.mxu0 %v4230
        %5341 = vmatpush.bf16.msra.mxu0 %v4223
        %5342 = vmatmul.bf16.gmra.mxu0 %v2640
        %v5343 = vpop.f32.mrf.mxu0
        %v5344 = vadd.f32 %v5331, %v5343
        %v5345 = vpop.f32.mrf.mxu0
        %5346 = vdwg.mxu0
        %5347 = vmatpush.bf16.msra.mxu0 %v4328
        %5348 = vmatpush.bf16.msra.mxu0 %v4321
        %5349 = vmatpush.bf16.msra.mxu0 %v4314
        %5350 = vmatpush.bf16.msra.mxu0 %v4307
        %5351 = vmatpush.bf16.msra.mxu0 %v4300
        %5352 = vmatpush.bf16.msra.mxu0 %v4293
        %5353 = vmatpush.bf16.msra.mxu0 %v4286
        %5354 = vmatpush.bf16.msra.mxu0 %v4279
        %5355 = vmatmul.bf16.gmra.mxu0 %v2641
        %v5356 = vpop.f32.mrf.mxu0
        %v5357 = vadd.f32 %v5344, %v5356
        %v5358 = vpop.f32.mrf.mxu0
        %5359 = vdwg.mxu0
        %5360 = vmatpush.bf16.msra.mxu0 %v4384
        %5361 = vmatpush.bf16.msra.mxu0 %v4377
        %5362 = vmatpush.bf16.msra.mxu0 %v4370
        %5363 = vmatpush.bf16.msra.mxu0 %v4363
        %5364 = vmatpush.bf16.msra.mxu0 %v4356
        %5365 = vmatpush.bf16.msra.mxu0 %v4349
        %5366 = vmatpush.bf16.msra.mxu0 %v4342
        %5367 = vmatpush.bf16.msra.mxu0 %v4335
        %5368 = vmatmul.bf16.gmra.mxu0 %v2642
        %v5369 = vpop.f32.mrf.mxu0
        %v5370 = vadd.f32 %v5357, %v5369
        %v5371 = vpop.f32.mrf.mxu0
        %5372 = vdwg.mxu0
        %5373 = vmatpush.bf16.msra.mxu0 %v4440
        %5374 = vmatpush.bf16.msra.mxu0 %v4433
        %5375 = vmatpush.bf16.msra.mxu0 %v4426
        %5376 = vmatpush.bf16.msra.mxu0 %v4419
        %5377 = vmatpush.bf16.msra.mxu0 %v4412
        %5378 = vmatpush.bf16.msra.mxu0 %v4405
        %5379 = vmatpush.bf16.msra.mxu0 %v4398
        %5380 = vmatpush.bf16.msra.mxu0 %v4391
        %5381 = vmatmul.bf16.gmra.mxu0 %v2643
        %v5382 = vpop.f32.mrf.mxu0
        %v5383 = vadd.f32 %v5370, %v5382
        %v5384 = vpop.f32.mrf.mxu0
        %5385 = vdwg.mxu0
        %5386 = vmatpush.bf16.msra.mxu0 %v4496
        %5387 = vmatpush.bf16.msra.mxu0 %v4489
        %5388 = vmatpush.bf16.msra.mxu0 %v4482
        %5389 = vmatpush.bf16.msra.mxu0 %v4475
        %5390 = vmatpush.bf16.msra.mxu0 %v4468
        %5391 = vmatpush.bf16.msra.mxu0 %v4461
        %5392 = vmatpush.bf16.msra.mxu0 %v4454
        %5393 = vmatpush.bf16.msra.mxu0 %v4447
        %5394 = vmatmul.bf16.gmra.mxu0 %v2644
        %v5395 = vpop.f32.mrf.mxu0
        %v5396 = vadd.f32 %v5383, %v5395
        %v5397 = vpop.f32.mrf.mxu0
        %5398 = vdwg.mxu0
        %5399 = vmatpush.bf16.msra.mxu0 0
        %5400 = vmatpush.bf16.msra.mxu0 0
        %5401 = vmatpush.bf16.msra.mxu0 0
        %5402 = vmatpush.bf16.msra.mxu0 0
        %5403 = vmatpush.bf16.msra.mxu0 0
        %5404 = vmatpush.bf16.msra.mxu0 0
        %5405 = vmatpush.bf16.msra.mxu0 %v4510
        %5406 = vmatpush.bf16.msra.mxu0 %v4503
        %5407 = vmatmul.bf16.gmra.mxu0 %v4864
        %v5408 = vpop.f32.mrf.mxu0
        %v5409 = vadd.f32 %v5396, %v5408
        %v5410 = vpop.f32.mrf.mxu0
        %5411 = vdwg.mxu0
        %5412 = vmatpush.bf16.msra.mxu0 %v4217
        %5413 = vmatpush.bf16.msra.mxu0 %v4210
        %5414 = vmatpush.bf16.msra.mxu0 %v4203
        %5415 = vmatpush.bf16.msra.mxu0 %v4196
        %5416 = vmatpush.bf16.msra.mxu0 %v4189
        %5417 = vmatpush.bf16.msra.mxu0 %v4182
        %5418 = vmatpush.bf16.msra.mxu0 %v4175
        %5419 = vmatpush.bf16.msra.mxu0 %v4168
        %5420 = vmatmul.bf16.gmra.mxu0 %v2639
        %v5421 = vpop.f32.mrf.mxu0
        %v5422 = vadd.f32 %v3054, %v5421
        %v5423 = vpop.f32.mrf.mxu0
        %5424 = vdwg.mxu0
        %5425 = vmatpush.bf16.msra.mxu0 %v4273
        %5426 = vmatpush.bf16.msra.mxu0 %v4266
        %5427 = vmatpush.bf16.msra.mxu0 %v4259
        %5428 = vmatpush.bf16.msra.mxu0 %v4252
        %5429 = vmatpush.bf16.msra.mxu0 %v4245
        %5430 = vmatpush.bf16.msra.mxu0 %v4238
        %5431 = vmatpush.bf16.msra.mxu0 %v4231
        %5432 = vmatpush.bf16.msra.mxu0 %v4224
        %5433 = vmatmul.bf16.gmra.mxu0 %v2640
        %v5434 = vpop.f32.mrf.mxu0
        %v5435 = vadd.f32 %v5422, %v5434
        %v5436 = vpop.f32.mrf.mxu0
        %5437 = vdwg.mxu0
        %5438 = vmatpush.bf16.msra.mxu0 %v4329
        %5439 = vmatpush.bf16.msra.mxu0 %v4322
        %5440 = vmatpush.bf16.msra.mxu0 %v4315
        %5441 = vmatpush.bf16.msra.mxu0 %v4308
        %5442 = vmatpush.bf16.msra.mxu0 %v4301
        %5443 = vmatpush.bf16.msra.mxu0 %v4294
        %5444 = vmatpush.bf16.msra.mxu0 %v4287
        %5445 = vmatpush.bf16.msra.mxu0 %v4280
        %5446 = vmatmul.bf16.gmra.mxu0 %v2641
        %v5447 = vpop.f32.mrf.mxu0
        %v5448 = vadd.f32 %v5435, %v5447
        %v5449 = vpop.f32.mrf.mxu0
        %5450 = vdwg.mxu0
        %5451 = vmatpush.bf16.msra.mxu0 %v4385
        %5452 = vmatpush.bf16.msra.mxu0 %v4378
        %5453 = vmatpush.bf16.msra.mxu0 %v4371
        %5454 = vmatpush.bf16.msra.mxu0 %v4364
        %5455 = vmatpush.bf16.msra.mxu0 %v4357
        %5456 = vmatpush.bf16.msra.mxu0 %v4350
        %5457 = vmatpush.bf16.msra.mxu0 %v4343
        %5458 = vmatpush.bf16.msra.mxu0 %v4336
        %5459 = vmatmul.bf16.gmra.mxu0 %v2642
        %v5460 = vpop.f32.mrf.mxu0
        %v5461 = vadd.f32 %v5448, %v5460
        %v5462 = vpop.f32.mrf.mxu0
        %5463 = vdwg.mxu0
        %5464 = vmatpush.bf16.msra.mxu0 %v4441
        %5465 = vmatpush.bf16.msra.mxu0 %v4434
        %5466 = vmatpush.bf16.msra.mxu0 %v4427
        %5467 = vmatpush.bf16.msra.mxu0 %v4420
        %5468 = vmatpush.bf16.msra.mxu0 %v4413
        %5469 = vmatpush.bf16.msra.mxu0 %v4406
        %5470 = vmatpush.bf16.msra.mxu0 %v4399
        %5471 = vmatpush.bf16.msra.mxu0 %v4392
        %5472 = vmatmul.bf16.gmra.mxu0 %v2643
        %v5473 = vpop.f32.mrf.mxu0
        %v5474 = vadd.f32 %v5461, %v5473
        %v5475 = vpop.f32.mrf.mxu0
        %5476 = vdwg.mxu0
        %5477 = vmatpush.bf16.msra.mxu0 %v4497
        %5478 = vmatpush.bf16.msra.mxu0 %v4490
        %5479 = vmatpush.bf16.msra.mxu0 %v4483
        %5480 = vmatpush.bf16.msra.mxu0 %v4476
        %5481 = vmatpush.bf16.msra.mxu0 %v4469
        %5482 = vmatpush.bf16.msra.mxu0 %v4462
        %5483 = vmatpush.bf16.msra.mxu0 %v4455
        %5484 = vmatpush.bf16.msra.mxu0 %v4448
        %5485 = vmatmul.bf16.gmra.mxu0 %v2644
        %v5486 = vpop.f32.mrf.mxu0
        %v5487 = vadd.f32 %v5474, %v5486
        %v5488 = vpop.f32.mrf.mxu0
        %5489 = vdwg.mxu0
        %5490 = vmatpush.bf16.msra.mxu0 0
        %5491 = vmatpush.bf16.msra.mxu0 0
        %5492 = vmatpush.bf16.msra.mxu0 0
        %5493 = vmatpush.bf16.msra.mxu0 0
        %5494 = vmatpush.bf16.msra.mxu0 0
        %5495 = vmatpush.bf16.msra.mxu0 0
        %5496 = vmatpush.bf16.msra.mxu0 %v4511
        %5497 = vmatpush.bf16.msra.mxu0 %v4504
        %5498 = vmatmul.bf16.gmra.mxu0 %v4864
        %v5499 = vpop.f32.mrf.mxu0
        %v5500 = vadd.f32 %v5487, %v5499
        %v5501 = vpop.f32.mrf.mxu0
        %5502 = vdwg.mxu0
        %vm5503 = vcmp.gt.f32.partialorder %v4954, 0.0
        %vm5504 = vcmp.gt.f32.partialorder %v5045, 0.0
        %vm5505 = vcmp.gt.f32.partialorder %v5136, 0.0
        %vm5506 = vcmp.gt.f32.partialorder %v5227, 0.0
        %vm5507 = vcmp.gt.f32.partialorder %v5318, 0.0
        %vm5508 = vcmp.gt.f32.partialorder %v5409, 0.0
        %vm5509 = vcmp.gt.f32.partialorder %v5500, 0.0
        %v5510 = vmul.f32 %v4954, 0.01
        %v5511 = vmul.f32 %v5045, 0.01
        %v5512 = vmul.f32 %v5136, 0.01
        %v5513 = vmul.f32 %v5227, 0.01
        %v5514 = vmul.f32 %v5318, 0.01
        %v5515 = vmul.f32 %v5409, 0.01
        %v5516 = vmul.f32 %v5500, 0.01
        %v5517 = vsel %vm5503, %v4954, %v5510
        %v5518 = vsel %vm5504, %v5045, %v5511
        %v5519 = vsel %vm5505, %v5136, %v5512
        %v5520 = vsel %vm5506, %v5227, %v5513
        %v5521 = vsel %vm5507, %v5318, %v5514
        %v5522 = vsel %vm5508, %v5409, %v5515
        %v5523 = vsel %vm5509, %v5500, %v5516
        %v5524 = vpack.c.bf16 %v5517, %v5517
        %v5525 = vpack.c.bf16 %v5518, %v5518
        %v5526 = vpack.c.bf16 %v5519, %v5519
        %v5527 = vpack.c.bf16 %v5520, %v5520
        %v5528 = vpack.c.bf16 %v5521, %v5521
        %v5529 = vpack.c.bf16 %v5522, %v5522
        %v5530 = vpack.c.bf16 %v5523, %v5523
        %v5531 = vld [vmem:[#allocation7] sm:$0xff]
        %v5532 = vld [vmem:[#allocation7 + $0x8] sm:$0xff]
        %v5533 = vld [vmem:[#allocation7 + $0x10] sm:$0xff]
        %v5534 = vld [vmem:[#allocation7 + $0x18] sm:$0xf]
        %v5535 = vld [vmem:[#allocation7 + $0x1c] sm:$0xff]
        %v5536 = vld [vmem:[#allocation7 + $0x24] sm:$0xff]
        %v5537 = vld [vmem:[#allocation7 + $0x2c] sm:$0xff]
        %v5538 = vld [vmem:[#allocation7 + $0x34] sm:$0xf]
        %v5539 = vld [vmem:[#allocation7 + $0x38] sm:$0xff]
        %v5540 = vld [vmem:[#allocation7 + $0x40] sm:$0xff]
        %v5541 = vld [vmem:[#allocation7 + $0x48] sm:$0xff]
        %v5542 = vld [vmem:[#allocation7 + $0x50] sm:$0xf]
        %v5543 = vld [vmem:[#allocation7 + $0x54] sm:$0xff]
        %v5544 = vld [vmem:[#allocation7 + $0x5c] sm:$0xff]
        %v5545 = vld [vmem:[#allocation7 + $0x64] sm:$0xff]
        %v5546 = vld [vmem:[#allocation7 + $0x6c] sm:$0xf]
        %v5547 = vld [vmem:[#allocation7 + $0x70] sm:$0xff]
        %v5548 = vld [vmem:[#allocation7 + $0x78] sm:$0xff]
        %v5549 = vld [vmem:[#allocation7 + $0x80] sm:$0xff]
        %v5550 = vld [vmem:[#allocation7 + $0x88] sm:$0xf]
        %v5551 = vld [vmem:[#allocation7 + $0x8c] sm:$0xff]
        %v5552 = vld [vmem:[#allocation7 + $0x94] sm:$0xff]
        %v5553 = vld [vmem:[#allocation7 + $0x9c] sm:$0xff]
        %v5554 = vld [vmem:[#allocation7 + $0xa4] sm:$0xf]
        %v5555 = vld [vmem:[#allocation7 + $0xa8] sm:$0xff]
        %v5556 = vld [vmem:[#allocation7 + $0xb0] sm:$0xff]
        %v5557 = vld [vmem:[#allocation7 + $0xb8] sm:$0xff]
        %v5558 = vld [vmem:[#allocation7 + $0xc0] sm:$0xf]
        %v5559 = vld [vmem:[#allocation7 + $0xc4] sm:$0xff]
        %v5560 = vld [vmem:[#allocation7 + $0xcc] sm:$0xff]
        %v5561 = vld [vmem:[#allocation7 + $0xd4] sm:$0xff]
        %v5562 = vld [vmem:[#allocation7 + $0xdc] sm:$0xf]
        %v5563 = vld [vmem:[#allocation7 + $0xe0] sm:$0xff]
        %v5564 = vld [vmem:[#allocation7 + $0xe8] sm:$0xff]
        %v5565 = vld [vmem:[#allocation7 + $0xf0] sm:$0xff]
        %v5566 = vld [vmem:[#allocation7 + $0xf8] sm:$0xf]
        %v5567 = vld [vmem:[#allocation7 + $0xfc] sm:$0xff]
        %v5568 = vld [vmem:[#allocation7 + $0x104] sm:$0xff]
        %v5569 = vld [vmem:[#allocation7 + $0x10c] sm:$0xff]
        %v5570 = vld [vmem:[#allocation7 + $0x114] sm:$0xf]
        %v5571 = vld [vmem:[#allocation7 + $0x118] sm:$0xff]
        %v5572 = vld [vmem:[#allocation7 + $0x120] sm:$0xff]
        %v5573 = vld [vmem:[#allocation7 + $0x128] sm:$0xff]
        %v5574 = vld [vmem:[#allocation7 + $0x130] sm:$0xf]
        %v5575 = vld [vmem:[#allocation7 + $0x134] sm:$0xff]
        %v5576 = vld [vmem:[#allocation7 + $0x13c] sm:$0xff]
        %v5577 = vld [vmem:[#allocation7 + $0x144] sm:$0xff]
        %v5578 = vld [vmem:[#allocation7 + $0x14c] sm:$0xf]
        %v5579 = vld [vmem:[#allocation7 + $0x150] sm:$0xff]
        %v5580 = vld [vmem:[#allocation7 + $0x158] sm:$0xff]
        %v5581 = vld [vmem:[#allocation7 + $0x160] sm:$0xff]
        %v5582 = vld [vmem:[#allocation7 + $0x168] sm:$0xf]
        %v5583 = vld [vmem:[#allocation7 + $0x16c] sm:$0xff]
        %v5584 = vld [vmem:[#allocation7 + $0x174] sm:$0xff]
        %v5585 = vld [vmem:[#allocation7 + $0x17c] sm:$0xff]
        %v5586 = vld [vmem:[#allocation7 + $0x184] sm:$0xf]
        %v5587 = vld [vmem:[#allocation7 + $0x188] sm:$0xff]
        %v5588 = vld [vmem:[#allocation7 + $0x190] sm:$0xff]
        %v5589 = vld [vmem:[#allocation7 + $0x198] sm:$0xff]
        %v5590 = vld [vmem:[#allocation7 + $0x1a0] sm:$0xf]
        %v5591 = vld [vmem:[#allocation7 + $0x1a4] sm:$0xff]
        %v5592 = vld [vmem:[#allocation7 + $0x1ac] sm:$0xff]
        %v5593 = vld [vmem:[#allocation7 + $0x1b4] sm:$0xff]
        %v5594 = vld [vmem:[#allocation7 + $0x1bc] sm:$0xf]
        %v5595 = vld [vmem:[#allocation7 + $0x1c0] sm:$0xff]
        %v5596 = vld [vmem:[#allocation7 + $0x1c8] sm:$0xff]
        %v5597 = vld [vmem:[#allocation7 + $0x1d0] sm:$0xff]
        %v5598 = vld [vmem:[#allocation7 + $0x1d8] sm:$0xf]
        %v5599 = vld [vmem:[#allocation7 + $0x1dc] sm:$0xff]
        %v5600 = vld [vmem:[#allocation7 + $0x1e4] sm:$0xff]
        %v5601 = vld [vmem:[#allocation7 + $0x1ec] sm:$0xff]
        %v5602 = vld [vmem:[#allocation7 + $0x1f4] sm:$0xf]
        %v5603 = vld [vmem:[#allocation7 + $0x1f8] sm:$0xff]
        %v5604 = vld [vmem:[#allocation7 + $0x200] sm:$0xff]
        %v5605 = vld [vmem:[#allocation7 + $0x208] sm:$0xff]
        %v5606 = vld [vmem:[#allocation7 + $0x210] sm:$0xf]
        %v5607 = vld [vmem:[#allocation7 + $0x214] sm:$0xff]
        %v5608 = vld [vmem:[#allocation7 + $0x21c] sm:$0xff]
        %v5609 = vld [vmem:[#allocation7 + $0x224] sm:$0xff]
        %v5610 = vld [vmem:[#allocation7 + $0x22c] sm:$0xf]
        %v5611 = vld [vmem:[#allocation7 + $0x230] sm:$0xff]
        %v5612 = vld [vmem:[#allocation7 + $0x238] sm:$0xff]
        %v5613 = vld [vmem:[#allocation7 + $0x240] sm:$0xff]
        %v5614 = vld [vmem:[#allocation7 + $0x248] sm:$0xf]
        %v5615 = vld [vmem:[#allocation7 + $0x24c] sm:$0xff]
        %v5616 = vld [vmem:[#allocation7 + $0x254] sm:$0xff]
        %v5617 = vld [vmem:[#allocation7 + $0x25c] sm:$0xff]
        %v5618 = vld [vmem:[#allocation7 + $0x264] sm:$0xf]
        %v5619 = vld [vmem:[#allocation7 + $0x268] sm:$0xff]
        %v5620 = vld [vmem:[#allocation7 + $0x270] sm:$0xff]
        %v5621 = vld [vmem:[#allocation7 + $0x278] sm:$0xff]
        %v5622 = vld [vmem:[#allocation7 + $0x280] sm:$0xf]
        %v5623 = vld [vmem:[#allocation7 + $0x284] sm:$0xff]
        %v5624 = vld [vmem:[#allocation7 + $0x28c] sm:$0xff]
        %v5625 = vld [vmem:[#allocation7 + $0x294] sm:$0xff]
        %v5626 = vld [vmem:[#allocation7 + $0x29c] sm:$0xf]
        %v5627 = vld [vmem:[#allocation7 + $0x2a0] sm:$0xff]
        %v5628 = vld [vmem:[#allocation7 + $0x2a8] sm:$0xff]
        %v5629 = vld [vmem:[#allocation7 + $0x2b0] sm:$0xff]
        %v5630 = vld [vmem:[#allocation7 + $0x2b8] sm:$0xf]
        %v5631 = vld [vmem:[#allocation7 + $0x2bc] sm:$0xff]
        %v5632 = vld [vmem:[#allocation7 + $0x2c4] sm:$0xff]
        %v5633 = vld [vmem:[#allocation7 + $0x2cc] sm:$0xff]
        %v5634 = vld [vmem:[#allocation7 + $0x2d4] sm:$0xf]
        %v5635 = vld [vmem:[#allocation7 + $0x2d8] sm:$0xff]
        %v5636 = vld [vmem:[#allocation7 + $0x2e0] sm:$0xff]
        %v5637 = vld [vmem:[#allocation7 + $0x2e8] sm:$0xff]
        %v5638 = vld [vmem:[#allocation7 + $0x2f0] sm:$0xf]
        %v5639 = vld [vmem:[#allocation7 + $0x2f4] sm:$0xff]
        %v5640 = vld [vmem:[#allocation7 + $0x2fc] sm:$0xff]
        %v5641 = vld [vmem:[#allocation7 + $0x304] sm:$0xff]
        %v5642 = vld [vmem:[#allocation7 + $0x30c] sm:$0xf]
        %v5643 = vld [vmem:[#allocation7 + $0x310] sm:$0xff]
        %v5644 = vld [vmem:[#allocation7 + $0x318] sm:$0xff]
        %v5645 = vld [vmem:[#allocation7 + $0x320] sm:$0xff]
        %v5646 = vld [vmem:[#allocation7 + $0x328] sm:$0xf]
        %v5647 = vld [vmem:[#allocation7 + $0x32c] sm:$0xff]
        %v5648 = vld [vmem:[#allocation7 + $0x334] sm:$0xff]
        %v5649 = vld [vmem:[#allocation7 + $0x33c] sm:$0xff]
        %v5650 = vld [vmem:[#allocation7 + $0x344] sm:$0xf]
        %v5651 = vld [vmem:[#allocation7 + $0x348] sm:$0xff]
        %v5652 = vld [vmem:[#allocation7 + $0x350] sm:$0xff]
        %v5653 = vld [vmem:[#allocation7 + $0x358] sm:$0xff]
        %v5654 = vld [vmem:[#allocation7 + $0x360] sm:$0xf]
        %v5655 = vld [vmem:[#allocation7 + $0x364] sm:$0xff]
        %v5656 = vld [vmem:[#allocation7 + $0x36c] sm:$0xff]
        %v5657 = vld [vmem:[#allocation7 + $0x374] sm:$0xff]
        %v5658 = vld [vmem:[#allocation7 + $0x37c] sm:$0xf]
        %v5659 = vld [vmem:[#allocation7 + $0x380] sm:$0xff]
        %v5660 = vld [vmem:[#allocation7 + $0x388] sm:$0xff]
        %v5661 = vld [vmem:[#allocation7 + $0x390] sm:$0xff]
        %v5662 = vld [vmem:[#allocation7 + $0x398] sm:$0xf]
        %v5663 = vld [vmem:[#allocation7 + $0x39c] sm:$0xff]
        %v5664 = vld [vmem:[#allocation7 + $0x3a4] sm:$0xff]
        %v5665 = vld [vmem:[#allocation7 + $0x3ac] sm:$0xff]
        %v5666 = vld [vmem:[#allocation7 + $0x3b4] sm:$0xf]
        %v5667 = vld [vmem:[#allocation7 + $0x3b8] sm:$0xff]
        %v5668 = vld [vmem:[#allocation7 + $0x3c0] sm:$0xff]
        %v5669 = vld [vmem:[#allocation7 + $0x3c8] sm:$0xff]
        %v5670 = vld [vmem:[#allocation7 + $0x3d0] sm:$0xf]
        %v5671 = vld [vmem:[#allocation7 + $0x3d4] sm:$0xff]
        %v5672 = vld [vmem:[#allocation7 + $0x3dc] sm:$0xff]
        %v5673 = vld [vmem:[#allocation7 + $0x3e4] sm:$0xff]
        %v5674 = vld [vmem:[#allocation7 + $0x3ec] sm:$0xf]
        %v5675 = vld [vmem:[#allocation7 + $0x3f0] sm:$0xff]
        %v5676 = vld [vmem:[#allocation7 + $0x3f8] sm:$0xff]
        %v5677 = vld [vmem:[#allocation7 + $0x400] sm:$0xff]
        %v5678 = vld [vmem:[#allocation7 + $0x408] sm:$0xf]
        %v5679 = vld [vmem:[#allocation7 + $0x40c] sm:$0xff]
        %v5680 = vld [vmem:[#allocation7 + $0x414] sm:$0xff]
        %v5681 = vld [vmem:[#allocation7 + $0x41c] sm:$0xff]
        %v5682 = vld [vmem:[#allocation7 + $0x424] sm:$0xf]
        %v5683 = vld [vmem:[#allocation7 + $0x428] sm:$0xff]
        %v5684 = vld [vmem:[#allocation7 + $0x430] sm:$0xff]
        %v5685 = vld [vmem:[#allocation7 + $0x438] sm:$0xff]
        %v5686 = vld [vmem:[#allocation7 + $0x440] sm:$0xf]
        %v5687 = vld [vmem:[#allocation7 + $0x444] sm:$0xff]
        %v5688 = vld [vmem:[#allocation7 + $0x44c] sm:$0xff]
        %v5689 = vld [vmem:[#allocation7 + $0x454] sm:$0xff]
        %v5690 = vld [vmem:[#allocation7 + $0x45c] sm:$0xf]
        %v5691 = vld [vmem:[#allocation7 + $0x460] sm:$0xff]
        %v5692 = vld [vmem:[#allocation7 + $0x468] sm:$0xff]
        %v5693 = vld [vmem:[#allocation7 + $0x470] sm:$0xff]
        %v5694 = vld [vmem:[#allocation7 + $0x478] sm:$0xf]
        %v5695 = vld [vmem:[#allocation7 + $0x47c] sm:$0xff]
        %v5696 = vld [vmem:[#allocation7 + $0x484] sm:$0xff]
        %v5697 = vld [vmem:[#allocation7 + $0x48c] sm:$0xff]
        %v5698 = vld [vmem:[#allocation7 + $0x494] sm:$0xf]
        %v5699 = vld [vmem:[#allocation7 + $0x498] sm:$0xff]
        %v5700 = vld [vmem:[#allocation7 + $0x4a0] sm:$0xff]
        %v5701 = vld [vmem:[#allocation7 + $0x4a8] sm:$0xff]
        %v5702 = vld [vmem:[#allocation7 + $0x4b0] sm:$0xf]
        %v5703 = vld [vmem:[#allocation7 + $0x4b4] sm:$0xff]
        %v5704 = vld [vmem:[#allocation7 + $0x4bc] sm:$0xff]
        %v5705 = vld [vmem:[#allocation7 + $0x4c4] sm:$0xff]
        %v5706 = vld [vmem:[#allocation7 + $0x4cc] sm:$0xf]
        %v5707 = vld [vmem:[#allocation7 + $0x4d0] sm:$0xff]
        %v5708 = vld [vmem:[#allocation7 + $0x4d8] sm:$0xff]
        %v5709 = vld [vmem:[#allocation7 + $0x4e0] sm:$0xff]
        %v5710 = vld [vmem:[#allocation7 + $0x4e8] sm:$0xf]
        %v5711 = vld [vmem:[#allocation7 + $0x4ec] sm:$0xff]
        %v5712 = vld [vmem:[#allocation7 + $0x4f4] sm:$0xff]
        %v5713 = vld [vmem:[#allocation7 + $0x4fc] sm:$0xff]
        %v5714 = vld [vmem:[#allocation7 + $0x504] sm:$0xf]
        %v5715 = vld [vmem:[#allocation7 + $0x508] sm:$0xff]
        %v5716 = vld [vmem:[#allocation7 + $0x510] sm:$0xff]
        %v5717 = vld [vmem:[#allocation7 + $0x518] sm:$0xff]
        %v5718 = vld [vmem:[#allocation7 + $0x520] sm:$0xf]
        %v5719 = vld [vmem:[#allocation7 + $0x524] sm:$0xff]
        %v5720 = vld [vmem:[#allocation7 + $0x52c] sm:$0xff]
        %v5721 = vld [vmem:[#allocation7 + $0x534] sm:$0xff]
        %v5722 = vld [vmem:[#allocation7 + $0x53c] sm:$0xf]
        %v5723 = vld [vmem:[#allocation7 + $0x540] sm:$0xff]
        %v5724 = vld [vmem:[#allocation7 + $0x548] sm:$0xff]
        %v5725 = vld [vmem:[#allocation7 + $0x550] sm:$0xff]
        %v5726 = vld [vmem:[#allocation7 + $0x558] sm:$0xf]
        %v5727 = vld [vmem:[#allocation7 + $0x55c] sm:$0xff]
        %v5728 = vld [vmem:[#allocation7 + $0x564] sm:$0xff]
        %v5729 = vld [vmem:[#allocation7 + $0x56c] sm:$0xff]
        %v5730 = vld [vmem:[#allocation7 + $0x574] sm:$0xf]
        %v5731 = vld [vmem:[#allocation7 + $0x578] sm:$0xff]
        %v5732 = vld [vmem:[#allocation7 + $0x580] sm:$0xff]
        %v5733 = vld [vmem:[#allocation7 + $0x588] sm:$0xff]
        %v5734 = vld [vmem:[#allocation7 + $0x590] sm:$0xf]
        %v5735 = vld [vmem:[#allocation7 + $0x594] sm:$0xff]
        %v5736 = vld [vmem:[#allocation7 + $0x59c] sm:$0xff]
        %v5737 = vld [vmem:[#allocation7 + $0x5a4] sm:$0xff]
        %v5738 = vld [vmem:[#allocation7 + $0x5ac] sm:$0xf]
        %v5739 = vld [vmem:[#allocation7 + $0x5b0] sm:$0xff]
        %v5740 = vld [vmem:[#allocation7 + $0x5b8] sm:$0xff]
        %v5741 = vld [vmem:[#allocation7 + $0x5c0] sm:$0xff]
        %v5742 = vld [vmem:[#allocation7 + $0x5c8] sm:$0xf]
        %v5743 = vld [vmem:[#allocation7 + $0x5cc] sm:$0xff]
        %v5744 = vld [vmem:[#allocation7 + $0x5d4] sm:$0xff]
        %v5745 = vld [vmem:[#allocation7 + $0x5dc] sm:$0xff]
        %v5746 = vld [vmem:[#allocation7 + $0x5e4] sm:$0xf]
        %v5747 = vld [vmem:[#allocation7 + $0x5e8] sm:$0xff]
        %v5748 = vld [vmem:[#allocation7 + $0x5f0] sm:$0xff]
        %v5749 = vld [vmem:[#allocation7 + $0x5f8] sm:$0xff]
        %v5750 = vld [vmem:[#allocation7 + $0x600] sm:$0xf]
        %v5751 = vld [vmem:[#allocation7 + $0x604] sm:$0xff]
        %v5752 = vld [vmem:[#allocation7 + $0x60c] sm:$0xff]
        %v5753 = vld [vmem:[#allocation7 + $0x614] sm:$0xff]
        %v5754 = vld [vmem:[#allocation7 + $0x61c] sm:$0xf]
        %v5755 = vld [vmem:[#allocation7 + $0x620] sm:$0xff]
        %v5756 = vld [vmem:[#allocation7 + $0x628] sm:$0xff]
        %v5757 = vld [vmem:[#allocation7 + $0x630] sm:$0xff]
        %v5758 = vld [vmem:[#allocation7 + $0x638] sm:$0xf]
        %v5759 = vld [vmem:[#allocation7 + $0x63c] sm:$0xff]
        %v5760 = vld [vmem:[#allocation7 + $0x644] sm:$0xff]
        %v5761 = vld [vmem:[#allocation7 + $0x64c] sm:$0xff]
        %v5762 = vld [vmem:[#allocation7 + $0x654] sm:$0xf]
        %v5763 = vld [vmem:[#allocation7 + $0x658] sm:$0xff]
        %v5764 = vld [vmem:[#allocation7 + $0x660] sm:$0xff]
        %v5765 = vld [vmem:[#allocation7 + $0x668] sm:$0xff]
        %v5766 = vld [vmem:[#allocation7 + $0x670] sm:$0xf]
        %v5767 = vld [vmem:[#allocation7 + $0x674] sm:$0xff]
        %v5768 = vld [vmem:[#allocation7 + $0x67c] sm:$0xff]
        %v5769 = vld [vmem:[#allocation7 + $0x684] sm:$0xff]
        %v5770 = vld [vmem:[#allocation7 + $0x68c] sm:$0xf]
        %v5771 = vld [vmem:[#allocation7 + $0x690] sm:$0xff]
        %v5772 = vld [vmem:[#allocation7 + $0x698] sm:$0xff]
        %v5773 = vld [vmem:[#allocation7 + $0x6a0] sm:$0xff]
        %v5774 = vld [vmem:[#allocation7 + $0x6a8] sm:$0xf]
        %v5775 = vld [vmem:[#allocation7 + $0x6ac] sm:$0xff]
        %v5776 = vld [vmem:[#allocation7 + $0x6b4] sm:$0xff]
        %v5777 = vld [vmem:[#allocation7 + $0x6bc] sm:$0xff]
        %v5778 = vld [vmem:[#allocation7 + $0x6c4] sm:$0xf]
        %v5779 = vld [vmem:[#allocation7 + $0x6c8] sm:$0xff]
        %v5780 = vld [vmem:[#allocation7 + $0x6d0] sm:$0xff]
        %v5781 = vld [vmem:[#allocation7 + $0x6d8] sm:$0xff]
        %v5782 = vld [vmem:[#allocation7 + $0x6e0] sm:$0xf]
        %v5783 = vld [vmem:[#allocation7 + $0x6e4] sm:$0xff]
        %v5784 = vld [vmem:[#allocation7 + $0x6ec] sm:$0xff]
        %v5785 = vld [vmem:[#allocation7 + $0x6f4] sm:$0xff]
        %v5786 = vld [vmem:[#allocation7 + $0x6fc] sm:$0xf]
        %v5787 = vld [vmem:[#allocation7 + $0x700] sm:$0xff]
        %v5788 = vld [vmem:[#allocation7 + $0x708] sm:$0xff]
        %v5789 = vld [vmem:[#allocation7 + $0x710] sm:$0xff]
        %v5790 = vld [vmem:[#allocation7 + $0x718] sm:$0xf]
        %v5791 = vld [vmem:[#allocation7 + $0x71c] sm:$0xff]
        %v5792 = vld [vmem:[#allocation7 + $0x724] sm:$0xff]
        %v5793 = vld [vmem:[#allocation7 + $0x72c] sm:$0xff]
        %v5794 = vld [vmem:[#allocation7 + $0x734] sm:$0xf]
        %v5795 = vld [vmem:[#allocation7 + $0x738] sm:$0xff]
        %v5796 = vld [vmem:[#allocation7 + $0x740] sm:$0xff]
        %v5797 = vld [vmem:[#allocation7 + $0x748] sm:$0xff]
        %v5798 = vld [vmem:[#allocation7 + $0x750] sm:$0xf]
        %v5799 = vld [vmem:[#allocation7 + $0x754] sm:$0xff]
        %v5800 = vld [vmem:[#allocation7 + $0x75c] sm:$0xff]
        %v5801 = vld [vmem:[#allocation7 + $0x764] sm:$0xff]
        %v5802 = vld [vmem:[#allocation7 + $0x76c] sm:$0xf]
        %v5803 = vld [vmem:[#allocation7 + $0x770] sm:$0xff]
        %v5804 = vld [vmem:[#allocation7 + $0x778] sm:$0xff]
        %v5805 = vld [vmem:[#allocation7 + $0x780] sm:$0xff]
        %v5806 = vld [vmem:[#allocation7 + $0x788] sm:$0xf]
        %v5807 = vld [vmem:[#allocation7 + $0x78c] sm:$0xff]
        %v5808 = vld [vmem:[#allocation7 + $0x794] sm:$0xff]
        %v5809 = vld [vmem:[#allocation7 + $0x79c] sm:$0xff]
        %v5810 = vld [vmem:[#allocation7 + $0x7a4] sm:$0xf]
        %v5811 = vld [vmem:[#allocation7 + $0x7a8] sm:$0xff]
        %v5812 = vld [vmem:[#allocation7 + $0x7b0] sm:$0xff]
        %v5813 = vld [vmem:[#allocation7 + $0x7b8] sm:$0xff]
        %v5814 = vld [vmem:[#allocation7 + $0x7c0] sm:$0xf]
        %v5815 = vld [vmem:[#allocation7 + $0x7c4] sm:$0xff]
        %v5816 = vld [vmem:[#allocation7 + $0x7cc] sm:$0xff]
        %v5817 = vld [vmem:[#allocation7 + $0x7d4] sm:$0xff]
        %v5818 = vld [vmem:[#allocation7 + $0x7dc] sm:$0xf]
        %v5819 = vld [vmem:[#allocation7 + $0x7e0] sm:$0xff]
        %v5820 = vld [vmem:[#allocation7 + $0x7e8] sm:$0xff]
        %v5821 = vld [vmem:[#allocation7 + $0x7f0] sm:$0xff]
        %v5822 = vld [vmem:[#allocation7 + $0x7f8] sm:$0xf]
        %v5823 = vld [vmem:[#allocation7 + $0x7fc] sm:$0xff]
        %v5824 = vld [vmem:[#allocation7 + $0x804] sm:$0xff]
        %v5825 = vld [vmem:[#allocation7 + $0x80c] sm:$0xff]
        %v5826 = vld [vmem:[#allocation7 + $0x814] sm:$0xf]
        %v5827 = vld [vmem:[#allocation7 + $0x818] sm:$0xff]
        %v5828 = vld [vmem:[#allocation7 + $0x820] sm:$0xff]
        %v5829 = vld [vmem:[#allocation7 + $0x828] sm:$0xff]
        %v5830 = vld [vmem:[#allocation7 + $0x830] sm:$0xf]
        %v5831 = vld [vmem:[#allocation7 + $0x834] sm:$0xff]
        %v5832 = vld [vmem:[#allocation7 + $0x83c] sm:$0xff]
        %v5833 = vld [vmem:[#allocation7 + $0x844] sm:$0xff]
        %v5834 = vld [vmem:[#allocation7 + $0x84c] sm:$0xf]
        %v5835 = vld [vmem:[#allocation7 + $0x850] sm:$0xff]
        %v5836 = vld [vmem:[#allocation7 + $0x858] sm:$0xff]
        %v5837 = vld [vmem:[#allocation7 + $0x860] sm:$0xff]
        %v5838 = vld [vmem:[#allocation7 + $0x868] sm:$0xf]
        %v5839 = vld [vmem:[#allocation7 + $0x86c] sm:$0xff]
        %v5840 = vld [vmem:[#allocation7 + $0x874] sm:$0xff]
        %v5841 = vld [vmem:[#allocation7 + $0x87c] sm:$0xff]
        %v5842 = vld [vmem:[#allocation7 + $0x884] sm:$0xf]
        %v5843 = vld [vmem:[#allocation7 + $0x888] sm:$0xff]
        %v5844 = vld [vmem:[#allocation7 + $0x890] sm:$0xff]
        %v5845 = vld [vmem:[#allocation7 + $0x898] sm:$0xff]
        %v5846 = vld [vmem:[#allocation7 + $0x8a0] sm:$0xf]
        %v5847 = vld [vmem:[#allocation7 + $0x8a4] sm:$0xff]
        %v5848 = vld [vmem:[#allocation7 + $0x8ac] sm:$0xff]
        %v5849 = vld [vmem:[#allocation7 + $0x8b4] sm:$0xff]
        %v5850 = vld [vmem:[#allocation7 + $0x8bc] sm:$0xf]
        %v5851 = vld [vmem:[#allocation7 + $0x8c0] sm:$0xff]
        %v5852 = vld [vmem:[#allocation7 + $0x8c8] sm:$0xff]
        %v5853 = vld [vmem:[#allocation7 + $0x8d0] sm:$0xff]
        %v5854 = vld [vmem:[#allocation7 + $0x8d8] sm:$0xf]
        %v5855 = vld [vmem:[#allocation7 + $0x8dc] sm:$0xff]
        %v5856 = vld [vmem:[#allocation7 + $0x8e4] sm:$0xff]
        %v5857 = vld [vmem:[#allocation7 + $0x8ec] sm:$0xff]
        %v5858 = vld [vmem:[#allocation7 + $0x8f4] sm:$0xf]
        %v5859 = vld [vmem:[#allocation7 + $0x8f8] sm:$0xff]
        %v5860 = vld [vmem:[#allocation7 + $0x900] sm:$0xff]
        %v5861 = vld [vmem:[#allocation7 + $0x908] sm:$0xff]
        %v5862 = vld [vmem:[#allocation7 + $0x910] sm:$0xf]
        %v5863 = vld [vmem:[#allocation7 + $0x914] sm:$0xff]
        %v5864 = vld [vmem:[#allocation7 + $0x91c] sm:$0xff]
        %v5865 = vld [vmem:[#allocation7 + $0x924] sm:$0xff]
        %v5866 = vld [vmem:[#allocation7 + $0x92c] sm:$0xf]
        %v5867 = vld [vmem:[#allocation7 + $0x930] sm:$0xff]
        %v5868 = vld [vmem:[#allocation7 + $0x938] sm:$0xff]
        %v5869 = vld [vmem:[#allocation7 + $0x940] sm:$0xff]
        %v5870 = vld [vmem:[#allocation7 + $0x948] sm:$0xf]
        %v5871 = vld [vmem:[#allocation7 + $0x94c] sm:$0xff]
        %v5872 = vld [vmem:[#allocation7 + $0x954] sm:$0xff]
        %v5873 = vld [vmem:[#allocation7 + $0x95c] sm:$0xff]
        %v5874 = vld [vmem:[#allocation7 + $0x964] sm:$0xf]
        %v5875 = vld [vmem:[#allocation7 + $0x968] sm:$0xff]
        %v5876 = vld [vmem:[#allocation7 + $0x970] sm:$0xff]
        %v5877 = vld [vmem:[#allocation7 + $0x978] sm:$0xff]
        %v5878 = vld [vmem:[#allocation7 + $0x980] sm:$0xf]
        %v5879 = vld [vmem:[#allocation7 + $0x984] sm:$0xff]
        %v5880 = vld [vmem:[#allocation7 + $0x98c] sm:$0xff]
        %v5881 = vld [vmem:[#allocation7 + $0x994] sm:$0xff]
        %v5882 = vld [vmem:[#allocation7 + $0x99c] sm:$0xf]
        %v5883 = vld [vmem:[#allocation7 + $0x9a0] sm:$0xff]
        %v5884 = vld [vmem:[#allocation7 + $0x9a8] sm:$0xff]
        %v5885 = vld [vmem:[#allocation7 + $0x9b0] sm:$0xff]
        %v5886 = vld [vmem:[#allocation7 + $0x9b8] sm:$0xf]
        %v5887 = vld [vmem:[#allocation7 + $0x9bc] sm:$0xff]
        %v5888 = vld [vmem:[#allocation7 + $0x9c4] sm:$0xff]
        %v5889 = vld [vmem:[#allocation7 + $0x9cc] sm:$0xff]
        %v5890 = vld [vmem:[#allocation7 + $0x9d4] sm:$0xf]
        %v5891 = vld [vmem:[#allocation7 + $0x9d8] sm:$0xff]
        %v5892 = vld [vmem:[#allocation7 + $0x9e0] sm:$0xff]
        %v5893 = vld [vmem:[#allocation7 + $0x9e8] sm:$0xff]
        %v5894 = vld [vmem:[#allocation7 + $0x9f0] sm:$0xf]
        %v5895 = vld [vmem:[#allocation7 + $0x9f4] sm:$0xff]
        %v5896 = vld [vmem:[#allocation7 + $0x9fc] sm:$0xff]
        %v5897 = vld [vmem:[#allocation7 + $0xa04] sm:$0xff]
        %v5898 = vld [vmem:[#allocation7 + $0xa0c] sm:$0xf]
        %v5899 = vld [vmem:[#allocation7 + $0xa10] sm:$0xff]
        %v5900 = vld [vmem:[#allocation7 + $0xa18] sm:$0xff]
        %v5901 = vld [vmem:[#allocation7 + $0xa20] sm:$0xff]
        %v5902 = vld [vmem:[#allocation7 + $0xa28] sm:$0xf]
        %v5903 = vld [vmem:[#allocation7 + $0xa2c] sm:$0xff]
        %v5904 = vld [vmem:[#allocation7 + $0xa34] sm:$0xff]
        %v5905 = vld [vmem:[#allocation7 + $0xa3c] sm:$0xff]
        %v5906 = vld [vmem:[#allocation7 + $0xa44] sm:$0xf]
        %v5907 = vld [vmem:[#allocation7 + $0xa48] sm:$0xff]
        %v5908 = vld [vmem:[#allocation7 + $0xa50] sm:$0xff]
        %v5909 = vld [vmem:[#allocation7 + $0xa58] sm:$0xff]
        %v5910 = vld [vmem:[#allocation7 + $0xa60] sm:$0xf]
        %v5911 = vld [vmem:[#allocation7 + $0xa64] sm:$0xff]
        %v5912 = vld [vmem:[#allocation7 + $0xa6c] sm:$0xff]
        %v5913 = vld [vmem:[#allocation7 + $0xa74] sm:$0xff]
        %v5914 = vld [vmem:[#allocation7 + $0xa7c] sm:$0xf]
        %v5915 = vld [vmem:[#allocation7 + $0xa80] sm:$0xff]
        %v5916 = vld [vmem:[#allocation7 + $0xa88] sm:$0xff]
        %v5917 = vld [vmem:[#allocation7 + $0xa90] sm:$0xff]
        %v5918 = vld [vmem:[#allocation7 + $0xa98] sm:$0xf]
        %v5919 = vld [vmem:[#allocation7 + $0xa9c] sm:$0xff]
        %v5920 = vld [vmem:[#allocation7 + $0xaa4] sm:$0xff]
        %v5921 = vld [vmem:[#allocation7 + $0xaac] sm:$0xff]
        %v5922 = vld [vmem:[#allocation7 + $0xab4] sm:$0xf]
        %v5923 = vld [vmem:[#allocation7 + $0xab8] sm:$0xff]
        %v5924 = vld [vmem:[#allocation7 + $0xac0] sm:$0xff]
        %v5925 = vld [vmem:[#allocation7 + $0xac8] sm:$0xff]
        %v5926 = vld [vmem:[#allocation7 + $0xad0] sm:$0xf]
        %v5927 = vld [vmem:[#allocation7 + $0xad4] sm:$0xff]
        %v5928 = vld [vmem:[#allocation7 + $0xadc] sm:$0xff]
        %v5929 = vld [vmem:[#allocation7 + $0xae4] sm:$0xff]
        %v5930 = vld [vmem:[#allocation7 + $0xaec] sm:$0xf]
        %v5931 = vld [vmem:[%s10] sm:$0x7f]
        %v5933 = vperm.slane %v5931, 0
        %v5934 = vperm.slane %v5931, 1
        %v5935 = vperm.slane %v5931, 2
        %v5936 = vperm.slane %v5931, 3
        %v5937 = vperm.slane %v5931, 4
        %v5938 = vperm.slane %v5931, 5
        %v5939 = vperm.slane %v5931, 6
        %v6347 = vunpack.c.l.b16 %v5531
        %v6348 = vunpack.c.h.b16 %v5531
        %v6349 = vunpack.c.l.b16 %v5532
        %v6350 = vunpack.c.h.b16 %v5532
        %v6351 = vunpack.c.l.b16 %v5533
        %v6352 = vunpack.c.h.b16 %v5533
        %v6353 = vunpack.c.l.b16 %v5534
        %v6354 = vunpack.c.l.b16 %v5535
        %v6355 = vunpack.c.h.b16 %v5535
        %v6356 = vunpack.c.l.b16 %v5536
        %v6357 = vunpack.c.h.b16 %v5536
        %v6358 = vunpack.c.l.b16 %v5537
        %v6359 = vunpack.c.h.b16 %v5537
        %v6360 = vunpack.c.l.b16 %v5538
        %v6361 = vunpack.c.l.b16 %v5539
        %v6362 = vunpack.c.h.b16 %v5539
        %v6363 = vunpack.c.l.b16 %v5540
        %v6364 = vunpack.c.h.b16 %v5540
        %v6365 = vunpack.c.l.b16 %v5541
        %v6366 = vunpack.c.h.b16 %v5541
        %v6367 = vunpack.c.l.b16 %v5542
        %v6368 = vunpack.c.l.b16 %v5543
        %v6369 = vunpack.c.h.b16 %v5543
        %v6370 = vunpack.c.l.b16 %v5544
        %v6371 = vunpack.c.h.b16 %v5544
        %v6372 = vunpack.c.l.b16 %v5545
        %v6373 = vunpack.c.h.b16 %v5545
        %v6374 = vunpack.c.l.b16 %v5546
        %v6375 = vunpack.c.l.b16 %v5547
        %v6376 = vunpack.c.h.b16 %v5547
        %v6377 = vunpack.c.l.b16 %v5548
        %v6378 = vunpack.c.h.b16 %v5548
        %v6379 = vunpack.c.l.b16 %v5549
        %v6380 = vunpack.c.h.b16 %v5549
        %v6381 = vunpack.c.l.b16 %v5550
        %v6382 = vunpack.c.l.b16 %v5551
        %v6383 = vunpack.c.h.b16 %v5551
        %v6384 = vunpack.c.l.b16 %v5552
        %v6385 = vunpack.c.h.b16 %v5552
        %v6386 = vunpack.c.l.b16 %v5553
        %v6387 = vunpack.c.h.b16 %v5553
        %v6388 = vunpack.c.l.b16 %v5554
        %v6389 = vunpack.c.l.b16 %v5555
        %v6390 = vunpack.c.h.b16 %v5555
        %v6391 = vunpack.c.l.b16 %v5556
        %v6392 = vunpack.c.h.b16 %v5556
        %v6393 = vunpack.c.l.b16 %v5557
        %v6394 = vunpack.c.h.b16 %v5557
        %v6395 = vunpack.c.l.b16 %v5558
        %v6396 = vunpack.c.l.b16 %v5559
        %v6397 = vunpack.c.h.b16 %v5559
        %v6398 = vunpack.c.l.b16 %v5560
        %v6399 = vunpack.c.h.b16 %v5560
        %v6400 = vunpack.c.l.b16 %v5561
        %v6401 = vunpack.c.h.b16 %v5561
        %v6402 = vunpack.c.l.b16 %v5562
        %v6403 = vunpack.c.l.b16 %v5563
        %v6404 = vunpack.c.h.b16 %v5563
        %v6405 = vunpack.c.l.b16 %v5564
        %v6406 = vunpack.c.h.b16 %v5564
        %v6407 = vunpack.c.l.b16 %v5565
        %v6408 = vunpack.c.h.b16 %v5565
        %v6409 = vunpack.c.l.b16 %v5566
        %v6410 = vunpack.c.l.b16 %v5567
        %v6411 = vunpack.c.h.b16 %v5567
        %v6412 = vunpack.c.l.b16 %v5568
        %v6413 = vunpack.c.h.b16 %v5568
        %v6414 = vunpack.c.l.b16 %v5569
        %v6415 = vunpack.c.h.b16 %v5569
        %v6416 = vunpack.c.l.b16 %v5570
        %v6417 = vunpack.c.l.b16 %v5571
        %v6418 = vunpack.c.h.b16 %v5571
        %v6419 = vunpack.c.l.b16 %v5572
        %v6420 = vunpack.c.h.b16 %v5572
        %v6421 = vunpack.c.l.b16 %v5573
        %v6422 = vunpack.c.h.b16 %v5573
        %v6423 = vunpack.c.l.b16 %v5574
        %v6424 = vunpack.c.l.b16 %v5575
        %v6425 = vunpack.c.h.b16 %v5575
        %v6426 = vunpack.c.l.b16 %v5576
        %v6427 = vunpack.c.h.b16 %v5576
        %v6428 = vunpack.c.l.b16 %v5577
        %v6429 = vunpack.c.h.b16 %v5577
        %v6430 = vunpack.c.l.b16 %v5578
        %v6431 = vunpack.c.l.b16 %v5579
        %v6432 = vunpack.c.h.b16 %v5579
        %v6433 = vunpack.c.l.b16 %v5580
        %v6434 = vunpack.c.h.b16 %v5580
        %v6435 = vunpack.c.l.b16 %v5581
        %v6436 = vunpack.c.h.b16 %v5581
        %v6437 = vunpack.c.l.b16 %v5582
        %v6438 = vunpack.c.l.b16 %v5583
        %v6439 = vunpack.c.h.b16 %v5583
        %v6440 = vunpack.c.l.b16 %v5584
        %v6441 = vunpack.c.h.b16 %v5584
        %v6442 = vunpack.c.l.b16 %v5585
        %v6443 = vunpack.c.h.b16 %v5585
        %v6444 = vunpack.c.l.b16 %v5586
        %v6445 = vunpack.c.l.b16 %v5587
        %v6446 = vunpack.c.h.b16 %v5587
        %v6447 = vunpack.c.l.b16 %v5588
        %v6448 = vunpack.c.h.b16 %v5588
        %v6449 = vunpack.c.l.b16 %v5589
        %v6450 = vunpack.c.h.b16 %v5589
        %v6451 = vunpack.c.l.b16 %v5590
        %v6452 = vunpack.c.l.b16 %v5591
        %v6453 = vunpack.c.h.b16 %v5591
        %v6454 = vunpack.c.l.b16 %v5592
        %v6455 = vunpack.c.h.b16 %v5592
        %v6456 = vunpack.c.l.b16 %v5593
        %v6457 = vunpack.c.h.b16 %v5593
        %v6458 = vunpack.c.l.b16 %v5594
        %v6459 = vunpack.c.l.b16 %v5595
        %v6460 = vunpack.c.h.b16 %v5595
        %v6461 = vunpack.c.l.b16 %v5596
        %v6462 = vunpack.c.h.b16 %v5596
        %v6463 = vunpack.c.l.b16 %v5597
        %v6464 = vunpack.c.h.b16 %v5597
        %v6465 = vunpack.c.l.b16 %v5598
        %v6466 = vunpack.c.l.b16 %v5599
        %v6467 = vunpack.c.h.b16 %v5599
        %v6468 = vunpack.c.l.b16 %v5600
        %v6469 = vunpack.c.h.b16 %v5600
        %v6470 = vunpack.c.l.b16 %v5601
        %v6471 = vunpack.c.h.b16 %v5601
        %v6472 = vunpack.c.l.b16 %v5602
        %v6473 = vunpack.c.l.b16 %v5603
        %v6474 = vunpack.c.h.b16 %v5603
        %v6475 = vunpack.c.l.b16 %v5604
        %v6476 = vunpack.c.h.b16 %v5604
        %v6477 = vunpack.c.l.b16 %v5605
        %v6478 = vunpack.c.h.b16 %v5605
        %v6479 = vunpack.c.l.b16 %v5606
        %v6480 = vunpack.c.l.b16 %v5607
        %v6481 = vunpack.c.h.b16 %v5607
        %v6482 = vunpack.c.l.b16 %v5608
        %v6483 = vunpack.c.h.b16 %v5608
        %v6484 = vunpack.c.l.b16 %v5609
        %v6485 = vunpack.c.h.b16 %v5609
        %v6486 = vunpack.c.l.b16 %v5610
        %v6487 = vunpack.c.l.b16 %v5611
        %v6488 = vunpack.c.h.b16 %v5611
        %v6489 = vunpack.c.l.b16 %v5612
        %v6490 = vunpack.c.h.b16 %v5612
        %v6491 = vunpack.c.l.b16 %v5613
        %v6492 = vunpack.c.h.b16 %v5613
        %v6493 = vunpack.c.l.b16 %v5614
        %v6494 = vunpack.c.l.b16 %v5615
        %v6495 = vunpack.c.h.b16 %v5615
        %v6496 = vunpack.c.l.b16 %v5616
        %v6497 = vunpack.c.h.b16 %v5616
        %v6498 = vunpack.c.l.b16 %v5617
        %v6499 = vunpack.c.h.b16 %v5617
        %v6500 = vunpack.c.l.b16 %v5618
        %v6501 = vunpack.c.l.b16 %v5619
        %v6502 = vunpack.c.h.b16 %v5619
        %v6503 = vunpack.c.l.b16 %v5620
        %v6504 = vunpack.c.h.b16 %v5620
        %v6505 = vunpack.c.l.b16 %v5621
        %v6506 = vunpack.c.h.b16 %v5621
        %v6507 = vunpack.c.l.b16 %v5622
        %v6508 = vunpack.c.l.b16 %v5623
        %v6509 = vunpack.c.h.b16 %v5623
        %v6510 = vunpack.c.l.b16 %v5624
        %v6511 = vunpack.c.h.b16 %v5624
        %v6512 = vunpack.c.l.b16 %v5625
        %v6513 = vunpack.c.h.b16 %v5625
        %v6514 = vunpack.c.l.b16 %v5626
        %v6515 = vunpack.c.l.b16 %v5627
        %v6516 = vunpack.c.h.b16 %v5627
        %v6517 = vunpack.c.l.b16 %v5628
        %v6518 = vunpack.c.h.b16 %v5628
        %v6519 = vunpack.c.l.b16 %v5629
        %v6520 = vunpack.c.h.b16 %v5629
        %v6521 = vunpack.c.l.b16 %v5630
        %v6522 = vunpack.c.l.b16 %v5631
        %v6523 = vunpack.c.h.b16 %v5631
        %v6524 = vunpack.c.l.b16 %v5632
        %v6525 = vunpack.c.h.b16 %v5632
        %v6526 = vunpack.c.l.b16 %v5633
        %v6527 = vunpack.c.h.b16 %v5633
        %v6528 = vunpack.c.l.b16 %v5634
        %v6529 = vunpack.c.l.b16 %v5635
        %v6530 = vunpack.c.h.b16 %v5635
        %v6531 = vunpack.c.l.b16 %v5636
        %v6532 = vunpack.c.h.b16 %v5636
        %v6533 = vunpack.c.l.b16 %v5637
        %v6534 = vunpack.c.h.b16 %v5637
        %v6535 = vunpack.c.l.b16 %v5638
        %v6536 = vunpack.c.l.b16 %v5639
        %v6537 = vunpack.c.h.b16 %v5639
        %v6538 = vunpack.c.l.b16 %v5640
        %v6539 = vunpack.c.h.b16 %v5640
        %v6540 = vunpack.c.l.b16 %v5641
        %v6541 = vunpack.c.h.b16 %v5641
        %v6542 = vunpack.c.l.b16 %v5642
        %v6543 = vunpack.c.l.b16 %v5643
        %v6544 = vunpack.c.h.b16 %v5643
        %v6545 = vunpack.c.l.b16 %v5644
        %v6546 = vunpack.c.h.b16 %v5644
        %v6547 = vunpack.c.l.b16 %v5645
        %v6548 = vunpack.c.h.b16 %v5645
        %v6549 = vunpack.c.l.b16 %v5646
        %v6550 = vunpack.c.l.b16 %v5647
        %v6551 = vunpack.c.h.b16 %v5647
        %v6552 = vunpack.c.l.b16 %v5648
        %v6553 = vunpack.c.h.b16 %v5648
        %v6554 = vunpack.c.l.b16 %v5649
        %v6555 = vunpack.c.h.b16 %v5649
        %v6556 = vunpack.c.l.b16 %v5650
        %v6557 = vunpack.c.l.b16 %v5651
        %v6558 = vunpack.c.h.b16 %v5651
        %v6559 = vunpack.c.l.b16 %v5652
        %v6560 = vunpack.c.h.b16 %v5652
        %v6561 = vunpack.c.l.b16 %v5653
        %v6562 = vunpack.c.h.b16 %v5653
        %v6563 = vunpack.c.l.b16 %v5654
        %v6564 = vunpack.c.l.b16 %v5655
        %v6565 = vunpack.c.h.b16 %v5655
        %v6566 = vunpack.c.l.b16 %v5656
        %v6567 = vunpack.c.h.b16 %v5656
        %v6568 = vunpack.c.l.b16 %v5657
        %v6569 = vunpack.c.h.b16 %v5657
        %v6570 = vunpack.c.l.b16 %v5658
        %v6571 = vunpack.c.l.b16 %v5659
        %v6572 = vunpack.c.h.b16 %v5659
        %v6573 = vunpack.c.l.b16 %v5660
        %v6574 = vunpack.c.h.b16 %v5660
        %v6575 = vunpack.c.l.b16 %v5661
        %v6576 = vunpack.c.h.b16 %v5661
        %v6577 = vunpack.c.l.b16 %v5662
        %v6578 = vunpack.c.l.b16 %v5663
        %v6579 = vunpack.c.h.b16 %v5663
        %v6580 = vunpack.c.l.b16 %v5664
        %v6581 = vunpack.c.h.b16 %v5664
        %v6582 = vunpack.c.l.b16 %v5665
        %v6583 = vunpack.c.h.b16 %v5665
        %v6584 = vunpack.c.l.b16 %v5666
        %v6585 = vunpack.c.l.b16 %v5667
        %v6586 = vunpack.c.h.b16 %v5667
        %v6587 = vunpack.c.l.b16 %v5668
        %v6588 = vunpack.c.h.b16 %v5668
        %v6589 = vunpack.c.l.b16 %v5669
        %v6590 = vunpack.c.h.b16 %v5669
        %v6591 = vunpack.c.l.b16 %v5670
        %v6592 = vunpack.c.l.b16 %v5671
        %v6593 = vunpack.c.h.b16 %v5671
        %v6594 = vunpack.c.l.b16 %v5672
        %v6595 = vunpack.c.h.b16 %v5672
        %v6596 = vunpack.c.l.b16 %v5673
        %v6597 = vunpack.c.h.b16 %v5673
        %v6598 = vunpack.c.l.b16 %v5674
        %v6599 = vunpack.c.l.b16 %v5675
        %v6600 = vunpack.c.h.b16 %v5675
        %v6601 = vunpack.c.l.b16 %v5676
        %v6602 = vunpack.c.h.b16 %v5676
        %v6603 = vunpack.c.l.b16 %v5677
        %v6604 = vunpack.c.h.b16 %v5677
        %v6605 = vunpack.c.l.b16 %v5678
        %v6606 = vunpack.c.l.b16 %v5679
        %v6607 = vunpack.c.h.b16 %v5679
        %v6608 = vunpack.c.l.b16 %v5680
        %v6609 = vunpack.c.h.b16 %v5680
        %v6610 = vunpack.c.l.b16 %v5681
        %v6611 = vunpack.c.h.b16 %v5681
        %v6612 = vunpack.c.l.b16 %v5682
        %v6613 = vunpack.c.l.b16 %v5683
        %v6614 = vunpack.c.h.b16 %v5683
        %v6615 = vunpack.c.l.b16 %v5684
        %v6616 = vunpack.c.h.b16 %v5684
        %v6617 = vunpack.c.l.b16 %v5685
        %v6618 = vunpack.c.h.b16 %v5685
        %v6619 = vunpack.c.l.b16 %v5686
        %v6620 = vunpack.c.l.b16 %v5687
        %v6621 = vunpack.c.h.b16 %v5687
        %v6622 = vunpack.c.l.b16 %v5688
        %v6623 = vunpack.c.h.b16 %v5688
        %v6624 = vunpack.c.l.b16 %v5689
        %v6625 = vunpack.c.h.b16 %v5689
        %v6626 = vunpack.c.l.b16 %v5690
        %v6627 = vunpack.c.l.b16 %v5691
        %v6628 = vunpack.c.h.b16 %v5691
        %v6629 = vunpack.c.l.b16 %v5692
        %v6630 = vunpack.c.h.b16 %v5692
        %v6631 = vunpack.c.l.b16 %v5693
        %v6632 = vunpack.c.h.b16 %v5693
        %v6633 = vunpack.c.l.b16 %v5694
        %v6634 = vunpack.c.l.b16 %v5695
        %v6635 = vunpack.c.h.b16 %v5695
        %v6636 = vunpack.c.l.b16 %v5696
        %v6637 = vunpack.c.h.b16 %v5696
        %v6638 = vunpack.c.l.b16 %v5697
        %v6639 = vunpack.c.h.b16 %v5697
        %v6640 = vunpack.c.l.b16 %v5698
        %v6641 = vunpack.c.l.b16 %v5699
        %v6642 = vunpack.c.h.b16 %v5699
        %v6643 = vunpack.c.l.b16 %v5700
        %v6644 = vunpack.c.h.b16 %v5700
        %v6645 = vunpack.c.l.b16 %v5701
        %v6646 = vunpack.c.h.b16 %v5701
        %v6647 = vunpack.c.l.b16 %v5702
        %v6648 = vunpack.c.l.b16 %v5703
        %v6649 = vunpack.c.h.b16 %v5703
        %v6650 = vunpack.c.l.b16 %v5704
        %v6651 = vunpack.c.h.b16 %v5704
        %v6652 = vunpack.c.l.b16 %v5705
        %v6653 = vunpack.c.h.b16 %v5705
        %v6654 = vunpack.c.l.b16 %v5706
        %v6655 = vunpack.c.l.b16 %v5707
        %v6656 = vunpack.c.h.b16 %v5707
        %v6657 = vunpack.c.l.b16 %v5708
        %v6658 = vunpack.c.h.b16 %v5708
        %v6659 = vunpack.c.l.b16 %v5709
        %v6660 = vunpack.c.h.b16 %v5709
        %v6661 = vunpack.c.l.b16 %v5710
        %v6662 = vunpack.c.l.b16 %v5711
        %v6663 = vunpack.c.h.b16 %v5711
        %v6664 = vunpack.c.l.b16 %v5712
        %v6665 = vunpack.c.h.b16 %v5712
        %v6666 = vunpack.c.l.b16 %v5713
        %v6667 = vunpack.c.h.b16 %v5713
        %v6668 = vunpack.c.l.b16 %v5714
        %v6669 = vunpack.c.l.b16 %v5715
        %v6670 = vunpack.c.h.b16 %v5715
        %v6671 = vunpack.c.l.b16 %v5716
        %v6672 = vunpack.c.h.b16 %v5716
        %v6673 = vunpack.c.l.b16 %v5717
        %v6674 = vunpack.c.h.b16 %v5717
        %v6675 = vunpack.c.l.b16 %v5718
        %v6676 = vunpack.c.l.b16 %v5719
        %v6677 = vunpack.c.h.b16 %v5719
        %v6678 = vunpack.c.l.b16 %v5720
        %v6679 = vunpack.c.h.b16 %v5720
        %v6680 = vunpack.c.l.b16 %v5721
        %v6681 = vunpack.c.h.b16 %v5721
        %v6682 = vunpack.c.l.b16 %v5722
        %v6683 = vunpack.c.l.b16 %v5723
        %v6684 = vunpack.c.h.b16 %v5723
        %v6685 = vunpack.c.l.b16 %v5724
        %v6686 = vunpack.c.h.b16 %v5724
        %v6687 = vunpack.c.l.b16 %v5725
        %v6688 = vunpack.c.h.b16 %v5725
        %v6689 = vunpack.c.l.b16 %v5726
        %v6690 = vunpack.c.l.b16 %v5727
        %v6691 = vunpack.c.h.b16 %v5727
        %v6692 = vunpack.c.l.b16 %v5728
        %v6693 = vunpack.c.h.b16 %v5728
        %v6694 = vunpack.c.l.b16 %v5729
        %v6695 = vunpack.c.h.b16 %v5729
        %v6696 = vunpack.c.l.b16 %v5730
        %v6697 = vunpack.c.l.b16 %v5731
        %v6698 = vunpack.c.h.b16 %v5731
        %v6699 = vunpack.c.l.b16 %v5732
        %v6700 = vunpack.c.h.b16 %v5732
        %v6701 = vunpack.c.l.b16 %v5733
        %v6702 = vunpack.c.h.b16 %v5733
        %v6703 = vunpack.c.l.b16 %v5734
        %v6704 = vunpack.c.l.b16 %v5735
        %v6705 = vunpack.c.h.b16 %v5735
        %v6706 = vunpack.c.l.b16 %v5736
        %v6707 = vunpack.c.h.b16 %v5736
        %v6708 = vunpack.c.l.b16 %v5737
        %v6709 = vunpack.c.h.b16 %v5737
        %v6710 = vunpack.c.l.b16 %v5738
        %v6711 = vunpack.c.l.b16 %v5739
        %v6712 = vunpack.c.h.b16 %v5739
        %v6713 = vunpack.c.l.b16 %v5740
        %v6714 = vunpack.c.h.b16 %v5740
        %v6715 = vunpack.c.l.b16 %v5741
        %v6716 = vunpack.c.h.b16 %v5741
        %v6717 = vunpack.c.l.b16 %v5742
        %v6718 = vunpack.c.l.b16 %v5743
        %v6719 = vunpack.c.h.b16 %v5743
        %v6720 = vunpack.c.l.b16 %v5744
        %v6721 = vunpack.c.h.b16 %v5744
        %v6722 = vunpack.c.l.b16 %v5745
        %v6723 = vunpack.c.h.b16 %v5745
        %v6724 = vunpack.c.l.b16 %v5746
        %v6725 = vunpack.c.l.b16 %v5747
        %v6726 = vunpack.c.h.b16 %v5747
        %v6727 = vunpack.c.l.b16 %v5748
        %v6728 = vunpack.c.h.b16 %v5748
        %v6729 = vunpack.c.l.b16 %v5749
        %v6730 = vunpack.c.h.b16 %v5749
        %v6731 = vunpack.c.l.b16 %v5750
        %v6732 = vunpack.c.l.b16 %v5751
        %v6733 = vunpack.c.h.b16 %v5751
        %v6734 = vunpack.c.l.b16 %v5752
        %v6735 = vunpack.c.h.b16 %v5752
        %v6736 = vunpack.c.l.b16 %v5753
        %v6737 = vunpack.c.h.b16 %v5753
        %v6738 = vunpack.c.l.b16 %v5754
        %v6739 = vunpack.c.l.b16 %v5755
        %v6740 = vunpack.c.h.b16 %v5755
        %v6741 = vunpack.c.l.b16 %v5756
        %v6742 = vunpack.c.h.b16 %v5756
        %v6743 = vunpack.c.l.b16 %v5757
        %v6744 = vunpack.c.h.b16 %v5757
        %v6745 = vunpack.c.l.b16 %v5758
        %v6746 = vunpack.c.l.b16 %v5759
        %v6747 = vunpack.c.h.b16 %v5759
        %v6748 = vunpack.c.l.b16 %v5760
        %v6749 = vunpack.c.h.b16 %v5760
        %v6750 = vunpack.c.l.b16 %v5761
        %v6751 = vunpack.c.h.b16 %v5761
        %v6752 = vunpack.c.l.b16 %v5762
        %v6753 = vunpack.c.l.b16 %v5763
        %v6754 = vunpack.c.h.b16 %v5763
        %v6755 = vunpack.c.l.b16 %v5764
        %v6756 = vunpack.c.h.b16 %v5764
        %v6757 = vunpack.c.l.b16 %v5765
        %v6758 = vunpack.c.h.b16 %v5765
        %v6759 = vunpack.c.l.b16 %v5766
        %v6760 = vunpack.c.l.b16 %v5767
        %v6761 = vunpack.c.h.b16 %v5767
        %v6762 = vunpack.c.l.b16 %v5768
        %v6763 = vunpack.c.h.b16 %v5768
        %v6764 = vunpack.c.l.b16 %v5769
        %v6765 = vunpack.c.h.b16 %v5769
        %v6766 = vunpack.c.l.b16 %v5770
        %v6767 = vunpack.c.l.b16 %v5771
        %v6768 = vunpack.c.h.b16 %v5771
        %v6769 = vunpack.c.l.b16 %v5772
        %v6770 = vunpack.c.h.b16 %v5772
        %v6771 = vunpack.c.l.b16 %v5773
        %v6772 = vunpack.c.h.b16 %v5773
        %v6773 = vunpack.c.l.b16 %v5774
        %v6774 = vunpack.c.l.b16 %v5775
        %v6775 = vunpack.c.h.b16 %v5775
        %v6776 = vunpack.c.l.b16 %v5776
        %v6777 = vunpack.c.h.b16 %v5776
        %v6778 = vunpack.c.l.b16 %v5777
        %v6779 = vunpack.c.h.b16 %v5777
        %v6780 = vunpack.c.l.b16 %v5778
        %v6781 = vunpack.c.l.b16 %v5779
        %v6782 = vunpack.c.h.b16 %v5779
        %v6783 = vunpack.c.l.b16 %v5780
        %v6784 = vunpack.c.h.b16 %v5780
        %v6785 = vunpack.c.l.b16 %v5781
        %v6786 = vunpack.c.h.b16 %v5781
        %v6787 = vunpack.c.l.b16 %v5782
        %v6788 = vunpack.c.l.b16 %v5783
        %v6789 = vunpack.c.h.b16 %v5783
        %v6790 = vunpack.c.l.b16 %v5784
        %v6791 = vunpack.c.h.b16 %v5784
        %v6792 = vunpack.c.l.b16 %v5785
        %v6793 = vunpack.c.h.b16 %v5785
        %v6794 = vunpack.c.l.b16 %v5786
        %v6795 = vunpack.c.l.b16 %v5787
        %v6796 = vunpack.c.h.b16 %v5787
        %v6797 = vunpack.c.l.b16 %v5788
        %v6798 = vunpack.c.h.b16 %v5788
        %v6799 = vunpack.c.l.b16 %v5789
        %v6800 = vunpack.c.h.b16 %v5789
        %v6801 = vunpack.c.l.b16 %v5790
        %v6802 = vunpack.c.l.b16 %v5791
        %v6803 = vunpack.c.h.b16 %v5791
        %v6804 = vunpack.c.l.b16 %v5792
        %v6805 = vunpack.c.h.b16 %v5792
        %v6806 = vunpack.c.l.b16 %v5793
        %v6807 = vunpack.c.h.b16 %v5793
        %v6808 = vunpack.c.l.b16 %v5794
        %v6809 = vunpack.c.l.b16 %v5795
        %v6810 = vunpack.c.h.b16 %v5795
        %v6811 = vunpack.c.l.b16 %v5796
        %v6812 = vunpack.c.h.b16 %v5796
        %v6813 = vunpack.c.l.b16 %v5797
        %v6814 = vunpack.c.h.b16 %v5797
        %v6815 = vunpack.c.l.b16 %v5798
        %v6816 = vunpack.c.l.b16 %v5799
        %v6817 = vunpack.c.h.b16 %v5799
        %v6818 = vunpack.c.l.b16 %v5800
        %v6819 = vunpack.c.h.b16 %v5800
        %v6820 = vunpack.c.l.b16 %v5801
        %v6821 = vunpack.c.h.b16 %v5801
        %v6822 = vunpack.c.l.b16 %v5802
        %v6823 = vunpack.c.l.b16 %v5803
        %v6824 = vunpack.c.h.b16 %v5803
        %v6825 = vunpack.c.l.b16 %v5804
        %v6826 = vunpack.c.h.b16 %v5804
        %v6827 = vunpack.c.l.b16 %v5805
        %v6828 = vunpack.c.h.b16 %v5805
        %v6829 = vunpack.c.l.b16 %v5806
        %v6830 = vunpack.c.l.b16 %v5807
        %v6831 = vunpack.c.h.b16 %v5807
        %v6832 = vunpack.c.l.b16 %v5808
        %v6833 = vunpack.c.h.b16 %v5808
        %v6834 = vunpack.c.l.b16 %v5809
        %v6835 = vunpack.c.h.b16 %v5809
        %v6836 = vunpack.c.l.b16 %v5810
        %v6837 = vunpack.c.l.b16 %v5811
        %v6838 = vunpack.c.h.b16 %v5811
        %v6839 = vunpack.c.l.b16 %v5812
        %v6840 = vunpack.c.h.b16 %v5812
        %v6841 = vunpack.c.l.b16 %v5813
        %v6842 = vunpack.c.h.b16 %v5813
        %v6843 = vunpack.c.l.b16 %v5814
        %v6844 = vunpack.c.l.b16 %v5815
        %v6845 = vunpack.c.h.b16 %v5815
        %v6846 = vunpack.c.l.b16 %v5816
        %v6847 = vunpack.c.h.b16 %v5816
        %v6848 = vunpack.c.l.b16 %v5817
        %v6849 = vunpack.c.h.b16 %v5817
        %v6850 = vunpack.c.l.b16 %v5818
        %v6851 = vunpack.c.l.b16 %v5819
        %v6852 = vunpack.c.h.b16 %v5819
        %v6853 = vunpack.c.l.b16 %v5820
        %v6854 = vunpack.c.h.b16 %v5820
        %v6855 = vunpack.c.l.b16 %v5821
        %v6856 = vunpack.c.h.b16 %v5821
        %v6857 = vunpack.c.l.b16 %v5822
        %v6858 = vunpack.c.l.b16 %v5823
        %v6859 = vunpack.c.h.b16 %v5823
        %v6860 = vunpack.c.l.b16 %v5824
        %v6861 = vunpack.c.h.b16 %v5824
        %v6862 = vunpack.c.l.b16 %v5825
        %v6863 = vunpack.c.h.b16 %v5825
        %v6864 = vunpack.c.l.b16 %v5826
        %v6865 = vunpack.c.l.b16 %v5827
        %v6866 = vunpack.c.h.b16 %v5827
        %v6867 = vunpack.c.l.b16 %v5828
        %v6868 = vunpack.c.h.b16 %v5828
        %v6869 = vunpack.c.l.b16 %v5829
        %v6870 = vunpack.c.h.b16 %v5829
        %v6871 = vunpack.c.l.b16 %v5830
        %v6872 = vunpack.c.l.b16 %v5831
        %v6873 = vunpack.c.h.b16 %v5831
        %v6874 = vunpack.c.l.b16 %v5832
        %v6875 = vunpack.c.h.b16 %v5832
        %v6876 = vunpack.c.l.b16 %v5833
        %v6877 = vunpack.c.h.b16 %v5833
        %v6878 = vunpack.c.l.b16 %v5834
        %v6879 = vunpack.c.l.b16 %v5835
        %v6880 = vunpack.c.h.b16 %v5835
        %v6881 = vunpack.c.l.b16 %v5836
        %v6882 = vunpack.c.h.b16 %v5836
        %v6883 = vunpack.c.l.b16 %v5837
        %v6884 = vunpack.c.h.b16 %v5837
        %v6885 = vunpack.c.l.b16 %v5838
        %v6886 = vunpack.c.l.b16 %v5839
        %v6887 = vunpack.c.h.b16 %v5839
        %v6888 = vunpack.c.l.b16 %v5840
        %v6889 = vunpack.c.h.b16 %v5840
        %v6890 = vunpack.c.l.b16 %v5841
        %v6891 = vunpack.c.h.b16 %v5841
        %v6892 = vunpack.c.l.b16 %v5842
        %v6893 = vunpack.c.l.b16 %v5843
        %v6894 = vunpack.c.h.b16 %v5843
        %v6895 = vunpack.c.l.b16 %v5844
        %v6896 = vunpack.c.h.b16 %v5844
        %v6897 = vunpack.c.l.b16 %v5845
        %v6898 = vunpack.c.h.b16 %v5845
        %v6899 = vunpack.c.l.b16 %v5846
        %v6900 = vunpack.c.l.b16 %v5847
        %v6901 = vunpack.c.h.b16 %v5847
        %v6902 = vunpack.c.l.b16 %v5848
        %v6903 = vunpack.c.h.b16 %v5848
        %v6904 = vunpack.c.l.b16 %v5849
        %v6905 = vunpack.c.h.b16 %v5849
        %v6906 = vunpack.c.l.b16 %v5850
        %v6907 = vunpack.c.l.b16 %v5851
        %v6908 = vunpack.c.h.b16 %v5851
        %v6909 = vunpack.c.l.b16 %v5852
        %v6910 = vunpack.c.h.b16 %v5852
        %v6911 = vunpack.c.l.b16 %v5853
        %v6912 = vunpack.c.h.b16 %v5853
        %v6913 = vunpack.c.l.b16 %v5854
        %v6914 = vunpack.c.l.b16 %v5855
        %v6915 = vunpack.c.h.b16 %v5855
        %v6916 = vunpack.c.l.b16 %v5856
        %v6917 = vunpack.c.h.b16 %v5856
        %v6918 = vunpack.c.l.b16 %v5857
        %v6919 = vunpack.c.h.b16 %v5857
        %v6920 = vunpack.c.l.b16 %v5858
        %v6921 = vunpack.c.l.b16 %v5859
        %v6922 = vunpack.c.h.b16 %v5859
        %v6923 = vunpack.c.l.b16 %v5860
        %v6924 = vunpack.c.h.b16 %v5860
        %v6925 = vunpack.c.l.b16 %v5861
        %v6926 = vunpack.c.h.b16 %v5861
        %v6927 = vunpack.c.l.b16 %v5862
        %v6928 = vunpack.c.l.b16 %v5863
        %v6929 = vunpack.c.h.b16 %v5863
        %v6930 = vunpack.c.l.b16 %v5864
        %v6931 = vunpack.c.h.b16 %v5864
        %v6932 = vunpack.c.l.b16 %v5865
        %v6933 = vunpack.c.h.b16 %v5865
        %v6934 = vunpack.c.l.b16 %v5866
        %v6935 = vunpack.c.l.b16 %v5867
        %v6936 = vunpack.c.h.b16 %v5867
        %v6937 = vunpack.c.l.b16 %v5868
        %v6938 = vunpack.c.h.b16 %v5868
        %v6939 = vunpack.c.l.b16 %v5869
        %v6940 = vunpack.c.h.b16 %v5869
        %v6941 = vunpack.c.l.b16 %v5870
        %v6942 = vunpack.c.l.b16 %v5871
        %v6943 = vunpack.c.h.b16 %v5871
        %v6944 = vunpack.c.l.b16 %v5872
        %v6945 = vunpack.c.h.b16 %v5872
        %v6946 = vunpack.c.l.b16 %v5873
        %v6947 = vunpack.c.h.b16 %v5873
        %v6948 = vunpack.c.l.b16 %v5874
        %v6949 = vunpack.c.l.b16 %v5875
        %v6950 = vunpack.c.h.b16 %v5875
        %v6951 = vunpack.c.l.b16 %v5876
        %v6952 = vunpack.c.h.b16 %v5876
        %v6953 = vunpack.c.l.b16 %v5877
        %v6954 = vunpack.c.h.b16 %v5877
        %v6955 = vunpack.c.l.b16 %v5878
        %v6956 = vunpack.c.l.b16 %v5879
        %v6957 = vunpack.c.h.b16 %v5879
        %v6958 = vunpack.c.l.b16 %v5880
        %v6959 = vunpack.c.h.b16 %v5880
        %v6960 = vunpack.c.l.b16 %v5881
        %v6961 = vunpack.c.h.b16 %v5881
        %v6962 = vunpack.c.l.b16 %v5882
        %v6963 = vunpack.c.l.b16 %v5883
        %v6964 = vunpack.c.h.b16 %v5883
        %v6965 = vunpack.c.l.b16 %v5884
        %v6966 = vunpack.c.h.b16 %v5884
        %v6967 = vunpack.c.l.b16 %v5885
        %v6968 = vunpack.c.h.b16 %v5885
        %v6969 = vunpack.c.l.b16 %v5886
        %v6970 = vunpack.c.l.b16 %v5887
        %v6971 = vunpack.c.h.b16 %v5887
        %v6972 = vunpack.c.l.b16 %v5888
        %v6973 = vunpack.c.h.b16 %v5888
        %v6974 = vunpack.c.l.b16 %v5889
        %v6975 = vunpack.c.h.b16 %v5889
        %v6976 = vunpack.c.l.b16 %v5890
        %v6977 = vunpack.c.l.b16 %v5891
        %v6978 = vunpack.c.h.b16 %v5891
        %v6979 = vunpack.c.l.b16 %v5892
        %v6980 = vunpack.c.h.b16 %v5892
        %v6981 = vunpack.c.l.b16 %v5893
        %v6982 = vunpack.c.h.b16 %v5893
        %v6983 = vunpack.c.l.b16 %v5894
        %v6984 = vunpack.c.l.b16 %v5895
        %v6985 = vunpack.c.h.b16 %v5895
        %v6986 = vunpack.c.l.b16 %v5896
        %v6987 = vunpack.c.h.b16 %v5896
        %v6988 = vunpack.c.l.b16 %v5897
        %v6989 = vunpack.c.h.b16 %v5897
        %v6990 = vunpack.c.l.b16 %v5898
        %v6991 = vunpack.c.l.b16 %v5899
        %v6992 = vunpack.c.h.b16 %v5899
        %v6993 = vunpack.c.l.b16 %v5900
        %v6994 = vunpack.c.h.b16 %v5900
        %v6995 = vunpack.c.l.b16 %v5901
        %v6996 = vunpack.c.h.b16 %v5901
        %v6997 = vunpack.c.l.b16 %v5902
        %v6998 = vunpack.c.l.b16 %v5903
        %v6999 = vunpack.c.h.b16 %v5903
        %v7000 = vunpack.c.l.b16 %v5904
        %v7001 = vunpack.c.h.b16 %v5904
        %v7002 = vunpack.c.l.b16 %v5905
        %v7003 = vunpack.c.h.b16 %v5905
        %v7004 = vunpack.c.l.b16 %v5906
        %v7005 = vunpack.c.l.b16 %v5907
        %v7006 = vunpack.c.h.b16 %v5907
        %v7007 = vunpack.c.l.b16 %v5908
        %v7008 = vunpack.c.h.b16 %v5908
        %v7009 = vunpack.c.l.b16 %v5909
        %v7010 = vunpack.c.h.b16 %v5909
        %v7011 = vunpack.c.l.b16 %v5910
        %v7012 = vunpack.c.l.b16 %v5911
        %v7013 = vunpack.c.h.b16 %v5911
        %v7014 = vunpack.c.l.b16 %v5912
        %v7015 = vunpack.c.h.b16 %v5912
        %v7016 = vunpack.c.l.b16 %v5913
        %v7017 = vunpack.c.h.b16 %v5913
        %v7018 = vunpack.c.l.b16 %v5914
        %v7019 = vunpack.c.l.b16 %v5915
        %v7020 = vunpack.c.h.b16 %v5915
        %v7021 = vunpack.c.l.b16 %v5916
        %v7022 = vunpack.c.h.b16 %v5916
        %v7023 = vunpack.c.l.b16 %v5917
        %v7024 = vunpack.c.h.b16 %v5917
        %v7025 = vunpack.c.l.b16 %v5918
        %v7026 = vunpack.c.l.b16 %v5919
        %v7027 = vunpack.c.h.b16 %v5919
        %v7028 = vunpack.c.l.b16 %v5920
        %v7029 = vunpack.c.h.b16 %v5920
        %v7030 = vunpack.c.l.b16 %v5921
        %v7031 = vunpack.c.h.b16 %v5921
        %v7032 = vunpack.c.l.b16 %v5922
        %v7033 = vunpack.c.l.b16 %v5923
        %v7034 = vunpack.c.h.b16 %v5923
        %v7035 = vunpack.c.l.b16 %v5924
        %v7036 = vunpack.c.h.b16 %v5924
        %v7037 = vunpack.c.l.b16 %v5925
        %v7038 = vunpack.c.h.b16 %v5925
        %v7039 = vunpack.c.l.b16 %v5926
        %v7040 = vunpack.c.l.b16 %v5927
        %v7041 = vunpack.c.h.b16 %v5927
        %v7042 = vunpack.c.l.b16 %v5928
        %v7043 = vunpack.c.h.b16 %v5928
        %v7044 = vunpack.c.l.b16 %v5929
        %v7045 = vunpack.c.h.b16 %v5929
        %v7046 = vunpack.c.l.b16 %v5930
        %v7047 = vpack.c.b16 %v6354, %v6347
        %v7048 = vpack.c.b16 %v6355, %v6348
        %v7049 = vpack.c.b16 %v6356, %v6349
        %v7050 = vpack.c.b16 %v6357, %v6350
        %v7051 = vpack.c.b16 %v6358, %v6351
        %v7052 = vpack.c.b16 %v6359, %v6352
        %v7053 = vpack.c.b16 %v6360, %v6353
        %v7054 = vpack.c.b16 %v6368, %v6361
        %v7055 = vpack.c.b16 %v6369, %v6362
        %v7056 = vpack.c.b16 %v6370, %v6363
        %v7057 = vpack.c.b16 %v6371, %v6364
        %v7058 = vpack.c.b16 %v6372, %v6365
        %v7059 = vpack.c.b16 %v6373, %v6366
        %v7060 = vpack.c.b16 %v6374, %v6367
        %v7061 = vpack.c.b16 %v6382, %v6375
        %v7062 = vpack.c.b16 %v6383, %v6376
        %v7063 = vpack.c.b16 %v6384, %v6377
        %v7064 = vpack.c.b16 %v6385, %v6378
        %v7065 = vpack.c.b16 %v6386, %v6379
        %v7066 = vpack.c.b16 %v6387, %v6380
        %v7067 = vpack.c.b16 %v6388, %v6381
        %v7068 = vpack.c.b16 %v6396, %v6389
        %v7069 = vpack.c.b16 %v6397, %v6390
        %v7070 = vpack.c.b16 %v6398, %v6391
        %v7071 = vpack.c.b16 %v6399, %v6392
        %v7072 = vpack.c.b16 %v6400, %v6393
        %v7073 = vpack.c.b16 %v6401, %v6394
        %v7074 = vpack.c.b16 %v6402, %v6395
        %v7075 = vpack.c.b16 %v6410, %v6403
        %v7076 = vpack.c.b16 %v6411, %v6404
        %v7077 = vpack.c.b16 %v6412, %v6405
        %v7078 = vpack.c.b16 %v6413, %v6406
        %v7079 = vpack.c.b16 %v6414, %v6407
        %v7080 = vpack.c.b16 %v6415, %v6408
        %v7081 = vpack.c.b16 %v6416, %v6409
        %v7082 = vpack.c.b16 %v6424, %v6417
        %v7083 = vpack.c.b16 %v6425, %v6418
        %v7084 = vpack.c.b16 %v6426, %v6419
        %v7085 = vpack.c.b16 %v6427, %v6420
        %v7086 = vpack.c.b16 %v6428, %v6421
        %v7087 = vpack.c.b16 %v6429, %v6422
        %v7088 = vpack.c.b16 %v6430, %v6423
        %v7089 = vpack.c.b16 %v6438, %v6431
        %v7090 = vpack.c.b16 %v6439, %v6432
        %v7091 = vpack.c.b16 %v6440, %v6433
        %v7092 = vpack.c.b16 %v6441, %v6434
        %v7093 = vpack.c.b16 %v6442, %v6435
        %v7094 = vpack.c.b16 %v6443, %v6436
        %v7095 = vpack.c.b16 %v6444, %v6437
        %v7096 = vpack.c.b16 %v6452, %v6445
        %v7097 = vpack.c.b16 %v6453, %v6446
        %v7098 = vpack.c.b16 %v6454, %v6447
        %v7099 = vpack.c.b16 %v6455, %v6448
        %v7100 = vpack.c.b16 %v6456, %v6449
        %v7101 = vpack.c.b16 %v6457, %v6450
        %v7102 = vpack.c.b16 %v6458, %v6451
        %v7103 = vpack.c.b16 %v6466, %v6459
        %v7104 = vpack.c.b16 %v6467, %v6460
        %v7105 = vpack.c.b16 %v6468, %v6461
        %v7106 = vpack.c.b16 %v6469, %v6462
        %v7107 = vpack.c.b16 %v6470, %v6463
        %v7108 = vpack.c.b16 %v6471, %v6464
        %v7109 = vpack.c.b16 %v6472, %v6465
        %v7110 = vpack.c.b16 %v6480, %v6473
        %v7111 = vpack.c.b16 %v6481, %v6474
        %v7112 = vpack.c.b16 %v6482, %v6475
        %v7113 = vpack.c.b16 %v6483, %v6476
        %v7114 = vpack.c.b16 %v6484, %v6477
        %v7115 = vpack.c.b16 %v6485, %v6478
        %v7116 = vpack.c.b16 %v6486, %v6479
        %v7117 = vpack.c.b16 %v6494, %v6487
        %v7118 = vpack.c.b16 %v6495, %v6488
        %v7119 = vpack.c.b16 %v6496, %v6489
        %v7120 = vpack.c.b16 %v6497, %v6490
        %v7121 = vpack.c.b16 %v6498, %v6491
        %v7122 = vpack.c.b16 %v6499, %v6492
        %v7123 = vpack.c.b16 %v6500, %v6493
        %v7124 = vpack.c.b16 %v6508, %v6501
        %v7125 = vpack.c.b16 %v6509, %v6502
        %v7126 = vpack.c.b16 %v6510, %v6503
        %v7127 = vpack.c.b16 %v6511, %v6504
        %v7128 = vpack.c.b16 %v6512, %v6505
        %v7129 = vpack.c.b16 %v6513, %v6506
        %v7130 = vpack.c.b16 %v6514, %v6507
        %v7131 = vpack.c.b16 %v6522, %v6515
        %v7132 = vpack.c.b16 %v6523, %v6516
        %v7133 = vpack.c.b16 %v6524, %v6517
        %v7134 = vpack.c.b16 %v6525, %v6518
        %v7135 = vpack.c.b16 %v6526, %v6519
        %v7136 = vpack.c.b16 %v6527, %v6520
        %v7137 = vpack.c.b16 %v6528, %v6521
        %v7138 = vpack.c.b16 %v6536, %v6529
        %v7139 = vpack.c.b16 %v6537, %v6530
        %v7140 = vpack.c.b16 %v6538, %v6531
        %v7141 = vpack.c.b16 %v6539, %v6532
        %v7142 = vpack.c.b16 %v6540, %v6533
        %v7143 = vpack.c.b16 %v6541, %v6534
        %v7144 = vpack.c.b16 %v6542, %v6535
        %v7145 = vpack.c.b16 %v6550, %v6543
        %v7146 = vpack.c.b16 %v6551, %v6544
        %v7147 = vpack.c.b16 %v6552, %v6545
        %v7148 = vpack.c.b16 %v6553, %v6546
        %v7149 = vpack.c.b16 %v6554, %v6547
        %v7150 = vpack.c.b16 %v6555, %v6548
        %v7151 = vpack.c.b16 %v6556, %v6549
        %v7152 = vpack.c.b16 %v6564, %v6557
        %v7153 = vpack.c.b16 %v6565, %v6558
        %v7154 = vpack.c.b16 %v6566, %v6559
        %v7155 = vpack.c.b16 %v6567, %v6560
        %v7156 = vpack.c.b16 %v6568, %v6561
        %v7157 = vpack.c.b16 %v6569, %v6562
        %v7158 = vpack.c.b16 %v6570, %v6563
        %v7159 = vpack.c.b16 %v6578, %v6571
        %v7160 = vpack.c.b16 %v6579, %v6572
        %v7161 = vpack.c.b16 %v6580, %v6573
        %v7162 = vpack.c.b16 %v6581, %v6574
        %v7163 = vpack.c.b16 %v6582, %v6575
        %v7164 = vpack.c.b16 %v6583, %v6576
        %v7165 = vpack.c.b16 %v6584, %v6577
        %v7166 = vpack.c.b16 %v6592, %v6585
        %v7167 = vpack.c.b16 %v6593, %v6586
        %v7168 = vpack.c.b16 %v6594, %v6587
        %v7169 = vpack.c.b16 %v6595, %v6588
        %v7170 = vpack.c.b16 %v6596, %v6589
        %v7171 = vpack.c.b16 %v6597, %v6590
        %v7172 = vpack.c.b16 %v6598, %v6591
        %v7173 = vpack.c.b16 %v6606, %v6599
        %v7174 = vpack.c.b16 %v6607, %v6600
        %v7175 = vpack.c.b16 %v6608, %v6601
        %v7176 = vpack.c.b16 %v6609, %v6602
        %v7177 = vpack.c.b16 %v6610, %v6603
        %v7178 = vpack.c.b16 %v6611, %v6604
        %v7179 = vpack.c.b16 %v6612, %v6605
        %v7180 = vpack.c.b16 %v6620, %v6613
        %v7181 = vpack.c.b16 %v6621, %v6614
        %v7182 = vpack.c.b16 %v6622, %v6615
        %v7183 = vpack.c.b16 %v6623, %v6616
        %v7184 = vpack.c.b16 %v6624, %v6617
        %v7185 = vpack.c.b16 %v6625, %v6618
        %v7186 = vpack.c.b16 %v6626, %v6619
        %v7187 = vpack.c.b16 %v6634, %v6627
        %v7188 = vpack.c.b16 %v6635, %v6628
        %v7189 = vpack.c.b16 %v6636, %v6629
        %v7190 = vpack.c.b16 %v6637, %v6630
        %v7191 = vpack.c.b16 %v6638, %v6631
        %v7192 = vpack.c.b16 %v6639, %v6632
        %v7193 = vpack.c.b16 %v6640, %v6633
        %v7194 = vpack.c.b16 %v6648, %v6641
        %v7195 = vpack.c.b16 %v6649, %v6642
        %v7196 = vpack.c.b16 %v6650, %v6643
        %v7197 = vpack.c.b16 %v6651, %v6644
        %v7198 = vpack.c.b16 %v6652, %v6645
        %v7199 = vpack.c.b16 %v6653, %v6646
        %v7200 = vpack.c.b16 %v6654, %v6647
        %v7201 = vpack.c.b16 %v6662, %v6655
        %v7202 = vpack.c.b16 %v6663, %v6656
        %v7203 = vpack.c.b16 %v6664, %v6657
        %v7204 = vpack.c.b16 %v6665, %v6658
        %v7205 = vpack.c.b16 %v6666, %v6659
        %v7206 = vpack.c.b16 %v6667, %v6660
        %v7207 = vpack.c.b16 %v6668, %v6661
        %v7208 = vpack.c.b16 %v6676, %v6669
        %v7209 = vpack.c.b16 %v6677, %v6670
        %v7210 = vpack.c.b16 %v6678, %v6671
        %v7211 = vpack.c.b16 %v6679, %v6672
        %v7212 = vpack.c.b16 %v6680, %v6673
        %v7213 = vpack.c.b16 %v6681, %v6674
        %v7214 = vpack.c.b16 %v6682, %v6675
        %v7215 = vpack.c.b16 %v6690, %v6683
        %v7216 = vpack.c.b16 %v6691, %v6684
        %v7217 = vpack.c.b16 %v6692, %v6685
        %v7218 = vpack.c.b16 %v6693, %v6686
        %v7219 = vpack.c.b16 %v6694, %v6687
        %v7220 = vpack.c.b16 %v6695, %v6688
        %v7221 = vpack.c.b16 %v6696, %v6689
        %v7222 = vpack.c.b16 %v6704, %v6697
        %v7223 = vpack.c.b16 %v6705, %v6698
        %v7224 = vpack.c.b16 %v6706, %v6699
        %v7225 = vpack.c.b16 %v6707, %v6700
        %v7226 = vpack.c.b16 %v6708, %v6701
        %v7227 = vpack.c.b16 %v6709, %v6702
        %v7228 = vpack.c.b16 %v6710, %v6703
        %v7229 = vpack.c.b16 %v6718, %v6711
        %v7230 = vpack.c.b16 %v6719, %v6712
        %v7231 = vpack.c.b16 %v6720, %v6713
        %v7232 = vpack.c.b16 %v6721, %v6714
        %v7233 = vpack.c.b16 %v6722, %v6715
        %v7234 = vpack.c.b16 %v6723, %v6716
        %v7235 = vpack.c.b16 %v6724, %v6717
        %v7236 = vpack.c.b16 %v6732, %v6725
        %v7237 = vpack.c.b16 %v6733, %v6726
        %v7238 = vpack.c.b16 %v6734, %v6727
        %v7239 = vpack.c.b16 %v6735, %v6728
        %v7240 = vpack.c.b16 %v6736, %v6729
        %v7241 = vpack.c.b16 %v6737, %v6730
        %v7242 = vpack.c.b16 %v6738, %v6731
        %v7243 = vpack.c.b16 %v6746, %v6739
        %v7244 = vpack.c.b16 %v6747, %v6740
        %v7245 = vpack.c.b16 %v6748, %v6741
        %v7246 = vpack.c.b16 %v6749, %v6742
        %v7247 = vpack.c.b16 %v6750, %v6743
        %v7248 = vpack.c.b16 %v6751, %v6744
        %v7249 = vpack.c.b16 %v6752, %v6745
        %v7250 = vpack.c.b16 %v6760, %v6753
        %v7251 = vpack.c.b16 %v6761, %v6754
        %v7252 = vpack.c.b16 %v6762, %v6755
        %v7253 = vpack.c.b16 %v6763, %v6756
        %v7254 = vpack.c.b16 %v6764, %v6757
        %v7255 = vpack.c.b16 %v6765, %v6758
        %v7256 = vpack.c.b16 %v6766, %v6759
        %v7257 = vpack.c.b16 %v6774, %v6767
        %v7258 = vpack.c.b16 %v6775, %v6768
        %v7259 = vpack.c.b16 %v6776, %v6769
        %v7260 = vpack.c.b16 %v6777, %v6770
        %v7261 = vpack.c.b16 %v6778, %v6771
        %v7262 = vpack.c.b16 %v6779, %v6772
        %v7263 = vpack.c.b16 %v6780, %v6773
        %v7264 = vpack.c.b16 %v6788, %v6781
        %v7265 = vpack.c.b16 %v6789, %v6782
        %v7266 = vpack.c.b16 %v6790, %v6783
        %v7267 = vpack.c.b16 %v6791, %v6784
        %v7268 = vpack.c.b16 %v6792, %v6785
        %v7269 = vpack.c.b16 %v6793, %v6786
        %v7270 = vpack.c.b16 %v6794, %v6787
        %v7271 = vpack.c.b16 %v6802, %v6795
        %v7272 = vpack.c.b16 %v6803, %v6796
        %v7273 = vpack.c.b16 %v6804, %v6797
        %v7274 = vpack.c.b16 %v6805, %v6798
        %v7275 = vpack.c.b16 %v6806, %v6799
        %v7276 = vpack.c.b16 %v6807, %v6800
        %v7277 = vpack.c.b16 %v6808, %v6801
        %v7278 = vpack.c.b16 %v6816, %v6809
        %v7279 = vpack.c.b16 %v6817, %v6810
        %v7280 = vpack.c.b16 %v6818, %v6811
        %v7281 = vpack.c.b16 %v6819, %v6812
        %v7282 = vpack.c.b16 %v6820, %v6813
        %v7283 = vpack.c.b16 %v6821, %v6814
        %v7284 = vpack.c.b16 %v6822, %v6815
        %v7285 = vpack.c.b16 %v6830, %v6823
        %v7286 = vpack.c.b16 %v6831, %v6824
        %v7287 = vpack.c.b16 %v6832, %v6825
        %v7288 = vpack.c.b16 %v6833, %v6826
        %v7289 = vpack.c.b16 %v6834, %v6827
        %v7290 = vpack.c.b16 %v6835, %v6828
        %v7291 = vpack.c.b16 %v6836, %v6829
        %v7292 = vpack.c.b16 %v6844, %v6837
        %v7293 = vpack.c.b16 %v6845, %v6838
        %v7294 = vpack.c.b16 %v6846, %v6839
        %v7295 = vpack.c.b16 %v6847, %v6840
        %v7296 = vpack.c.b16 %v6848, %v6841
        %v7297 = vpack.c.b16 %v6849, %v6842
        %v7298 = vpack.c.b16 %v6850, %v6843
        %v7299 = vpack.c.b16 %v6858, %v6851
        %v7300 = vpack.c.b16 %v6859, %v6852
        %v7301 = vpack.c.b16 %v6860, %v6853
        %v7302 = vpack.c.b16 %v6861, %v6854
        %v7303 = vpack.c.b16 %v6862, %v6855
        %v7304 = vpack.c.b16 %v6863, %v6856
        %v7305 = vpack.c.b16 %v6864, %v6857
        %v7306 = vpack.c.b16 %v6872, %v6865
        %v7307 = vpack.c.b16 %v6873, %v6866
        %v7308 = vpack.c.b16 %v6874, %v6867
        %v7309 = vpack.c.b16 %v6875, %v6868
        %v7310 = vpack.c.b16 %v6876, %v6869
        %v7311 = vpack.c.b16 %v6877, %v6870
        %v7312 = vpack.c.b16 %v6878, %v6871
        %v7313 = vpack.c.b16 %v6886, %v6879
        %v7314 = vpack.c.b16 %v6887, %v6880
        %v7315 = vpack.c.b16 %v6888, %v6881
        %v7316 = vpack.c.b16 %v6889, %v6882
        %v7317 = vpack.c.b16 %v6890, %v6883
        %v7318 = vpack.c.b16 %v6891, %v6884
        %v7319 = vpack.c.b16 %v6892, %v6885
        %v7320 = vpack.c.b16 %v6900, %v6893
        %v7321 = vpack.c.b16 %v6901, %v6894
        %v7322 = vpack.c.b16 %v6902, %v6895
        %v7323 = vpack.c.b16 %v6903, %v6896
        %v7324 = vpack.c.b16 %v6904, %v6897
        %v7325 = vpack.c.b16 %v6905, %v6898
        %v7326 = vpack.c.b16 %v6906, %v6899
        %v7327 = vpack.c.b16 %v6914, %v6907
        %v7328 = vpack.c.b16 %v6915, %v6908
        %v7329 = vpack.c.b16 %v6916, %v6909
        %v7330 = vpack.c.b16 %v6917, %v6910
        %v7331 = vpack.c.b16 %v6918, %v6911
        %v7332 = vpack.c.b16 %v6919, %v6912
        %v7333 = vpack.c.b16 %v6920, %v6913
        %v7334 = vpack.c.b16 %v6928, %v6921
        %v7335 = vpack.c.b16 %v6929, %v6922
        %v7336 = vpack.c.b16 %v6930, %v6923
        %v7337 = vpack.c.b16 %v6931, %v6924
        %v7338 = vpack.c.b16 %v6932, %v6925
        %v7339 = vpack.c.b16 %v6933, %v6926
        %v7340 = vpack.c.b16 %v6934, %v6927
        %v7341 = vpack.c.b16 %v6942, %v6935
        %v7342 = vpack.c.b16 %v6943, %v6936
        %v7343 = vpack.c.b16 %v6944, %v6937
        %v7344 = vpack.c.b16 %v6945, %v6938
        %v7345 = vpack.c.b16 %v6946, %v6939
        %v7346 = vpack.c.b16 %v6947, %v6940
        %v7347 = vpack.c.b16 %v6948, %v6941
        %v7348 = vpack.c.b16 %v6956, %v6949
        %v7349 = vpack.c.b16 %v6957, %v6950
        %v7350 = vpack.c.b16 %v6958, %v6951
        %v7351 = vpack.c.b16 %v6959, %v6952
        %v7352 = vpack.c.b16 %v6960, %v6953
        %v7353 = vpack.c.b16 %v6961, %v6954
        %v7354 = vpack.c.b16 %v6962, %v6955
        %v7355 = vpack.c.b16 %v6970, %v6963
        %v7356 = vpack.c.b16 %v6971, %v6964
        %v7357 = vpack.c.b16 %v6972, %v6965
        %v7358 = vpack.c.b16 %v6973, %v6966
        %v7359 = vpack.c.b16 %v6974, %v6967
        %v7360 = vpack.c.b16 %v6975, %v6968
        %v7361 = vpack.c.b16 %v6976, %v6969
        %v7362 = vpack.c.b16 %v6984, %v6977
        %v7363 = vpack.c.b16 %v6985, %v6978
        %v7364 = vpack.c.b16 %v6986, %v6979
        %v7365 = vpack.c.b16 %v6987, %v6980
        %v7366 = vpack.c.b16 %v6988, %v6981
        %v7367 = vpack.c.b16 %v6989, %v6982
        %v7368 = vpack.c.b16 %v6990, %v6983
        %v7369 = vpack.c.b16 %v6998, %v6991
        %v7370 = vpack.c.b16 %v6999, %v6992
        %v7371 = vpack.c.b16 %v7000, %v6993
        %v7372 = vpack.c.b16 %v7001, %v6994
        %v7373 = vpack.c.b16 %v7002, %v6995
        %v7374 = vpack.c.b16 %v7003, %v6996
        %v7375 = vpack.c.b16 %v7004, %v6997
        %v7376 = vpack.c.b16 %v7012, %v7005
        %v7377 = vpack.c.b16 %v7013, %v7006
        %v7378 = vpack.c.b16 %v7014, %v7007
        %v7379 = vpack.c.b16 %v7015, %v7008
        %v7380 = vpack.c.b16 %v7016, %v7009
        %v7381 = vpack.c.b16 %v7017, %v7010
        %v7382 = vpack.c.b16 %v7018, %v7011
        %v7383 = vpack.c.b16 %v7026, %v7019
        %v7384 = vpack.c.b16 %v7027, %v7020
        %v7385 = vpack.c.b16 %v7028, %v7021
        %v7386 = vpack.c.b16 %v7029, %v7022
        %v7387 = vpack.c.b16 %v7030, %v7023
        %v7388 = vpack.c.b16 %v7031, %v7024
        %v7389 = vpack.c.b16 %v7032, %v7025
        %v7390 = vpack.c.b16 %v7040, %v7033
        %v7391 = vpack.c.b16 %v7041, %v7034
        %v7392 = vpack.c.b16 %v7042, %v7035
        %v7393 = vpack.c.b16 %v7043, %v7036
        %v7394 = vpack.c.b16 %v7044, %v7037
        %v7395 = vpack.c.b16 %v7045, %v7038
        %v7396 = vpack.c.b16 %v7046, %v7039
        %v7748 = vsel %vm4862, %v5530, 0
        %7750 = vmatpush.bf16.msra.mxu0 %v7096
        %7751 = vmatpush.bf16.msra.mxu0 %v7089
        %7752 = vmatpush.bf16.msra.mxu0 %v7082
        %7753 = vmatpush.bf16.msra.mxu0 %v7075
        %7754 = vmatpush.bf16.msra.mxu0 %v7068
        %7755 = vmatpush.bf16.msra.mxu0 %v7061
        %7756 = vmatpush.bf16.msra.mxu0 %v7054
        %7757 = vmatpush.bf16.msra.mxu0 %v7047
        %7758 = vmatmul.bf16.gmra.mxu0 %v5524
        %v7759 = vpop.f32.mrf.mxu0
        %v7760 = vadd.f32 %v5933, %v7759
        %v7761 = vpop.f32.mrf.mxu0
        %7762 = vdwg.mxu0
        %7763 = vmatpush.bf16.msra.mxu0 %v7152
        %7764 = vmatpush.bf16.msra.mxu0 %v7145
        %7765 = vmatpush.bf16.msra.mxu0 %v7138
        %7766 = vmatpush.bf16.msra.mxu0 %v7131
        %7767 = vmatpush.bf16.msra.mxu0 %v7124
        %7768 = vmatpush.bf16.msra.mxu0 %v7117
        %7769 = vmatpush.bf16.msra.mxu0 %v7110
        %7770 = vmatpush.bf16.msra.mxu0 %v7103
        %7771 = vmatmul.bf16.gmra.mxu0 %v5525
        %v7772 = vpop.f32.mrf.mxu0
        %v7773 = vadd.f32 %v7760, %v7772
        %v7774 = vpop.f32.mrf.mxu0
        %7775 = vdwg.mxu0
        %7776 = vmatpush.bf16.msra.mxu0 %v7208
        %7777 = vmatpush.bf16.msra.mxu0 %v7201
        %7778 = vmatpush.bf16.msra.mxu0 %v7194
        %7779 = vmatpush.bf16.msra.mxu0 %v7187
        %7780 = vmatpush.bf16.msra.mxu0 %v7180
        %7781 = vmatpush.bf16.msra.mxu0 %v7173
        %7782 = vmatpush.bf16.msra.mxu0 %v7166
        %7783 = vmatpush.bf16.msra.mxu0 %v7159
        %7784 = vmatmul.bf16.gmra.mxu0 %v5526
        %v7785 = vpop.f32.mrf.mxu0
        %v7786 = vadd.f32 %v7773, %v7785
        %v7787 = vpop.f32.mrf.mxu0
        %7788 = vdwg.mxu0
        %7789 = vmatpush.bf16.msra.mxu0 %v7264
        %7790 = vmatpush.bf16.msra.mxu0 %v7257
        %7791 = vmatpush.bf16.msra.mxu0 %v7250
        %7792 = vmatpush.bf16.msra.mxu0 %v7243
        %7793 = vmatpush.bf16.msra.mxu0 %v7236
        %7794 = vmatpush.bf16.msra.mxu0 %v7229
        %7795 = vmatpush.bf16.msra.mxu0 %v7222
        %7796 = vmatpush.bf16.msra.mxu0 %v7215
        %7797 = vmatmul.bf16.gmra.mxu0 %v5527
        %v7798 = vpop.f32.mrf.mxu0
        %v7799 = vadd.f32 %v7786, %v7798
        %v7800 = vpop.f32.mrf.mxu0
        %7801 = vdwg.mxu0
        %7802 = vmatpush.bf16.msra.mxu0 %v7320
        %7803 = vmatpush.bf16.msra.mxu0 %v7313
        %7804 = vmatpush.bf16.msra.mxu0 %v7306
        %7805 = vmatpush.bf16.msra.mxu0 %v7299
        %7806 = vmatpush.bf16.msra.mxu0 %v7292
        %7807 = vmatpush.bf16.msra.mxu0 %v7285
        %7808 = vmatpush.bf16.msra.mxu0 %v7278
        %7809 = vmatpush.bf16.msra.mxu0 %v7271
        %7810 = vmatmul.bf16.gmra.mxu0 %v5528
        %v7811 = vpop.f32.mrf.mxu0
        %v7812 = vadd.f32 %v7799, %v7811
        %v7813 = vpop.f32.mrf.mxu0
        %7814 = vdwg.mxu0
        %7815 = vmatpush.bf16.msra.mxu0 %v7376
        %7816 = vmatpush.bf16.msra.mxu0 %v7369
        %7817 = vmatpush.bf16.msra.mxu0 %v7362
        %7818 = vmatpush.bf16.msra.mxu0 %v7355
        %7819 = vmatpush.bf16.msra.mxu0 %v7348
        %7820 = vmatpush.bf16.msra.mxu0 %v7341
        %7821 = vmatpush.bf16.msra.mxu0 %v7334
        %7822 = vmatpush.bf16.msra.mxu0 %v7327
        %7823 = vmatmul.bf16.gmra.mxu0 %v5529
        %v7824 = vpop.f32.mrf.mxu0
        %v7825 = vadd.f32 %v7812, %v7824
        %v7826 = vpop.f32.mrf.mxu0
        %7827 = vdwg.mxu0
        %7828 = vmatpush.bf16.msra.mxu0 0
        %7829 = vmatpush.bf16.msra.mxu0 0
        %7830 = vmatpush.bf16.msra.mxu0 0
        %7831 = vmatpush.bf16.msra.mxu0 0
        %7832 = vmatpush.bf16.msra.mxu0 0
        %7833 = vmatpush.bf16.msra.mxu0 0
        %7834 = vmatpush.bf16.msra.mxu0 %v7390
        %7835 = vmatpush.bf16.msra.mxu0 %v7383
        %7836 = vmatmul.bf16.gmra.mxu0 %v7748
        %v7837 = vpop.f32.mrf.mxu0
        %v7838 = vadd.f32 %v7825, %v7837
        %v7839 = vpop.f32.mrf.mxu0
        %7840 = vdwg.mxu0
        %7841 = vmatpush.bf16.msra.mxu0 %v7097
        %7842 = vmatpush.bf16.msra.mxu0 %v7090
        %7843 = vmatpush.bf16.msra.mxu0 %v7083
        %7844 = vmatpush.bf16.msra.mxu0 %v7076
        %7845 = vmatpush.bf16.msra.mxu0 %v7069
        %7846 = vmatpush.bf16.msra.mxu0 %v7062
        %7847 = vmatpush.bf16.msra.mxu0 %v7055
        %7848 = vmatpush.bf16.msra.mxu0 %v7048
        %7849 = vmatmul.bf16.gmra.mxu0 %v5524
        %v7850 = vpop.f32.mrf.mxu0
        %v7851 = vadd.f32 %v5934, %v7850
        %v7852 = vpop.f32.mrf.mxu0
        %7853 = vdwg.mxu0
        %7854 = vmatpush.bf16.msra.mxu0 %v7153
        %7855 = vmatpush.bf16.msra.mxu0 %v7146
        %7856 = vmatpush.bf16.msra.mxu0 %v7139
        %7857 = vmatpush.bf16.msra.mxu0 %v7132
        %7858 = vmatpush.bf16.msra.mxu0 %v7125
        %7859 = vmatpush.bf16.msra.mxu0 %v7118
        %7860 = vmatpush.bf16.msra.mxu0 %v7111
        %7861 = vmatpush.bf16.msra.mxu0 %v7104
        %7862 = vmatmul.bf16.gmra.mxu0 %v5525
        %v7863 = vpop.f32.mrf.mxu0
        %v7864 = vadd.f32 %v7851, %v7863
        %v7865 = vpop.f32.mrf.mxu0
        %7866 = vdwg.mxu0
        %7867 = vmatpush.bf16.msra.mxu0 %v7209
        %7868 = vmatpush.bf16.msra.mxu0 %v7202
        %7869 = vmatpush.bf16.msra.mxu0 %v7195
        %7870 = vmatpush.bf16.msra.mxu0 %v7188
        %7871 = vmatpush.bf16.msra.mxu0 %v7181
        %7872 = vmatpush.bf16.msra.mxu0 %v7174
        %7873 = vmatpush.bf16.msra.mxu0 %v7167
        %7874 = vmatpush.bf16.msra.mxu0 %v7160
        %7875 = vmatmul.bf16.gmra.mxu0 %v5526
        %v7876 = vpop.f32.mrf.mxu0
        %v7877 = vadd.f32 %v7864, %v7876
        %v7878 = vpop.f32.mrf.mxu0
        %7879 = vdwg.mxu0
        %7880 = vmatpush.bf16.msra.mxu0 %v7265
        %7881 = vmatpush.bf16.msra.mxu0 %v7258
        %7882 = vmatpush.bf16.msra.mxu0 %v7251
        %7883 = vmatpush.bf16.msra.mxu0 %v7244
        %7884 = vmatpush.bf16.msra.mxu0 %v7237
        %7885 = vmatpush.bf16.msra.mxu0 %v7230
        %7886 = vmatpush.bf16.msra.mxu0 %v7223
        %7887 = vmatpush.bf16.msra.mxu0 %v7216
        %7888 = vmatmul.bf16.gmra.mxu0 %v5527
        %v7889 = vpop.f32.mrf.mxu0
        %v7890 = vadd.f32 %v7877, %v7889
        %v7891 = vpop.f32.mrf.mxu0
        %7892 = vdwg.mxu0
        %7893 = vmatpush.bf16.msra.mxu0 %v7321
        %7894 = vmatpush.bf16.msra.mxu0 %v7314
        %7895 = vmatpush.bf16.msra.mxu0 %v7307
        %7896 = vmatpush.bf16.msra.mxu0 %v7300
        %7897 = vmatpush.bf16.msra.mxu0 %v7293
        %7898 = vmatpush.bf16.msra.mxu0 %v7286
        %7899 = vmatpush.bf16.msra.mxu0 %v7279
        %7900 = vmatpush.bf16.msra.mxu0 %v7272
        %7901 = vmatmul.bf16.gmra.mxu0 %v5528
        %v7902 = vpop.f32.mrf.mxu0
        %v7903 = vadd.f32 %v7890, %v7902
        %v7904 = vpop.f32.mrf.mxu0
        %7905 = vdwg.mxu0
        %7906 = vmatpush.bf16.msra.mxu0 %v7377
        %7907 = vmatpush.bf16.msra.mxu0 %v7370
        %7908 = vmatpush.bf16.msra.mxu0 %v7363
        %7909 = vmatpush.bf16.msra.mxu0 %v7356
        %7910 = vmatpush.bf16.msra.mxu0 %v7349
        %7911 = vmatpush.bf16.msra.mxu0 %v7342
        %7912 = vmatpush.bf16.msra.mxu0 %v7335
        %7913 = vmatpush.bf16.msra.mxu0 %v7328
        %7914 = vmatmul.bf16.gmra.mxu0 %v5529
        %v7915 = vpop.f32.mrf.mxu0
        %v7916 = vadd.f32 %v7903, %v7915
        %v7917 = vpop.f32.mrf.mxu0
        %7918 = vdwg.mxu0
        %7919 = vmatpush.bf16.msra.mxu0 0
        %7920 = vmatpush.bf16.msra.mxu0 0
        %7921 = vmatpush.bf16.msra.mxu0 0
        %7922 = vmatpush.bf16.msra.mxu0 0
        %7923 = vmatpush.bf16.msra.mxu0 0
        %7924 = vmatpush.bf16.msra.mxu0 0
        %7925 = vmatpush.bf16.msra.mxu0 %v7391
        %7926 = vmatpush.bf16.msra.mxu0 %v7384
        %7927 = vmatmul.bf16.gmra.mxu0 %v7748
        %v7928 = vpop.f32.mrf.mxu0
        %v7929 = vadd.f32 %v7916, %v7928
        %v7930 = vpop.f32.mrf.mxu0
        %7931 = vdwg.mxu0
        %7932 = vmatpush.bf16.msra.mxu0 %v7098
        %7933 = vmatpush.bf16.msra.mxu0 %v7091
        %7934 = vmatpush.bf16.msra.mxu0 %v7084
        %7935 = vmatpush.bf16.msra.mxu0 %v7077
        %7936 = vmatpush.bf16.msra.mxu0 %v7070
        %7937 = vmatpush.bf16.msra.mxu0 %v7063
        %7938 = vmatpush.bf16.msra.mxu0 %v7056
        %7939 = vmatpush.bf16.msra.mxu0 %v7049
        %7940 = vmatmul.bf16.gmra.mxu0 %v5524
        %v7941 = vpop.f32.mrf.mxu0
        %v7942 = vadd.f32 %v5935, %v7941
        %v7943 = vpop.f32.mrf.mxu0
        %7944 = vdwg.mxu0
        %7945 = vmatpush.bf16.msra.mxu0 %v7154
        %7946 = vmatpush.bf16.msra.mxu0 %v7147
        %7947 = vmatpush.bf16.msra.mxu0 %v7140
        %7948 = vmatpush.bf16.msra.mxu0 %v7133
        %7949 = vmatpush.bf16.msra.mxu0 %v7126
        %7950 = vmatpush.bf16.msra.mxu0 %v7119
        %7951 = vmatpush.bf16.msra.mxu0 %v7112
        %7952 = vmatpush.bf16.msra.mxu0 %v7105
        %7953 = vmatmul.bf16.gmra.mxu0 %v5525
        %v7954 = vpop.f32.mrf.mxu0
        %v7955 = vadd.f32 %v7942, %v7954
        %v7956 = vpop.f32.mrf.mxu0
        %7957 = vdwg.mxu0
        %7958 = vmatpush.bf16.msra.mxu0 %v7210
        %7959 = vmatpush.bf16.msra.mxu0 %v7203
        %7960 = vmatpush.bf16.msra.mxu0 %v7196
        %7961 = vmatpush.bf16.msra.mxu0 %v7189
        %7962 = vmatpush.bf16.msra.mxu0 %v7182
        %7963 = vmatpush.bf16.msra.mxu0 %v7175
        %7964 = vmatpush.bf16.msra.mxu0 %v7168
        %7965 = vmatpush.bf16.msra.mxu0 %v7161
        %7966 = vmatmul.bf16.gmra.mxu0 %v5526
        %v7967 = vpop.f32.mrf.mxu0
        %v7968 = vadd.f32 %v7955, %v7967
        %v7969 = vpop.f32.mrf.mxu0
        %7970 = vdwg.mxu0
        %7971 = vmatpush.bf16.msra.mxu0 %v7266
        %7972 = vmatpush.bf16.msra.mxu0 %v7259
        %7973 = vmatpush.bf16.msra.mxu0 %v7252
        %7974 = vmatpush.bf16.msra.mxu0 %v7245
        %7975 = vmatpush.bf16.msra.mxu0 %v7238
        %7976 = vmatpush.bf16.msra.mxu0 %v7231
        %7977 = vmatpush.bf16.msra.mxu0 %v7224
        %7978 = vmatpush.bf16.msra.mxu0 %v7217
        %7979 = vmatmul.bf16.gmra.mxu0 %v5527
        %v7980 = vpop.f32.mrf.mxu0
        %v7981 = vadd.f32 %v7968, %v7980
        %v7982 = vpop.f32.mrf.mxu0
        %7983 = vdwg.mxu0
        %7984 = vmatpush.bf16.msra.mxu0 %v7322
        %7985 = vmatpush.bf16.msra.mxu0 %v7315
        %7986 = vmatpush.bf16.msra.mxu0 %v7308
        %7987 = vmatpush.bf16.msra.mxu0 %v7301
        %7988 = vmatpush.bf16.msra.mxu0 %v7294
        %7989 = vmatpush.bf16.msra.mxu0 %v7287
        %7990 = vmatpush.bf16.msra.mxu0 %v7280
        %7991 = vmatpush.bf16.msra.mxu0 %v7273
        %7992 = vmatmul.bf16.gmra.mxu0 %v5528
        %v7993 = vpop.f32.mrf.mxu0
        %v7994 = vadd.f32 %v7981, %v7993
        %v7995 = vpop.f32.mrf.mxu0
        %7996 = vdwg.mxu0
        %7997 = vmatpush.bf16.msra.mxu0 %v7378
        %7998 = vmatpush.bf16.msra.mxu0 %v7371
        %7999 = vmatpush.bf16.msra.mxu0 %v7364
        %8000 = vmatpush.bf16.msra.mxu0 %v7357
        %8001 = vmatpush.bf16.msra.mxu0 %v7350
        %8002 = vmatpush.bf16.msra.mxu0 %v7343
        %8003 = vmatpush.bf16.msra.mxu0 %v7336
        %8004 = vmatpush.bf16.msra.mxu0 %v7329
        %8005 = vmatmul.bf16.gmra.mxu0 %v5529
        %v8006 = vpop.f32.mrf.mxu0
        %v8007 = vadd.f32 %v7994, %v8006
        %v8008 = vpop.f32.mrf.mxu0
        %8009 = vdwg.mxu0
        %8010 = vmatpush.bf16.msra.mxu0 0
        %8011 = vmatpush.bf16.msra.mxu0 0
        %8012 = vmatpush.bf16.msra.mxu0 0
        %8013 = vmatpush.bf16.msra.mxu0 0
        %8014 = vmatpush.bf16.msra.mxu0 0
        %8015 = vmatpush.bf16.msra.mxu0 0
        %8016 = vmatpush.bf16.msra.mxu0 %v7392
        %8017 = vmatpush.bf16.msra.mxu0 %v7385
        %8018 = vmatmul.bf16.gmra.mxu0 %v7748
        %v8019 = vpop.f32.mrf.mxu0
        %v8020 = vadd.f32 %v8007, %v8019
        %v8021 = vpop.f32.mrf.mxu0
        %8022 = vdwg.mxu0
        %8023 = vmatpush.bf16.msra.mxu0 %v7099
        %8024 = vmatpush.bf16.msra.mxu0 %v7092
        %8025 = vmatpush.bf16.msra.mxu0 %v7085
        %8026 = vmatpush.bf16.msra.mxu0 %v7078
        %8027 = vmatpush.bf16.msra.mxu0 %v7071
        %8028 = vmatpush.bf16.msra.mxu0 %v7064
        %8029 = vmatpush.bf16.msra.mxu0 %v7057
        %8030 = vmatpush.bf16.msra.mxu0 %v7050
        %8031 = vmatmul.bf16.gmra.mxu0 %v5524
        %v8032 = vpop.f32.mrf.mxu0
        %v8033 = vadd.f32 %v5936, %v8032
        %v8034 = vpop.f32.mrf.mxu0
        %8035 = vdwg.mxu0
        %8036 = vmatpush.bf16.msra.mxu0 %v7155
        %8037 = vmatpush.bf16.msra.mxu0 %v7148
        %8038 = vmatpush.bf16.msra.mxu0 %v7141
        %8039 = vmatpush.bf16.msra.mxu0 %v7134
        %8040 = vmatpush.bf16.msra.mxu0 %v7127
        %8041 = vmatpush.bf16.msra.mxu0 %v7120
        %8042 = vmatpush.bf16.msra.mxu0 %v7113
        %8043 = vmatpush.bf16.msra.mxu0 %v7106
        %8044 = vmatmul.bf16.gmra.mxu0 %v5525
        %v8045 = vpop.f32.mrf.mxu0
        %v8046 = vadd.f32 %v8033, %v8045
        %v8047 = vpop.f32.mrf.mxu0
        %8048 = vdwg.mxu0
        %8049 = vmatpush.bf16.msra.mxu0 %v7211
        %8050 = vmatpush.bf16.msra.mxu0 %v7204
        %8051 = vmatpush.bf16.msra.mxu0 %v7197
        %8052 = vmatpush.bf16.msra.mxu0 %v7190
        %8053 = vmatpush.bf16.msra.mxu0 %v7183
        %8054 = vmatpush.bf16.msra.mxu0 %v7176
        %8055 = vmatpush.bf16.msra.mxu0 %v7169
        %8056 = vmatpush.bf16.msra.mxu0 %v7162
        %8057 = vmatmul.bf16.gmra.mxu0 %v5526
        %v8058 = vpop.f32.mrf.mxu0
        %v8059 = vadd.f32 %v8046, %v8058
        %v8060 = vpop.f32.mrf.mxu0
        %8061 = vdwg.mxu0
        %8062 = vmatpush.bf16.msra.mxu0 %v7267
        %8063 = vmatpush.bf16.msra.mxu0 %v7260
        %8064 = vmatpush.bf16.msra.mxu0 %v7253
        %8065 = vmatpush.bf16.msra.mxu0 %v7246
        %8066 = vmatpush.bf16.msra.mxu0 %v7239
        %8067 = vmatpush.bf16.msra.mxu0 %v7232
        %8068 = vmatpush.bf16.msra.mxu0 %v7225
        %8069 = vmatpush.bf16.msra.mxu0 %v7218
        %8070 = vmatmul.bf16.gmra.mxu0 %v5527
        %v8071 = vpop.f32.mrf.mxu0
        %v8072 = vadd.f32 %v8059, %v8071
        %v8073 = vpop.f32.mrf.mxu0
        %8074 = vdwg.mxu0
        %8075 = vmatpush.bf16.msra.mxu0 %v7323
        %8076 = vmatpush.bf16.msra.mxu0 %v7316
        %8077 = vmatpush.bf16.msra.mxu0 %v7309
        %8078 = vmatpush.bf16.msra.mxu0 %v7302
        %8079 = vmatpush.bf16.msra.mxu0 %v7295
        %8080 = vmatpush.bf16.msra.mxu0 %v7288
        %8081 = vmatpush.bf16.msra.mxu0 %v7281
        %8082 = vmatpush.bf16.msra.mxu0 %v7274
        %8083 = vmatmul.bf16.gmra.mxu0 %v5528
        %v8084 = vpop.f32.mrf.mxu0
        %v8085 = vadd.f32 %v8072, %v8084
        %v8086 = vpop.f32.mrf.mxu0
        %8087 = vdwg.mxu0
        %8088 = vmatpush.bf16.msra.mxu0 %v7379
        %8089 = vmatpush.bf16.msra.mxu0 %v7372
        %8090 = vmatpush.bf16.msra.mxu0 %v7365
        %8091 = vmatpush.bf16.msra.mxu0 %v7358
        %8092 = vmatpush.bf16.msra.mxu0 %v7351
        %8093 = vmatpush.bf16.msra.mxu0 %v7344
        %8094 = vmatpush.bf16.msra.mxu0 %v7337
        %8095 = vmatpush.bf16.msra.mxu0 %v7330
        %8096 = vmatmul.bf16.gmra.mxu0 %v5529
        %v8097 = vpop.f32.mrf.mxu0
        %v8098 = vadd.f32 %v8085, %v8097
        %v8099 = vpop.f32.mrf.mxu0
        %8100 = vdwg.mxu0
        %8101 = vmatpush.bf16.msra.mxu0 0
        %8102 = vmatpush.bf16.msra.mxu0 0
        %8103 = vmatpush.bf16.msra.mxu0 0
        %8104 = vmatpush.bf16.msra.mxu0 0
        %8105 = vmatpush.bf16.msra.mxu0 0
        %8106 = vmatpush.bf16.msra.mxu0 0
        %8107 = vmatpush.bf16.msra.mxu0 %v7393
        %8108 = vmatpush.bf16.msra.mxu0 %v7386
        %8109 = vmatmul.bf16.gmra.mxu0 %v7748
        %v8110 = vpop.f32.mrf.mxu0
        %v8111 = vadd.f32 %v8098, %v8110
        %v8112 = vpop.f32.mrf.mxu0
        %8113 = vdwg.mxu0
        %8114 = vmatpush.bf16.msra.mxu0 %v7100
        %8115 = vmatpush.bf16.msra.mxu0 %v7093
        %8116 = vmatpush.bf16.msra.mxu0 %v7086
        %8117 = vmatpush.bf16.msra.mxu0 %v7079
        %8118 = vmatpush.bf16.msra.mxu0 %v7072
        %8119 = vmatpush.bf16.msra.mxu0 %v7065
        %8120 = vmatpush.bf16.msra.mxu0 %v7058
        %8121 = vmatpush.bf16.msra.mxu0 %v7051
        %8122 = vmatmul.bf16.gmra.mxu0 %v5524
        %v8123 = vpop.f32.mrf.mxu0
        %v8124 = vadd.f32 %v5937, %v8123
        %v8125 = vpop.f32.mrf.mxu0
        %8126 = vdwg.mxu0
        %8127 = vmatpush.bf16.msra.mxu0 %v7156
        %8128 = vmatpush.bf16.msra.mxu0 %v7149
        %8129 = vmatpush.bf16.msra.mxu0 %v7142
        %8130 = vmatpush.bf16.msra.mxu0 %v7135
        %8131 = vmatpush.bf16.msra.mxu0 %v7128
        %8132 = vmatpush.bf16.msra.mxu0 %v7121
        %8133 = vmatpush.bf16.msra.mxu0 %v7114
        %8134 = vmatpush.bf16.msra.mxu0 %v7107
        %8135 = vmatmul.bf16.gmra.mxu0 %v5525
        %v8136 = vpop.f32.mrf.mxu0
        %v8137 = vadd.f32 %v8124, %v8136
        %v8138 = vpop.f32.mrf.mxu0
        %8139 = vdwg.mxu0
        %8140 = vmatpush.bf16.msra.mxu0 %v7212
        %8141 = vmatpush.bf16.msra.mxu0 %v7205
        %8142 = vmatpush.bf16.msra.mxu0 %v7198
        %8143 = vmatpush.bf16.msra.mxu0 %v7191
        %8144 = vmatpush.bf16.msra.mxu0 %v7184
        %8145 = vmatpush.bf16.msra.mxu0 %v7177
        %8146 = vmatpush.bf16.msra.mxu0 %v7170
        %8147 = vmatpush.bf16.msra.mxu0 %v7163
        %8148 = vmatmul.bf16.gmra.mxu0 %v5526
        %v8149 = vpop.f32.mrf.mxu0
        %v8150 = vadd.f32 %v8137, %v8149
        %v8151 = vpop.f32.mrf.mxu0
        %8152 = vdwg.mxu0
        %8153 = vmatpush.bf16.msra.mxu0 %v7268
        %8154 = vmatpush.bf16.msra.mxu0 %v7261
        %8155 = vmatpush.bf16.msra.mxu0 %v7254
        %8156 = vmatpush.bf16.msra.mxu0 %v7247
        %8157 = vmatpush.bf16.msra.mxu0 %v7240
        %8158 = vmatpush.bf16.msra.mxu0 %v7233
        %8159 = vmatpush.bf16.msra.mxu0 %v7226
        %8160 = vmatpush.bf16.msra.mxu0 %v7219
        %8161 = vmatmul.bf16.gmra.mxu0 %v5527
        %v8162 = vpop.f32.mrf.mxu0
        %v8163 = vadd.f32 %v8150, %v8162
        %v8164 = vpop.f32.mrf.mxu0
        %8165 = vdwg.mxu0
        %8166 = vmatpush.bf16.msra.mxu0 %v7324
        %8167 = vmatpush.bf16.msra.mxu0 %v7317
        %8168 = vmatpush.bf16.msra.mxu0 %v7310
        %8169 = vmatpush.bf16.msra.mxu0 %v7303
        %8170 = vmatpush.bf16.msra.mxu0 %v7296
        %8171 = vmatpush.bf16.msra.mxu0 %v7289
        %8172 = vmatpush.bf16.msra.mxu0 %v7282
        %8173 = vmatpush.bf16.msra.mxu0 %v7275
        %8174 = vmatmul.bf16.gmra.mxu0 %v5528
        %v8175 = vpop.f32.mrf.mxu0
        %v8176 = vadd.f32 %v8163, %v8175
        %v8177 = vpop.f32.mrf.mxu0
        %8178 = vdwg.mxu0
        %8179 = vmatpush.bf16.msra.mxu0 %v7380
        %8180 = vmatpush.bf16.msra.mxu0 %v7373
        %8181 = vmatpush.bf16.msra.mxu0 %v7366
        %8182 = vmatpush.bf16.msra.mxu0 %v7359
        %8183 = vmatpush.bf16.msra.mxu0 %v7352
        %8184 = vmatpush.bf16.msra.mxu0 %v7345
        %8185 = vmatpush.bf16.msra.mxu0 %v7338
        %8186 = vmatpush.bf16.msra.mxu0 %v7331
        %8187 = vmatmul.bf16.gmra.mxu0 %v5529
        %v8188 = vpop.f32.mrf.mxu0
        %v8189 = vadd.f32 %v8176, %v8188
        %v8190 = vpop.f32.mrf.mxu0
        %8191 = vdwg.mxu0
        %8192 = vmatpush.bf16.msra.mxu0 0
        %8193 = vmatpush.bf16.msra.mxu0 0
        %8194 = vmatpush.bf16.msra.mxu0 0
        %8195 = vmatpush.bf16.msra.mxu0 0
        %8196 = vmatpush.bf16.msra.mxu0 0
        %8197 = vmatpush.bf16.msra.mxu0 0
        %8198 = vmatpush.bf16.msra.mxu0 %v7394
        %8199 = vmatpush.bf16.msra.mxu0 %v7387
        %8200 = vmatmul.bf16.gmra.mxu0 %v7748
        %v8201 = vpop.f32.mrf.mxu0
        %v8202 = vadd.f32 %v8189, %v8201
        %v8203 = vpop.f32.mrf.mxu0
        %8204 = vdwg.mxu0
        %8205 = vmatpush.bf16.msra.mxu0 %v7101
        %8206 = vmatpush.bf16.msra.mxu0 %v7094
        %8207 = vmatpush.bf16.msra.mxu0 %v7087
        %8208 = vmatpush.bf16.msra.mxu0 %v7080
        %8209 = vmatpush.bf16.msra.mxu0 %v7073
        %8210 = vmatpush.bf16.msra.mxu0 %v7066
        %8211 = vmatpush.bf16.msra.mxu0 %v7059
        %8212 = vmatpush.bf16.msra.mxu0 %v7052
        %8213 = vmatmul.bf16.gmra.mxu0 %v5524
        %v8214 = vpop.f32.mrf.mxu0
        %v8215 = vadd.f32 %v5938, %v8214
        %v8216 = vpop.f32.mrf.mxu0
        %8217 = vdwg.mxu0
        %8218 = vmatpush.bf16.msra.mxu0 %v7157
        %8219 = vmatpush.bf16.msra.mxu0 %v7150
        %8220 = vmatpush.bf16.msra.mxu0 %v7143
        %8221 = vmatpush.bf16.msra.mxu0 %v7136
        %8222 = vmatpush.bf16.msra.mxu0 %v7129
        %8223 = vmatpush.bf16.msra.mxu0 %v7122
        %8224 = vmatpush.bf16.msra.mxu0 %v7115
        %8225 = vmatpush.bf16.msra.mxu0 %v7108
        %8226 = vmatmul.bf16.gmra.mxu0 %v5525
        %v8227 = vpop.f32.mrf.mxu0
        %v8228 = vadd.f32 %v8215, %v8227
        %v8229 = vpop.f32.mrf.mxu0
        %8230 = vdwg.mxu0
        %8231 = vmatpush.bf16.msra.mxu0 %v7213
        %8232 = vmatpush.bf16.msra.mxu0 %v7206
        %8233 = vmatpush.bf16.msra.mxu0 %v7199
        %8234 = vmatpush.bf16.msra.mxu0 %v7192
        %8235 = vmatpush.bf16.msra.mxu0 %v7185
        %8236 = vmatpush.bf16.msra.mxu0 %v7178
        %8237 = vmatpush.bf16.msra.mxu0 %v7171
        %8238 = vmatpush.bf16.msra.mxu0 %v7164
        %8239 = vmatmul.bf16.gmra.mxu0 %v5526
        %v8240 = vpop.f32.mrf.mxu0
        %v8241 = vadd.f32 %v8228, %v8240
        %v8242 = vpop.f32.mrf.mxu0
        %8243 = vdwg.mxu0
        %8244 = vmatpush.bf16.msra.mxu0 %v7269
        %8245 = vmatpush.bf16.msra.mxu0 %v7262
        %8246 = vmatpush.bf16.msra.mxu0 %v7255
        %8247 = vmatpush.bf16.msra.mxu0 %v7248
        %8248 = vmatpush.bf16.msra.mxu0 %v7241
        %8249 = vmatpush.bf16.msra.mxu0 %v7234
        %8250 = vmatpush.bf16.msra.mxu0 %v7227
        %8251 = vmatpush.bf16.msra.mxu0 %v7220
        %8252 = vmatmul.bf16.gmra.mxu0 %v5527
        %v8253 = vpop.f32.mrf.mxu0
        %v8254 = vadd.f32 %v8241, %v8253
        %v8255 = vpop.f32.mrf.mxu0
        %8256 = vdwg.mxu0
        %8257 = vmatpush.bf16.msra.mxu0 %v7325
        %8258 = vmatpush.bf16.msra.mxu0 %v7318
        %8259 = vmatpush.bf16.msra.mxu0 %v7311
        %8260 = vmatpush.bf16.msra.mxu0 %v7304
        %8261 = vmatpush.bf16.msra.mxu0 %v7297
        %8262 = vmatpush.bf16.msra.mxu0 %v7290
        %8263 = vmatpush.bf16.msra.mxu0 %v7283
        %8264 = vmatpush.bf16.msra.mxu0 %v7276
        %8265 = vmatmul.bf16.gmra.mxu0 %v5528
        %v8266 = vpop.f32.mrf.mxu0
        %v8267 = vadd.f32 %v8254, %v8266
        %v8268 = vpop.f32.mrf.mxu0
        %8269 = vdwg.mxu0
        %8270 = vmatpush.bf16.msra.mxu0 %v7381
        %8271 = vmatpush.bf16.msra.mxu0 %v7374
        %8272 = vmatpush.bf16.msra.mxu0 %v7367
        %8273 = vmatpush.bf16.msra.mxu0 %v7360
        %8274 = vmatpush.bf16.msra.mxu0 %v7353
        %8275 = vmatpush.bf16.msra.mxu0 %v7346
        %8276 = vmatpush.bf16.msra.mxu0 %v7339
        %8277 = vmatpush.bf16.msra.mxu0 %v7332
        %8278 = vmatmul.bf16.gmra.mxu0 %v5529
        %v8279 = vpop.f32.mrf.mxu0
        %v8280 = vadd.f32 %v8267, %v8279
        %v8281 = vpop.f32.mrf.mxu0
        %8282 = vdwg.mxu0
        %8283 = vmatpush.bf16.msra.mxu0 0
        %8284 = vmatpush.bf16.msra.mxu0 0
        %8285 = vmatpush.bf16.msra.mxu0 0
        %8286 = vmatpush.bf16.msra.mxu0 0
        %8287 = vmatpush.bf16.msra.mxu0 0
        %8288 = vmatpush.bf16.msra.mxu0 0
        %8289 = vmatpush.bf16.msra.mxu0 %v7395
        %8290 = vmatpush.bf16.msra.mxu0 %v7388
        %8291 = vmatmul.bf16.gmra.mxu0 %v7748
        %v8292 = vpop.f32.mrf.mxu0
        %v8293 = vadd.f32 %v8280, %v8292
        %v8294 = vpop.f32.mrf.mxu0
        %8295 = vdwg.mxu0
        %8296 = vmatpush.bf16.msra.mxu0 %v7102
        %8297 = vmatpush.bf16.msra.mxu0 %v7095
        %8298 = vmatpush.bf16.msra.mxu0 %v7088
        %8299 = vmatpush.bf16.msra.mxu0 %v7081
        %8300 = vmatpush.bf16.msra.mxu0 %v7074
        %8301 = vmatpush.bf16.msra.mxu0 %v7067
        %8302 = vmatpush.bf16.msra.mxu0 %v7060
        %8303 = vmatpush.bf16.msra.mxu0 %v7053
        %8304 = vmatmul.bf16.gmra.mxu0 %v5524
        %v8305 = vpop.f32.mrf.mxu0
        %v8306 = vadd.f32 %v5939, %v8305
        %v8307 = vpop.f32.mrf.mxu0
        %8308 = vdwg.mxu0
        %8309 = vmatpush.bf16.msra.mxu0 %v7158
        %8310 = vmatpush.bf16.msra.mxu0 %v7151
        %8311 = vmatpush.bf16.msra.mxu0 %v7144
        %8312 = vmatpush.bf16.msra.mxu0 %v7137
        %8313 = vmatpush.bf16.msra.mxu0 %v7130
        %8314 = vmatpush.bf16.msra.mxu0 %v7123
        %8315 = vmatpush.bf16.msra.mxu0 %v7116
        %8316 = vmatpush.bf16.msra.mxu0 %v7109
        %8317 = vmatmul.bf16.gmra.mxu0 %v5525
        %v8318 = vpop.f32.mrf.mxu0
        %v8319 = vadd.f32 %v8306, %v8318
        %v8320 = vpop.f32.mrf.mxu0
        %8321 = vdwg.mxu0
        %8322 = vmatpush.bf16.msra.mxu0 %v7214
        %8323 = vmatpush.bf16.msra.mxu0 %v7207
        %8324 = vmatpush.bf16.msra.mxu0 %v7200
        %8325 = vmatpush.bf16.msra.mxu0 %v7193
        %8326 = vmatpush.bf16.msra.mxu0 %v7186
        %8327 = vmatpush.bf16.msra.mxu0 %v7179
        %8328 = vmatpush.bf16.msra.mxu0 %v7172
        %8329 = vmatpush.bf16.msra.mxu0 %v7165
        %8330 = vmatmul.bf16.gmra.mxu0 %v5526
        %v8331 = vpop.f32.mrf.mxu0
        %v8332 = vadd.f32 %v8319, %v8331
        %v8333 = vpop.f32.mrf.mxu0
        %8334 = vdwg.mxu0
        %8335 = vmatpush.bf16.msra.mxu0 %v7270
        %8336 = vmatpush.bf16.msra.mxu0 %v7263
        %8337 = vmatpush.bf16.msra.mxu0 %v7256
        %8338 = vmatpush.bf16.msra.mxu0 %v7249
        %8339 = vmatpush.bf16.msra.mxu0 %v7242
        %8340 = vmatpush.bf16.msra.mxu0 %v7235
        %8341 = vmatpush.bf16.msra.mxu0 %v7228
        %8342 = vmatpush.bf16.msra.mxu0 %v7221
        %8343 = vmatmul.bf16.gmra.mxu0 %v5527
        %v8344 = vpop.f32.mrf.mxu0
        %v8345 = vadd.f32 %v8332, %v8344
        %v8346 = vpop.f32.mrf.mxu0
        %8347 = vdwg.mxu0
        %8348 = vmatpush.bf16.msra.mxu0 %v7326
        %8349 = vmatpush.bf16.msra.mxu0 %v7319
        %8350 = vmatpush.bf16.msra.mxu0 %v7312
        %8351 = vmatpush.bf16.msra.mxu0 %v7305
        %8352 = vmatpush.bf16.msra.mxu0 %v7298
        %8353 = vmatpush.bf16.msra.mxu0 %v7291
        %8354 = vmatpush.bf16.msra.mxu0 %v7284
        %8355 = vmatpush.bf16.msra.mxu0 %v7277
        %8356 = vmatmul.bf16.gmra.mxu0 %v5528
        %v8357 = vpop.f32.mrf.mxu0
        %v8358 = vadd.f32 %v8345, %v8357
        %v8359 = vpop.f32.mrf.mxu0
        %8360 = vdwg.mxu0
        %8361 = vmatpush.bf16.msra.mxu0 %v7382
        %8362 = vmatpush.bf16.msra.mxu0 %v7375
        %8363 = vmatpush.bf16.msra.mxu0 %v7368
        %8364 = vmatpush.bf16.msra.mxu0 %v7361
        %8365 = vmatpush.bf16.msra.mxu0 %v7354
        %8366 = vmatpush.bf16.msra.mxu0 %v7347
        %8367 = vmatpush.bf16.msra.mxu0 %v7340
        %8368 = vmatpush.bf16.msra.mxu0 %v7333
        %8369 = vmatmul.bf16.gmra.mxu0 %v5529
        %v8370 = vpop.f32.mrf.mxu0
        %v8371 = vadd.f32 %v8358, %v8370
        %v8372 = vpop.f32.mrf.mxu0
        %8373 = vdwg.mxu0
        %8374 = vmatpush.bf16.msra.mxu0 0
        %8375 = vmatpush.bf16.msra.mxu0 0
        %8376 = vmatpush.bf16.msra.mxu0 0
        %8377 = vmatpush.bf16.msra.mxu0 0
        %8378 = vmatpush.bf16.msra.mxu0 0
        %8379 = vmatpush.bf16.msra.mxu0 0
        %8380 = vmatpush.bf16.msra.mxu0 %v7396
        %8381 = vmatpush.bf16.msra.mxu0 %v7389
        %8382 = vmatmul.bf16.gmra.mxu0 %v7748
        %v8383 = vpop.f32.mrf.mxu0
        %v8384 = vadd.f32 %v8371, %v8383
        %v8385 = vpop.f32.mrf.mxu0
        %8386 = vdwg.mxu0
        %vm8387 = vcmp.gt.f32.partialorder %v7838, 0.0
        %vm8388 = vcmp.gt.f32.partialorder %v7929, 0.0
        %vm8389 = vcmp.gt.f32.partialorder %v8020, 0.0
        %vm8390 = vcmp.gt.f32.partialorder %v8111, 0.0
        %vm8391 = vcmp.gt.f32.partialorder %v8202, 0.0
        %vm8392 = vcmp.gt.f32.partialorder %v8293, 0.0
        %vm8393 = vcmp.gt.f32.partialorder %v8384, 0.0
        %v8394 = vmul.f32 %v7838, 0.01
        %v8395 = vmul.f32 %v7929, 0.01
        %v8396 = vmul.f32 %v8020, 0.01
        %v8397 = vmul.f32 %v8111, 0.01
        %v8398 = vmul.f32 %v8202, 0.01
        %v8399 = vmul.f32 %v8293, 0.01
        %v8400 = vmul.f32 %v8384, 0.01
        %v8401 = vsel %vm8387, %v7838, %v8394
        %v8402 = vsel %vm8388, %v7929, %v8395
        %v8403 = vsel %vm8389, %v8020, %v8396
        %v8404 = vsel %vm8390, %v8111, %v8397
        %v8405 = vsel %vm8391, %v8202, %v8398
        %v8406 = vsel %vm8392, %v8293, %v8399
        %v8407 = vsel %vm8393, %v8384, %v8400
        %v8408 = vpack.c.bf16 %v8401, %v8401
        %v8409 = vpack.c.bf16 %v8402, %v8402
        %v8410 = vpack.c.bf16 %v8403, %v8403
        %v8411 = vpack.c.bf16 %v8404, %v8404
        %v8412 = vpack.c.bf16 %v8405, %v8405
        %v8413 = vpack.c.bf16 %v8406, %v8406
        %v8414 = vpack.c.bf16 %v8407, %v8407
        %v8415 = vld [vmem:[%s11] sm:$0xff]
        %v8416 = vld [vmem:[%s11 + $0x8] sm:$0xff]
        %v8417 = vld [vmem:[%s11 + $0x10] sm:$0xff]
        %v8418 = vld [vmem:[%s11 + $0x18] sm:$0xff]
        %v8419 = vld [vmem:[%s11 + $0x20] sm:$0xff]
        %v8420 = vld [vmem:[%s11 + $0x28] sm:$0xff]
        %v8421 = vld [vmem:[%s11 + $0x30] sm:$0xff]
        %v8422 = vld [vmem:[%s11 + $0x38] sm:$0xff]
        %v8423 = vld [vmem:[%s11 + $0x40] sm:$0xff]
        %v8424 = vld [vmem:[%s11 + $0x48] sm:$0xff]
        %v8425 = vld [vmem:[%s11 + $0x50] sm:$0xff]
        %v8426 = vld [vmem:[%s11 + $0x58] sm:$0xff]
        %v8427 = vld [vmem:[%s11 + $0x60] sm:$0xff]
        %v8428 = vld [vmem:[%s11 + $0x68] sm:$0xff]
        %v8429 = vld [vmem:[%s11 + $0x70] sm:$0xff]
        %v8430 = vld [vmem:[%s11 + $0x78] sm:$0xff]
        %v8431 = vld [vmem:[%s11 + $0x80] sm:$0xff]
        %v8432 = vld [vmem:[%s11 + $0x88] sm:$0xff]
        %v8433 = vld [vmem:[%s11 + $0x90] sm:$0xff]
        %v8434 = vld [vmem:[%s11 + $0x98] sm:$0xff]
        %v8435 = vld [vmem:[%s11 + $0xa0] sm:$0xff]
        %v8436 = vld [vmem:[%s11 + $0xa8] sm:$0xff]
        %v8437 = vld [vmem:[%s11 + $0xb0] sm:$0xff]
        %v8438 = vld [vmem:[%s11 + $0xb8] sm:$0xff]
        %v8439 = vld [vmem:[%s11 + $0xc0] sm:$0xff]
        %v8440 = vld [vmem:[%s11 + $0xc8] sm:$0xff]
        %v8441 = vld [vmem:[%s11 + $0xd0] sm:$0xff]
        %v8442 = vld [vmem:[%s11 + $0xd8] sm:$0xff]
        %v8443 = vld [vmem:[%s11 + $0xe0] sm:$0xff]
        %v8444 = vld [vmem:[%s11 + $0xe8] sm:$0xff]
        %v8445 = vld [vmem:[%s11 + $0xf0] sm:$0xff]
        %v8446 = vld [vmem:[%s11 + $0xf8] sm:$0xff]
        %v8447 = vld [vmem:[%s11 + $0x100] sm:$0xff]
        %v8448 = vld [vmem:[%s11 + $0x108] sm:$0xff]
        %v8449 = vld [vmem:[%s11 + $0x110] sm:$0xff]
        %v8450 = vld [vmem:[%s11 + $0x118] sm:$0xff]
        %v8451 = vld [vmem:[%s11 + $0x120] sm:$0xff]
        %v8452 = vld [vmem:[%s11 + $0x128] sm:$0xff]
        %v8453 = vld [vmem:[%s11 + $0x130] sm:$0xff]
        %v8454 = vld [vmem:[%s11 + $0x138] sm:$0xff]
        %v8455 = vld [vmem:[%s11 + $0x140] sm:$0xff]
        %v8456 = vld [vmem:[%s11 + $0x148] sm:$0xff]
        %v8457 = vld [vmem:[%s11 + $0x150] sm:$0xff]
        %v8458 = vld [vmem:[%s11 + $0x158] sm:$0xff]
        %v8459 = vld [vmem:[%s11 + $0x160] sm:$0xff]
        %v8460 = vld [vmem:[%s11 + $0x168] sm:$0xff]
        %v8461 = vld [vmem:[%s11 + $0x170] sm:$0xff]
        %v8462 = vld [vmem:[%s11 + $0x178] sm:$0xff]
        %v8463 = vld [vmem:[%s11 + $0x180] sm:$0xff]
        %v8464 = vld [vmem:[%s11 + $0x188] sm:$0xff]
        %v8465 = vld [vmem:[%s11 + $0x190] sm:$0xff]
        %v8466 = vld [vmem:[%s11 + $0x198] sm:$0xff]
        %v8467 = vld [vmem:[%s11 + $0x1a0] sm:$0xff]
        %v8468 = vld [vmem:[%s11 + $0x1a8] sm:$0xff]
        %v8469 = vld [vmem:[%s11 + $0x1b0] sm:$0xff]
        %v8470 = vld [vmem:[%s11 + $0x1b8] sm:$0xff]
        %v8471 = vld [vmem:[%s11 + $0x1c0] sm:$0xff]
        %v8472 = vld [vmem:[%s11 + $0x1c8] sm:$0xff]
        %v8473 = vld [vmem:[%s11 + $0x1d0] sm:$0xff]
        %v8474 = vld [vmem:[%s11 + $0x1d8] sm:$0xff]
        %v8475 = vld [vmem:[%s11 + $0x1e0] sm:$0xff]
        %v8476 = vld [vmem:[%s11 + $0x1e8] sm:$0xff]
        %v8477 = vld [vmem:[%s11 + $0x1f0] sm:$0xff]
        %v8478 = vld [vmem:[%s11 + $0x1f8] sm:$0xff]
        %v8479 = vld [vmem:[%s11 + $0x200] sm:$0xff]
        %v8480 = vld [vmem:[%s11 + $0x208] sm:$0xff]
        %v8481 = vld [vmem:[%s11 + $0x210] sm:$0xff]
        %v8482 = vld [vmem:[%s11 + $0x218] sm:$0xff]
        %v8483 = vld [vmem:[%s11 + $0x220] sm:$0xff]
        %v8484 = vld [vmem:[%s11 + $0x228] sm:$0xff]
        %v8485 = vld [vmem:[%s11 + $0x230] sm:$0xff]
        %v8486 = vld [vmem:[%s11 + $0x238] sm:$0xff]
        %v8487 = vld [vmem:[%s11 + $0x240] sm:$0xff]
        %v8488 = vld [vmem:[%s11 + $0x248] sm:$0xff]
        %v8489 = vld [vmem:[%s11 + $0x250] sm:$0xff]
        %v8490 = vld [vmem:[%s11 + $0x258] sm:$0xff]
        %v8491 = vld [vmem:[%s11 + $0x260] sm:$0xff]
        %v8492 = vld [vmem:[%s11 + $0x268] sm:$0xff]
        %v8493 = vld [vmem:[%s11 + $0x270] sm:$0xff]
        %v8494 = vld [vmem:[%s11 + $0x278] sm:$0xff]
        %v8495 = vld [vmem:[%s11 + $0x280] sm:$0xff]
        %v8496 = vld [vmem:[%s11 + $0x288] sm:$0xff]
        %v8497 = vld [vmem:[%s11 + $0x290] sm:$0xff]
        %v8498 = vld [vmem:[%s11 + $0x298] sm:$0xff]
        %v8499 = vld [vmem:[%s11 + $0x2a0] sm:$0xff]
        %v8500 = vld [vmem:[%s11 + $0x2a8] sm:$0xff]
        %v8501 = vld [vmem:[%s11 + $0x2b0] sm:$0xff]
        %v8502 = vld [vmem:[%s11 + $0x2b8] sm:$0xff]
        %v8503 = vld [vmem:[%s11 + $0x2c0] sm:$0xff]
        %v8504 = vld [vmem:[%s11 + $0x2c8] sm:$0xff]
        %v8505 = vld [vmem:[%s11 + $0x2d0] sm:$0xff]
        %v8506 = vld [vmem:[%s11 + $0x2d8] sm:$0xff]
        %v8507 = vld [vmem:[%s11 + $0x2e0] sm:$0xff]
        %v8508 = vld [vmem:[%s11 + $0x2e8] sm:$0xff]
        %v8509 = vld [vmem:[%s11 + $0x2f0] sm:$0xff]
        %v8510 = vld [vmem:[%s11 + $0x2f8] sm:$0xff]
        %v8511 = vld [vmem:[%s11 + $0x300] sm:$0xff]
        %v8512 = vld [vmem:[%s11 + $0x308] sm:$0xff]
        %v8513 = vld [vmem:[%s11 + $0x310] sm:$0xff]
        %v8514 = vld [vmem:[%s11 + $0x318] sm:$0xff]
        %v8515 = vld [vmem:[%s11 + $0x320] sm:$0xff]
        %v8516 = vld [vmem:[%s11 + $0x328] sm:$0xff]
        %v8517 = vld [vmem:[%s11 + $0x330] sm:$0xff]
        %v8518 = vld [vmem:[%s11 + $0x338] sm:$0xff]
        %v8519 = vld [vmem:[%s11 + $0x340] sm:$0xff]
        %v8520 = vld [vmem:[%s11 + $0x348] sm:$0xff]
        %v8521 = vld [vmem:[%s11 + $0x350] sm:$0xff]
        %v8522 = vld [vmem:[%s11 + $0x358] sm:$0xff]
        %v8523 = vld [vmem:[%s11 + $0x360] sm:$0xff]
        %v8524 = vld [vmem:[%s11 + $0x368] sm:$0xff]
        %v8525 = vld [vmem:[%s11 + $0x370] sm:$0xff]
        %v8526 = vld [vmem:[%s11 + $0x378] sm:$0xff]
        %v8527 = vld [vmem:[%s11 + $0x380] sm:$0xff]
        %v8528 = vld [vmem:[%s11 + $0x388] sm:$0xff]
        %v8529 = vld [vmem:[%s11 + $0x390] sm:$0xff]
        %v8530 = vld [vmem:[%s11 + $0x398] sm:$0xff]
        %v8531 = vld [vmem:[%s11 + $0x3a0] sm:$0xff]
        %v8532 = vld [vmem:[%s11 + $0x3a8] sm:$0xff]
        %v8533 = vld [vmem:[%s11 + $0x3b0] sm:$0xff]
        %v8534 = vld [vmem:[%s11 + $0x3b8] sm:$0xff]
        %v8535 = vld [vmem:[%s11 + $0x3c0] sm:$0xff]
        %v8536 = vld [vmem:[%s11 + $0x3c8] sm:$0xff]
        %v8537 = vld [vmem:[%s11 + $0x3d0] sm:$0xff]
        %v8538 = vld [vmem:[%s11 + $0x3d8] sm:$0xff]
        %v8539 = vld [vmem:[%s11 + $0x3e0] sm:$0xff]
        %v8540 = vld [vmem:[%s11 + $0x3e8] sm:$0xff]
        %v8541 = vld [vmem:[%s11 + $0x3f0] sm:$0xff]
        %v8542 = vld [vmem:[%s11 + $0x3f8] sm:$0xff]
        %v8543 = vld [vmem:[%s11 + $0x400] sm:$0xff]
        %v8544 = vld [vmem:[%s11 + $0x408] sm:$0xff]
        %v8545 = vld [vmem:[%s11 + $0x410] sm:$0xff]
        %v8546 = vld [vmem:[%s11 + $0x418] sm:$0xff]
        %v8547 = vld [vmem:[%s11 + $0x420] sm:$0xff]
        %v8548 = vld [vmem:[%s11 + $0x428] sm:$0xff]
        %v8549 = vld [vmem:[%s11 + $0x430] sm:$0xff]
        %v8550 = vld [vmem:[%s11 + $0x438] sm:$0xff]
        %v8551 = vld [vmem:[%s11 + $0x440] sm:$0xff]
        %v8552 = vld [vmem:[%s11 + $0x448] sm:$0xff]
        %v8553 = vld [vmem:[%s11 + $0x450] sm:$0xff]
        %v8554 = vld [vmem:[%s11 + $0x458] sm:$0xff]
        %v8555 = vld [vmem:[%s11 + $0x460] sm:$0xff]
        %v8556 = vld [vmem:[%s11 + $0x468] sm:$0xff]
        %v8557 = vld [vmem:[%s11 + $0x470] sm:$0xff]
        %v8558 = vld [vmem:[%s11 + $0x478] sm:$0xff]
        %v8559 = vld [vmem:[%s11 + $0x480] sm:$0xff]
        %v8560 = vld [vmem:[%s11 + $0x488] sm:$0xff]
        %v8561 = vld [vmem:[%s11 + $0x490] sm:$0xff]
        %v8562 = vld [vmem:[%s11 + $0x498] sm:$0xff]
        %v8563 = vld [vmem:[%s11 + $0x4a0] sm:$0xff]
        %v8564 = vld [vmem:[%s11 + $0x4a8] sm:$0xff]
        %v8565 = vld [vmem:[%s11 + $0x4b0] sm:$0xff]
        %v8566 = vld [vmem:[%s11 + $0x4b8] sm:$0xff]
        %v8567 = vld [vmem:[%s11 + $0x4c0] sm:$0xff]
        %v8568 = vld [vmem:[%s11 + $0x4c8] sm:$0xff]
        %v8569 = vld [vmem:[%s11 + $0x4d0] sm:$0xff]
        %v8570 = vld [vmem:[%s11 + $0x4d8] sm:$0xff]
        %v8571 = vld [vmem:[%s11 + $0x4e0] sm:$0xff]
        %v8572 = vld [vmem:[%s11 + $0x4e8] sm:$0xff]
        %v8573 = vld [vmem:[%s11 + $0x4f0] sm:$0xff]
        %v8574 = vld [vmem:[%s11 + $0x4f8] sm:$0xff]
        %v8575 = vld [vmem:[%s11 + $0x500] sm:$0xff]
        %v8576 = vld [vmem:[%s11 + $0x508] sm:$0xff]
        %v8577 = vld [vmem:[%s11 + $0x510] sm:$0xff]
        %v8578 = vld [vmem:[%s11 + $0x518] sm:$0xff]
        %v8579 = vld [vmem:[%s11 + $0x520] sm:$0xff]
        %v8580 = vld [vmem:[%s11 + $0x528] sm:$0xff]
        %v8581 = vld [vmem:[%s11 + $0x530] sm:$0xff]
        %v8582 = vld [vmem:[%s11 + $0x538] sm:$0xff]
        %v8583 = vld [vmem:[%s11 + $0x540] sm:$0xff]
        %v8584 = vld [vmem:[%s11 + $0x548] sm:$0xff]
        %v8585 = vld [vmem:[%s11 + $0x550] sm:$0xff]
        %v8586 = vld [vmem:[%s11 + $0x558] sm:$0xff]
        %v8587 = vld [vmem:[%s11 + $0x560] sm:$0xff]
        %v8588 = vld [vmem:[%s11 + $0x568] sm:$0xff]
        %v8589 = vld [vmem:[%s11 + $0x570] sm:$0xff]
        %v8590 = vld [vmem:[%s11 + $0x578] sm:$0xff]
        %v8591 = vld [vmem:[%s11 + $0x580] sm:$0xff]
        %v8592 = vld [vmem:[%s11 + $0x588] sm:$0xff]
        %v8593 = vld [vmem:[%s11 + $0x590] sm:$0xff]
        %v8594 = vld [vmem:[%s11 + $0x598] sm:$0xff]
        %v8595 = vld [vmem:[%s11 + $0x5a0] sm:$0xff]
        %v8596 = vld [vmem:[%s11 + $0x5a8] sm:$0xff]
        %v8597 = vld [vmem:[%s11 + $0x5b0] sm:$0xff]
        %v8598 = vld [vmem:[%s11 + $0x5b8] sm:$0xff]
        %v8599 = vld [vmem:[%s11 + $0x5c0] sm:$0xff]
        %v8600 = vld [vmem:[%s11 + $0x5c8] sm:$0xff]
        %v8601 = vld [vmem:[%s11 + $0x5d0] sm:$0xff]
        %v8602 = vld [vmem:[%s11 + $0x5d8] sm:$0xff]
        %v8603 = vld [vmem:[%s11 + $0x5e0] sm:$0xff]
        %v8604 = vld [vmem:[%s11 + $0x5e8] sm:$0xff]
        %v8605 = vld [vmem:[%s11 + $0x5f0] sm:$0xff]
        %v8606 = vld [vmem:[%s11 + $0x5f8] sm:$0xff]
        %v8607 = vld [vmem:[%s11 + $0x600] sm:$0xff]
        %v8608 = vld [vmem:[%s11 + $0x608] sm:$0xff]
        %v8609 = vld [vmem:[%s11 + $0x610] sm:$0xff]
        %v8610 = vld [vmem:[%s11 + $0x618] sm:$0xff]
        %v8611 = vld [vmem:[%s11 + $0x620] sm:$0xff]
        %v8612 = vld [vmem:[%s11 + $0x628] sm:$0xff]
        %v8613 = vld [vmem:[%s11 + $0x630] sm:$0xff]
        %v8614 = vld [vmem:[%s11 + $0x638] sm:$0xff]
        %v8615 = vld [vmem:[%s12] sm:$0xf]
        %v8617 = vperm.slane %v8615, 0
        %v8618 = vperm.slane %v8615, 1
        %v8619 = vperm.slane %v8615, 2
        %v8620 = vperm.slane %v8615, 3
        %v8825 = vunpack.c.l.b16 %v8415
        %v8826 = vunpack.c.h.b16 %v8415
        %v8827 = vunpack.c.l.b16 %v8416
        %v8828 = vunpack.c.h.b16 %v8416
        %v8829 = vunpack.c.l.b16 %v8417
        %v8830 = vunpack.c.h.b16 %v8417
        %v8831 = vunpack.c.l.b16 %v8418
        %v8832 = vunpack.c.h.b16 %v8418
        %v8833 = vunpack.c.l.b16 %v8419
        %v8834 = vunpack.c.h.b16 %v8419
        %v8835 = vunpack.c.l.b16 %v8420
        %v8836 = vunpack.c.h.b16 %v8420
        %v8837 = vunpack.c.l.b16 %v8421
        %v8838 = vunpack.c.h.b16 %v8421
        %v8839 = vunpack.c.l.b16 %v8422
        %v8840 = vunpack.c.h.b16 %v8422
        %v8841 = vunpack.c.l.b16 %v8423
        %v8842 = vunpack.c.h.b16 %v8423
        %v8843 = vunpack.c.l.b16 %v8424
        %v8844 = vunpack.c.h.b16 %v8424
        %v8845 = vunpack.c.l.b16 %v8425
        %v8846 = vunpack.c.h.b16 %v8425
        %v8847 = vunpack.c.l.b16 %v8426
        %v8848 = vunpack.c.h.b16 %v8426
        %v8849 = vunpack.c.l.b16 %v8427
        %v8850 = vunpack.c.h.b16 %v8427
        %v8851 = vunpack.c.l.b16 %v8428
        %v8852 = vunpack.c.h.b16 %v8428
        %v8853 = vunpack.c.l.b16 %v8429
        %v8854 = vunpack.c.h.b16 %v8429
        %v8855 = vunpack.c.l.b16 %v8430
        %v8856 = vunpack.c.h.b16 %v8430
        %v8857 = vunpack.c.l.b16 %v8431
        %v8858 = vunpack.c.h.b16 %v8431
        %v8859 = vunpack.c.l.b16 %v8432
        %v8860 = vunpack.c.h.b16 %v8432
        %v8861 = vunpack.c.l.b16 %v8433
        %v8862 = vunpack.c.h.b16 %v8433
        %v8863 = vunpack.c.l.b16 %v8434
        %v8864 = vunpack.c.h.b16 %v8434
        %v8865 = vunpack.c.l.b16 %v8435
        %v8866 = vunpack.c.h.b16 %v8435
        %v8867 = vunpack.c.l.b16 %v8436
        %v8868 = vunpack.c.h.b16 %v8436
        %v8869 = vunpack.c.l.b16 %v8437
        %v8870 = vunpack.c.h.b16 %v8437
        %v8871 = vunpack.c.l.b16 %v8438
        %v8872 = vunpack.c.h.b16 %v8438
        %v8873 = vunpack.c.l.b16 %v8439
        %v8874 = vunpack.c.h.b16 %v8439
        %v8875 = vunpack.c.l.b16 %v8440
        %v8876 = vunpack.c.h.b16 %v8440
        %v8877 = vunpack.c.l.b16 %v8441
        %v8878 = vunpack.c.h.b16 %v8441
        %v8879 = vunpack.c.l.b16 %v8442
        %v8880 = vunpack.c.h.b16 %v8442
        %v8881 = vunpack.c.l.b16 %v8443
        %v8882 = vunpack.c.h.b16 %v8443
        %v8883 = vunpack.c.l.b16 %v8444
        %v8884 = vunpack.c.h.b16 %v8444
        %v8885 = vunpack.c.l.b16 %v8445
        %v8886 = vunpack.c.h.b16 %v8445
        %v8887 = vunpack.c.l.b16 %v8446
        %v8888 = vunpack.c.h.b16 %v8446
        %v8889 = vunpack.c.l.b16 %v8447
        %v8890 = vunpack.c.h.b16 %v8447
        %v8891 = vunpack.c.l.b16 %v8448
        %v8892 = vunpack.c.h.b16 %v8448
        %v8893 = vunpack.c.l.b16 %v8449
        %v8894 = vunpack.c.h.b16 %v8449
        %v8895 = vunpack.c.l.b16 %v8450
        %v8896 = vunpack.c.h.b16 %v8450
        %v8897 = vunpack.c.l.b16 %v8451
        %v8898 = vunpack.c.h.b16 %v8451
        %v8899 = vunpack.c.l.b16 %v8452
        %v8900 = vunpack.c.h.b16 %v8452
        %v8901 = vunpack.c.l.b16 %v8453
        %v8902 = vunpack.c.h.b16 %v8453
        %v8903 = vunpack.c.l.b16 %v8454
        %v8904 = vunpack.c.h.b16 %v8454
        %v8905 = vunpack.c.l.b16 %v8455
        %v8906 = vunpack.c.h.b16 %v8455
        %v8907 = vunpack.c.l.b16 %v8456
        %v8908 = vunpack.c.h.b16 %v8456
        %v8909 = vunpack.c.l.b16 %v8457
        %v8910 = vunpack.c.h.b16 %v8457
        %v8911 = vunpack.c.l.b16 %v8458
        %v8912 = vunpack.c.h.b16 %v8458
        %v8913 = vunpack.c.l.b16 %v8459
        %v8914 = vunpack.c.h.b16 %v8459
        %v8915 = vunpack.c.l.b16 %v8460
        %v8916 = vunpack.c.h.b16 %v8460
        %v8917 = vunpack.c.l.b16 %v8461
        %v8918 = vunpack.c.h.b16 %v8461
        %v8919 = vunpack.c.l.b16 %v8462
        %v8920 = vunpack.c.h.b16 %v8462
        %v8921 = vunpack.c.l.b16 %v8463
        %v8922 = vunpack.c.h.b16 %v8463
        %v8923 = vunpack.c.l.b16 %v8464
        %v8924 = vunpack.c.h.b16 %v8464
        %v8925 = vunpack.c.l.b16 %v8465
        %v8926 = vunpack.c.h.b16 %v8465
        %v8927 = vunpack.c.l.b16 %v8466
        %v8928 = vunpack.c.h.b16 %v8466
        %v8929 = vunpack.c.l.b16 %v8467
        %v8930 = vunpack.c.h.b16 %v8467
        %v8931 = vunpack.c.l.b16 %v8468
        %v8932 = vunpack.c.h.b16 %v8468
        %v8933 = vunpack.c.l.b16 %v8469
        %v8934 = vunpack.c.h.b16 %v8469
        %v8935 = vunpack.c.l.b16 %v8470
        %v8936 = vunpack.c.h.b16 %v8470
        %v8937 = vunpack.c.l.b16 %v8471
        %v8938 = vunpack.c.h.b16 %v8471
        %v8939 = vunpack.c.l.b16 %v8472
        %v8940 = vunpack.c.h.b16 %v8472
        %v8941 = vunpack.c.l.b16 %v8473
        %v8942 = vunpack.c.h.b16 %v8473
        %v8943 = vunpack.c.l.b16 %v8474
        %v8944 = vunpack.c.h.b16 %v8474
        %v8945 = vunpack.c.l.b16 %v8475
        %v8946 = vunpack.c.h.b16 %v8475
        %v8947 = vunpack.c.l.b16 %v8476
        %v8948 = vunpack.c.h.b16 %v8476
        %v8949 = vunpack.c.l.b16 %v8477
        %v8950 = vunpack.c.h.b16 %v8477
        %v8951 = vunpack.c.l.b16 %v8478
        %v8952 = vunpack.c.h.b16 %v8478
        %v8953 = vunpack.c.l.b16 %v8479
        %v8954 = vunpack.c.h.b16 %v8479
        %v8955 = vunpack.c.l.b16 %v8480
        %v8956 = vunpack.c.h.b16 %v8480
        %v8957 = vunpack.c.l.b16 %v8481
        %v8958 = vunpack.c.h.b16 %v8481
        %v8959 = vunpack.c.l.b16 %v8482
        %v8960 = vunpack.c.h.b16 %v8482
        %v8961 = vunpack.c.l.b16 %v8483
        %v8962 = vunpack.c.h.b16 %v8483
        %v8963 = vunpack.c.l.b16 %v8484
        %v8964 = vunpack.c.h.b16 %v8484
        %v8965 = vunpack.c.l.b16 %v8485
        %v8966 = vunpack.c.h.b16 %v8485
        %v8967 = vunpack.c.l.b16 %v8486
        %v8968 = vunpack.c.h.b16 %v8486
        %v8969 = vunpack.c.l.b16 %v8487
        %v8970 = vunpack.c.h.b16 %v8487
        %v8971 = vunpack.c.l.b16 %v8488
        %v8972 = vunpack.c.h.b16 %v8488
        %v8973 = vunpack.c.l.b16 %v8489
        %v8974 = vunpack.c.h.b16 %v8489
        %v8975 = vunpack.c.l.b16 %v8490
        %v8976 = vunpack.c.h.b16 %v8490
        %v8977 = vunpack.c.l.b16 %v8491
        %v8978 = vunpack.c.h.b16 %v8491
        %v8979 = vunpack.c.l.b16 %v8492
        %v8980 = vunpack.c.h.b16 %v8492
        %v8981 = vunpack.c.l.b16 %v8493
        %v8982 = vunpack.c.h.b16 %v8493
        %v8983 = vunpack.c.l.b16 %v8494
        %v8984 = vunpack.c.h.b16 %v8494
        %v8985 = vunpack.c.l.b16 %v8495
        %v8986 = vunpack.c.h.b16 %v8495
        %v8987 = vunpack.c.l.b16 %v8496
        %v8988 = vunpack.c.h.b16 %v8496
        %v8989 = vunpack.c.l.b16 %v8497
        %v8990 = vunpack.c.h.b16 %v8497
        %v8991 = vunpack.c.l.b16 %v8498
        %v8992 = vunpack.c.h.b16 %v8498
        %v8993 = vunpack.c.l.b16 %v8499
        %v8994 = vunpack.c.h.b16 %v8499
        %v8995 = vunpack.c.l.b16 %v8500
        %v8996 = vunpack.c.h.b16 %v8500
        %v8997 = vunpack.c.l.b16 %v8501
        %v8998 = vunpack.c.h.b16 %v8501
        %v8999 = vunpack.c.l.b16 %v8502
        %v9000 = vunpack.c.h.b16 %v8502
        %v9001 = vunpack.c.l.b16 %v8503
        %v9002 = vunpack.c.h.b16 %v8503
        %v9003 = vunpack.c.l.b16 %v8504
        %v9004 = vunpack.c.h.b16 %v8504
        %v9005 = vunpack.c.l.b16 %v8505
        %v9006 = vunpack.c.h.b16 %v8505
        %v9007 = vunpack.c.l.b16 %v8506
        %v9008 = vunpack.c.h.b16 %v8506
        %v9009 = vunpack.c.l.b16 %v8507
        %v9010 = vunpack.c.h.b16 %v8507
        %v9011 = vunpack.c.l.b16 %v8508
        %v9012 = vunpack.c.h.b16 %v8508
        %v9013 = vunpack.c.l.b16 %v8509
        %v9014 = vunpack.c.h.b16 %v8509
        %v9015 = vunpack.c.l.b16 %v8510
        %v9016 = vunpack.c.h.b16 %v8510
        %v9017 = vunpack.c.l.b16 %v8511
        %v9018 = vunpack.c.h.b16 %v8511
        %v9019 = vunpack.c.l.b16 %v8512
        %v9020 = vunpack.c.h.b16 %v8512
        %v9021 = vunpack.c.l.b16 %v8513
        %v9022 = vunpack.c.h.b16 %v8513
        %v9023 = vunpack.c.l.b16 %v8514
        %v9024 = vunpack.c.h.b16 %v8514
        %v9025 = vunpack.c.l.b16 %v8515
        %v9026 = vunpack.c.h.b16 %v8515
        %v9027 = vunpack.c.l.b16 %v8516
        %v9028 = vunpack.c.h.b16 %v8516
        %v9029 = vunpack.c.l.b16 %v8517
        %v9030 = vunpack.c.h.b16 %v8517
        %v9031 = vunpack.c.l.b16 %v8518
        %v9032 = vunpack.c.h.b16 %v8518
        %v9033 = vunpack.c.l.b16 %v8519
        %v9034 = vunpack.c.h.b16 %v8519
        %v9035 = vunpack.c.l.b16 %v8520
        %v9036 = vunpack.c.h.b16 %v8520
        %v9037 = vunpack.c.l.b16 %v8521
        %v9038 = vunpack.c.h.b16 %v8521
        %v9039 = vunpack.c.l.b16 %v8522
        %v9040 = vunpack.c.h.b16 %v8522
        %v9041 = vunpack.c.l.b16 %v8523
        %v9042 = vunpack.c.h.b16 %v8523
        %v9043 = vunpack.c.l.b16 %v8524
        %v9044 = vunpack.c.h.b16 %v8524
        %v9045 = vunpack.c.l.b16 %v8525
        %v9046 = vunpack.c.h.b16 %v8525
        %v9047 = vunpack.c.l.b16 %v8526
        %v9048 = vunpack.c.h.b16 %v8526
        %v9049 = vunpack.c.l.b16 %v8527
        %v9050 = vunpack.c.h.b16 %v8527
        %v9051 = vunpack.c.l.b16 %v8528
        %v9052 = vunpack.c.h.b16 %v8528
        %v9053 = vunpack.c.l.b16 %v8529
        %v9054 = vunpack.c.h.b16 %v8529
        %v9055 = vunpack.c.l.b16 %v8530
        %v9056 = vunpack.c.h.b16 %v8530
        %v9057 = vunpack.c.l.b16 %v8531
        %v9058 = vunpack.c.h.b16 %v8531
        %v9059 = vunpack.c.l.b16 %v8532
        %v9060 = vunpack.c.h.b16 %v8532
        %v9061 = vunpack.c.l.b16 %v8533
        %v9062 = vunpack.c.h.b16 %v8533
        %v9063 = vunpack.c.l.b16 %v8534
        %v9064 = vunpack.c.h.b16 %v8534
        %v9065 = vunpack.c.l.b16 %v8535
        %v9066 = vunpack.c.h.b16 %v8535
        %v9067 = vunpack.c.l.b16 %v8536
        %v9068 = vunpack.c.h.b16 %v8536
        %v9069 = vunpack.c.l.b16 %v8537
        %v9070 = vunpack.c.h.b16 %v8537
        %v9071 = vunpack.c.l.b16 %v8538
        %v9072 = vunpack.c.h.b16 %v8538
        %v9073 = vunpack.c.l.b16 %v8539
        %v9074 = vunpack.c.h.b16 %v8539
        %v9075 = vunpack.c.l.b16 %v8540
        %v9076 = vunpack.c.h.b16 %v8540
        %v9077 = vunpack.c.l.b16 %v8541
        %v9078 = vunpack.c.h.b16 %v8541
        %v9079 = vunpack.c.l.b16 %v8542
        %v9080 = vunpack.c.h.b16 %v8542
        %v9081 = vunpack.c.l.b16 %v8543
        %v9082 = vunpack.c.h.b16 %v8543
        %v9083 = vunpack.c.l.b16 %v8544
        %v9084 = vunpack.c.h.b16 %v8544
        %v9085 = vunpack.c.l.b16 %v8545
        %v9086 = vunpack.c.h.b16 %v8545
        %v9087 = vunpack.c.l.b16 %v8546
        %v9088 = vunpack.c.h.b16 %v8546
        %v9089 = vunpack.c.l.b16 %v8547
        %v9090 = vunpack.c.h.b16 %v8547
        %v9091 = vunpack.c.l.b16 %v8548
        %v9092 = vunpack.c.h.b16 %v8548
        %v9093 = vunpack.c.l.b16 %v8549
        %v9094 = vunpack.c.h.b16 %v8549
        %v9095 = vunpack.c.l.b16 %v8550
        %v9096 = vunpack.c.h.b16 %v8550
        %v9097 = vunpack.c.l.b16 %v8551
        %v9098 = vunpack.c.h.b16 %v8551
        %v9099 = vunpack.c.l.b16 %v8552
        %v9100 = vunpack.c.h.b16 %v8552
        %v9101 = vunpack.c.l.b16 %v8553
        %v9102 = vunpack.c.h.b16 %v8553
        %v9103 = vunpack.c.l.b16 %v8554
        %v9104 = vunpack.c.h.b16 %v8554
        %v9105 = vunpack.c.l.b16 %v8555
        %v9106 = vunpack.c.h.b16 %v8555
        %v9107 = vunpack.c.l.b16 %v8556
        %v9108 = vunpack.c.h.b16 %v8556
        %v9109 = vunpack.c.l.b16 %v8557
        %v9110 = vunpack.c.h.b16 %v8557
        %v9111 = vunpack.c.l.b16 %v8558
        %v9112 = vunpack.c.h.b16 %v8558
        %v9113 = vunpack.c.l.b16 %v8559
        %v9114 = vunpack.c.h.b16 %v8559
        %v9115 = vunpack.c.l.b16 %v8560
        %v9116 = vunpack.c.h.b16 %v8560
        %v9117 = vunpack.c.l.b16 %v8561
        %v9118 = vunpack.c.h.b16 %v8561
        %v9119 = vunpack.c.l.b16 %v8562
        %v9120 = vunpack.c.h.b16 %v8562
        %v9121 = vunpack.c.l.b16 %v8563
        %v9122 = vunpack.c.h.b16 %v8563
        %v9123 = vunpack.c.l.b16 %v8564
        %v9124 = vunpack.c.h.b16 %v8564
        %v9125 = vunpack.c.l.b16 %v8565
        %v9126 = vunpack.c.h.b16 %v8565
        %v9127 = vunpack.c.l.b16 %v8566
        %v9128 = vunpack.c.h.b16 %v8566
        %v9129 = vunpack.c.l.b16 %v8567
        %v9130 = vunpack.c.h.b16 %v8567
        %v9131 = vunpack.c.l.b16 %v8568
        %v9132 = vunpack.c.h.b16 %v8568
        %v9133 = vunpack.c.l.b16 %v8569
        %v9134 = vunpack.c.h.b16 %v8569
        %v9135 = vunpack.c.l.b16 %v8570
        %v9136 = vunpack.c.h.b16 %v8570
        %v9137 = vunpack.c.l.b16 %v8571
        %v9138 = vunpack.c.h.b16 %v8571
        %v9139 = vunpack.c.l.b16 %v8572
        %v9140 = vunpack.c.h.b16 %v8572
        %v9141 = vunpack.c.l.b16 %v8573
        %v9142 = vunpack.c.h.b16 %v8573
        %v9143 = vunpack.c.l.b16 %v8574
        %v9144 = vunpack.c.h.b16 %v8574
        %v9145 = vunpack.c.l.b16 %v8575
        %v9146 = vunpack.c.h.b16 %v8575
        %v9147 = vunpack.c.l.b16 %v8576
        %v9148 = vunpack.c.h.b16 %v8576
        %v9149 = vunpack.c.l.b16 %v8577
        %v9150 = vunpack.c.h.b16 %v8577
        %v9151 = vunpack.c.l.b16 %v8578
        %v9152 = vunpack.c.h.b16 %v8578
        %v9153 = vunpack.c.l.b16 %v8579
        %v9154 = vunpack.c.h.b16 %v8579
        %v9155 = vunpack.c.l.b16 %v8580
        %v9156 = vunpack.c.h.b16 %v8580
        %v9157 = vunpack.c.l.b16 %v8581
        %v9158 = vunpack.c.h.b16 %v8581
        %v9159 = vunpack.c.l.b16 %v8582
        %v9160 = vunpack.c.h.b16 %v8582
        %v9161 = vunpack.c.l.b16 %v8583
        %v9162 = vunpack.c.h.b16 %v8583
        %v9163 = vunpack.c.l.b16 %v8584
        %v9164 = vunpack.c.h.b16 %v8584
        %v9165 = vunpack.c.l.b16 %v8585
        %v9166 = vunpack.c.h.b16 %v8585
        %v9167 = vunpack.c.l.b16 %v8586
        %v9168 = vunpack.c.h.b16 %v8586
        %v9169 = vunpack.c.l.b16 %v8587
        %v9170 = vunpack.c.h.b16 %v8587
        %v9171 = vunpack.c.l.b16 %v8588
        %v9172 = vunpack.c.h.b16 %v8588
        %v9173 = vunpack.c.l.b16 %v8589
        %v9174 = vunpack.c.h.b16 %v8589
        %v9175 = vunpack.c.l.b16 %v8590
        %v9176 = vunpack.c.h.b16 %v8590
        %v9177 = vunpack.c.l.b16 %v8591
        %v9178 = vunpack.c.h.b16 %v8591
        %v9179 = vunpack.c.l.b16 %v8592
        %v9180 = vunpack.c.h.b16 %v8592
        %v9181 = vunpack.c.l.b16 %v8593
        %v9182 = vunpack.c.h.b16 %v8593
        %v9183 = vunpack.c.l.b16 %v8594
        %v9184 = vunpack.c.h.b16 %v8594
        %v9185 = vunpack.c.l.b16 %v8595
        %v9186 = vunpack.c.h.b16 %v8595
        %v9187 = vunpack.c.l.b16 %v8596
        %v9188 = vunpack.c.h.b16 %v8596
        %v9189 = vunpack.c.l.b16 %v8597
        %v9190 = vunpack.c.h.b16 %v8597
        %v9191 = vunpack.c.l.b16 %v8598
        %v9192 = vunpack.c.h.b16 %v8598
        %v9193 = vunpack.c.l.b16 %v8599
        %v9194 = vunpack.c.h.b16 %v8599
        %v9195 = vunpack.c.l.b16 %v8600
        %v9196 = vunpack.c.h.b16 %v8600
        %v9197 = vunpack.c.l.b16 %v8601
        %v9198 = vunpack.c.h.b16 %v8601
        %v9199 = vunpack.c.l.b16 %v8602
        %v9200 = vunpack.c.h.b16 %v8602
        %v9201 = vunpack.c.l.b16 %v8603
        %v9202 = vunpack.c.h.b16 %v8603
        %v9203 = vunpack.c.l.b16 %v8604
        %v9204 = vunpack.c.h.b16 %v8604
        %v9205 = vunpack.c.l.b16 %v8605
        %v9206 = vunpack.c.h.b16 %v8605
        %v9207 = vunpack.c.l.b16 %v8606
        %v9208 = vunpack.c.h.b16 %v8606
        %v9209 = vunpack.c.l.b16 %v8607
        %v9210 = vunpack.c.h.b16 %v8607
        %v9211 = vunpack.c.l.b16 %v8608
        %v9212 = vunpack.c.h.b16 %v8608
        %v9213 = vunpack.c.l.b16 %v8609
        %v9214 = vunpack.c.h.b16 %v8609
        %v9215 = vunpack.c.l.b16 %v8610
        %v9216 = vunpack.c.h.b16 %v8610
        %v9217 = vunpack.c.l.b16 %v8611
        %v9218 = vunpack.c.h.b16 %v8611
        %v9219 = vunpack.c.l.b16 %v8612
        %v9220 = vunpack.c.h.b16 %v8612
        %v9221 = vunpack.c.l.b16 %v8613
        %v9222 = vunpack.c.h.b16 %v8613
        %v9223 = vunpack.c.l.b16 %v8614
        %v9224 = vunpack.c.h.b16 %v8614
        %v9225 = vpack.c.b16 %v8829, %v8825
        %v9226 = vpack.c.b16 %v8830, %v8826
        %v9227 = vpack.c.b16 %v8831, %v8827
        %v9228 = vpack.c.b16 %v8832, %v8828
        %v9229 = vpack.c.b16 %v8837, %v8833
        %v9230 = vpack.c.b16 %v8838, %v8834
        %v9231 = vpack.c.b16 %v8839, %v8835
        %v9232 = vpack.c.b16 %v8840, %v8836
        %v9233 = vpack.c.b16 %v8845, %v8841
        %v9234 = vpack.c.b16 %v8846, %v8842
        %v9235 = vpack.c.b16 %v8847, %v8843
        %v9236 = vpack.c.b16 %v8848, %v8844
        %v9237 = vpack.c.b16 %v8853, %v8849
        %v9238 = vpack.c.b16 %v8854, %v8850
        %v9239 = vpack.c.b16 %v8855, %v8851
        %v9240 = vpack.c.b16 %v8856, %v8852
        %v9241 = vpack.c.b16 %v8861, %v8857
        %v9242 = vpack.c.b16 %v8862, %v8858
        %v9243 = vpack.c.b16 %v8863, %v8859
        %v9244 = vpack.c.b16 %v8864, %v8860
        %v9245 = vpack.c.b16 %v8869, %v8865
        %v9246 = vpack.c.b16 %v8870, %v8866
        %v9247 = vpack.c.b16 %v8871, %v8867
        %v9248 = vpack.c.b16 %v8872, %v8868
        %v9249 = vpack.c.b16 %v8877, %v8873
        %v9250 = vpack.c.b16 %v8878, %v8874
        %v9251 = vpack.c.b16 %v8879, %v8875
        %v9252 = vpack.c.b16 %v8880, %v8876
        %v9253 = vpack.c.b16 %v8885, %v8881
        %v9254 = vpack.c.b16 %v8886, %v8882
        %v9255 = vpack.c.b16 %v8887, %v8883
        %v9256 = vpack.c.b16 %v8888, %v8884
        %v9257 = vpack.c.b16 %v8893, %v8889
        %v9258 = vpack.c.b16 %v8894, %v8890
        %v9259 = vpack.c.b16 %v8895, %v8891
        %v9260 = vpack.c.b16 %v8896, %v8892
        %v9261 = vpack.c.b16 %v8901, %v8897
        %v9262 = vpack.c.b16 %v8902, %v8898
        %v9263 = vpack.c.b16 %v8903, %v8899
        %v9264 = vpack.c.b16 %v8904, %v8900
        %v9265 = vpack.c.b16 %v8909, %v8905
        %v9266 = vpack.c.b16 %v8910, %v8906
        %v9267 = vpack.c.b16 %v8911, %v8907
        %v9268 = vpack.c.b16 %v8912, %v8908
        %v9269 = vpack.c.b16 %v8917, %v8913
        %v9270 = vpack.c.b16 %v8918, %v8914
        %v9271 = vpack.c.b16 %v8919, %v8915
        %v9272 = vpack.c.b16 %v8920, %v8916
        %v9273 = vpack.c.b16 %v8925, %v8921
        %v9274 = vpack.c.b16 %v8926, %v8922
        %v9275 = vpack.c.b16 %v8927, %v8923
        %v9276 = vpack.c.b16 %v8928, %v8924
        %v9277 = vpack.c.b16 %v8933, %v8929
        %v9278 = vpack.c.b16 %v8934, %v8930
        %v9279 = vpack.c.b16 %v8935, %v8931
        %v9280 = vpack.c.b16 %v8936, %v8932
        %v9281 = vpack.c.b16 %v8941, %v8937
        %v9282 = vpack.c.b16 %v8942, %v8938
        %v9283 = vpack.c.b16 %v8943, %v8939
        %v9284 = vpack.c.b16 %v8944, %v8940
        %v9285 = vpack.c.b16 %v8949, %v8945
        %v9286 = vpack.c.b16 %v8950, %v8946
        %v9287 = vpack.c.b16 %v8951, %v8947
        %v9288 = vpack.c.b16 %v8952, %v8948
        %v9289 = vpack.c.b16 %v8957, %v8953
        %v9290 = vpack.c.b16 %v8958, %v8954
        %v9291 = vpack.c.b16 %v8959, %v8955
        %v9292 = vpack.c.b16 %v8960, %v8956
        %v9293 = vpack.c.b16 %v8965, %v8961
        %v9294 = vpack.c.b16 %v8966, %v8962
        %v9295 = vpack.c.b16 %v8967, %v8963
        %v9296 = vpack.c.b16 %v8968, %v8964
        %v9297 = vpack.c.b16 %v8973, %v8969
        %v9298 = vpack.c.b16 %v8974, %v8970
        %v9299 = vpack.c.b16 %v8975, %v8971
        %v9300 = vpack.c.b16 %v8976, %v8972
        %v9301 = vpack.c.b16 %v8981, %v8977
        %v9302 = vpack.c.b16 %v8982, %v8978
        %v9303 = vpack.c.b16 %v8983, %v8979
        %v9304 = vpack.c.b16 %v8984, %v8980
        %v9305 = vpack.c.b16 %v8989, %v8985
        %v9306 = vpack.c.b16 %v8990, %v8986
        %v9307 = vpack.c.b16 %v8991, %v8987
        %v9308 = vpack.c.b16 %v8992, %v8988
        %v9309 = vpack.c.b16 %v8997, %v8993
        %v9310 = vpack.c.b16 %v8998, %v8994
        %v9311 = vpack.c.b16 %v8999, %v8995
        %v9312 = vpack.c.b16 %v9000, %v8996
        %v9313 = vpack.c.b16 %v9005, %v9001
        %v9314 = vpack.c.b16 %v9006, %v9002
        %v9315 = vpack.c.b16 %v9007, %v9003
        %v9316 = vpack.c.b16 %v9008, %v9004
        %v9317 = vpack.c.b16 %v9013, %v9009
        %v9318 = vpack.c.b16 %v9014, %v9010
        %v9319 = vpack.c.b16 %v9015, %v9011
        %v9320 = vpack.c.b16 %v9016, %v9012
        %v9321 = vpack.c.b16 %v9021, %v9017
        %v9322 = vpack.c.b16 %v9022, %v9018
        %v9323 = vpack.c.b16 %v9023, %v9019
        %v9324 = vpack.c.b16 %v9024, %v9020
        %v9325 = vpack.c.b16 %v9029, %v9025
        %v9326 = vpack.c.b16 %v9030, %v9026
        %v9327 = vpack.c.b16 %v9031, %v9027
        %v9328 = vpack.c.b16 %v9032, %v9028
        %v9329 = vpack.c.b16 %v9037, %v9033
        %v9330 = vpack.c.b16 %v9038, %v9034
        %v9331 = vpack.c.b16 %v9039, %v9035
        %v9332 = vpack.c.b16 %v9040, %v9036
        %v9333 = vpack.c.b16 %v9045, %v9041
        %v9334 = vpack.c.b16 %v9046, %v9042
        %v9335 = vpack.c.b16 %v9047, %v9043
        %v9336 = vpack.c.b16 %v9048, %v9044
        %v9337 = vpack.c.b16 %v9053, %v9049
        %v9338 = vpack.c.b16 %v9054, %v9050
        %v9339 = vpack.c.b16 %v9055, %v9051
        %v9340 = vpack.c.b16 %v9056, %v9052
        %v9341 = vpack.c.b16 %v9061, %v9057
        %v9342 = vpack.c.b16 %v9062, %v9058
        %v9343 = vpack.c.b16 %v9063, %v9059
        %v9344 = vpack.c.b16 %v9064, %v9060
        %v9345 = vpack.c.b16 %v9069, %v9065
        %v9346 = vpack.c.b16 %v9070, %v9066
        %v9347 = vpack.c.b16 %v9071, %v9067
        %v9348 = vpack.c.b16 %v9072, %v9068
        %v9349 = vpack.c.b16 %v9077, %v9073
        %v9350 = vpack.c.b16 %v9078, %v9074
        %v9351 = vpack.c.b16 %v9079, %v9075
        %v9352 = vpack.c.b16 %v9080, %v9076
        %v9353 = vpack.c.b16 %v9085, %v9081
        %v9354 = vpack.c.b16 %v9086, %v9082
        %v9355 = vpack.c.b16 %v9087, %v9083
        %v9356 = vpack.c.b16 %v9088, %v9084
        %v9357 = vpack.c.b16 %v9093, %v9089
        %v9358 = vpack.c.b16 %v9094, %v9090
        %v9359 = vpack.c.b16 %v9095, %v9091
        %v9360 = vpack.c.b16 %v9096, %v9092
        %v9361 = vpack.c.b16 %v9101, %v9097
        %v9362 = vpack.c.b16 %v9102, %v9098
        %v9363 = vpack.c.b16 %v9103, %v9099
        %v9364 = vpack.c.b16 %v9104, %v9100
        %v9365 = vpack.c.b16 %v9109, %v9105
        %v9366 = vpack.c.b16 %v9110, %v9106
        %v9367 = vpack.c.b16 %v9111, %v9107
        %v9368 = vpack.c.b16 %v9112, %v9108
        %v9369 = vpack.c.b16 %v9117, %v9113
        %v9370 = vpack.c.b16 %v9118, %v9114
        %v9371 = vpack.c.b16 %v9119, %v9115
        %v9372 = vpack.c.b16 %v9120, %v9116
        %v9373 = vpack.c.b16 %v9125, %v9121
        %v9374 = vpack.c.b16 %v9126, %v9122
        %v9375 = vpack.c.b16 %v9127, %v9123
        %v9376 = vpack.c.b16 %v9128, %v9124
        %v9377 = vpack.c.b16 %v9133, %v9129
        %v9378 = vpack.c.b16 %v9134, %v9130
        %v9379 = vpack.c.b16 %v9135, %v9131
        %v9380 = vpack.c.b16 %v9136, %v9132
        %v9381 = vpack.c.b16 %v9141, %v9137
        %v9382 = vpack.c.b16 %v9142, %v9138
        %v9383 = vpack.c.b16 %v9143, %v9139
        %v9384 = vpack.c.b16 %v9144, %v9140
        %v9385 = vpack.c.b16 %v9149, %v9145
        %v9386 = vpack.c.b16 %v9150, %v9146
        %v9387 = vpack.c.b16 %v9151, %v9147
        %v9388 = vpack.c.b16 %v9152, %v9148
        %v9389 = vpack.c.b16 %v9157, %v9153
        %v9390 = vpack.c.b16 %v9158, %v9154
        %v9391 = vpack.c.b16 %v9159, %v9155
        %v9392 = vpack.c.b16 %v9160, %v9156
        %v9393 = vpack.c.b16 %v9165, %v9161
        %v9394 = vpack.c.b16 %v9166, %v9162
        %v9395 = vpack.c.b16 %v9167, %v9163
        %v9396 = vpack.c.b16 %v9168, %v9164
        %v9397 = vpack.c.b16 %v9173, %v9169
        %v9398 = vpack.c.b16 %v9174, %v9170
        %v9399 = vpack.c.b16 %v9175, %v9171
        %v9400 = vpack.c.b16 %v9176, %v9172
        %v9401 = vpack.c.b16 %v9181, %v9177
        %v9402 = vpack.c.b16 %v9182, %v9178
        %v9403 = vpack.c.b16 %v9183, %v9179
        %v9404 = vpack.c.b16 %v9184, %v9180
        %v9405 = vpack.c.b16 %v9189, %v9185
        %v9406 = vpack.c.b16 %v9190, %v9186
        %v9407 = vpack.c.b16 %v9191, %v9187
        %v9408 = vpack.c.b16 %v9192, %v9188
        %v9409 = vpack.c.b16 %v9197, %v9193
        %v9410 = vpack.c.b16 %v9198, %v9194
        %v9411 = vpack.c.b16 %v9199, %v9195
        %v9412 = vpack.c.b16 %v9200, %v9196
        %v9413 = vpack.c.b16 %v9205, %v9201
        %v9414 = vpack.c.b16 %v9206, %v9202
        %v9415 = vpack.c.b16 %v9207, %v9203
        %v9416 = vpack.c.b16 %v9208, %v9204
        %v9417 = vpack.c.b16 %v9213, %v9209
        %v9418 = vpack.c.b16 %v9214, %v9210
        %v9419 = vpack.c.b16 %v9215, %v9211
        %v9420 = vpack.c.b16 %v9216, %v9212
        %v9421 = vpack.c.b16 %v9221, %v9217
        %v9422 = vpack.c.b16 %v9222, %v9218
        %v9423 = vpack.c.b16 %v9223, %v9219
        %v9424 = vpack.c.b16 %v9224, %v9220
        %v9626 = vsel %vm4862, %v8414, 0
        %9628 = vmatpush.bf16.msra.mxu0 %v9253
        %9629 = vmatpush.bf16.msra.mxu0 %v9249
        %9630 = vmatpush.bf16.msra.mxu0 %v9245
        %9631 = vmatpush.bf16.msra.mxu0 %v9241
        %9632 = vmatpush.bf16.msra.mxu0 %v9237
        %9633 = vmatpush.bf16.msra.mxu0 %v9233
        %9634 = vmatpush.bf16.msra.mxu0 %v9229
        %9635 = vmatpush.bf16.msra.mxu0 %v9225
        %9636 = vmatmul.bf16.gmra.mxu0 %v8408
        %v9637 = vpop.f32.mrf.mxu0
        %v9638 = vadd.f32 %v8617, %v9637
        %v9639 = vpop.f32.mrf.mxu0
        %9640 = vdwg.mxu0
        %9641 = vmatpush.bf16.msra.mxu0 %v9285
        %9642 = vmatpush.bf16.msra.mxu0 %v9281
        %9643 = vmatpush.bf16.msra.mxu0 %v9277
        %9644 = vmatpush.bf16.msra.mxu0 %v9273
        %9645 = vmatpush.bf16.msra.mxu0 %v9269
        %9646 = vmatpush.bf16.msra.mxu0 %v9265
        %9647 = vmatpush.bf16.msra.mxu0 %v9261
        %9648 = vmatpush.bf16.msra.mxu0 %v9257
        %9649 = vmatmul.bf16.gmra.mxu0 %v8409
        %v9650 = vpop.f32.mrf.mxu0
        %v9651 = vadd.f32 %v9638, %v9650
        %v9652 = vpop.f32.mrf.mxu0
        %9653 = vdwg.mxu0
        %9654 = vmatpush.bf16.msra.mxu0 %v9317
        %9655 = vmatpush.bf16.msra.mxu0 %v9313
        %9656 = vmatpush.bf16.msra.mxu0 %v9309
        %9657 = vmatpush.bf16.msra.mxu0 %v9305
        %9658 = vmatpush.bf16.msra.mxu0 %v9301
        %9659 = vmatpush.bf16.msra.mxu0 %v9297
        %9660 = vmatpush.bf16.msra.mxu0 %v9293
        %9661 = vmatpush.bf16.msra.mxu0 %v9289
        %9662 = vmatmul.bf16.gmra.mxu0 %v8410
        %v9663 = vpop.f32.mrf.mxu0
        %v9664 = vadd.f32 %v9651, %v9663
        %v9665 = vpop.f32.mrf.mxu0
        %9666 = vdwg.mxu0
        %9667 = vmatpush.bf16.msra.mxu0 %v9349
        %9668 = vmatpush.bf16.msra.mxu0 %v9345
        %9669 = vmatpush.bf16.msra.mxu0 %v9341
        %9670 = vmatpush.bf16.msra.mxu0 %v9337
        %9671 = vmatpush.bf16.msra.mxu0 %v9333
        %9672 = vmatpush.bf16.msra.mxu0 %v9329
        %9673 = vmatpush.bf16.msra.mxu0 %v9325
        %9674 = vmatpush.bf16.msra.mxu0 %v9321
        %9675 = vmatmul.bf16.gmra.mxu0 %v8411
        %v9676 = vpop.f32.mrf.mxu0
        %v9677 = vadd.f32 %v9664, %v9676
        %v9678 = vpop.f32.mrf.mxu0
        %9679 = vdwg.mxu0
        %9680 = vmatpush.bf16.msra.mxu0 %v9381
        %9681 = vmatpush.bf16.msra.mxu0 %v9377
        %9682 = vmatpush.bf16.msra.mxu0 %v9373
        %9683 = vmatpush.bf16.msra.mxu0 %v9369
        %9684 = vmatpush.bf16.msra.mxu0 %v9365
        %9685 = vmatpush.bf16.msra.mxu0 %v9361
        %9686 = vmatpush.bf16.msra.mxu0 %v9357
        %9687 = vmatpush.bf16.msra.mxu0 %v9353
        %9688 = vmatmul.bf16.gmra.mxu0 %v8412
        %v9689 = vpop.f32.mrf.mxu0
        %v9690 = vadd.f32 %v9677, %v9689
        %v9691 = vpop.f32.mrf.mxu0
        %9692 = vdwg.mxu0
        %9693 = vmatpush.bf16.msra.mxu0 %v9413
        %9694 = vmatpush.bf16.msra.mxu0 %v9409
        %9695 = vmatpush.bf16.msra.mxu0 %v9405
        %9696 = vmatpush.bf16.msra.mxu0 %v9401
        %9697 = vmatpush.bf16.msra.mxu0 %v9397
        %9698 = vmatpush.bf16.msra.mxu0 %v9393
        %9699 = vmatpush.bf16.msra.mxu0 %v9389
        %9700 = vmatpush.bf16.msra.mxu0 %v9385
        %9701 = vmatmul.bf16.gmra.mxu0 %v8413
        %v9702 = vpop.f32.mrf.mxu0
        %v9703 = vadd.f32 %v9690, %v9702
        %v9704 = vpop.f32.mrf.mxu0
        %9705 = vdwg.mxu0
        %9706 = vmatpush.bf16.msra.mxu0 0
        %9707 = vmatpush.bf16.msra.mxu0 0
        %9708 = vmatpush.bf16.msra.mxu0 0
        %9709 = vmatpush.bf16.msra.mxu0 0
        %9710 = vmatpush.bf16.msra.mxu0 0
        %9711 = vmatpush.bf16.msra.mxu0 0
        %9712 = vmatpush.bf16.msra.mxu0 %v9421
        %9713 = vmatpush.bf16.msra.mxu0 %v9417
        %9714 = vmatmul.bf16.gmra.mxu0 %v9626
        %v9715 = vpop.f32.mrf.mxu0
        %v9716 = vadd.f32 %v9703, %v9715
        %v9717 = vpop.f32.mrf.mxu0
        %9718 = vdwg.mxu0
        %9719 = vmatpush.bf16.msra.mxu0 %v9254
        %9720 = vmatpush.bf16.msra.mxu0 %v9250
        %9721 = vmatpush.bf16.msra.mxu0 %v9246
        %9722 = vmatpush.bf16.msra.mxu0 %v9242
        %9723 = vmatpush.bf16.msra.mxu0 %v9238
        %9724 = vmatpush.bf16.msra.mxu0 %v9234
        %9725 = vmatpush.bf16.msra.mxu0 %v9230
        %9726 = vmatpush.bf16.msra.mxu0 %v9226
        %9727 = vmatmul.bf16.gmra.mxu0 %v8408
        %v9728 = vpop.f32.mrf.mxu0
        %v9729 = vadd.f32 %v8618, %v9728
        %v9730 = vpop.f32.mrf.mxu0
        %9731 = vdwg.mxu0
        %9732 = vmatpush.bf16.msra.mxu0 %v9286
        %9733 = vmatpush.bf16.msra.mxu0 %v9282
        %9734 = vmatpush.bf16.msra.mxu0 %v9278
        %9735 = vmatpush.bf16.msra.mxu0 %v9274
        %9736 = vmatpush.bf16.msra.mxu0 %v9270
        %9737 = vmatpush.bf16.msra.mxu0 %v9266
        %9738 = vmatpush.bf16.msra.mxu0 %v9262
        %9739 = vmatpush.bf16.msra.mxu0 %v9258
        %9740 = vmatmul.bf16.gmra.mxu0 %v8409
        %v9741 = vpop.f32.mrf.mxu0
        %v9742 = vadd.f32 %v9729, %v9741
        %v9743 = vpop.f32.mrf.mxu0
        %9744 = vdwg.mxu0
        %9745 = vmatpush.bf16.msra.mxu0 %v9318
        %9746 = vmatpush.bf16.msra.mxu0 %v9314
        %9747 = vmatpush.bf16.msra.mxu0 %v9310
        %9748 = vmatpush.bf16.msra.mxu0 %v9306
        %9749 = vmatpush.bf16.msra.mxu0 %v9302
        %9750 = vmatpush.bf16.msra.mxu0 %v9298
        %9751 = vmatpush.bf16.msra.mxu0 %v9294
        %9752 = vmatpush.bf16.msra.mxu0 %v9290
        %9753 = vmatmul.bf16.gmra.mxu0 %v8410
        %v9754 = vpop.f32.mrf.mxu0
        %v9755 = vadd.f32 %v9742, %v9754
        %v9756 = vpop.f32.mrf.mxu0
        %9757 = vdwg.mxu0
        %9758 = vmatpush.bf16.msra.mxu0 %v9350
        %9759 = vmatpush.bf16.msra.mxu0 %v9346
        %9760 = vmatpush.bf16.msra.mxu0 %v9342
        %9761 = vmatpush.bf16.msra.mxu0 %v9338
        %9762 = vmatpush.bf16.msra.mxu0 %v9334
        %9763 = vmatpush.bf16.msra.mxu0 %v9330
        %9764 = vmatpush.bf16.msra.mxu0 %v9326
        %9765 = vmatpush.bf16.msra.mxu0 %v9322
        %9766 = vmatmul.bf16.gmra.mxu0 %v8411
        %v9767 = vpop.f32.mrf.mxu0
        %v9768 = vadd.f32 %v9755, %v9767
        %v9769 = vpop.f32.mrf.mxu0
        %9770 = vdwg.mxu0
        %9771 = vmatpush.bf16.msra.mxu0 %v9382
        %9772 = vmatpush.bf16.msra.mxu0 %v9378
        %9773 = vmatpush.bf16.msra.mxu0 %v9374
        %9774 = vmatpush.bf16.msra.mxu0 %v9370
        %9775 = vmatpush.bf16.msra.mxu0 %v9366
        %9776 = vmatpush.bf16.msra.mxu0 %v9362
        %9777 = vmatpush.bf16.msra.mxu0 %v9358
        %9778 = vmatpush.bf16.msra.mxu0 %v9354
        %9779 = vmatmul.bf16.gmra.mxu0 %v8412
        %v9780 = vpop.f32.mrf.mxu0
        %v9781 = vadd.f32 %v9768, %v9780
        %v9782 = vpop.f32.mrf.mxu0
        %9783 = vdwg.mxu0
        %9784 = vmatpush.bf16.msra.mxu0 %v9414
        %9785 = vmatpush.bf16.msra.mxu0 %v9410
        %9786 = vmatpush.bf16.msra.mxu0 %v9406
        %9787 = vmatpush.bf16.msra.mxu0 %v9402
        %9788 = vmatpush.bf16.msra.mxu0 %v9398
        %9789 = vmatpush.bf16.msra.mxu0 %v9394
        %9790 = vmatpush.bf16.msra.mxu0 %v9390
        %9791 = vmatpush.bf16.msra.mxu0 %v9386
        %9792 = vmatmul.bf16.gmra.mxu0 %v8413
        %v9793 = vpop.f32.mrf.mxu0
        %v9794 = vadd.f32 %v9781, %v9793
        %v9795 = vpop.f32.mrf.mxu0
        %9796 = vdwg.mxu0
        %9797 = vmatpush.bf16.msra.mxu0 0
        %9798 = vmatpush.bf16.msra.mxu0 0
        %9799 = vmatpush.bf16.msra.mxu0 0
        %9800 = vmatpush.bf16.msra.mxu0 0
        %9801 = vmatpush.bf16.msra.mxu0 0
        %9802 = vmatpush.bf16.msra.mxu0 0
        %9803 = vmatpush.bf16.msra.mxu0 %v9422
        %9804 = vmatpush.bf16.msra.mxu0 %v9418
        %9805 = vmatmul.bf16.gmra.mxu0 %v9626
        %v9806 = vpop.f32.mrf.mxu0
        %v9807 = vadd.f32 %v9794, %v9806
        %v9808 = vpop.f32.mrf.mxu0
        %9809 = vdwg.mxu0
        %9810 = vmatpush.bf16.msra.mxu0 %v9255
        %9811 = vmatpush.bf16.msra.mxu0 %v9251
        %9812 = vmatpush.bf16.msra.mxu0 %v9247
        %9813 = vmatpush.bf16.msra.mxu0 %v9243
        %9814 = vmatpush.bf16.msra.mxu0 %v9239
        %9815 = vmatpush.bf16.msra.mxu0 %v9235
        %9816 = vmatpush.bf16.msra.mxu0 %v9231
        %9817 = vmatpush.bf16.msra.mxu0 %v9227
        %9818 = vmatmul.bf16.gmra.mxu0 %v8408
        %v9819 = vpop.f32.mrf.mxu0
        %v9820 = vadd.f32 %v8619, %v9819
        %v9821 = vpop.f32.mrf.mxu0
        %9822 = vdwg.mxu0
        %9823 = vmatpush.bf16.msra.mxu0 %v9287
        %9824 = vmatpush.bf16.msra.mxu0 %v9283
        %9825 = vmatpush.bf16.msra.mxu0 %v9279
        %9826 = vmatpush.bf16.msra.mxu0 %v9275
        %9827 = vmatpush.bf16.msra.mxu0 %v9271
        %9828 = vmatpush.bf16.msra.mxu0 %v9267
        %9829 = vmatpush.bf16.msra.mxu0 %v9263
        %9830 = vmatpush.bf16.msra.mxu0 %v9259
        %9831 = vmatmul.bf16.gmra.mxu0 %v8409
        %v9832 = vpop.f32.mrf.mxu0
        %v9833 = vadd.f32 %v9820, %v9832
        %v9834 = vpop.f32.mrf.mxu0
        %9835 = vdwg.mxu0
        %9836 = vmatpush.bf16.msra.mxu0 %v9319
        %9837 = vmatpush.bf16.msra.mxu0 %v9315
        %9838 = vmatpush.bf16.msra.mxu0 %v9311
        %9839 = vmatpush.bf16.msra.mxu0 %v9307
        %9840 = vmatpush.bf16.msra.mxu0 %v9303
        %9841 = vmatpush.bf16.msra.mxu0 %v9299
        %9842 = vmatpush.bf16.msra.mxu0 %v9295
        %9843 = vmatpush.bf16.msra.mxu0 %v9291
        %9844 = vmatmul.bf16.gmra.mxu0 %v8410
        %v9845 = vpop.f32.mrf.mxu0
        %v9846 = vadd.f32 %v9833, %v9845
        %v9847 = vpop.f32.mrf.mxu0
        %9848 = vdwg.mxu0
        %9849 = vmatpush.bf16.msra.mxu0 %v9351
        %9850 = vmatpush.bf16.msra.mxu0 %v9347
        %9851 = vmatpush.bf16.msra.mxu0 %v9343
        %9852 = vmatpush.bf16.msra.mxu0 %v9339
        %9853 = vmatpush.bf16.msra.mxu0 %v9335
        %9854 = vmatpush.bf16.msra.mxu0 %v9331
        %9855 = vmatpush.bf16.msra.mxu0 %v9327
        %9856 = vmatpush.bf16.msra.mxu0 %v9323
        %9857 = vmatmul.bf16.gmra.mxu0 %v8411
        %v9858 = vpop.f32.mrf.mxu0
        %v9859 = vadd.f32 %v9846, %v9858
        %v9860 = vpop.f32.mrf.mxu0
        %9861 = vdwg.mxu0
        %9862 = vmatpush.bf16.msra.mxu0 %v9383
        %9863 = vmatpush.bf16.msra.mxu0 %v9379
        %9864 = vmatpush.bf16.msra.mxu0 %v9375
        %9865 = vmatpush.bf16.msra.mxu0 %v9371
        %9866 = vmatpush.bf16.msra.mxu0 %v9367
        %9867 = vmatpush.bf16.msra.mxu0 %v9363
        %9868 = vmatpush.bf16.msra.mxu0 %v9359
        %9869 = vmatpush.bf16.msra.mxu0 %v9355
        %9870 = vmatmul.bf16.gmra.mxu0 %v8412
        %v9871 = vpop.f32.mrf.mxu0
        %v9872 = vadd.f32 %v9859, %v9871
        %v9873 = vpop.f32.mrf.mxu0
        %9874 = vdwg.mxu0
        %9875 = vmatpush.bf16.msra.mxu0 %v9415
        %9876 = vmatpush.bf16.msra.mxu0 %v9411
        %9877 = vmatpush.bf16.msra.mxu0 %v9407
        %9878 = vmatpush.bf16.msra.mxu0 %v9403
        %9879 = vmatpush.bf16.msra.mxu0 %v9399
        %9880 = vmatpush.bf16.msra.mxu0 %v9395
        %9881 = vmatpush.bf16.msra.mxu0 %v9391
        %9882 = vmatpush.bf16.msra.mxu0 %v9387
        %9883 = vmatmul.bf16.gmra.mxu0 %v8413
        %v9884 = vpop.f32.mrf.mxu0
        %v9885 = vadd.f32 %v9872, %v9884
        %v9886 = vpop.f32.mrf.mxu0
        %9887 = vdwg.mxu0
        %9888 = vmatpush.bf16.msra.mxu0 0
        %9889 = vmatpush.bf16.msra.mxu0 0
        %9890 = vmatpush.bf16.msra.mxu0 0
        %9891 = vmatpush.bf16.msra.mxu0 0
        %9892 = vmatpush.bf16.msra.mxu0 0
        %9893 = vmatpush.bf16.msra.mxu0 0
        %9894 = vmatpush.bf16.msra.mxu0 %v9423
        %9895 = vmatpush.bf16.msra.mxu0 %v9419
        %9896 = vmatmul.bf16.gmra.mxu0 %v9626
        %v9897 = vpop.f32.mrf.mxu0
        %v9898 = vadd.f32 %v9885, %v9897
        %v9899 = vpop.f32.mrf.mxu0
        %9900 = vdwg.mxu0
        %9901 = vmatpush.bf16.msra.mxu0 %v9256
        %9902 = vmatpush.bf16.msra.mxu0 %v9252
        %9903 = vmatpush.bf16.msra.mxu0 %v9248
        %9904 = vmatpush.bf16.msra.mxu0 %v9244
        %9905 = vmatpush.bf16.msra.mxu0 %v9240
        %9906 = vmatpush.bf16.msra.mxu0 %v9236
        %9907 = vmatpush.bf16.msra.mxu0 %v9232
        %9908 = vmatpush.bf16.msra.mxu0 %v9228
        %9909 = vmatmul.bf16.gmra.mxu0 %v8408
        %v9910 = vpop.f32.mrf.mxu0
        %v9911 = vadd.f32 %v8620, %v9910
        %v9912 = vpop.f32.mrf.mxu0
        %9913 = vdwg.mxu0
        %9914 = vmatpush.bf16.msra.mxu0 %v9288
        %9915 = vmatpush.bf16.msra.mxu0 %v9284
        %9916 = vmatpush.bf16.msra.mxu0 %v9280
        %9917 = vmatpush.bf16.msra.mxu0 %v9276
        %9918 = vmatpush.bf16.msra.mxu0 %v9272
        %9919 = vmatpush.bf16.msra.mxu0 %v9268
        %9920 = vmatpush.bf16.msra.mxu0 %v9264
        %9921 = vmatpush.bf16.msra.mxu0 %v9260
        %9922 = vmatmul.bf16.gmra.mxu0 %v8409
        %v9923 = vpop.f32.mrf.mxu0
        %v9924 = vadd.f32 %v9911, %v9923
        %v9925 = vpop.f32.mrf.mxu0
        %9926 = vdwg.mxu0
        %9927 = vmatpush.bf16.msra.mxu0 %v9320
        %9928 = vmatpush.bf16.msra.mxu0 %v9316
        %9929 = vmatpush.bf16.msra.mxu0 %v9312
        %9930 = vmatpush.bf16.msra.mxu0 %v9308
        %9931 = vmatpush.bf16.msra.mxu0 %v9304
        %9932 = vmatpush.bf16.msra.mxu0 %v9300
        %9933 = vmatpush.bf16.msra.mxu0 %v9296
        %9934 = vmatpush.bf16.msra.mxu0 %v9292
        %9935 = vmatmul.bf16.gmra.mxu0 %v8410
        %v9936 = vpop.f32.mrf.mxu0
        %v9937 = vadd.f32 %v9924, %v9936
        %v9938 = vpop.f32.mrf.mxu0
        %9939 = vdwg.mxu0
        %9940 = vmatpush.bf16.msra.mxu0 %v9352
        %9941 = vmatpush.bf16.msra.mxu0 %v9348
        %9942 = vmatpush.bf16.msra.mxu0 %v9344
        %9943 = vmatpush.bf16.msra.mxu0 %v9340
        %9944 = vmatpush.bf16.msra.mxu0 %v9336
        %9945 = vmatpush.bf16.msra.mxu0 %v9332
        %9946 = vmatpush.bf16.msra.mxu0 %v9328
        %9947 = vmatpush.bf16.msra.mxu0 %v9324
        %9948 = vmatmul.bf16.gmra.mxu0 %v8411
        %v9949 = vpop.f32.mrf.mxu0
        %v9950 = vadd.f32 %v9937, %v9949
        %v9951 = vpop.f32.mrf.mxu0
        %9952 = vdwg.mxu0
        %9953 = vmatpush.bf16.msra.mxu0 %v9384
        %9954 = vmatpush.bf16.msra.mxu0 %v9380
        %9955 = vmatpush.bf16.msra.mxu0 %v9376
        %9956 = vmatpush.bf16.msra.mxu0 %v9372
        %9957 = vmatpush.bf16.msra.mxu0 %v9368
        %9958 = vmatpush.bf16.msra.mxu0 %v9364
        %9959 = vmatpush.bf16.msra.mxu0 %v9360
        %9960 = vmatpush.bf16.msra.mxu0 %v9356
        %9961 = vmatmul.bf16.gmra.mxu0 %v8412
        %v9962 = vpop.f32.mrf.mxu0
        %v9963 = vadd.f32 %v9950, %v9962
        %v9964 = vpop.f32.mrf.mxu0
        %9965 = vdwg.mxu0
        %9966 = vmatpush.bf16.msra.mxu0 %v9416
        %9967 = vmatpush.bf16.msra.mxu0 %v9412
        %9968 = vmatpush.bf16.msra.mxu0 %v9408
        %9969 = vmatpush.bf16.msra.mxu0 %v9404
        %9970 = vmatpush.bf16.msra.mxu0 %v9400
        %9971 = vmatpush.bf16.msra.mxu0 %v9396
        %9972 = vmatpush.bf16.msra.mxu0 %v9392
        %9973 = vmatpush.bf16.msra.mxu0 %v9388
        %9974 = vmatmul.bf16.gmra.mxu0 %v8413
        %v9975 = vpop.f32.mrf.mxu0
        %v9976 = vadd.f32 %v9963, %v9975
        %v9977 = vpop.f32.mrf.mxu0
        %9978 = vdwg.mxu0
        %9979 = vmatpush.bf16.msra.mxu0 0
        %9980 = vmatpush.bf16.msra.mxu0 0
        %9981 = vmatpush.bf16.msra.mxu0 0
        %9982 = vmatpush.bf16.msra.mxu0 0
        %9983 = vmatpush.bf16.msra.mxu0 0
        %9984 = vmatpush.bf16.msra.mxu0 0
        %9985 = vmatpush.bf16.msra.mxu0 %v9424
        %9986 = vmatpush.bf16.msra.mxu0 %v9420
        %9987 = vmatmul.bf16.gmra.mxu0 %v9626
        %v9988 = vpop.f32.mrf.mxu0
        %v9989 = vadd.f32 %v9976, %v9988
        %v9990 = vpop.f32.mrf.mxu0
        %9991 = vdwg.mxu0
        %vm9992 = vcmp.gt.f32.partialorder %v9716, 0.0
        %vm9993 = vcmp.gt.f32.partialorder %v9807, 0.0
        %vm9994 = vcmp.gt.f32.partialorder %v9898, 0.0
        %vm9995 = vcmp.gt.f32.partialorder %v9989, 0.0
        %v9996 = vmul.f32 %v9716, 0.01
        %v9997 = vmul.f32 %v9807, 0.01
        %v9998 = vmul.f32 %v9898, 0.01
        %v9999 = vmul.f32 %v9989, 0.01
        %v10000 = vsel %vm9992, %v9716, %v9996
        %v10001 = vsel %vm9993, %v9807, %v9997
        %v10002 = vsel %vm9994, %v9898, %v9998
        %v10003 = vsel %vm9995, %v9989, %v9999
        %v10004 = vpack.c.bf16 %v10000, %v10000
        %v10005 = vpack.c.bf16 %v10001, %v10001
        %v10006 = vpack.c.bf16 %v10002, %v10002
        %v10007 = vpack.c.bf16 %v10003, %v10003
        %v10008 = vld [vmem:[#allocation8] sm:$0xff]
        %v10009 = vld [vmem:[#allocation8 + $0x8] sm:$0xff]
        %v10010 = vld [vmem:[#allocation8 + $0x10] sm:$0xff]
        %v10011 = vld [vmem:[#allocation8 + $0x18] sm:$0xff]
        %v10012 = vld [vmem:[#allocation8 + $0x20] sm:$0xff]
        %v10013 = vld [vmem:[#allocation8 + $0x28] sm:$0xff]
        %v10014 = vld [vmem:[#allocation8 + $0x30] sm:$0xff]
        %v10015 = vld [vmem:[#allocation8 + $0x38] sm:$0xff]
        %v10016 = vld [vmem:[#allocation8 + $0x40] sm:$0xff]
        %v10017 = vld [vmem:[#allocation8 + $0x48] sm:$0xff]
        %v10018 = vld [vmem:[#allocation8 + $0x50] sm:$0xff]
        %v10019 = vld [vmem:[#allocation8 + $0x58] sm:$0xff]
        %v10020 = vld [vmem:[#allocation8 + $0x60] sm:$0xff]
        %v10021 = vld [vmem:[#allocation8 + $0x68] sm:$0xff]
        %v10022 = vld [vmem:[#allocation8 + $0x70] sm:$0xff]
        %v10023 = vld [vmem:[#allocation8 + $0x78] sm:$0xff]
        %v10024 = vld [vmem:[#allocation8 + $0x80] sm:$0xff]
        %v10025 = vld [vmem:[#allocation8 + $0x88] sm:$0xff]
        %v10026 = vld [vmem:[#allocation8 + $0x90] sm:$0xff]
        %v10027 = vld [vmem:[#allocation8 + $0x98] sm:$0xff]
        %v10028 = vld [vmem:[#allocation8 + $0xa0] sm:$0xff]
        %v10029 = vld [vmem:[#allocation8 + $0xa8] sm:$0xff]
        %v10030 = vld [vmem:[#allocation8 + $0xb0] sm:$0xff]
        %v10031 = vld [vmem:[#allocation8 + $0xb8] sm:$0xff]
        %v10032 = vld [vmem:[#allocation8 + $0xc0] sm:$0xff]
        %v10033 = vld [vmem:[#allocation8 + $0xc8] sm:$0xff]
        %v10034 = vld [vmem:[#allocation8 + $0xd0] sm:$0xff]
        %v10035 = vld [vmem:[#allocation8 + $0xd8] sm:$0xff]
        %v10036 = vld [vmem:[#allocation8 + $0xe0] sm:$0xff]
        %v10037 = vld [vmem:[#allocation8 + $0xe8] sm:$0xff]
        %v10038 = vld [vmem:[#allocation8 + $0xf0] sm:$0xff]
        %v10039 = vld [vmem:[#allocation8 + $0xf8] sm:$0xff]
        %v10040 = vld [vmem:[#allocation8 + $0x100] sm:$0xff]
        %v10041 = vld [vmem:[#allocation8 + $0x108] sm:$0xff]
        %v10042 = vld [vmem:[#allocation8 + $0x110] sm:$0xff]
        %v10043 = vld [vmem:[#allocation8 + $0x118] sm:$0xff]
        %v10044 = vld [vmem:[#allocation8 + $0x120] sm:$0xff]
        %v10045 = vld [vmem:[#allocation8 + $0x128] sm:$0xff]
        %v10046 = vld [vmem:[#allocation8 + $0x130] sm:$0xff]
        %v10047 = vld [vmem:[#allocation8 + $0x138] sm:$0xff]
        %v10048 = vld [vmem:[#allocation8 + $0x140] sm:$0xff]
        %v10049 = vld [vmem:[#allocation8 + $0x148] sm:$0xff]
        %v10050 = vld [vmem:[#allocation8 + $0x150] sm:$0xff]
        %v10051 = vld [vmem:[#allocation8 + $0x158] sm:$0xff]
        %v10052 = vld [vmem:[#allocation8 + $0x160] sm:$0xff]
        %v10053 = vld [vmem:[#allocation8 + $0x168] sm:$0xff]
        %v10054 = vld [vmem:[#allocation8 + $0x170] sm:$0xff]
        %v10055 = vld [vmem:[#allocation8 + $0x178] sm:$0xff]
        %v10056 = vld [vmem:[#allocation8 + $0x180] sm:$0xff]
        %v10057 = vld [vmem:[#allocation8 + $0x188] sm:$0xff]
        %v10058 = vld [vmem:[%s14] sm:$0x3]
        %v10060 = vperm.slane %v10058, 0
        %v10061 = vperm.slane %v10058, 1
        %v10114 = vunpack.c.l.b16 %v10008
        %v10115 = vunpack.c.h.b16 %v10008
        %v10116 = vunpack.c.l.b16 %v10009
        %v10117 = vunpack.c.h.b16 %v10009
        %v10118 = vunpack.c.l.b16 %v10010
        %v10119 = vunpack.c.h.b16 %v10010
        %v10120 = vunpack.c.l.b16 %v10011
        %v10121 = vunpack.c.h.b16 %v10011
        %v10122 = vunpack.c.l.b16 %v10012
        %v10123 = vunpack.c.h.b16 %v10012
        %v10124 = vunpack.c.l.b16 %v10013
        %v10125 = vunpack.c.h.b16 %v10013
        %v10126 = vunpack.c.l.b16 %v10014
        %v10127 = vunpack.c.h.b16 %v10014
        %v10128 = vunpack.c.l.b16 %v10015
        %v10129 = vunpack.c.h.b16 %v10015
        %v10130 = vunpack.c.l.b16 %v10016
        %v10131 = vunpack.c.h.b16 %v10016
        %v10132 = vunpack.c.l.b16 %v10017
        %v10133 = vunpack.c.h.b16 %v10017
        %v10134 = vunpack.c.l.b16 %v10018
        %v10135 = vunpack.c.h.b16 %v10018
        %v10136 = vunpack.c.l.b16 %v10019
        %v10137 = vunpack.c.h.b16 %v10019
        %v10138 = vunpack.c.l.b16 %v10020
        %v10139 = vunpack.c.h.b16 %v10020
        %v10140 = vunpack.c.l.b16 %v10021
        %v10141 = vunpack.c.h.b16 %v10021
        %v10142 = vunpack.c.l.b16 %v10022
        %v10143 = vunpack.c.h.b16 %v10022
        %v10144 = vunpack.c.l.b16 %v10023
        %v10145 = vunpack.c.h.b16 %v10023
        %v10146 = vunpack.c.l.b16 %v10024
        %v10147 = vunpack.c.h.b16 %v10024
        %v10148 = vunpack.c.l.b16 %v10025
        %v10149 = vunpack.c.h.b16 %v10025
        %v10150 = vunpack.c.l.b16 %v10026
        %v10151 = vunpack.c.h.b16 %v10026
        %v10152 = vunpack.c.l.b16 %v10027
        %v10153 = vunpack.c.h.b16 %v10027
        %v10154 = vunpack.c.l.b16 %v10028
        %v10155 = vunpack.c.h.b16 %v10028
        %v10156 = vunpack.c.l.b16 %v10029
        %v10157 = vunpack.c.h.b16 %v10029
        %v10158 = vunpack.c.l.b16 %v10030
        %v10159 = vunpack.c.h.b16 %v10030
        %v10160 = vunpack.c.l.b16 %v10031
        %v10161 = vunpack.c.h.b16 %v10031
        %v10162 = vunpack.c.l.b16 %v10032
        %v10163 = vunpack.c.h.b16 %v10032
        %v10164 = vunpack.c.l.b16 %v10033
        %v10165 = vunpack.c.h.b16 %v10033
        %v10166 = vunpack.c.l.b16 %v10034
        %v10167 = vunpack.c.h.b16 %v10034
        %v10168 = vunpack.c.l.b16 %v10035
        %v10169 = vunpack.c.h.b16 %v10035
        %v10170 = vunpack.c.l.b16 %v10036
        %v10171 = vunpack.c.h.b16 %v10036
        %v10172 = vunpack.c.l.b16 %v10037
        %v10173 = vunpack.c.h.b16 %v10037
        %v10174 = vunpack.c.l.b16 %v10038
        %v10175 = vunpack.c.h.b16 %v10038
        %v10176 = vunpack.c.l.b16 %v10039
        %v10177 = vunpack.c.h.b16 %v10039
        %v10178 = vunpack.c.l.b16 %v10040
        %v10179 = vunpack.c.h.b16 %v10040
        %v10180 = vunpack.c.l.b16 %v10041
        %v10181 = vunpack.c.h.b16 %v10041
        %v10182 = vunpack.c.l.b16 %v10042
        %v10183 = vunpack.c.h.b16 %v10042
        %v10184 = vunpack.c.l.b16 %v10043
        %v10185 = vunpack.c.h.b16 %v10043
        %v10186 = vunpack.c.l.b16 %v10044
        %v10187 = vunpack.c.h.b16 %v10044
        %v10188 = vunpack.c.l.b16 %v10045
        %v10189 = vunpack.c.h.b16 %v10045
        %v10190 = vunpack.c.l.b16 %v10046
        %v10191 = vunpack.c.h.b16 %v10046
        %v10192 = vunpack.c.l.b16 %v10047
        %v10193 = vunpack.c.h.b16 %v10047
        %v10194 = vunpack.c.l.b16 %v10048
        %v10195 = vunpack.c.h.b16 %v10048
        %v10196 = vunpack.c.l.b16 %v10049
        %v10197 = vunpack.c.h.b16 %v10049
        %v10198 = vunpack.c.l.b16 %v10050
        %v10199 = vunpack.c.h.b16 %v10050
        %v10200 = vunpack.c.l.b16 %v10051
        %v10201 = vunpack.c.h.b16 %v10051
        %v10202 = vunpack.c.l.b16 %v10052
        %v10203 = vunpack.c.h.b16 %v10052
        %v10204 = vunpack.c.l.b16 %v10053
        %v10205 = vunpack.c.h.b16 %v10053
        %v10206 = vunpack.c.l.b16 %v10054
        %v10207 = vunpack.c.h.b16 %v10054
        %v10208 = vunpack.c.l.b16 %v10055
        %v10209 = vunpack.c.h.b16 %v10055
        %v10210 = vunpack.c.l.b16 %v10056
        %v10211 = vunpack.c.h.b16 %v10056
        %v10212 = vunpack.c.l.b16 %v10057
        %v10213 = vunpack.c.h.b16 %v10057
        %v10214 = vpack.c.b16 %v10116, %v10114
        %v10215 = vpack.c.b16 %v10117, %v10115
        %v10216 = vpack.c.b16 %v10120, %v10118
        %v10217 = vpack.c.b16 %v10121, %v10119
        %v10218 = vpack.c.b16 %v10124, %v10122
        %v10219 = vpack.c.b16 %v10125, %v10123
        %v10220 = vpack.c.b16 %v10128, %v10126
        %v10221 = vpack.c.b16 %v10129, %v10127
        %v10222 = vpack.c.b16 %v10132, %v10130
        %v10223 = vpack.c.b16 %v10133, %v10131
        %v10224 = vpack.c.b16 %v10136, %v10134
        %v10225 = vpack.c.b16 %v10137, %v10135
        %v10226 = vpack.c.b16 %v10140, %v10138
        %v10227 = vpack.c.b16 %v10141, %v10139
        %v10228 = vpack.c.b16 %v10144, %v10142
        %v10229 = vpack.c.b16 %v10145, %v10143
        %v10230 = vpack.c.b16 %v10148, %v10146
        %v10231 = vpack.c.b16 %v10149, %v10147
        %v10232 = vpack.c.b16 %v10152, %v10150
        %v10233 = vpack.c.b16 %v10153, %v10151
        %v10234 = vpack.c.b16 %v10156, %v10154
        %v10235 = vpack.c.b16 %v10157, %v10155
        %v10236 = vpack.c.b16 %v10160, %v10158
        %v10237 = vpack.c.b16 %v10161, %v10159
        %v10238 = vpack.c.b16 %v10164, %v10162
        %v10239 = vpack.c.b16 %v10165, %v10163
        %v10240 = vpack.c.b16 %v10168, %v10166
        %v10241 = vpack.c.b16 %v10169, %v10167
        %v10242 = vpack.c.b16 %v10172, %v10170
        %v10243 = vpack.c.b16 %v10173, %v10171
        %v10244 = vpack.c.b16 %v10176, %v10174
        %v10245 = vpack.c.b16 %v10177, %v10175
        %v10246 = vpack.c.b16 %v10180, %v10178
        %v10247 = vpack.c.b16 %v10181, %v10179
        %v10248 = vpack.c.b16 %v10184, %v10182
        %v10249 = vpack.c.b16 %v10185, %v10183
        %v10250 = vpack.c.b16 %v10188, %v10186
        %v10251 = vpack.c.b16 %v10189, %v10187
        %v10252 = vpack.c.b16 %v10192, %v10190
        %v10253 = vpack.c.b16 %v10193, %v10191
        %v10254 = vpack.c.b16 %v10196, %v10194
        %v10255 = vpack.c.b16 %v10197, %v10195
        %v10256 = vpack.c.b16 %v10200, %v10198
        %v10257 = vpack.c.b16 %v10201, %v10199
        %v10258 = vpack.c.b16 %v10204, %v10202
        %v10259 = vpack.c.b16 %v10205, %v10203
        %v10260 = vpack.c.b16 %v10208, %v10206
        %v10261 = vpack.c.b16 %v10209, %v10207
        %v10262 = vpack.c.b16 %v10212, %v10210
        %v10263 = vpack.c.b16 %v10213, %v10211
        %v10315 = vsel %vm2250, %v10007, 0
        %10317 = vmatpush.bf16.msra.mxu0 %v10228
        %10318 = vmatpush.bf16.msra.mxu0 %v10226
        %10319 = vmatpush.bf16.msra.mxu0 %v10224
        %10320 = vmatpush.bf16.msra.mxu0 %v10222
        %10321 = vmatpush.bf16.msra.mxu0 %v10220
        %10322 = vmatpush.bf16.msra.mxu0 %v10218
        %10323 = vmatpush.bf16.msra.mxu0 %v10216
        %10324 = vmatpush.bf16.msra.mxu0 %v10214
        %10325 = vmatmul.bf16.gmra.mxu0 %v10004
        %v10326 = vpop.f32.mrf.mxu0
        %v10327 = vadd.f32 %v10060, %v10326
        %v10328 = vpop.f32.mrf.mxu0
        %10329 = vdwg.mxu0
        %10330 = vmatpush.bf16.msra.mxu0 %v10244
        %10331 = vmatpush.bf16.msra.mxu0 %v10242
        %10332 = vmatpush.bf16.msra.mxu0 %v10240
        %10333 = vmatpush.bf16.msra.mxu0 %v10238
        %10334 = vmatpush.bf16.msra.mxu0 %v10236
        %10335 = vmatpush.bf16.msra.mxu0 %v10234
        %10336 = vmatpush.bf16.msra.mxu0 %v10232
        %10337 = vmatpush.bf16.msra.mxu0 %v10230
        %10338 = vmatmul.bf16.gmra.mxu0 %v10005
        %v10339 = vpop.f32.mrf.mxu0
        %v10340 = vadd.f32 %v10327, %v10339
        %v10341 = vpop.f32.mrf.mxu0
        %10342 = vdwg.mxu0
        %10343 = vmatpush.bf16.msra.mxu0 %v10260
        %10344 = vmatpush.bf16.msra.mxu0 %v10258
        %10345 = vmatpush.bf16.msra.mxu0 %v10256
        %10346 = vmatpush.bf16.msra.mxu0 %v10254
        %10347 = vmatpush.bf16.msra.mxu0 %v10252
        %10348 = vmatpush.bf16.msra.mxu0 %v10250
        %10349 = vmatpush.bf16.msra.mxu0 %v10248
        %10350 = vmatpush.bf16.msra.mxu0 %v10246
        %10351 = vmatmul.bf16.gmra.mxu0 %v10006
        %v10352 = vpop.f32.mrf.mxu0
        %v10353 = vadd.f32 %v10340, %v10352
        %v10354 = vpop.f32.mrf.mxu0
        %10355 = vdwg.mxu0
        %10356 = vmatpush.bf16.msra.mxu0 0
        %10357 = vmatpush.bf16.msra.mxu0 0
        %10358 = vmatpush.bf16.msra.mxu0 0
        %10359 = vmatpush.bf16.msra.mxu0 0
        %10360 = vmatpush.bf16.msra.mxu0 0
        %10361 = vmatpush.bf16.msra.mxu0 0
        %10362 = vmatpush.bf16.msra.mxu0 0
        %10363 = vmatpush.bf16.msra.mxu0 %v10262
        %10364 = vmatmul.bf16.gmra.mxu0 %v10315
        %v10365 = vpop.f32.mrf.mxu0
        %v10366 = vadd.f32 %v10353, %v10365
        %v10367 = vpop.f32.mrf.mxu0
        %10368 = vdwg.mxu0
        %10369 = vmatpush.bf16.msra.mxu0 %v10229
        %10370 = vmatpush.bf16.msra.mxu0 %v10227
        %10371 = vmatpush.bf16.msra.mxu0 %v10225
        %10372 = vmatpush.bf16.msra.mxu0 %v10223
        %10373 = vmatpush.bf16.msra.mxu0 %v10221
        %10374 = vmatpush.bf16.msra.mxu0 %v10219
        %10375 = vmatpush.bf16.msra.mxu0 %v10217
        %10376 = vmatpush.bf16.msra.mxu0 %v10215
        %10377 = vmatmul.bf16.gmra.mxu0 %v10004
        %v10378 = vpop.f32.mrf.mxu0
        %v10379 = vadd.f32 %v10061, %v10378
        %v10380 = vpop.f32.mrf.mxu0
        %10381 = vdwg.mxu0
        %10382 = vmatpush.bf16.msra.mxu0 %v10245
        %10383 = vmatpush.bf16.msra.mxu0 %v10243
        %10384 = vmatpush.bf16.msra.mxu0 %v10241
        %10385 = vmatpush.bf16.msra.mxu0 %v10239
        %10386 = vmatpush.bf16.msra.mxu0 %v10237
        %10387 = vmatpush.bf16.msra.mxu0 %v10235
        %10388 = vmatpush.bf16.msra.mxu0 %v10233
        %10389 = vmatpush.bf16.msra.mxu0 %v10231
        %10390 = vmatmul.bf16.gmra.mxu0 %v10005
        %v10391 = vpop.f32.mrf.mxu0
        %v10392 = vadd.f32 %v10379, %v10391
        %v10393 = vpop.f32.mrf.mxu0
        %10394 = vdwg.mxu0
        %10395 = vmatpush.bf16.msra.mxu0 %v10261
        %10396 = vmatpush.bf16.msra.mxu0 %v10259
        %10397 = vmatpush.bf16.msra.mxu0 %v10257
        %10398 = vmatpush.bf16.msra.mxu0 %v10255
        %10399 = vmatpush.bf16.msra.mxu0 %v10253
        %10400 = vmatpush.bf16.msra.mxu0 %v10251
        %10401 = vmatpush.bf16.msra.mxu0 %v10249
        %10402 = vmatpush.bf16.msra.mxu0 %v10247
        %10403 = vmatmul.bf16.gmra.mxu0 %v10006
        %v10404 = vpop.f32.mrf.mxu0
        %v10405 = vadd.f32 %v10392, %v10404
        %v10406 = vpop.f32.mrf.mxu0
        %10407 = vdwg.mxu0
        %10408 = vmatpush.bf16.msra.mxu0 0
        %10409 = vmatpush.bf16.msra.mxu0 0
        %10410 = vmatpush.bf16.msra.mxu0 0
        %10411 = vmatpush.bf16.msra.mxu0 0
        %10412 = vmatpush.bf16.msra.mxu0 0
        %10413 = vmatpush.bf16.msra.mxu0 0
        %10414 = vmatpush.bf16.msra.mxu0 0
        %10415 = vmatpush.bf16.msra.mxu0 %v10263
        %10416 = vmatmul.bf16.gmra.mxu0 %v10315
        %v10417 = vpop.f32.mrf.mxu0
        %v10418 = vadd.f32 %v10405, %v10417
        %v10419 = vpop.f32.mrf.mxu0
        %10420 = vdwg.mxu0
        %vm10421 = vcmp.gt.f32.partialorder %v10366, 0.0
        %vm10422 = vcmp.gt.f32.partialorder %v10418, 0.0
        %v10423 = vmul.f32 %v10366, 0.01
        %v10424 = vmul.f32 %v10418, 0.01
        %v10425 = vsel %vm10421, %v10366, %v10423
        %v10426 = vsel %vm10422, %v10418, %v10424
        %v10427 = vpack.c.bf16 %v10425, %v10425
        %v10428 = vpack.c.bf16 %v10426, %v10426
        %v10429 = vld [vmem:[%s15] sm:$0xf]
        %v10430 = vld [vmem:[%s15 + $0x4] sm:$0xf]
        %v10431 = vld [vmem:[%s15 + $0x8] sm:$0xf]
        %v10432 = vld [vmem:[%s15 + $0xc] sm:$0xf]
        %v10433 = vld [vmem:[%s15 + $0x10] sm:$0xf]
        %v10434 = vld [vmem:[%s15 + $0x14] sm:$0xf]
        %v10435 = vld [vmem:[%s15 + $0x18] sm:$0xf]
        %v10436 = vld [vmem:[%s15 + $0x1c] sm:$0xf]
        %v10437 = vld [vmem:[%s15 + $0x20] sm:$0xf]
        %v10438 = vld [vmem:[%s15 + $0x24] sm:$0xf]
        %v10439 = vld [vmem:[%s15 + $0x28] sm:$0xf]
        %v10440 = vld [vmem:[%s15 + $0x2c] sm:$0xf]
        %v10441 = vld [vmem:[%s15 + $0x30] sm:$0xf]
        %v10442 = vld [vmem:[%s15 + $0x34] sm:$0xf]
        %v10443 = vld [vmem:[%s15 + $0x38] sm:$0xf]
        %v10444 = vld [vmem:[%s15 + $0x3c] sm:$0xf]
        %v10445 = vld [vmem:[%s15 + $0x40] sm:$0xf]
        %v10446 = vld [vmem:[%s15 + $0x44] sm:$0xf]
        %v10447 = vld [vmem:[%s15 + $0x48] sm:$0xf]
        %v10448 = vld [vmem:[%s15 + $0x4c] sm:$0xf]
        %v10449 = vld [vmem:[%s15 + $0x50] sm:$0xf]
        %v10450 = vld [vmem:[%s15 + $0x54] sm:$0xf]
        %v10451 = vld [vmem:[%s15 + $0x58] sm:$0xf]
        %v10452 = vld [vmem:[%s15 + $0x5c] sm:$0xf]
        %v10453 = vld [vmem:[%s15 + $0x60] sm:$0xf]
        %v10454 = vld [vmem:[%s16] sm:$0x1]
        %v10456 = vperm.slane %v10454, 0
        %v10483 = vunpack.c.l.b16 %v10429
        %v10484 = vunpack.c.l.b16 %v10430
        %v10485 = vunpack.c.l.b16 %v10431
        %v10486 = vunpack.c.l.b16 %v10432
        %v10487 = vunpack.c.l.b16 %v10433
        %v10488 = vunpack.c.l.b16 %v10434
        %v10489 = vunpack.c.l.b16 %v10435
        %v10490 = vunpack.c.l.b16 %v10436
        %v10491 = vunpack.c.l.b16 %v10437
        %v10492 = vunpack.c.l.b16 %v10438
        %v10493 = vunpack.c.l.b16 %v10439
        %v10494 = vunpack.c.l.b16 %v10440
        %v10495 = vunpack.c.l.b16 %v10441
        %v10496 = vunpack.c.l.b16 %v10442
        %v10497 = vunpack.c.l.b16 %v10443
        %v10498 = vunpack.c.l.b16 %v10444
        %v10499 = vunpack.c.l.b16 %v10445
        %v10500 = vunpack.c.l.b16 %v10446
        %v10501 = vunpack.c.l.b16 %v10447
        %v10502 = vunpack.c.l.b16 %v10448
        %v10503 = vunpack.c.l.b16 %v10449
        %v10504 = vunpack.c.l.b16 %v10450
        %v10505 = vunpack.c.l.b16 %v10451
        %v10506 = vunpack.c.l.b16 %v10452
        %v10507 = vunpack.c.l.b16 %v10453
        %v10508 = vpack.c.b16 %v10484, %v10483
        %v10509 = vpack.c.b16 %v10486, %v10485
        %v10510 = vpack.c.b16 %v10488, %v10487
        %v10511 = vpack.c.b16 %v10490, %v10489
        %v10512 = vpack.c.b16 %v10492, %v10491
        %v10513 = vpack.c.b16 %v10494, %v10493
        %v10514 = vpack.c.b16 %v10496, %v10495
        %v10515 = vpack.c.b16 %v10498, %v10497
        %v10516 = vpack.c.b16 %v10500, %v10499
        %v10517 = vpack.c.b16 %v10502, %v10501
        %v10518 = vpack.c.b16 %v10504, %v10503
        %v10519 = vpack.c.b16 %v10506, %v10505
        %v10520 = vpack.c.b16 %v10507, %v10507
        %v10534 = vsel %vm997, %v10428, 0
        %v10537 = vsel %vm1001, %v10520, 0
        %10539 = vmatpush.bf16.msra.mxu0 %v10515
        %10540 = vmatpush.bf16.msra.mxu0 %v10514
        %10541 = vmatpush.bf16.msra.mxu0 %v10513
        %10542 = vmatpush.bf16.msra.mxu0 %v10512
        %10543 = vmatpush.bf16.msra.mxu0 %v10511
        %10544 = vmatpush.bf16.msra.mxu0 %v10510
        %10545 = vmatpush.bf16.msra.mxu0 %v10509
        %10546 = vmatpush.bf16.msra.mxu0 %v10508
        %10547 = vmatmul.bf16.gmra.mxu0 %v10427
        %v10548 = vpop.f32.mrf.mxu0
        %v10549 = vadd.f32 %v10456, %v10548
        %v10550 = vpop.f32.mrf.mxu0
        %10551 = vdwg.mxu0
        %10552 = vmatpush.bf16.msra.mxu0 0
        %10553 = vmatpush.bf16.msra.mxu0 0
        %10554 = vmatpush.bf16.msra.mxu0 0
        %10555 = vmatpush.bf16.msra.mxu0 %v10537
        %10556 = vmatpush.bf16.msra.mxu0 %v10519
        %10557 = vmatpush.bf16.msra.mxu0 %v10518
        %10558 = vmatpush.bf16.msra.mxu0 %v10517
        %10559 = vmatpush.bf16.msra.mxu0 %v10516
        %10560 = vmatmul.bf16.gmra.mxu0 %v10534
        %v10561 = vpop.f32.mrf.mxu0
        %v10562 = vadd.f32 %v10549, %v10561
        %v10563 = vpop.f32.mrf.mxu0
        %10564 = vdwg.mxu0
        %v10565 = vlaneseq
        %v10566 = vand.u32 %v10565, 127
        %vm10567 = vcmp.ge.s32.totalorder %v10566, 6
        %v10568 = vmax.f32 %v10562, 0.0
        %v10569 = vsel %vm10567, %v10568, %v10562
        %10570 = vst [vmem:[%s606] sm:$0xff] %v10569
        %s10571 = sand.u32 %s404, 1
        %s10572 = scalar_lea.sflag [#allocation4], %s10571
        %s10573 = sand.u32 %s404, 1
        %s10574 = smul.addr %s10573, 8
        %s10575 = scalar_lea.vmem [#allocation10], %s10574
        // Predicated region
        $region105: #{tpu_custom_call.1} parent=87 // pred_check
          %p10576 = pneg %p414
        $region106: #{tpu_custom_call.1} parent=87 // pred_check_branch
          %10578 = sbr.rel (%p10576) target = $region108
        $region107: #{tpu_custom_call.1} parent=87 // pred_region
          %10580 = vsyncadd %s10572, 0
          %s10581 = smul.addr %s34, 8
          %s10582 = scalar_lea.hbm %s17, %s10581
          %s10584 = sshll.u32 %s10575, 4
          %s10585 = int_to_ptr.vmem [resolvable:$true] %s10584
          %s10586 = sshll.u32 %s10582, 4
          %s10587 = int_to_ptr.hbm [resolvable:$true] %s10586
          %10589 = dma.vmem_to_hbm [thread:$0]  %s10585, 128, %s10587, %s10572
        $region108: #{tpu_custom_call.1} parent=87 // pred_fallthru
          _
      $region88: #{tpu_custom_call.1} parent=5 // pred_fallthru
        _
      %p10590 = scmp.le.s32.totalorder 2, %s29
      // Predicated region
      $region109: #{tpu_custom_call.1} parent=5 // pred_check
        %p10591 = pneg %p10590
      $region110: #{tpu_custom_call.1} parent=5 // pred_check_branch
        %10593 = sbr.rel (%p10591) target = $region112
      $region111: #{tpu_custom_call.1} parent=5 // pred_region
        %s10594 = ssub.s32 %s29, 2
        // Predicated region
        $region113: #{tpu_custom_call.1} parent=111 // pred_check
          %p10595 = pneg %p420
        $region114: #{tpu_custom_call.1} parent=111 // pred_check_branch
          %10597 = sbr.rel (%p10595) target = $region116
        $region115: #{tpu_custom_call.1} parent=111 // pred_region
          %s10598 = sand.u32 %s405, 1
          %s10599 = scalar_lea.sflag [#allocation4], %s10598
          %s10600 = sand.u32 %s405, 1
          %s10601 = smul.addr %s10600, 8
          %s10602 = scalar_lea.vmem [#allocation10], %s10601
          %10604 = dma.done %s10599, 128
        $region116: #{tpu_custom_call.1} parent=111 // pred_fallthru
          _
      $region112: #{tpu_custom_call.1} parent=5 // pred_fallthru
        _
    $region6: #{tpu_custom_call.1} parent=1 // loop_footer
      %s33 = sadd.s32 1, %s29
    $region7: #{tpu_custom_call.1} parent=1 // loop_footer_branch
      %28 = sbr.rel target = $region3
    $region8: #{tpu_custom_call.1} parent=1 // loop_exit
      _
    %10605 = vsyncpa [#allocation3], 1
    %s10606 = scalar_lea.sflag [#allocation3], 1
    %10607 = vsyncpa %s10606, 1
    %10608 = vsyncpa [#allocation6], 1
    %10609 = vsyncpa [#allocation9], 1
    %10610 = vsyncpa [#allocation4], 1
    %s10611 = scalar_lea.sflag [#allocation4], 1
    %10612 = vsyncpa %s10611, 1

</llo_original>
